<compile_context>
chip_gen: v7x
topology: tpu7x:2x2x1
jax: 0.10.0
libtpu: 0.0.40
codegen_flags: <defaults>
</compile_context>

<pallas_src>
import functools

import jax
import jax.numpy as jnp
from jax import lax
from jax.experimental import pallas as pl
from jax.experimental.pallas import tpu as pltpu

BN_EPS = 1e-5


# ------------------------------ small helpers ------------------------------ #

def _swish(x):
    return x * jax.nn.sigmoid(x)


@functools.lru_cache(maxsize=1)
def _vmem_limit_bytes():
    """Generation-aware scoped-VMEM budget: ~48 MiB on v7x, 96 MiB on v5e/v6e."""
    cap = 128 * 1024 * 1024
    try:
        cap = int(pltpu.get_tpu_info().vmem_capacity_bytes)
    except Exception:
        pass
    return int(min(96 * 1024 * 1024, max(32 * 1024 * 1024, (cap * 3) // 4)))


def _default_tile_target():
    # Bigger streaming tiles where VMEM allows it (v5e/v6e); 512 rows on v7x.
    return 1024 if _vmem_limit_bytes() >= 80 * 1024 * 1024 else 512


def _compiler_params(n_axes):
    return pltpu.CompilerParams(
        dimension_semantics=("parallel",) * n_axes,
        vmem_limit_bytes=_vmem_limit_bytes(),
    )


def _pick_tile_m(m, target):
    """Largest multiple-of-16 (fallback 8) divisor of m not exceeding target."""
    for step in (16, 8):
        best = None
        t = step
        while t <= min(m, target):
            if m % t == 0:
                best = t
            t += step
        if best is not None:
            return best
    return m  # TODO(synk): pl.cdiv grid + tail masking instead of exact divisors.


def _stats_from_parts(sum_parts, sq_parts, count):
    """Reduce per-tile partial (sum, sum-of-squares) -> (mean, rstd), each (1, C)."""
    axes = tuple(range(sum_parts.ndim - 1))
    s = jnp.sum(sum_parts, axis=axes)
    q = jnp.sum(sq_parts, axis=axes)
    mean = s / count
    var = jnp.maximum(q / count - mean * mean, 0.0)
    rstd = lax.rsqrt(var + BN_EPS)
    return mean.reshape(1, -1), rstd.reshape(1, -1)


# ----------------------------- Pallas kernels ------------------------------ #

def _conv1_skip_kernel(x_ref, w1_ref, ws_ref,
                       z1_ref, s1_ref, q1_ref, zs_ref, ss_ref, qs_ref):
    """Fused 1x1 main conv + 1x1 skip conv on one M tile (bf16 MXU, f32 acc).

    Emits per-tile BN partial sums so batch statistics stay exact under tiling;
    activations are written back as bf16 (consumers cast to bf16 anyway).
    """
    x = x_ref[...]                                                 # (TM, Cin) bf16
    z1 = jnp.dot(x, w1_ref[...], preferred_element_type=jnp.float32)
    z1_ref[...] = z1.astype(z1_ref.dtype)
    s1_ref[0] = jnp.sum(z1, axis=0, keepdims=True)
    q1_ref[0] = jnp.sum(z1 * z1, axis=0, keepdims=True)

    zs = jnp.dot(x, ws_ref[...], preferred_element_type=jnp.float32)
    zs_ref[...] = zs.astype(zs_ref.dtype)
    ss_ref[0] = jnp.sum(zs, axis=0, keepdims=True)
    qs_ref[0] = jnp.sum(zs * zs, axis=0, keepdims=True)


def _conv1_kernel(x_ref, w1_ref, z1_ref, s1_ref, q1_ref):
    """1x1 conv on one M tile (identity-skip variant, no skip conv)."""
    x = x_ref[...]
    z1 = jnp.dot(x, w1_ref[...], preferred_element_type=jnp.float32)
    z1_ref[...] = z1.astype(z1_ref.dtype)
    s1_ref[0] = jnp.sum(z1, axis=0, keepdims=True)
    q1_ref[0] = jnp.sum(z1 * z1, axis=0, keepdims=True)


def _conv3x3_kernel(z1_ref, m1_ref, r1_ref, w2_ref, z2_ref, s2_ref, q2_ref,
                    ypad_ref, *, ho, wo):
    """3x3 conv for one full image per grid step.

    * BN1 + swish applied exactly once per element (in f32), cast to bf16.
    * Activated rows are scattered into a flat zero-padded VMEM scratch image
      (row-major (Hp, Wp)); the 1-pixel border stays literal zero, which is the
      exact padding of the activated map (swish(0) == 0 handled by padding the
      *activated* values).
    * Each of the 9 taps is a single contiguous (Ho*Wp, C) slab matmul with an
      "extended" output width Wp; the 2 garbage columns per row are dropped
      when compacting into z2.
    TODO(synk): fuse the three kx taps into one K=3C matmul and accumulate into
                a VMEM scratch / tile the output channels for production C.
    """
    hp, wp = ho + 2, wo + 2
    c = z2_ref.shape[1]
    m_ext = ho * wp

    # Zero the padded scratch every step (megacore-"parallel" safe).
    ypad_ref[...] = jnp.zeros_like(ypad_ref)

    z1 = z1_ref[...].astype(jnp.float32)                           # (Ho*Wo, C)
    y = _swish((z1 - m1_ref[...]) * r1_ref[...]).astype(jnp.bfloat16)

    # Scatter activated rows into the flat padded image.
    for h in range(ho):
        ypad_ref[pl.ds((h + 1) * wp + 1, wo), :] = y[h * wo:(h + 1) * wo, :]

    # 9 accumulated MXU matmuls over contiguous slabs of the padded image.
    acc = jnp.zeros((m_ext, c), jnp.float32)
    for ky in range(3):
        for kx in range(3):
            lhs = ypad_ref[pl.ds(ky * wp + kx, m_ext), :]          # (Ho*Wp, C) bf16
            rhs = w2_ref[pl.ds((ky * 3 + kx) * c, c), :]           # (C, C) bf16
            acc = acc + jnp.dot(lhs, rhs, preferred_element_type=jnp.float32)

    # Compact: drop the 2 garbage columns of every extended output row.
    for h in range(ho):
        z2_ref[pl.ds(h * wo, wo), :] = acc[h * wp:h * wp + wo, :].astype(z2_ref.dtype)

    # BN2 partial sums for this image (over exactly what the next stage reads).
    z2 = z2_ref[...].astype(jnp.float32)
    s2_ref[0] = jnp.sum(z2, axis=0, keepdims=True)
    q2_ref[0] = jnp.sum(z2 * z2, axis=0, keepdims=True)


def _conv3_kernel(z2_ref, m2_ref, r2_ref, w3_ref, z3_ref, s3_ref, q3_ref):
    """BN2 + swish fused into the 1x1 conv3 matmul on one M tile."""
    z2 = z2_ref[...].astype(jnp.float32)
    y2 = _swish((z2 - m2_ref[...]) * r2_ref[...]).astype(jnp.bfloat16)
    z3 = jnp.dot(y2, w3_ref[...], preferred_element_type=jnp.float32)
    z3_ref[...] = z3.astype(z3_ref.dtype)
    s3_ref[0] = jnp.sum(z3, axis=0, keepdims=True)
    q3_ref[0] = jnp.sum(z3 * z3, axis=0, keepdims=True)


def _epilogue_skip_kernel(z3_ref, m3_ref, r3_ref, zs_ref, ms_ref, rs_ref, o_ref):
    """BN3(z3) + BN_skip(zs) + swish, fused, one M tile."""
    y = (z3_ref[...].astype(jnp.float32) - m3_ref[...]) * r3_ref[...]
    s = (zs_ref[...].astype(jnp.float32) - ms_ref[...]) * rs_ref[...]
    o_ref[...] = _swish(y + s).astype(o_ref.dtype)


def _epilogue_identity_kernel(z3_ref, m3_ref, r3_ref, x_ref, o_ref):
    """BN3(z3) + identity skip + swish, fused, one M tile."""
    y = (z3_ref[...].astype(jnp.float32) - m3_ref[...]) * r3_ref[...]
    o_ref[...] = _swish(y + x_ref[...].astype(jnp.float32)).astype(o_ref.dtype)


# --------------------------- pallas_call wrappers --------------------------- #

def _run_conv1(x2d_bf16, w1, ws, tile_m):
    m, cin = x2d_bf16.shape
    c = w1.shape[1]
    assert m % tile_m == 0
    t = m // tile_m

    row_spec = lambda cols: pl.BlockSpec((tile_m, cols), lambda i: (i, 0))
    full_spec = lambda shape: pl.BlockSpec(tuple(shape), lambda i: (0,) * len(shape))
    part_spec = lambda cols: pl.BlockSpec((1, 1, cols), lambda i: (i, 0, 0))
    part_shape = lambda cols: jax.ShapeDtypeStruct((t, 1, cols), jnp.float32)

    if ws is not None:
        c4 = ws.shape[1]
        z1, s1, q1, zs, ss, qs = pl.pallas_call(
            _conv1_skip_kernel,
            grid=(t,),
            in_specs=[row_spec(cin), full_spec(w1.shape), full_spec(ws.shape)],
            out_specs=(row_spec(c), part_spec(c), part_spec(c),
                       row_spec(c4), part_spec(c4), part_spec(c4)),
            out_shape=(jax.ShapeDtypeStruct((m, c), jnp.bfloat16),
                       part_shape(c), part_shape(c),
                       jax.ShapeDtypeStruct((m, c4), jnp.bfloat16),
                       part_shape(c4), part_shape(c4)),
            compiler_params=_compiler_params(1),
        )(x2d_bf16, w1, ws)
        return z1, (s1, q1), zs, (ss, qs)

    z1, s1, q1 = pl.pallas_call(
        _conv1_kernel,
        grid=(t,),
        in_specs=[row_spec(cin), full_spec(w1.shape)],
        out_specs=(row_spec(c), part_spec(c), part_spec(c)),
        out_shape=(jax.ShapeDtypeStruct((m, c), jnp.bfloat16),
                   part_shape(c), part_shape(c)),
        compiler_params=_compiler_params(1),
    )(x2d_bf16, w1)
    return z1, (s1, q1), None, None


def _run_conv3x3(z1_2d, mean1, rstd1, w2f, n, ho, wo):
    c = w2f.shape[1]
    img_m = ho * wo
    hp, wp = ho + 2, wo + 2
    kernel = functools.partial(_conv3x3_kernel, ho=ho, wo=wo)
    return pl.pallas_call(
        kernel,
        grid=(n,),
        in_specs=[pl.BlockSpec((img_m, c), lambda i: (i, 0)),
                  pl.BlockSpec((1, c), lambda i: (0, 0)),
                  pl.BlockSpec((1, c), lambda i: (0, 0)),
                  pl.BlockSpec(tuple(w2f.shape), lambda i: (0, 0))],
        out_specs=(pl.BlockSpec((img_m, c), lambda i: (i, 0)),
                   pl.BlockSpec((1, 1, c), lambda i: (i, 0, 0)),
                   pl.BlockSpec((1, 1, c), lambda i: (i, 0, 0))),
        out_shape=(jax.ShapeDtypeStruct((n * img_m, c), jnp.bfloat16),
                   jax.ShapeDtypeStruct((n, 1, c), jnp.float32),
                   jax.ShapeDtypeStruct((n, 1, c), jnp.float32)),
        scratch_shapes=[pltpu.VMEM((hp * wp + 8, c), jnp.bfloat16)],
        compiler_params=_compiler_params(1),
    )(z1_2d, mean1, rstd1, w2f)


def _run_conv3(z2, mean2, rstd2, w3, tile_m):
    m, c = z2.shape
    c4 = w3.shape[1]
    assert m % tile_m == 0
    t = m // tile_m
    return pl.pallas_call(
        _conv3_kernel,
        grid=(t,),
        in_specs=[pl.BlockSpec((tile_m, c), lambda i: (i, 0)),
                  pl.BlockSpec((1, c), lambda i: (0, 0)),
                  pl.BlockSpec((1, c), lambda i: (0, 0)),
                  pl.BlockSpec((c, c4), lambda i: (0, 0))],
        out_specs=(pl.BlockSpec((tile_m, c4), lambda i: (i, 0)),
                   pl.BlockSpec((1, 1, c4), lambda i: (i, 0, 0)),
                   pl.BlockSpec((1, 1, c4), lambda i: (i, 0, 0))),
        out_shape=(jax.ShapeDtypeStruct((m, c4), jnp.bfloat16),
                   jax.ShapeDtypeStruct((t, 1, c4), jnp.float32),
                   jax.ShapeDtypeStruct((t, 1, c4), jnp.float32)),
        compiler_params=_compiler_params(1),
    )(z2, mean2, rstd2, w3)


def _run_epilogue(z3, mean3, rstd3, skip_pre, skip_stats, tile_m):
    m, c4 = z3.shape
    assert m % tile_m == 0
    t = m // tile_m
    row = pl.BlockSpec((tile_m, c4), lambda i: (i, 0))
    stat = pl.BlockSpec((1, c4), lambda i: (0, 0))

    if skip_stats is not None:
        means, rstds = skip_stats
        return pl.pallas_call(
            _epilogue_skip_kernel,
            grid=(t,),
            in_specs=[row, stat, stat, row, stat, stat],
            out_specs=row,
            out_shape=jax.ShapeDtypeStruct((m, c4), jnp.float32),
            compiler_params=_compiler_params(1),
        )(z3, mean3, rstd3, skip_pre, means, rstds)

    return pl.pallas_call(
        _epilogue_identity_kernel,
        grid=(t,),
        in_specs=[row, stat, stat, row],
        out_specs=row,
        out_shape=jax.ShapeDtypeStruct((m, c4), jnp.float32),
        compiler_params=_compiler_params(1),
    )(z3, mean3, rstd3, skip_pre)


# --------------------------- block forward (glue) --------------------------- #

def resnet_block_forward(x_nchw, params, *, downsample, has_skip_conv,
                         tile_m_target=None):
    """Pallas implementation of resnet_block.forward. Input/output are NCHW."""
    # TODO(synk): fold the NCHW<->NHWC transposes and the ::2 stride slice into
    #             Pallas index_maps instead of XLA copies.
    x = jnp.transpose(x_nchw, (0, 2, 3, 1)).astype(jnp.float32)     # -> NHWC
    x_main = x[:, ::2, ::2, :] if downsample else x                 # shared by conv1 & skip
    n, ho, wo, cin = x_main.shape
    m = n * ho * wo
    if tile_m_target is None:
        tile_m_target = _default_tile_target()
    tile_m = _pick_tile_m(m, tile_m_target)

    x2d = x_main.reshape(m, cin)
    x2d_bf16 = x2d.astype(jnp.bfloat16)

    w1, w2f, w3 = params["w1"], params["w2"], params["w3"]
    ws = params.get("ws") if has_skip_conv else None
    c4 = w3.shape[1]

    # Stage 1: fused conv1 (1x1) + skip conv (1x1); per-tile BN partials.
    z1, st1_parts, zs, sts_parts = _run_conv1(x2d_bf16, w1, ws, tile_m)
    mean1, rstd1 = _stats_from_parts(*st1_parts, m)

    # Stage 2: conv2 (3x3), BN1+swish + zero-padding fused in-kernel, one image
    # per grid step (no XLA halo copy, no redundant row DMA).
    z2, s2p, q2p = _run_conv3x3(z1, mean1, rstd1, w2f, n, ho, wo)
    mean2, rstd2 = _stats_from_parts(s2p, q2p, m)

    # Stage 3: conv3 (1x1) with BN2+swish fused.
    z3, s3p, q3p = _run_conv3(z2, mean2, rstd2, w3, tile_m)
    mean3, rstd3 = _stats_from_parts(s3p, q3p, m)

    # Stage 4: BN3 + (BN'd skip conv | identity skip) + final swish.
    if has_skip_conv:
        means, rstds = _stats_from_parts(*sts_parts, m)
        out2d = _run_epilogue(z3, mean3, rstd3, zs, (means, rstds), tile_m)
    else:
        out2d = _run_epilogue(z3, mean3, rstd3, x2d, None, tile_m)

    out = out2d.reshape(n, ho, wo, c4)
    return jnp.transpose(out, (0, 3, 1, 2))                         # -> NCHW


# ------------------------- parameter initialization ------------------------- #

def kaiming_normal(key, shape_oihw):
    cout, cin, kh, kw = shape_oihw
    fan_in = cin * kh * kw
    std = (2.0 / fan_in) ** 0.5
    return std * jax.random.normal(key, shape_oihw, dtype=jnp.float32)


def init_params(key, inp_channels, output_channels, downsample):
    c = output_channels
    keys = jax.random.split(key, 4)
    w1_t = kaiming_normal(keys[0], (c, inp_channels, 1, 1))
    w2_t = kaiming_normal(keys[1], (c, c, 3, 3))
    w3_t = kaiming_normal(keys[2], (4 * c, c, 1, 1))

    has_skip_conv = downsample or (inp_channels != 4 * c)
    ws_t = kaiming_normal(keys[3], (4 * c, inp_channels, 1, 1)) if has_skip_conv else None

    params = {
        # matmul-form bf16 weights:
        #   1x1 convs -> (Cin, Cout); 3x3 -> flat (9*Cin, Cout), rows ordered
        #   (ky, kx, cin) to match the in-kernel tap slices.
        "w1": jnp.transpose(w1_t[:, :, 0, 0], (1, 0)).astype(jnp.bfloat16),
        "w2": jnp.transpose(w2_t, (2, 3, 1, 0)).reshape(9 * c, c).astype(jnp.bfloat16),
        "w3": jnp.transpose(w3_t[:, :, 0, 0], (1, 0)).astype(jnp.bfloat16),
    }
    torch_form = {"w1_t": w1_t, "w2_t": w2_t, "w3_t": w3_t}
    if has_skip_conv:
        params["ws"] = jnp.transpose(ws_t[:, :, 0, 0], (1, 0)).astype(jnp.bfloat16)
        torch_form["ws_t"] = ws_t
    return params, torch_form, has_skip_conv


# --------------------------- pure-JAX reference ----------------------------- #

def reference_forward(x_nchw, torch_form, *, downsample, has_skip_conv):
    """Reference with the same conv precision policy (bf16 inputs, f32 accum)."""

    def conv(x, w, stride, pad):
        return lax.conv_general_dilated(
            x.astype(jnp.bfloat16), w.astype(jnp.bfloat16),
            (stride, stride), ((pad, pad), (pad, pad)),
            dimension_numbers=("NCHW", "OIHW", "NCHW"),
            preferred_element_type=jnp.float32,
        )

    def bn(z):
        mean = jnp.mean(z, axis=(0, 2, 3), keepdims=True)
        sq = jnp.mean(z * z, axis=(0, 2, 3), keepdims=True)
        var = jnp.maximum(sq - mean * mean, 0.0)
        return (z - mean) * lax.rsqrt(var + BN_EPS)

    s1 = 2 if downsample else 1
    y = _swish(bn(conv(x_nchw, torch_form["w1_t"], s1, 0)))
    y = _swish(bn(conv(y, torch_form["w2_t"], 1, 1)))
    y = bn(conv(y, torch_form["w3_t"], 1, 0))
    if has_skip_conv:
        skip = bn(conv(x_nchw, torch_form["ws_t"], s1, 0))
    else:
        skip = x_nchw
    return _swish(y + skip)


# ---------------------------------- main ------------------------------------ #

if __name__ == "__main__":
    key = jax.random.PRNGKey(0)
    k_x, k_p = jax.random.split(key)

    # Small shapes: batch=2, inp_channels=8, output_channels=4, spatial=16.
    N, CIN, H, W = 2, 8, 16, 16
    OUT_C = 4
    DOWNSAMPLE = False  # skip conv still present since CIN != 4*OUT_C

    x = jax.random.normal(k_x, (N, CIN, H, W), dtype=jnp.float32)
    params, torch_form, has_skip_conv = init_params(k_p, CIN, OUT_C, DOWNSAMPLE)

    fwd = jax.jit(functools.partial(
        resnet_block_forward, downsample=DOWNSAMPLE, has_skip_conv=has_skip_conv))
    out = jax.block_until_ready(fwd(x, params))

    ref = reference_forward(
        x, torch_form, downsample=DOWNSAMPLE, has_skip_conv=has_skip_conv)
    ref = jax.block_until_ready(ref)

    assert out.shape == (N, 4 * OUT_C, H, W), out.shape
    # bf16 inter-stage activations -> compare with a scale-aware tolerance.
    err = jnp.abs(out - ref)
    rel = float(jnp.max(err / (1.0 + jnp.abs(ref))))
    assert rel < 3e-2, rel

    print("KERNEL_OK")
</pallas_src>

<mosaic_0001>
module attributes {stable_mosaic.version = 11 : i64} {
  func.func @_conv3x3_kernel(%arg0: i32, %arg1: memref<256x4xbf16, #tpu.memory_space<vmem>>, %arg2: memref<1x4xf32, #tpu.memory_space<vmem>>, %arg3: memref<1x4xf32, #tpu.memory_space<vmem>>, %arg4: memref<36x4xbf16, #tpu.memory_space<vmem>>, %arg5: memref<256x4xbf16, #tpu.memory_space<vmem>>, %arg6: memref<1x1x4xf32, #tpu.memory_space<vmem>>, %arg7: memref<1x1x4xf32, #tpu.memory_space<vmem>>, %arg8: memref<332x4xbf16, #tpu.memory_space<vmem>>) attributes {dimension_semantics = [#tpu.dimension_semantics<parallel>], iteration_bounds = array<i64: 2>, scalar_prefetch = 0 : i64, scratch_operands = 1 : i64, tpu.core_type = #tpu.core_type<tc>, window_params = [{transform_indices = @transform_0, window_bounds = array<i64: 256, 4>}, {pipeline_mode = #tpu.pipeline_mode<synchronous>, transform_indices = @transform_1, window_bounds = array<i64: 1, 4>}, {pipeline_mode = #tpu.pipeline_mode<synchronous>, transform_indices = @transform_2, window_bounds = array<i64: 1, 4>}, {pipeline_mode = #tpu.pipeline_mode<synchronous>, transform_indices = @transform_3, window_bounds = array<i64: 36, 4>}, {transform_indices = @transform_4, window_bounds = array<i64: 256, 4>}, {transform_indices = @transform_5, window_bounds = array<i64: 1, 1, 4>}, {transform_indices = @transform_6, window_bounds = array<i64: 1, 1, 4>}]} {
    %cst = arith.constant 0.000000e+00 : bf16
    %0 = vector.broadcast %cst : bf16 to vector<332x4xbf16>
    %c0 = arith.constant 0 : index
    %c0_0 = arith.constant 0 : index
    %1 = vector.load %arg8[%c0, %c0_0] : memref<332x4xbf16, #tpu.memory_space<vmem>>, vector<332x4xbf16>
    tpu.vector_store %arg8[%c0, %c0_0], %0 {strides = array<i32>} : memref<332x4xbf16, #tpu.memory_space<vmem>>, vector<332x4xbf16>,
    %c0_1 = arith.constant 0 : index
    %c0_2 = arith.constant 0 : index
    %2 = vector.load %arg1[%c0_1, %c0_2] : memref<256x4xbf16, #tpu.memory_space<vmem>>, vector<256x4xbf16>
    %3 = arith.extf %2 : vector<256x4xbf16> to vector<256x4xf32>
    %c0_3 = arith.constant 0 : index
    %c0_4 = arith.constant 0 : index
    %4 = vector.load %arg2[%c0_3, %c0_4] : memref<1x4xf32, #tpu.memory_space<vmem>>, vector<1x4xf32>
    %5 = vector.broadcast %4 : vector<1x4xf32> to vector<256x4xf32>
    %6 = arith.subf %3, %5 : vector<256x4xf32>
    %c0_5 = arith.constant 0 : index
    %c0_6 = arith.constant 0 : index
    %7 = vector.load %arg3[%c0_5, %c0_6] : memref<1x4xf32, #tpu.memory_space<vmem>>, vector<1x4xf32>
    %8 = vector.broadcast %7 : vector<1x4xf32> to vector<256x4xf32>
    %9 = arith.mulf %6, %8 : vector<256x4xf32>
    %10 = arith.negf %9 : vector<256x4xf32>
    %11 = math.exp %10 : vector<256x4xf32>
    %cst_7 = arith.constant 1.000000e+00 : f32
    %12 = vector.broadcast %cst_7 : f32 to vector<256x4xf32>
    %13 = arith.addf %12, %11 : vector<256x4xf32>
    %14 = arith.divf %12, %13 : vector<256x4xf32>
    %15 = arith.mulf %9, %14 : vector<256x4xf32>
    %16 = arith.truncf %15 : vector<256x4xf32> to vector<256x4xbf16>
    %17 = vector.extract_strided_slice %16 {offsets = [0, 0], sizes = [16, 4], strides = [1, 1]} : vector<256x4xbf16> to vector<16x4xbf16>
    %c19 = arith.constant 19 : index
    %c0_8 = arith.constant 0 : index
    %18 = vector.load %arg8[%c19, %c0_8] : memref<332x4xbf16, #tpu.memory_space<vmem>>, vector<16x4xbf16>
    tpu.vector_store %arg8[%c19, %c0_8], %17 {strides = array<i32>} : memref<332x4xbf16, #tpu.memory_space<vmem>>, vector<16x4xbf16>,
    %19 = vector.extract_strided_slice %16 {offsets = [16, 0], sizes = [16, 4], strides = [1, 1]} : vector<256x4xbf16> to vector<16x4xbf16>
    %c37 = arith.constant 37 : index
    %c0_9 = arith.constant 0 : index
    %20 = vector.load %arg8[%c37, %c0_9] : memref<332x4xbf16, #tpu.memory_space<vmem>>, vector<16x4xbf16>
    tpu.vector_store %arg8[%c37, %c0_9], %19 {strides = array<i32>} : memref<332x4xbf16, #tpu.memory_space<vmem>>, vector<16x4xbf16>,
    %21 = vector.extract_strided_slice %16 {offsets = [32, 0], sizes = [16, 4], strides = [1, 1]} : vector<256x4xbf16> to vector<16x4xbf16>
    %c55 = arith.constant 55 : index
    %c0_10 = arith.constant 0 : index
    %22 = vector.load %arg8[%c55, %c0_10] : memref<332x4xbf16, #tpu.memory_space<vmem>>, vector<16x4xbf16>
    tpu.vector_store %arg8[%c55, %c0_10], %21 {strides = array<i32>} : memref<332x4xbf16, #tpu.memory_space<vmem>>, vector<16x4xbf16>,
    %23 = vector.extract_strided_slice %16 {offsets = [48, 0], sizes = [16, 4], strides = [1, 1]} : vector<256x4xbf16> to vector<16x4xbf16>
    %c73 = arith.constant 73 : index
    %c0_11 = arith.constant 0 : index
    %24 = vector.load %arg8[%c73, %c0_11] : memref<332x4xbf16, #tpu.memory_space<vmem>>, vector<16x4xbf16>
    tpu.vector_store %arg8[%c73, %c0_11], %23 {strides = array<i32>} : memref<332x4xbf16, #tpu.memory_space<vmem>>, vector<16x4xbf16>,
    %25 = vector.extract_strided_slice %16 {offsets = [64, 0], sizes = [16, 4], strides = [1, 1]} : vector<256x4xbf16> to vector<16x4xbf16>
    %c91 = arith.constant 91 : index
    %c0_12 = arith.constant 0 : index
    %26 = vector.load %arg8[%c91, %c0_12] : memref<332x4xbf16, #tpu.memory_space<vmem>>, vector<16x4xbf16>
    tpu.vector_store %arg8[%c91, %c0_12], %25 {strides = array<i32>} : memref<332x4xbf16, #tpu.memory_space<vmem>>, vector<16x4xbf16>,
    %27 = vector.extract_strided_slice %16 {offsets = [80, 0], sizes = [16, 4], strides = [1, 1]} : vector<256x4xbf16> to vector<16x4xbf16>
    %c109 = arith.constant 109 : index
    %c0_13 = arith.constant 0 : index
    %28 = vector.load %arg8[%c109, %c0_13] : memref<332x4xbf16, #tpu.memory_space<vmem>>, vector<16x4xbf16>
    tpu.vector_store %arg8[%c109, %c0_13], %27 {strides = array<i32>} : memref<332x4xbf16, #tpu.memory_space<vmem>>, vector<16x4xbf16>,
    %29 = vector.extract_strided_slice %16 {offsets = [96, 0], sizes = [16, 4], strides = [1, 1]} : vector<256x4xbf16> to vector<16x4xbf16>
    %c127 = arith.constant 127 : index
    %c0_14 = arith.constant 0 : index
    %30 = vector.load %arg8[%c127, %c0_14] : memref<332x4xbf16, #tpu.memory_space<vmem>>, vector<16x4xbf16>
    tpu.vector_store %arg8[%c127, %c0_14], %29 {strides = array<i32>} : memref<332x4xbf16, #tpu.memory_space<vmem>>, vector<16x4xbf16>,
    %31 = vector.extract_strided_slice %16 {offsets = [112, 0], sizes = [16, 4], strides = [1, 1]} : vector<256x4xbf16> to vector<16x4xbf16>
    %c145 = arith.constant 145 : index
    %c0_15 = arith.constant 0 : index
    %32 = vector.load %arg8[%c145, %c0_15] : memref<332x4xbf16, #tpu.memory_space<vmem>>, vector<16x4xbf16>
    tpu.vector_store %arg8[%c145, %c0_15], %31 {strides = array<i32>} : memref<332x4xbf16, #tpu.memory_space<vmem>>, vector<16x4xbf16>,
    %33 = vector.extract_strided_slice %16 {offsets = [128, 0], sizes = [16, 4], strides = [1, 1]} : vector<256x4xbf16> to vector<16x4xbf16>
    %c163 = arith.constant 163 : index
    %c0_16 = arith.constant 0 : index
    %34 = vector.load %arg8[%c163, %c0_16] : memref<332x4xbf16, #tpu.memory_space<vmem>>, vector<16x4xbf16>
    tpu.vector_store %arg8[%c163, %c0_16], %33 {strides = array<i32>} : memref<332x4xbf16, #tpu.memory_space<vmem>>, vector<16x4xbf16>,
    %35 = vector.extract_strided_slice %16 {offsets = [144, 0], sizes = [16, 4], strides = [1, 1]} : vector<256x4xbf16> to vector<16x4xbf16>
    %c181 = arith.constant 181 : index
    %c0_17 = arith.constant 0 : index
    %36 = vector.load %arg8[%c181, %c0_17] : memref<332x4xbf16, #tpu.memory_space<vmem>>, vector<16x4xbf16>
    tpu.vector_store %arg8[%c181, %c0_17], %35 {strides = array<i32>} : memref<332x4xbf16, #tpu.memory_space<vmem>>, vector<16x4xbf16>,
    %37 = vector.extract_strided_slice %16 {offsets = [160, 0], sizes = [16, 4], strides = [1, 1]} : vector<256x4xbf16> to vector<16x4xbf16>
    %c199 = arith.constant 199 : index
    %c0_18 = arith.constant 0 : index
    %38 = vector.load %arg8[%c199, %c0_18] : memref<332x4xbf16, #tpu.memory_space<vmem>>, vector<16x4xbf16>
    tpu.vector_store %arg8[%c199, %c0_18], %37 {strides = array<i32>} : memref<332x4xbf16, #tpu.memory_space<vmem>>, vector<16x4xbf16>,
    %39 = vector.extract_strided_slice %16 {offsets = [176, 0], sizes = [16, 4], strides = [1, 1]} : vector<256x4xbf16> to vector<16x4xbf16>
    %c217 = arith.constant 217 : index
    %c0_19 = arith.constant 0 : index
    %40 = vector.load %arg8[%c217, %c0_19] : memref<332x4xbf16, #tpu.memory_space<vmem>>, vector<16x4xbf16>
    tpu.vector_store %arg8[%c217, %c0_19], %39 {strides = array<i32>} : memref<332x4xbf16, #tpu.memory_space<vmem>>, vector<16x4xbf16>,
    %41 = vector.extract_strided_slice %16 {offsets = [192, 0], sizes = [16, 4], strides = [1, 1]} : vector<256x4xbf16> to vector<16x4xbf16>
    %c235 = arith.constant 235 : index
    %c0_20 = arith.constant 0 : index
    %42 = vector.load %arg8[%c235, %c0_20] : memref<332x4xbf16, #tpu.memory_space<vmem>>, vector<16x4xbf16>
    tpu.vector_store %arg8[%c235, %c0_20], %41 {strides = array<i32>} : memref<332x4xbf16, #tpu.memory_space<vmem>>, vector<16x4xbf16>,
    %43 = vector.extract_strided_slice %16 {offsets = [208, 0], sizes = [16, 4], strides = [1, 1]} : vector<256x4xbf16> to vector<16x4xbf16>
    %c253 = arith.constant 253 : index
    %c0_21 = arith.constant 0 : index
    %44 = vector.load %arg8[%c253, %c0_21] : memref<332x4xbf16, #tpu.memory_space<vmem>>, vector<16x4xbf16>
    tpu.vector_store %arg8[%c253, %c0_21], %43 {strides = array<i32>} : memref<332x4xbf16, #tpu.memory_space<vmem>>, vector<16x4xbf16>,
    %45 = vector.extract_strided_slice %16 {offsets = [224, 0], sizes = [16, 4], strides = [1, 1]} : vector<256x4xbf16> to vector<16x4xbf16>
    %c271 = arith.constant 271 : index
    %c0_22 = arith.constant 0 : index
    %46 = vector.load %arg8[%c271, %c0_22] : memref<332x4xbf16, #tpu.memory_space<vmem>>, vector<16x4xbf16>
    tpu.vector_store %arg8[%c271, %c0_22], %45 {strides = array<i32>} : memref<332x4xbf16, #tpu.memory_space<vmem>>, vector<16x4xbf16>,
    %47 = vector.extract_strided_slice %16 {offsets = [240, 0], sizes = [16, 4], strides = [1, 1]} : vector<256x4xbf16> to vector<16x4xbf16>
    %c289 = arith.constant 289 : index
    %c0_23 = arith.constant 0 : index
    %48 = vector.load %arg8[%c289, %c0_23] : memref<332x4xbf16, #tpu.memory_space<vmem>>, vector<16x4xbf16>
    tpu.vector_store %arg8[%c289, %c0_23], %47 {strides = array<i32>} : memref<332x4xbf16, #tpu.memory_space<vmem>>, vector<16x4xbf16>,
    %cst_24 = arith.constant 0.000000e+00 : f32
    %49 = vector.broadcast %cst_24 : f32 to vector<288x4xf32>
    %c0_25 = arith.constant 0 : index
    %c0_26 = arith.constant 0 : index
    %50 = vector.load %arg8[%c0_25, %c0_26] : memref<332x4xbf16, #tpu.memory_space<vmem>>, vector<288x4xbf16>
    %c0_27 = arith.constant 0 : index
    %c0_28 = arith.constant 0 : index
    %51 = vector.load %arg4[%c0_27, %c0_28] : memref<36x4xbf16, #tpu.memory_space<vmem>>, vector<4x4xbf16>
    %cst_29 = arith.constant dense<0.000000e+00> : vector<288x4xf32>
    %52 = tpu.matmul %50, %51, %cst_29 {dimension_numbers = #tpu.dot_dimension_numbers<[1], [0], [0], [1], [0, 0, 1, 1], [], []>} : vector<288x4xbf16>, vector<4x4xbf16>, vector<288x4xf32> -> vector<288x4xf32>
    %53 = arith.addf %49, %52 : vector<288x4xf32>
    %c1 = arith.constant 1 : index
    %c0_30 = arith.constant 0 : index
    %54 = vector.load %arg8[%c1, %c0_30] : memref<332x4xbf16, #tpu.memory_space<vmem>>, vector<288x4xbf16>
    %c4 = arith.constant 4 : index
    %c0_31 = arith.constant 0 : index
    %55 = vector.load %arg4[%c4, %c0_31] : memref<36x4xbf16, #tpu.memory_space<vmem>>, vector<4x4xbf16>
    %cst_32 = arith.constant dense<0.000000e+00> : vector<288x4xf32>
    %56 = tpu.matmul %54, %55, %cst_32 {dimension_numbers = #tpu.dot_dimension_numbers<[1], [0], [0], [1], [0, 0, 1, 1], [], []>} : vector<288x4xbf16>, vector<4x4xbf16>, vector<288x4xf32> -> vector<288x4xf32>
    %57 = arith.addf %53, %56 : vector<288x4xf32>
    %c2 = arith.constant 2 : index
    %c0_33 = arith.constant 0 : index
    %58 = vector.load %arg8[%c2, %c0_33] : memref<332x4xbf16, #tpu.memory_space<vmem>>, vector<288x4xbf16>
    %c8 = arith.constant 8 : index
    %c0_34 = arith.constant 0 : index
    %59 = vector.load %arg4[%c8, %c0_34] : memref<36x4xbf16, #tpu.memory_space<vmem>>, vector<4x4xbf16>
    %cst_35 = arith.constant dense<0.000000e+00> : vector<288x4xf32>
    %60 = tpu.matmul %58, %59, %cst_35 {dimension_numbers = #tpu.dot_dimension_numbers<[1], [0], [0], [1], [0, 0, 1, 1], [], []>} : vector<288x4xbf16>, vector<4x4xbf16>, vector<288x4xf32> -> vector<288x4xf32>
    %61 = arith.addf %57, %60 : vector<288x4xf32>
    %c18 = arith.constant 18 : index
    %c0_36 = arith.constant 0 : index
    %62 = vector.load %arg8[%c18, %c0_36] : memref<332x4xbf16, #tpu.memory_space<vmem>>, vector<288x4xbf16>
    %c12 = arith.constant 12 : index
    %c0_37 = arith.constant 0 : index
    %63 = vector.load %arg4[%c12, %c0_37] : memref<36x4xbf16, #tpu.memory_space<vmem>>, vector<4x4xbf16>
    %cst_38 = arith.constant dense<0.000000e+00> : vector<288x4xf32>
    %64 = tpu.matmul %62, %63, %cst_38 {dimension_numbers = #tpu.dot_dimension_numbers<[1], [0], [0], [1], [0, 0, 1, 1], [], []>} : vector<288x4xbf16>, vector<4x4xbf16>, vector<288x4xf32> -> vector<288x4xf32>
    %65 = arith.addf %61, %64 : vector<288x4xf32>
    %c19_39 = arith.constant 19 : index
    %c0_40 = arith.constant 0 : index
    %66 = vector.load %arg8[%c19_39, %c0_40] : memref<332x4xbf16, #tpu.memory_space<vmem>>, vector<288x4xbf16>
    %c16 = arith.constant 16 : index
    %c0_41 = arith.constant 0 : index
    %67 = vector.load %arg4[%c16, %c0_41] : memref<36x4xbf16, #tpu.memory_space<vmem>>, vector<4x4xbf16>
    %cst_42 = arith.constant dense<0.000000e+00> : vector<288x4xf32>
    %68 = tpu.matmul %66, %67, %cst_42 {dimension_numbers = #tpu.dot_dimension_numbers<[1], [0], [0], [1], [0, 0, 1, 1], [], []>} : vector<288x4xbf16>, vector<4x4xbf16>, vector<288x4xf32> -> vector<288x4xf32>
    %69 = arith.addf %65, %68 : vector<288x4xf32>
    %c20 = arith.constant 20 : index
    %c0_43 = arith.constant 0 : index
    %70 = vector.load %arg8[%c20, %c0_43] : memref<332x4xbf16, #tpu.memory_space<vmem>>, vector<288x4xbf16>
    %c20_44 = arith.constant 20 : index
    %c0_45 = arith.constant 0 : index
    %71 = vector.load %arg4[%c20_44, %c0_45] : memref<36x4xbf16, #tpu.memory_space<vmem>>, vector<4x4xbf16>
    %cst_46 = arith.constant dense<0.000000e+00> : vector<288x4xf32>
    %72 = tpu.matmul %70, %71, %cst_46 {dimension_numbers = #tpu.dot_dimension_numbers<[1], [0], [0], [1], [0, 0, 1, 1], [], []>} : vector<288x4xbf16>, vector<4x4xbf16>, vector<288x4xf32> -> vector<288x4xf32>
    %73 = arith.addf %69, %72 : vector<288x4xf32>
    %c36 = arith.constant 36 : index
    %c0_47 = arith.constant 0 : index
    %74 = vector.load %arg8[%c36, %c0_47] : memref<332x4xbf16, #tpu.memory_space<vmem>>, vector<288x4xbf16>
    %c24 = arith.constant 24 : index
    %c0_48 = arith.constant 0 : index
    %75 = vector.load %arg4[%c24, %c0_48] : memref<36x4xbf16, #tpu.memory_space<vmem>>, vector<4x4xbf16>
    %cst_49 = arith.constant dense<0.000000e+00> : vector<288x4xf32>
    %76 = tpu.matmul %74, %75, %cst_49 {dimension_numbers = #tpu.dot_dimension_numbers<[1], [0], [0], [1], [0, 0, 1, 1], [], []>} : vector<288x4xbf16>, vector<4x4xbf16>, vector<288x4xf32> -> vector<288x4xf32>
    %77 = arith.addf %73, %76 : vector<288x4xf32>
    %c37_50 = arith.constant 37 : index
    %c0_51 = arith.constant 0 : index
    %78 = vector.load %arg8[%c37_50, %c0_51] : memref<332x4xbf16, #tpu.memory_space<vmem>>, vector<288x4xbf16>
    %c28 = arith.constant 28 : index
    %c0_52 = arith.constant 0 : index
    %79 = vector.load %arg4[%c28, %c0_52] : memref<36x4xbf16, #tpu.memory_space<vmem>>, vector<4x4xbf16>
    %cst_53 = arith.constant dense<0.000000e+00> : vector<288x4xf32>
    %80 = tpu.matmul %78, %79, %cst_53 {dimension_numbers = #tpu.dot_dimension_numbers<[1], [0], [0], [1], [0, 0, 1, 1], [], []>} : vector<288x4xbf16>, vector<4x4xbf16>, vector<288x4xf32> -> vector<288x4xf32>
    %81 = arith.addf %77, %80 : vector<288x4xf32>
    %c38 = arith.constant 38 : index
    %c0_54 = arith.constant 0 : index
    %82 = vector.load %arg8[%c38, %c0_54] : memref<332x4xbf16, #tpu.memory_space<vmem>>, vector<288x4xbf16>
    %c32 = arith.constant 32 : index
    %c0_55 = arith.constant 0 : index
    %83 = vector.load %arg4[%c32, %c0_55] : memref<36x4xbf16, #tpu.memory_space<vmem>>, vector<4x4xbf16>
    %cst_56 = arith.constant dense<0.000000e+00> : vector<288x4xf32>
    %84 = tpu.matmul %82, %83, %cst_56 {dimension_numbers = #tpu.dot_dimension_numbers<[1], [0], [0], [1], [0, 0, 1, 1], [], []>} : vector<288x4xbf16>, vector<4x4xbf16>, vector<288x4xf32> -> vector<288x4xf32>
    %85 = arith.addf %81, %84 : vector<288x4xf32>
    %86 = vector.extract_strided_slice %85 {offsets = [0, 0], sizes = [16, 4], strides = [1, 1]} : vector<288x4xf32> to vector<16x4xf32>
    %87 = arith.truncf %86 : vector<16x4xf32> to vector<16x4xbf16>
    %c0_57 = arith.constant 0 : index
    %c0_58 = arith.constant 0 : index
    %88 = vector.load %arg5[%c0_57, %c0_58] : memref<256x4xbf16, #tpu.memory_space<vmem>>, vector<16x4xbf16>
    tpu.vector_store %arg5[%c0_57, %c0_58], %87 {strides = array<i32>} : memref<256x4xbf16, #tpu.memory_space<vmem>>, vector<16x4xbf16>,
    %89 = vector.extract_strided_slice %85 {offsets = [18, 0], sizes = [16, 4], strides = [1, 1]} : vector<288x4xf32> to vector<16x4xf32>
    %90 = arith.truncf %89 : vector<16x4xf32> to vector<16x4xbf16>
    %c16_59 = arith.constant 16 : index
    %c0_60 = arith.constant 0 : index
    %91 = vector.load %arg5[%c16_59, %c0_60] : memref<256x4xbf16, #tpu.memory_space<vmem>>, vector<16x4xbf16>
    tpu.vector_store %arg5[%c16_59, %c0_60], %90 {strides = array<i32>} : memref<256x4xbf16, #tpu.memory_space<vmem>>, vector<16x4xbf16>,
    %92 = vector.extract_strided_slice %85 {offsets = [36, 0], sizes = [16, 4], strides = [1, 1]} : vector<288x4xf32> to vector<16x4xf32>
    %93 = arith.truncf %92 : vector<16x4xf32> to vector<16x4xbf16>
    %c32_61 = arith.constant 32 : index
    %c0_62 = arith.constant 0 : index
    %94 = vector.load %arg5[%c32_61, %c0_62] : memref<256x4xbf16, #tpu.memory_space<vmem>>, vector<16x4xbf16>
    tpu.vector_store %arg5[%c32_61, %c0_62], %93 {strides = array<i32>} : memref<256x4xbf16, #tpu.memory_space<vmem>>, vector<16x4xbf16>,
    %95 = vector.extract_strided_slice %85 {offsets = [54, 0], sizes = [16, 4], strides = [1, 1]} : vector<288x4xf32> to vector<16x4xf32>
    %96 = arith.truncf %95 : vector<16x4xf32> to vector<16x4xbf16>
    %c48 = arith.constant 48 : index
    %c0_63 = arith.constant 0 : index
    %97 = vector.load %arg5[%c48, %c0_63] : memref<256x4xbf16, #tpu.memory_space<vmem>>, vector<16x4xbf16>
    tpu.vector_store %arg5[%c48, %c0_63], %96 {strides = array<i32>} : memref<256x4xbf16, #tpu.memory_space<vmem>>, vector<16x4xbf16>,
    %98 = vector.extract_strided_slice %85 {offsets = [72, 0], sizes = [16, 4], strides = [1, 1]} : vector<288x4xf32> to vector<16x4xf32>
    %99 = arith.truncf %98 : vector<16x4xf32> to vector<16x4xbf16>
    %c64 = arith.constant 64 : index
    %c0_64 = arith.constant 0 : index
    %100 = vector.load %arg5[%c64, %c0_64] : memref<256x4xbf16, #tpu.memory_space<vmem>>, vector<16x4xbf16>
    tpu.vector_store %arg5[%c64, %c0_64], %99 {strides = array<i32>} : memref<256x4xbf16, #tpu.memory_space<vmem>>, vector<16x4xbf16>,
    %101 = vector.extract_strided_slice %85 {offsets = [90, 0], sizes = [16, 4], strides = [1, 1]} : vector<288x4xf32> to vector<16x4xf32>
    %102 = arith.truncf %101 : vector<16x4xf32> to vector<16x4xbf16>
    %c80 = arith.constant 80 : index
    %c0_65 = arith.constant 0 : index
    %103 = vector.load %arg5[%c80, %c0_65] : memref<256x4xbf16, #tpu.memory_space<vmem>>, vector<16x4xbf16>
    tpu.vector_store %arg5[%c80, %c0_65], %102 {strides = array<i32>} : memref<256x4xbf16, #tpu.memory_space<vmem>>, vector<16x4xbf16>,
    %104 = vector.extract_strided_slice %85 {offsets = [108, 0], sizes = [16, 4], strides = [1, 1]} : vector<288x4xf32> to vector<16x4xf32>
    %105 = arith.truncf %104 : vector<16x4xf32> to vector<16x4xbf16>
    %c96 = arith.constant 96 : index
    %c0_66 = arith.constant 0 : index
    %106 = vector.load %arg5[%c96, %c0_66] : memref<256x4xbf16, #tpu.memory_space<vmem>>, vector<16x4xbf16>
    tpu.vector_store %arg5[%c96, %c0_66], %105 {strides = array<i32>} : memref<256x4xbf16, #tpu.memory_space<vmem>>, vector<16x4xbf16>,
    %107 = vector.extract_strided_slice %85 {offsets = [126, 0], sizes = [16, 4], strides = [1, 1]} : vector<288x4xf32> to vector<16x4xf32>
    %108 = arith.truncf %107 : vector<16x4xf32> to vector<16x4xbf16>
    %c112 = arith.constant 112 : index
    %c0_67 = arith.constant 0 : index
    %109 = vector.load %arg5[%c112, %c0_67] : memref<256x4xbf16, #tpu.memory_space<vmem>>, vector<16x4xbf16>
    tpu.vector_store %arg5[%c112, %c0_67], %108 {strides = array<i32>} : memref<256x4xbf16, #tpu.memory_space<vmem>>, vector<16x4xbf16>,
    %110 = vector.extract_strided_slice %85 {offsets = [144, 0], sizes = [16, 4], strides = [1, 1]} : vector<288x4xf32> to vector<16x4xf32>
    %111 = arith.truncf %110 : vector<16x4xf32> to vector<16x4xbf16>
    %c128 = arith.constant 128 : index
    %c0_68 = arith.constant 0 : index
    %112 = vector.load %arg5[%c128, %c0_68] : memref<256x4xbf16, #tpu.memory_space<vmem>>, vector<16x4xbf16>
    tpu.vector_store %arg5[%c128, %c0_68], %111 {strides = array<i32>} : memref<256x4xbf16, #tpu.memory_space<vmem>>, vector<16x4xbf16>,
    %113 = vector.extract_strided_slice %85 {offsets = [162, 0], sizes = [16, 4], strides = [1, 1]} : vector<288x4xf32> to vector<16x4xf32>
    %114 = arith.truncf %113 : vector<16x4xf32> to vector<16x4xbf16>
    %c144 = arith.constant 144 : index
    %c0_69 = arith.constant 0 : index
    %115 = vector.load %arg5[%c144, %c0_69] : memref<256x4xbf16, #tpu.memory_space<vmem>>, vector<16x4xbf16>
    tpu.vector_store %arg5[%c144, %c0_69], %114 {strides = array<i32>} : memref<256x4xbf16, #tpu.memory_space<vmem>>, vector<16x4xbf16>,
    %116 = vector.extract_strided_slice %85 {offsets = [180, 0], sizes = [16, 4], strides = [1, 1]} : vector<288x4xf32> to vector<16x4xf32>
    %117 = arith.truncf %116 : vector<16x4xf32> to vector<16x4xbf16>
    %c160 = arith.constant 160 : index
    %c0_70 = arith.constant 0 : index
    %118 = vector.load %arg5[%c160, %c0_70] : memref<256x4xbf16, #tpu.memory_space<vmem>>, vector<16x4xbf16>
    tpu.vector_store %arg5[%c160, %c0_70], %117 {strides = array<i32>} : memref<256x4xbf16, #tpu.memory_space<vmem>>, vector<16x4xbf16>,
    %119 = vector.extract_strided_slice %85 {offsets = [198, 0], sizes = [16, 4], strides = [1, 1]} : vector<288x4xf32> to vector<16x4xf32>
    %120 = arith.truncf %119 : vector<16x4xf32> to vector<16x4xbf16>
    %c176 = arith.constant 176 : index
    %c0_71 = arith.constant 0 : index
    %121 = vector.load %arg5[%c176, %c0_71] : memref<256x4xbf16, #tpu.memory_space<vmem>>, vector<16x4xbf16>
    tpu.vector_store %arg5[%c176, %c0_71], %120 {strides = array<i32>} : memref<256x4xbf16, #tpu.memory_space<vmem>>, vector<16x4xbf16>,
    %122 = vector.extract_strided_slice %85 {offsets = [216, 0], sizes = [16, 4], strides = [1, 1]} : vector<288x4xf32> to vector<16x4xf32>
    %123 = arith.truncf %122 : vector<16x4xf32> to vector<16x4xbf16>
    %c192 = arith.constant 192 : index
    %c0_72 = arith.constant 0 : index
    %124 = vector.load %arg5[%c192, %c0_72] : memref<256x4xbf16, #tpu.memory_space<vmem>>, vector<16x4xbf16>
    tpu.vector_store %arg5[%c192, %c0_72], %123 {strides = array<i32>} : memref<256x4xbf16, #tpu.memory_space<vmem>>, vector<16x4xbf16>,
    %125 = vector.extract_strided_slice %85 {offsets = [234, 0], sizes = [16, 4], strides = [1, 1]} : vector<288x4xf32> to vector<16x4xf32>
    %126 = arith.truncf %125 : vector<16x4xf32> to vector<16x4xbf16>
    %c208 = arith.constant 208 : index
    %c0_73 = arith.constant 0 : index
    %127 = vector.load %arg5[%c208, %c0_73] : memref<256x4xbf16, #tpu.memory_space<vmem>>, vector<16x4xbf16>
    tpu.vector_store %arg5[%c208, %c0_73], %126 {strides = array<i32>} : memref<256x4xbf16, #tpu.memory_space<vmem>>, vector<16x4xbf16>,
    %128 = vector.extract_strided_slice %85 {offsets = [252, 0], sizes = [16, 4], strides = [1, 1]} : vector<288x4xf32> to vector<16x4xf32>
    %129 = arith.truncf %128 : vector<16x4xf32> to vector<16x4xbf16>
    %c224 = arith.constant 224 : index
    %c0_74 = arith.constant 0 : index
    %130 = vector.load %arg5[%c224, %c0_74] : memref<256x4xbf16, #tpu.memory_space<vmem>>, vector<16x4xbf16>
    tpu.vector_store %arg5[%c224, %c0_74], %129 {strides = array<i32>} : memref<256x4xbf16, #tpu.memory_space<vmem>>, vector<16x4xbf16>,
    %131 = vector.extract_strided_slice %85 {offsets = [270, 0], sizes = [16, 4], strides = [1, 1]} : vector<288x4xf32> to vector<16x4xf32>
    %132 = arith.truncf %131 : vector<16x4xf32> to vector<16x4xbf16>
    %c240 = arith.constant 240 : index
    %c0_75 = arith.constant 0 : index
    %133 = vector.load %arg5[%c240, %c0_75] : memref<256x4xbf16, #tpu.memory_space<vmem>>, vector<16x4xbf16>
    tpu.vector_store %arg5[%c240, %c0_75], %132 {strides = array<i32>} : memref<256x4xbf16, #tpu.memory_space<vmem>>, vector<16x4xbf16>,
    %c0_76 = arith.constant 0 : index
    %c0_77 = arith.constant 0 : index
    %134 = vector.load %arg5[%c0_76, %c0_77] : memref<256x4xbf16, #tpu.memory_space<vmem>>, vector<256x4xbf16>
    %135 = arith.extf %134 : vector<256x4xbf16> to vector<256x4xf32>
    %cst_78 = arith.constant dense<0.000000e+00> : vector<4xf32>
    %136 = vector.multi_reduction <add>, %135, %cst_78 [0] : vector<256x4xf32> to vector<4xf32>
    %137 = vector.shape_cast %136 : vector<4xf32> to vector<1x4xf32>
    %c0_79 = arith.constant 0 : index
    %c0_80 = arith.constant 0 : index
    %c0_81 = arith.constant 0 : index
    %138 = vector.load %arg6[%c0_79, %c0_80, %c0_81] : memref<1x1x4xf32, #tpu.memory_space<vmem>>, vector<1x1x4xf32>
    %139 = vector.shape_cast %138 : vector<1x1x4xf32> to vector<1x4xf32>
    %140 = vector.shape_cast %137 : vector<1x4xf32> to vector<1x1x4xf32>
    tpu.vector_store %arg6[%c0_79, %c0_80, %c0_81], %140 {strides = array<i32>} : memref<1x1x4xf32, #tpu.memory_space<vmem>>, vector<1x1x4xf32>,
    %141 = arith.mulf %135, %135 : vector<256x4xf32>
    %cst_82 = arith.constant dense<0.000000e+00> : vector<4xf32>
    %142 = vector.multi_reduction <add>, %141, %cst_82 [0] : vector<256x4xf32> to vector<4xf32>
    %143 = vector.shape_cast %142 : vector<4xf32> to vector<1x4xf32>
    %c0_83 = arith.constant 0 : index
    %c0_84 = arith.constant 0 : index
    %c0_85 = arith.constant 0 : index
    %144 = vector.load %arg7[%c0_83, %c0_84, %c0_85] : memref<1x1x4xf32, #tpu.memory_space<vmem>>, vector<1x1x4xf32>
    %145 = vector.shape_cast %144 : vector<1x1x4xf32> to vector<1x4xf32>
    %146 = vector.shape_cast %143 : vector<1x4xf32> to vector<1x1x4xf32>
    tpu.vector_store %arg7[%c0_83, %c0_84, %c0_85], %146 {strides = array<i32>} : memref<1x1x4xf32, #tpu.memory_space<vmem>>, vector<1x1x4xf32>,
    return
  }
  func.func @transform_0(%arg0: i32) -> (i32, i32) {
    %c0_i32 = arith.constant 0 : i32
    %c0_i32_0 = arith.constant 0 : i32
    return %arg0, %c0_i32 : i32, i32
  }
  func.func @transform_1(%arg0: i32) -> (i32, i32) {
    %c0_i32 = arith.constant 0 : i32
    %c0_i32_0 = arith.constant 0 : i32
    %c0_i32_1 = arith.constant 0 : i32
    return %c0_i32, %c0_i32_0 : i32, i32
  }
  func.func @transform_2(%arg0: i32) -> (i32, i32) {
    %c0_i32 = arith.constant 0 : i32
    %c0_i32_0 = arith.constant 0 : i32
    %c0_i32_1 = arith.constant 0 : i32
    return %c0_i32, %c0_i32_0 : i32, i32
  }
  func.func @transform_3(%arg0: i32) -> (i32, i32) {
    %c0_i32 = arith.constant 0 : i32
    %c0_i32_0 = arith.constant 0 : i32
    %c0_i32_1 = arith.constant 0 : i32
    return %c0_i32, %c0_i32_0 : i32, i32
  }
  func.func @transform_4(%arg0: i32) -> (i32, i32) {
    %c0_i32 = arith.constant 0 : i32
    %c0_i32_0 = arith.constant 0 : i32
    return %arg0, %c0_i32 : i32, i32
  }
  func.func @transform_5(%arg0: i32) -> (i32, i32, i32) {
    %c0_i32 = arith.constant 0 : i32
    %c0_i32_0 = arith.constant 0 : i32
    %c0_i32_1 = arith.constant 0 : i32
    return %arg0, %c0_i32, %c0_i32_0 : i32, i32, i32
  }
  func.func @transform_6(%arg0: i32) -> (i32, i32, i32) {
    %c0_i32 = arith.constant 0 : i32
    %c0_i32_0 = arith.constant 0 : i32
    %c0_i32_1 = arith.constant 0 : i32
    return %arg0, %c0_i32, %c0_i32_0 : i32, i32, i32
  }
}

module attributes {stable_mosaic.version = 11 : i64} {
  func.func @_conv1_skip_kernel(%arg0: i32, %arg1: memref<512x8xbf16, #tpu.memory_space<vmem>>, %arg2: memref<8x4xbf16, #tpu.memory_space<vmem>>, %arg3: memref<8x16xbf16, #tpu.memory_space<vmem>>, %arg4: memref<512x4xbf16, #tpu.memory_space<vmem>>, %arg5: memref<1x1x4xf32, #tpu.memory_space<vmem>>, %arg6: memref<1x1x4xf32, #tpu.memory_space<vmem>>, %arg7: memref<512x16xbf16, #tpu.memory_space<vmem>>, %arg8: memref<1x1x16xf32, #tpu.memory_space<vmem>>, %arg9: memref<1x1x16xf32, #tpu.memory_space<vmem>>) attributes {dimension_semantics = [#tpu.dimension_semantics<parallel>], iteration_bounds = array<i64: 1>, scalar_prefetch = 0 : i64, scratch_operands = 0 : i64, tpu.core_type = #tpu.core_type<tc>, window_params = [{transform_indices = @transform_0, window_bounds = array<i64: 512, 8>}, {pipeline_mode = #tpu.pipeline_mode<synchronous>, transform_indices = @transform_1, window_bounds = array<i64: 8, 4>}, {pipeline_mode = #tpu.pipeline_mode<synchronous>, transform_indices = @transform_2, window_bounds = array<i64: 8, 16>}, {transform_indices = @transform_3, window_bounds = array<i64: 512, 4>}, {transform_indices = @transform_4, window_bounds = array<i64: 1, 1, 4>}, {transform_indices = @transform_5, window_bounds = array<i64: 1, 1, 4>}, {transform_indices = @transform_6, window_bounds = array<i64: 512, 16>}, {transform_indices = @transform_7, window_bounds = array<i64: 1, 1, 16>}, {transform_indices = @transform_8, window_bounds = array<i64: 1, 1, 16>}]} {
    %c0 = arith.constant 0 : index
    %c0_0 = arith.constant 0 : index
    %0 = vector.load %arg1[%c0, %c0_0] : memref<512x8xbf16, #tpu.memory_space<vmem>>, vector<512x8xbf16>
    %c0_1 = arith.constant 0 : index
    %c0_2 = arith.constant 0 : index
    %1 = vector.load %arg2[%c0_1, %c0_2] : memref<8x4xbf16, #tpu.memory_space<vmem>>, vector<8x4xbf16>
    %cst = arith.constant dense<0.000000e+00> : vector<512x4xf32>
    %2 = tpu.matmul %0, %1, %cst {dimension_numbers = #tpu.dot_dimension_numbers<[1], [0], [0], [1], [0, 0, 1, 1], [], []>} : vector<512x8xbf16>, vector<8x4xbf16>, vector<512x4xf32> -> vector<512x4xf32>
    %3 = arith.truncf %2 : vector<512x4xf32> to vector<512x4xbf16>
    %c0_3 = arith.constant 0 : index
    %c0_4 = arith.constant 0 : index
    %4 = vector.load %arg4[%c0_3, %c0_4] : memref<512x4xbf16, #tpu.memory_space<vmem>>, vector<512x4xbf16>
    tpu.vector_store %arg4[%c0_3, %c0_4], %3 {strides = array<i32>} : memref<512x4xbf16, #tpu.memory_space<vmem>>, vector<512x4xbf16>,
    %cst_5 = arith.constant dense<0.000000e+00> : vector<4xf32>
    %5 = vector.multi_reduction <add>, %2, %cst_5 [0] : vector<512x4xf32> to vector<4xf32>
    %6 = vector.shape_cast %5 : vector<4xf32> to vector<1x4xf32>
    %c0_6 = arith.constant 0 : index
    %c0_7 = arith.constant 0 : index
    %c0_8 = arith.constant 0 : index
    %7 = vector.load %arg5[%c0_6, %c0_7, %c0_8] : memref<1x1x4xf32, #tpu.memory_space<vmem>>, vector<1x1x4xf32>
    %8 = vector.shape_cast %7 : vector<1x1x4xf32> to vector<1x4xf32>
    %9 = vector.shape_cast %6 : vector<1x4xf32> to vector<1x1x4xf32>
    tpu.vector_store %arg5[%c0_6, %c0_7, %c0_8], %9 {strides = array<i32>} : memref<1x1x4xf32, #tpu.memory_space<vmem>>, vector<1x1x4xf32>,
    %10 = arith.mulf %2, %2 : vector<512x4xf32>
    %cst_9 = arith.constant dense<0.000000e+00> : vector<4xf32>
    %11 = vector.multi_reduction <add>, %10, %cst_9 [0] : vector<512x4xf32> to vector<4xf32>
    %12 = vector.shape_cast %11 : vector<4xf32> to vector<1x4xf32>
    %c0_10 = arith.constant 0 : index
    %c0_11 = arith.constant 0 : index
    %c0_12 = arith.constant 0 : index
    %13 = vector.load %arg6[%c0_10, %c0_11, %c0_12] : memref<1x1x4xf32, #tpu.memory_space<vmem>>, vector<1x1x4xf32>
    %14 = vector.shape_cast %13 : vector<1x1x4xf32> to vector<1x4xf32>
    %15 = vector.shape_cast %12 : vector<1x4xf32> to vector<1x1x4xf32>
    tpu.vector_store %arg6[%c0_10, %c0_11, %c0_12], %15 {strides = array<i32>} : memref<1x1x4xf32, #tpu.memory_space<vmem>>, vector<1x1x4xf32>,
    %c0_13 = arith.constant 0 : index
    %c0_14 = arith.constant 0 : index
    %16 = vector.load %arg3[%c0_13, %c0_14] : memref<8x16xbf16, #tpu.memory_space<vmem>>, vector<8x16xbf16>
    %cst_15 = arith.constant dense<0.000000e+00> : vector<512x16xf32>
    %17 = tpu.matmul %0, %16, %cst_15 {dimension_numbers = #tpu.dot_dimension_numbers<[1], [0], [0], [1], [0, 0, 1, 1], [], []>} : vector<512x8xbf16>, vector<8x16xbf16>, vector<512x16xf32> -> vector<512x16xf32>
    %18 = arith.truncf %17 : vector<512x16xf32> to vector<512x16xbf16>
    %c0_16 = arith.constant 0 : index
    %c0_17 = arith.constant 0 : index
    %19 = vector.load %arg7[%c0_16, %c0_17] : memref<512x16xbf16, #tpu.memory_space<vmem>>, vector<512x16xbf16>
    tpu.vector_store %arg7[%c0_16, %c0_17], %18 {strides = array<i32>} : memref<512x16xbf16, #tpu.memory_space<vmem>>, vector<512x16xbf16>,
    %cst_18 = arith.constant dense<0.000000e+00> : vector<16xf32>
    %20 = vector.multi_reduction <add>, %17, %cst_18 [0] : vector<512x16xf32> to vector<16xf32>
    %21 = vector.shape_cast %20 : vector<16xf32> to vector<1x16xf32>
    %c0_19 = arith.constant 0 : index
    %c0_20 = arith.constant 0 : index
    %c0_21 = arith.constant 0 : index
    %22 = vector.load %arg8[%c0_19, %c0_20, %c0_21] : memref<1x1x16xf32, #tpu.memory_space<vmem>>, vector<1x1x16xf32>
    %23 = vector.shape_cast %22 : vector<1x1x16xf32> to vector<1x16xf32>
    %24 = vector.shape_cast %21 : vector<1x16xf32> to vector<1x1x16xf32>
    tpu.vector_store %arg8[%c0_19, %c0_20, %c0_21], %24 {strides = array<i32>} : memref<1x1x16xf32, #tpu.memory_space<vmem>>, vector<1x1x16xf32>,
    %25 = arith.mulf %17, %17 : vector<512x16xf32>
    %cst_22 = arith.constant dense<0.000000e+00> : vector<16xf32>
    %26 = vector.multi_reduction <add>, %25, %cst_22 [0] : vector<512x16xf32> to vector<16xf32>
    %27 = vector.shape_cast %26 : vector<16xf32> to vector<1x16xf32>
    %c0_23 = arith.constant 0 : index
    %c0_24 = arith.constant 0 : index
    %c0_25 = arith.constant 0 : index
    %28 = vector.load %arg9[%c0_23, %c0_24, %c0_25] : memref<1x1x16xf32, #tpu.memory_space<vmem>>, vector<1x1x16xf32>
    %29 = vector.shape_cast %28 : vector<1x1x16xf32> to vector<1x16xf32>
    %30 = vector.shape_cast %27 : vector<1x16xf32> to vector<1x1x16xf32>
    tpu.vector_store %arg9[%c0_23, %c0_24, %c0_25], %30 {strides = array<i32>} : memref<1x1x16xf32, #tpu.memory_space<vmem>>, vector<1x1x16xf32>,
    return
  }
  func.func @transform_0(%arg0: i32) -> (i32, i32) {
    %c0_i32 = arith.constant 0 : i32
    %c0_i32_0 = arith.constant 0 : i32
    return %arg0, %c0_i32 : i32, i32
  }
  func.func @transform_1(%arg0: i32) -> (i32, i32) {
    %c0_i32 = arith.constant 0 : i32
    %c0_i32_0 = arith.constant 0 : i32
    %c0_i32_1 = arith.constant 0 : i32
    return %c0_i32, %c0_i32_0 : i32, i32
  }
  func.func @transform_2(%arg0: i32) -> (i32, i32) {
    %c0_i32 = arith.constant 0 : i32
    %c0_i32_0 = arith.constant 0 : i32
    %c0_i32_1 = arith.constant 0 : i32
    return %c0_i32, %c0_i32_0 : i32, i32
  }
  func.func @transform_3(%arg0: i32) -> (i32, i32) {
    %c0_i32 = arith.constant 0 : i32
    %c0_i32_0 = arith.constant 0 : i32
    return %arg0, %c0_i32 : i32, i32
  }
  func.func @transform_4(%arg0: i32) -> (i32, i32, i32) {
    %c0_i32 = arith.constant 0 : i32
    %c0_i32_0 = arith.constant 0 : i32
    %c0_i32_1 = arith.constant 0 : i32
    return %arg0, %c0_i32, %c0_i32_0 : i32, i32, i32
  }
  func.func @transform_5(%arg0: i32) -> (i32, i32, i32) {
    %c0_i32 = arith.constant 0 : i32
    %c0_i32_0 = arith.constant 0 : i32
    %c0_i32_1 = arith.constant 0 : i32
    return %arg0, %c0_i32, %c0_i32_0 : i32, i32, i32
  }
  func.func @transform_6(%arg0: i32) -> (i32, i32) {
    %c0_i32 = arith.constant 0 : i32
    %c0_i32_0 = arith.constant 0 : i32
    return %arg0, %c0_i32 : i32, i32
  }
  func.func @transform_7(%arg0: i32) -> (i32, i32, i32) {
    %c0_i32 = arith.constant 0 : i32
    %c0_i32_0 = arith.constant 0 : i32
    %c0_i32_1 = arith.constant 0 : i32
    return %arg0, %c0_i32, %c0_i32_0 : i32, i32, i32
  }
  func.func @transform_8(%arg0: i32) -> (i32, i32, i32) {
    %c0_i32 = arith.constant 0 : i32
    %c0_i32_0 = arith.constant 0 : i32
    %c0_i32_1 = arith.constant 0 : i32
    return %arg0, %c0_i32, %c0_i32_0 : i32, i32, i32
  }
}

module attributes {stable_mosaic.version = 11 : i64} {
  func.func @_conv3_kernel(%arg0: i32, %arg1: memref<512x4xbf16, #tpu.memory_space<vmem>>, %arg2: memref<1x4xf32, #tpu.memory_space<vmem>>, %arg3: memref<1x4xf32, #tpu.memory_space<vmem>>, %arg4: memref<4x16xbf16, #tpu.memory_space<vmem>>, %arg5: memref<512x16xbf16, #tpu.memory_space<vmem>>, %arg6: memref<1x1x16xf32, #tpu.memory_space<vmem>>, %arg7: memref<1x1x16xf32, #tpu.memory_space<vmem>>) attributes {dimension_semantics = [#tpu.dimension_semantics<parallel>], iteration_bounds = array<i64: 1>, scalar_prefetch = 0 : i64, scratch_operands = 0 : i64, tpu.core_type = #tpu.core_type<tc>, window_params = [{transform_indices = @transform_0, window_bounds = array<i64: 512, 4>}, {pipeline_mode = #tpu.pipeline_mode<synchronous>, transform_indices = @transform_1, window_bounds = array<i64: 1, 4>}, {pipeline_mode = #tpu.pipeline_mode<synchronous>, transform_indices = @transform_2, window_bounds = array<i64: 1, 4>}, {pipeline_mode = #tpu.pipeline_mode<synchronous>, transform_indices = @transform_3, window_bounds = array<i64: 4, 16>}, {transform_indices = @transform_4, window_bounds = array<i64: 512, 16>}, {transform_indices = @transform_5, window_bounds = array<i64: 1, 1, 16>}, {transform_indices = @transform_6, window_bounds = array<i64: 1, 1, 16>}]} {
    %c0 = arith.constant 0 : index
    %c0_0 = arith.constant 0 : index
    %0 = vector.load %arg1[%c0, %c0_0] : memref<512x4xbf16, #tpu.memory_space<vmem>>, vector<512x4xbf16>
    %1 = arith.extf %0 : vector<512x4xbf16> to vector<512x4xf32>
    %c0_1 = arith.constant 0 : index
    %c0_2 = arith.constant 0 : index
    %2 = vector.load %arg2[%c0_1, %c0_2] : memref<1x4xf32, #tpu.memory_space<vmem>>, vector<1x4xf32>
    %3 = vector.broadcast %2 : vector<1x4xf32> to vector<512x4xf32>
    %4 = arith.subf %1, %3 : vector<512x4xf32>
    %c0_3 = arith.constant 0 : index
    %c0_4 = arith.constant 0 : index
    %5 = vector.load %arg3[%c0_3, %c0_4] : memref<1x4xf32, #tpu.memory_space<vmem>>, vector<1x4xf32>
    %6 = vector.broadcast %5 : vector<1x4xf32> to vector<512x4xf32>
    %7 = arith.mulf %4, %6 : vector<512x4xf32>
    %8 = arith.negf %7 : vector<512x4xf32>
    %9 = math.exp %8 : vector<512x4xf32>
    %cst = arith.constant 1.000000e+00 : f32
    %10 = vector.broadcast %cst : f32 to vector<512x4xf32>
    %11 = arith.addf %10, %9 : vector<512x4xf32>
    %12 = arith.divf %10, %11 : vector<512x4xf32>
    %13 = arith.mulf %7, %12 : vector<512x4xf32>
    %14 = arith.truncf %13 : vector<512x4xf32> to vector<512x4xbf16>
    %c0_5 = arith.constant 0 : index
    %c0_6 = arith.constant 0 : index
    %15 = vector.load %arg4[%c0_5, %c0_6] : memref<4x16xbf16, #tpu.memory_space<vmem>>, vector<4x16xbf16>
    %cst_7 = arith.constant dense<0.000000e+00> : vector<512x16xf32>
    %16 = tpu.matmul %14, %15, %cst_7 {dimension_numbers = #tpu.dot_dimension_numbers<[1], [0], [0], [1], [0, 0, 1, 1], [], []>} : vector<512x4xbf16>, vector<4x16xbf16>, vector<512x16xf32> -> vector<512x16xf32>
    %17 = arith.truncf %16 : vector<512x16xf32> to vector<512x16xbf16>
    %c0_8 = arith.constant 0 : index
    %c0_9 = arith.constant 0 : index
    %18 = vector.load %arg5[%c0_8, %c0_9] : memref<512x16xbf16, #tpu.memory_space<vmem>>, vector<512x16xbf16>
    tpu.vector_store %arg5[%c0_8, %c0_9], %17 {strides = array<i32>} : memref<512x16xbf16, #tpu.memory_space<vmem>>, vector<512x16xbf16>,
    %cst_10 = arith.constant dense<0.000000e+00> : vector<16xf32>
    %19 = vector.multi_reduction <add>, %16, %cst_10 [0] : vector<512x16xf32> to vector<16xf32>
    %20 = vector.shape_cast %19 : vector<16xf32> to vector<1x16xf32>
    %c0_11 = arith.constant 0 : index
    %c0_12 = arith.constant 0 : index
    %c0_13 = arith.constant 0 : index
    %21 = vector.load %arg6[%c0_11, %c0_12, %c0_13] : memref<1x1x16xf32, #tpu.memory_space<vmem>>, vector<1x1x16xf32>
    %22 = vector.shape_cast %21 : vector<1x1x16xf32> to vector<1x16xf32>
    %23 = vector.shape_cast %20 : vector<1x16xf32> to vector<1x1x16xf32>
    tpu.vector_store %arg6[%c0_11, %c0_12, %c0_13], %23 {strides = array<i32>} : memref<1x1x16xf32, #tpu.memory_space<vmem>>, vector<1x1x16xf32>,
    %24 = arith.mulf %16, %16 : vector<512x16xf32>
    %cst_14 = arith.constant dense<0.000000e+00> : vector<16xf32>
    %25 = vector.multi_reduction <add>, %24, %cst_14 [0] : vector<512x16xf32> to vector<16xf32>
    %26 = vector.shape_cast %25 : vector<16xf32> to vector<1x16xf32>
    %c0_15 = arith.constant 0 : index
    %c0_16 = arith.constant 0 : index
    %c0_17 = arith.constant 0 : index
    %27 = vector.load %arg7[%c0_15, %c0_16, %c0_17] : memref<1x1x16xf32, #tpu.memory_space<vmem>>, vector<1x1x16xf32>
    %28 = vector.shape_cast %27 : vector<1x1x16xf32> to vector<1x16xf32>
    %29 = vector.shape_cast %26 : vector<1x16xf32> to vector<1x1x16xf32>
    tpu.vector_store %arg7[%c0_15, %c0_16, %c0_17], %29 {strides = array<i32>} : memref<1x1x16xf32, #tpu.memory_space<vmem>>, vector<1x1x16xf32>,
    return
  }
  func.func @transform_0(%arg0: i32) -> (i32, i32) {
    %c0_i32 = arith.constant 0 : i32
    %c0_i32_0 = arith.constant 0 : i32
    return %arg0, %c0_i32 : i32, i32
  }
  func.func @transform_1(%arg0: i32) -> (i32, i32) {
    %c0_i32 = arith.constant 0 : i32
    %c0_i32_0 = arith.constant 0 : i32
    %c0_i32_1 = arith.constant 0 : i32
    return %c0_i32, %c0_i32_0 : i32, i32
  }
  func.func @transform_2(%arg0: i32) -> (i32, i32) {
    %c0_i32 = arith.constant 0 : i32
    %c0_i32_0 = arith.constant 0 : i32
    %c0_i32_1 = arith.constant 0 : i32
    return %c0_i32, %c0_i32_0 : i32, i32
  }
  func.func @transform_3(%arg0: i32) -> (i32, i32) {
    %c0_i32 = arith.constant 0 : i32
    %c0_i32_0 = arith.constant 0 : i32
    %c0_i32_1 = arith.constant 0 : i32
    return %c0_i32, %c0_i32_0 : i32, i32
  }
  func.func @transform_4(%arg0: i32) -> (i32, i32) {
    %c0_i32 = arith.constant 0 : i32
    %c0_i32_0 = arith.constant 0 : i32
    return %arg0, %c0_i32 : i32, i32
  }
  func.func @transform_5(%arg0: i32) -> (i32, i32, i32) {
    %c0_i32 = arith.constant 0 : i32
    %c0_i32_0 = arith.constant 0 : i32
    %c0_i32_1 = arith.constant 0 : i32
    return %arg0, %c0_i32, %c0_i32_0 : i32, i32, i32
  }
  func.func @transform_6(%arg0: i32) -> (i32, i32, i32) {
    %c0_i32 = arith.constant 0 : i32
    %c0_i32_0 = arith.constant 0 : i32
    %c0_i32_1 = arith.constant 0 : i32
    return %arg0, %c0_i32, %c0_i32_0 : i32, i32, i32
  }
}

module attributes {stable_mosaic.version = 11 : i64} {
  func.func @_epilogue_skip_kernel(%arg0: i32, %arg1: memref<512x16xbf16, #tpu.memory_space<vmem>>, %arg2: memref<1x16xf32, #tpu.memory_space<vmem>>, %arg3: memref<1x16xf32, #tpu.memory_space<vmem>>, %arg4: memref<512x16xbf16, #tpu.memory_space<vmem>>, %arg5: memref<1x16xf32, #tpu.memory_space<vmem>>, %arg6: memref<1x16xf32, #tpu.memory_space<vmem>>, %arg7: memref<512x16xf32, #tpu.memory_space<vmem>>) attributes {dimension_semantics = [#tpu.dimension_semantics<parallel>], iteration_bounds = array<i64: 1>, scalar_prefetch = 0 : i64, scratch_operands = 0 : i64, tpu.core_type = #tpu.core_type<tc>, window_params = [{transform_indices = @transform_0, window_bounds = array<i64: 512, 16>}, {pipeline_mode = #tpu.pipeline_mode<synchronous>, transform_indices = @transform_1, window_bounds = array<i64: 1, 16>}, {pipeline_mode = #tpu.pipeline_mode<synchronous>, transform_indices = @transform_2, window_bounds = array<i64: 1, 16>}, {transform_indices = @transform_3, window_bounds = array<i64: 512, 16>}, {pipeline_mode = #tpu.pipeline_mode<synchronous>, transform_indices = @transform_4, window_bounds = array<i64: 1, 16>}, {pipeline_mode = #tpu.pipeline_mode<synchronous>, transform_indices = @transform_5, window_bounds = array<i64: 1, 16>}, {transform_indices = @transform_6, window_bounds = array<i64: 512, 16>}]} {
    %c0 = arith.constant 0 : index
    %c0_0 = arith.constant 0 : index
    %0 = vector.load %arg1[%c0, %c0_0] : memref<512x16xbf16, #tpu.memory_space<vmem>>, vector<512x16xbf16>
    %1 = arith.extf %0 : vector<512x16xbf16> to vector<512x16xf32>
    %c0_1 = arith.constant 0 : index
    %c0_2 = arith.constant 0 : index
    %2 = vector.load %arg2[%c0_1, %c0_2] : memref<1x16xf32, #tpu.memory_space<vmem>>, vector<1x16xf32>
    %3 = vector.broadcast %2 : vector<1x16xf32> to vector<512x16xf32>
    %4 = arith.subf %1, %3 : vector<512x16xf32>
    %c0_3 = arith.constant 0 : index
    %c0_4 = arith.constant 0 : index
    %5 = vector.load %arg3[%c0_3, %c0_4] : memref<1x16xf32, #tpu.memory_space<vmem>>, vector<1x16xf32>
    %6 = vector.broadcast %5 : vector<1x16xf32> to vector<512x16xf32>
    %7 = arith.mulf %4, %6 : vector<512x16xf32>
    %c0_5 = arith.constant 0 : index
    %c0_6 = arith.constant 0 : index
    %8 = vector.load %arg4[%c0_5, %c0_6] : memref<512x16xbf16, #tpu.memory_space<vmem>>, vector<512x16xbf16>
    %9 = arith.extf %8 : vector<512x16xbf16> to vector<512x16xf32>
    %c0_7 = arith.constant 0 : index
    %c0_8 = arith.constant 0 : index
    %10 = vector.load %arg5[%c0_7, %c0_8] : memref<1x16xf32, #tpu.memory_space<vmem>>, vector<1x16xf32>
    %11 = vector.broadcast %10 : vector<1x16xf32> to vector<512x16xf32>
    %12 = arith.subf %9, %11 : vector<512x16xf32>
    %c0_9 = arith.constant 0 : index
    %c0_10 = arith.constant 0 : index
    %13 = vector.load %arg6[%c0_9, %c0_10] : memref<1x16xf32, #tpu.memory_space<vmem>>, vector<1x16xf32>
    %14 = vector.broadcast %13 : vector<1x16xf32> to vector<512x16xf32>
    %15 = arith.mulf %12, %14 : vector<512x16xf32>
    %16 = arith.addf %7, %15 : vector<512x16xf32>
    %17 = arith.negf %16 : vector<512x16xf32>
    %18 = math.exp %17 : vector<512x16xf32>
    %cst = arith.constant 1.000000e+00 : f32
    %19 = vector.broadcast %cst : f32 to vector<512x16xf32>
    %20 = arith.addf %19, %18 : vector<512x16xf32>
    %21 = arith.divf %19, %20 : vector<512x16xf32>
    %22 = arith.mulf %16, %21 : vector<512x16xf32>
    %c0_11 = arith.constant 0 : index
    %c0_12 = arith.constant 0 : index
    %23 = vector.load %arg7[%c0_11, %c0_12] : memref<512x16xf32, #tpu.memory_space<vmem>>, vector<512x16xf32>
    tpu.vector_store %arg7[%c0_11, %c0_12], %22 {strides = array<i32>} : memref<512x16xf32, #tpu.memory_space<vmem>>, vector<512x16xf32>,
    return
  }
  func.func @transform_0(%arg0: i32) -> (i32, i32) {
    %c0_i32 = arith.constant 0 : i32
    %c0_i32_0 = arith.constant 0 : i32
    return %arg0, %c0_i32 : i32, i32
  }
  func.func @transform_1(%arg0: i32) -> (i32, i32) {
    %c0_i32 = arith.constant 0 : i32
    %c0_i32_0 = arith.constant 0 : i32
    %c0_i32_1 = arith.constant 0 : i32
    return %c0_i32, %c0_i32_0 : i32, i32
  }
  func.func @transform_2(%arg0: i32) -> (i32, i32) {
    %c0_i32 = arith.constant 0 : i32
    %c0_i32_0 = arith.constant 0 : i32
    %c0_i32_1 = arith.constant 0 : i32
    return %c0_i32, %c0_i32_0 : i32, i32
  }
  func.func @transform_3(%arg0: i32) -> (i32, i32) {
    %c0_i32 = arith.constant 0 : i32
    %c0_i32_0 = arith.constant 0 : i32
    return %arg0, %c0_i32 : i32, i32
  }
  func.func @transform_4(%arg0: i32) -> (i32, i32) {
    %c0_i32 = arith.constant 0 : i32
    %c0_i32_0 = arith.constant 0 : i32
    %c0_i32_1 = arith.constant 0 : i32
    return %c0_i32, %c0_i32_0 : i32, i32
  }
  func.func @transform_5(%arg0: i32) -> (i32, i32) {
    %c0_i32 = arith.constant 0 : i32
    %c0_i32_0 = arith.constant 0 : i32
    %c0_i32_1 = arith.constant 0 : i32
    return %c0_i32, %c0_i32_0 : i32, i32
  }
  func.func @transform_6(%arg0: i32) -> (i32, i32) {
    %c0_i32 = arith.constant 0 : i32
    %c0_i32_0 = arith.constant 0 : i32
    return %arg0, %c0_i32 : i32, i32
  }
}

</mosaic_0001>

<llo_original>
// kernel: resnet_block_forward.6
$region0: #{resnet_block_forward.6}
  #allocation0 [shape = 'u32[]', space=smem, size = 0x4, offset = 0x4, fixed_abs, tag = 'smem constant byte address 0x4 - core index']
  #allocation1 [shape = 'u32[144,128]{1,0:T(1,128)}', space=vmem, size = 0x12000, scoped, tag = 'internal scratch']
  %s0 = inlined_call_operand.hbm [shape: bf16[512,4], index: 0, kind: input, shape index: {}]
  %s1 = inlined_call_operand.hbm [shape: f32[1,4], index: 1, kind: input, shape index: {}]
  %s2 = inlined_call_operand.hbm [shape: f32[1,4], index: 2, kind: input, shape index: {}]
  %s3 = inlined_call_operand.hbm [shape: bf16[4,16], index: 3, kind: input, shape index: {}]
  %s4 = inlined_call_operand.hbm [shape: bf16[512,16], index: 4, kind: output, shape index: {0}]
  %s5 = inlined_call_operand.hbm [shape: f32[1,1,16], index: 5, kind: output, shape index: {1}]
  %s6 = inlined_call_operand.hbm [shape: f32[1,1,16], index: 6, kind: output, shape index: {2}]
  %7 = xla_tuple %s4, %s5, %s6
  %s8 = sld [smem:[#allocation0]]
  $region58: #{resnet_block_forward.6} parent=0
    _
  %s10 = ssub.s32 1, %s8
  %s11 = scalar_select 0, %s10, %s8
  $region1: #{resnet_block_forward.6} parent=0
    #allocation2 [shape = 'u8[131072]{0}', space=vmem, size = 0x20000, scoped, tag = 'input window, operand 0, single buffered']
    #allocation3 [shape = 's32[1]{0}', space=sflag, size = 0x4, scoped, tag = 'scoped memory for resnet_block_forward.6']
    #allocation4 [shape = 's32[1]{0}', space=sflag, size = 0x4, scoped, tag = 'scoped memory for resnet_block_forward.6']
    #allocation5 [shape = 'u8[512]{0}', space=vmem, size = 0x400, scoped, tag = 'input window, operand 1, single buffered']
    #allocation6 [shape = 's32[1]{0}', space=sflag, size = 0x4, scoped, tag = 'scoped memory for resnet_block_forward.6']
    #allocation7 [shape = 'u8[512]{0}', space=vmem, size = 0x400, scoped, tag = 'input window, operand 2, single buffered']
    #allocation8 [shape = 'u8[1024]{0}', space=vmem, size = 0x400, scoped, tag = 'input window, operand 3, single buffered']
    #allocation9 [shape = 's32[1]{0}', space=sflag, size = 0x4, scoped, tag = 'scoped memory for resnet_block_forward.6']
    #allocation10 [shape = 'u8[131072]{0}', space=vmem, size = 0x20000, scoped, tag = 'output window, operand 0, single buffered']
    #allocation11 [shape = 'u8[512]{0}', space=vmem, size = 0x400, scoped, tag = 'output window, operand 1, single buffered']
    #allocation12 [shape = 's32[1]{0}', space=sflag, size = 0x4, scoped, tag = 'scoped memory for resnet_block_forward.6']
    #allocation13 [shape = 'u8[512]{0}', space=vmem, size = 0x400, scoped, tag = 'output window, operand 2, single buffered']
    %12 = vsyncpa [#allocation3], 0
    %13 = vsyncpa [#allocation6], 0
    %14 = vsyncpa [#allocation9], 0
    %15 = vsyncpa [#allocation4], 0
    %16 = vsyncpa [#allocation12], 0
    // Predicated region
    $region2: #{resnet_block_forward.6} parent=1 // pred_check
      _
    $region3: #{resnet_block_forward.6} parent=1 // pred_check_branch
      %18 = sbr.rel (0) target = $region5
    $region4: #{resnet_block_forward.6} parent=1 // pred_region
      %s20 = ssub.s32 4096, 4096
      %21 = vsyncadd [#allocation3], %s20
      %s22 = sshll.u32 [#allocation2], 4
      %s23 = int_to_ptr.vmem [resolvable:$true] %s22
      %28 = dma.hbm_to_vmem [thread:$0]  %s0, 4096, %s23, [#allocation3], 64, 64, 4
    $region5: #{resnet_block_forward.6} parent=1 // pred_fallthru
      _
    // Predicated region
    $region6: #{resnet_block_forward.6} parent=1 // pred_check
      _
    $region7: #{resnet_block_forward.6} parent=1 // pred_check_branch
      %30 = sbr.rel (0) target = $region9
    $region8: #{resnet_block_forward.6} parent=1 // pred_region
      %s32 = ssub.s32 16, 16
      %33 = vsyncadd [#allocation6], %s32
      %s35 = sshll.u32 [#allocation5], 4
      %s36 = int_to_ptr.vmem [resolvable:$true] %s35
      %38 = dma.hbm_to_vmem [thread:$0]  %s1, 16, %s36, [#allocation6]
    $region9: #{resnet_block_forward.6} parent=1 // pred_fallthru
      _
    // Predicated region
    $region10: #{resnet_block_forward.6} parent=1 // pred_check
      _
    $region11: #{resnet_block_forward.6} parent=1 // pred_check_branch
      %40 = sbr.rel (0) target = $region13
    $region12: #{resnet_block_forward.6} parent=1 // pred_region
      %s42 = ssub.s32 16, 16
      %43 = vsyncadd [#allocation6], %s42
      %s45 = sshll.u32 [#allocation7], 4
      %s46 = int_to_ptr.vmem [resolvable:$true] %s45
      %48 = dma.hbm_to_vmem [thread:$0]  %s2, 16, %s46, [#allocation6]
    $region13: #{resnet_block_forward.6} parent=1 // pred_fallthru
      _
    // Predicated region
    $region14: #{resnet_block_forward.6} parent=1 // pred_check
      _
    $region15: #{resnet_block_forward.6} parent=1 // pred_check_branch
      %50 = sbr.rel (0) target = $region17
    $region16: #{resnet_block_forward.6} parent=1 // pred_region
      %s52 = ssub.s32 32, 32
      %53 = vsyncadd [#allocation9], %s52
      %s55 = sshll.u32 [#allocation8], 4
      %s56 = int_to_ptr.vmem [resolvable:$true] %s55
      %58 = dma.hbm_to_vmem [thread:$0]  %s3, 32, %s56, [#allocation9]
    $region17: #{resnet_block_forward.6} parent=1 // pred_fallthru
      _
    // Predicated region
    $region18: #{resnet_block_forward.6} parent=1 // pred_check
      _
    $region19: #{resnet_block_forward.6} parent=1 // pred_check_branch
      %60 = sbr.rel (0) target = $region21
    $region20: #{resnet_block_forward.6} parent=1 // pred_region
      %61 = dma.done [#allocation3], 4096
    $region21: #{resnet_block_forward.6} parent=1 // pred_fallthru
      _
    // Predicated region
    $region22: #{resnet_block_forward.6} parent=1 // pred_check
      _
    $region23: #{resnet_block_forward.6} parent=1 // pred_check_branch
      %63 = sbr.rel (0) target = $region25
    $region24: #{resnet_block_forward.6} parent=1 // pred_region
      %64 = dma.done [#allocation6], 16
    $region25: #{resnet_block_forward.6} parent=1 // pred_fallthru
      _
    // Predicated region
    $region26: #{resnet_block_forward.6} parent=1 // pred_check
      _
    $region27: #{resnet_block_forward.6} parent=1 // pred_check_branch
      %66 = sbr.rel (0) target = $region29
    $region28: #{resnet_block_forward.6} parent=1 // pred_region
      %67 = dma.done [#allocation6], 16
    $region29: #{resnet_block_forward.6} parent=1 // pred_fallthru
      _
    // Predicated region
    $region30: #{resnet_block_forward.6} parent=1 // pred_check
      _
    $region31: #{resnet_block_forward.6} parent=1 // pred_check_branch
      %69 = sbr.rel (0) target = $region33
    $region32: #{resnet_block_forward.6} parent=1 // pred_region
      %70 = dma.done [#allocation9], 32
    $region33: #{resnet_block_forward.6} parent=1 // pred_fallthru
      _
    %v72 = vld [vmem:[#allocation2] sm:$0xf]
    %v73 = vld [vmem:[#allocation2 + $0x4] sm:$0xf]
    %v74 = vld [vmem:[#allocation2 + $0x8] sm:$0xf]
    %v75 = vld [vmem:[#allocation2 + $0xc] sm:$0xf]
    %v76 = vld [vmem:[#allocation2 + $0x10] sm:$0xf]
    %v77 = vld [vmem:[#allocation2 + $0x14] sm:$0xf]
    %v78 = vld [vmem:[#allocation2 + $0x18] sm:$0xf]
    %v79 = vld [vmem:[#allocation2 + $0x1c] sm:$0xf]
    %v80 = vld [vmem:[#allocation2 + $0x20] sm:$0xf]
    %v81 = vld [vmem:[#allocation2 + $0x24] sm:$0xf]
    %v82 = vld [vmem:[#allocation2 + $0x28] sm:$0xf]
    %v83 = vld [vmem:[#allocation2 + $0x2c] sm:$0xf]
    %v84 = vld [vmem:[#allocation2 + $0x30] sm:$0xf]
    %v85 = vld [vmem:[#allocation2 + $0x34] sm:$0xf]
    %v86 = vld [vmem:[#allocation2 + $0x38] sm:$0xf]
    %v87 = vld [vmem:[#allocation2 + $0x3c] sm:$0xf]
    %v88 = vld [vmem:[#allocation2 + $0x40] sm:$0xf]
    %v89 = vld [vmem:[#allocation2 + $0x44] sm:$0xf]
    %v90 = vld [vmem:[#allocation2 + $0x48] sm:$0xf]
    %v91 = vld [vmem:[#allocation2 + $0x4c] sm:$0xf]
    %v92 = vld [vmem:[#allocation2 + $0x50] sm:$0xf]
    %v93 = vld [vmem:[#allocation2 + $0x54] sm:$0xf]
    %v94 = vld [vmem:[#allocation2 + $0x58] sm:$0xf]
    %v95 = vld [vmem:[#allocation2 + $0x5c] sm:$0xf]
    %v96 = vld [vmem:[#allocation2 + $0x60] sm:$0xf]
    %v97 = vld [vmem:[#allocation2 + $0x64] sm:$0xf]
    %v98 = vld [vmem:[#allocation2 + $0x68] sm:$0xf]
    %v99 = vld [vmem:[#allocation2 + $0x6c] sm:$0xf]
    %v100 = vld [vmem:[#allocation2 + $0x70] sm:$0xf]
    %v101 = vld [vmem:[#allocation2 + $0x74] sm:$0xf]
    %v102 = vld [vmem:[#allocation2 + $0x78] sm:$0xf]
    %v103 = vld [vmem:[#allocation2 + $0x7c] sm:$0xf]
    %v104 = vld [vmem:[#allocation2 + $0x80] sm:$0xf]
    %v105 = vld [vmem:[#allocation2 + $0x84] sm:$0xf]
    %v106 = vld [vmem:[#allocation2 + $0x88] sm:$0xf]
    %v107 = vld [vmem:[#allocation2 + $0x8c] sm:$0xf]
    %v108 = vld [vmem:[#allocation2 + $0x90] sm:$0xf]
    %v109 = vld [vmem:[#allocation2 + $0x94] sm:$0xf]
    %v110 = vld [vmem:[#allocation2 + $0x98] sm:$0xf]
    %v111 = vld [vmem:[#allocation2 + $0x9c] sm:$0xf]
    %v112 = vld [vmem:[#allocation2 + $0xa0] sm:$0xf]
    %v113 = vld [vmem:[#allocation2 + $0xa4] sm:$0xf]
    %v114 = vld [vmem:[#allocation2 + $0xa8] sm:$0xf]
    %v115 = vld [vmem:[#allocation2 + $0xac] sm:$0xf]
    %v116 = vld [vmem:[#allocation2 + $0xb0] sm:$0xf]
    %v117 = vld [vmem:[#allocation2 + $0xb4] sm:$0xf]
    %v118 = vld [vmem:[#allocation2 + $0xb8] sm:$0xf]
    %v119 = vld [vmem:[#allocation2 + $0xbc] sm:$0xf]
    %v120 = vld [vmem:[#allocation2 + $0xc0] sm:$0xf]
    %v121 = vld [vmem:[#allocation2 + $0xc4] sm:$0xf]
    %v122 = vld [vmem:[#allocation2 + $0xc8] sm:$0xf]
    %v123 = vld [vmem:[#allocation2 + $0xcc] sm:$0xf]
    %v124 = vld [vmem:[#allocation2 + $0xd0] sm:$0xf]
    %v125 = vld [vmem:[#allocation2 + $0xd4] sm:$0xf]
    %v126 = vld [vmem:[#allocation2 + $0xd8] sm:$0xf]
    %v127 = vld [vmem:[#allocation2 + $0xdc] sm:$0xf]
    %v128 = vld [vmem:[#allocation2 + $0xe0] sm:$0xf]
    %v129 = vld [vmem:[#allocation2 + $0xe4] sm:$0xf]
    %v130 = vld [vmem:[#allocation2 + $0xe8] sm:$0xf]
    %v131 = vld [vmem:[#allocation2 + $0xec] sm:$0xf]
    %v132 = vld [vmem:[#allocation2 + $0xf0] sm:$0xf]
    %v133 = vld [vmem:[#allocation2 + $0xf4] sm:$0xf]
    %v134 = vld [vmem:[#allocation2 + $0xf8] sm:$0xf]
    %v135 = vld [vmem:[#allocation2 + $0xfc] sm:$0xf]
    %v136 = vunpack.c.l.bf16 %v72
    %v137 = vunpack.c.l.bf16 %v73
    %v138 = vunpack.c.l.bf16 %v74
    %v139 = vunpack.c.l.bf16 %v75
    %v140 = vunpack.c.l.bf16 %v76
    %v141 = vunpack.c.l.bf16 %v77
    %v142 = vunpack.c.l.bf16 %v78
    %v143 = vunpack.c.l.bf16 %v79
    %v144 = vunpack.c.l.bf16 %v80
    %v145 = vunpack.c.l.bf16 %v81
    %v146 = vunpack.c.l.bf16 %v82
    %v147 = vunpack.c.l.bf16 %v83
    %v148 = vunpack.c.l.bf16 %v84
    %v149 = vunpack.c.l.bf16 %v85
    %v150 = vunpack.c.l.bf16 %v86
    %v151 = vunpack.c.l.bf16 %v87
    %v152 = vunpack.c.l.bf16 %v88
    %v153 = vunpack.c.l.bf16 %v89
    %v154 = vunpack.c.l.bf16 %v90
    %v155 = vunpack.c.l.bf16 %v91
    %v156 = vunpack.c.l.bf16 %v92
    %v157 = vunpack.c.l.bf16 %v93
    %v158 = vunpack.c.l.bf16 %v94
    %v159 = vunpack.c.l.bf16 %v95
    %v160 = vunpack.c.l.bf16 %v96
    %v161 = vunpack.c.l.bf16 %v97
    %v162 = vunpack.c.l.bf16 %v98
    %v163 = vunpack.c.l.bf16 %v99
    %v164 = vunpack.c.l.bf16 %v100
    %v165 = vunpack.c.l.bf16 %v101
    %v166 = vunpack.c.l.bf16 %v102
    %v167 = vunpack.c.l.bf16 %v103
    %v168 = vunpack.c.l.bf16 %v104
    %v169 = vunpack.c.l.bf16 %v105
    %v170 = vunpack.c.l.bf16 %v106
    %v171 = vunpack.c.l.bf16 %v107
    %v172 = vunpack.c.l.bf16 %v108
    %v173 = vunpack.c.l.bf16 %v109
    %v174 = vunpack.c.l.bf16 %v110
    %v175 = vunpack.c.l.bf16 %v111
    %v176 = vunpack.c.l.bf16 %v112
    %v177 = vunpack.c.l.bf16 %v113
    %v178 = vunpack.c.l.bf16 %v114
    %v179 = vunpack.c.l.bf16 %v115
    %v180 = vunpack.c.l.bf16 %v116
    %v181 = vunpack.c.l.bf16 %v117
    %v182 = vunpack.c.l.bf16 %v118
    %v183 = vunpack.c.l.bf16 %v119
    %v184 = vunpack.c.l.bf16 %v120
    %v185 = vunpack.c.l.bf16 %v121
    %v186 = vunpack.c.l.bf16 %v122
    %v187 = vunpack.c.l.bf16 %v123
    %v188 = vunpack.c.l.bf16 %v124
    %v189 = vunpack.c.l.bf16 %v125
    %v190 = vunpack.c.l.bf16 %v126
    %v191 = vunpack.c.l.bf16 %v127
    %v192 = vunpack.c.l.bf16 %v128
    %v193 = vunpack.c.l.bf16 %v129
    %v194 = vunpack.c.l.bf16 %v130
    %v195 = vunpack.c.l.bf16 %v131
    %v196 = vunpack.c.l.bf16 %v132
    %v197 = vunpack.c.l.bf16 %v133
    %v198 = vunpack.c.l.bf16 %v134
    %v199 = vunpack.c.l.bf16 %v135
    %v200 = vld [vmem:[#allocation5] sm:$0x1]
    %v202 = vlaneseq
    %v203 = vshrl.u32 %v202, 7
    %v204 = vsub.s32 0, %v203
    %v205 = vrot.slane %v200, %v204
    %v207 = vsub.f32 %v136, %v205
    %v208 = vsub.f32 %v137, %v205
    %v209 = vsub.f32 %v138, %v205
    %v210 = vsub.f32 %v139, %v205
    %v211 = vsub.f32 %v140, %v205
    %v212 = vsub.f32 %v141, %v205
    %v213 = vsub.f32 %v142, %v205
    %v214 = vsub.f32 %v143, %v205
    %v215 = vsub.f32 %v144, %v205
    %v216 = vsub.f32 %v145, %v205
    %v217 = vsub.f32 %v146, %v205
    %v218 = vsub.f32 %v147, %v205
    %v219 = vsub.f32 %v148, %v205
    %v220 = vsub.f32 %v149, %v205
    %v221 = vsub.f32 %v150, %v205
    %v222 = vsub.f32 %v151, %v205
    %v223 = vsub.f32 %v152, %v205
    %v224 = vsub.f32 %v153, %v205
    %v225 = vsub.f32 %v154, %v205
    %v226 = vsub.f32 %v155, %v205
    %v227 = vsub.f32 %v156, %v205
    %v228 = vsub.f32 %v157, %v205
    %v229 = vsub.f32 %v158, %v205
    %v230 = vsub.f32 %v159, %v205
    %v231 = vsub.f32 %v160, %v205
    %v232 = vsub.f32 %v161, %v205
    %v233 = vsub.f32 %v162, %v205
    %v234 = vsub.f32 %v163, %v205
    %v235 = vsub.f32 %v164, %v205
    %v236 = vsub.f32 %v165, %v205
    %v237 = vsub.f32 %v166, %v205
    %v238 = vsub.f32 %v167, %v205
    %v239 = vsub.f32 %v168, %v205
    %v240 = vsub.f32 %v169, %v205
    %v241 = vsub.f32 %v170, %v205
    %v242 = vsub.f32 %v171, %v205
    %v243 = vsub.f32 %v172, %v205
    %v244 = vsub.f32 %v173, %v205
    %v245 = vsub.f32 %v174, %v205
    %v246 = vsub.f32 %v175, %v205
    %v247 = vsub.f32 %v176, %v205
    %v248 = vsub.f32 %v177, %v205
    %v249 = vsub.f32 %v178, %v205
    %v250 = vsub.f32 %v179, %v205
    %v251 = vsub.f32 %v180, %v205
    %v252 = vsub.f32 %v181, %v205
    %v253 = vsub.f32 %v182, %v205
    %v254 = vsub.f32 %v183, %v205
    %v255 = vsub.f32 %v184, %v205
    %v256 = vsub.f32 %v185, %v205
    %v257 = vsub.f32 %v186, %v205
    %v258 = vsub.f32 %v187, %v205
    %v259 = vsub.f32 %v188, %v205
    %v260 = vsub.f32 %v189, %v205
    %v261 = vsub.f32 %v190, %v205
    %v262 = vsub.f32 %v191, %v205
    %v263 = vsub.f32 %v192, %v205
    %v264 = vsub.f32 %v193, %v205
    %v265 = vsub.f32 %v194, %v205
    %v266 = vsub.f32 %v195, %v205
    %v267 = vsub.f32 %v196, %v205
    %v268 = vsub.f32 %v197, %v205
    %v269 = vsub.f32 %v198, %v205
    %v270 = vsub.f32 %v199, %v205
    %v271 = vld [vmem:[#allocation7] sm:$0x1]
    %v273 = vlaneseq
    %v274 = vshrl.u32 %v273, 7
    %v275 = vsub.s32 0, %v274
    %v276 = vrot.slane %v271, %v275
    %v278 = vmul.f32 %v207, %v276
    %v279 = vmul.f32 %v208, %v276
    %v280 = vmul.f32 %v209, %v276
    %v281 = vmul.f32 %v210, %v276
    %v282 = vmul.f32 %v211, %v276
    %v283 = vmul.f32 %v212, %v276
    %v284 = vmul.f32 %v213, %v276
    %v285 = vmul.f32 %v214, %v276
    %v286 = vmul.f32 %v215, %v276
    %v287 = vmul.f32 %v216, %v276
    %v288 = vmul.f32 %v217, %v276
    %v289 = vmul.f32 %v218, %v276
    %v290 = vmul.f32 %v219, %v276
    %v291 = vmul.f32 %v220, %v276
    %v292 = vmul.f32 %v221, %v276
    %v293 = vmul.f32 %v222, %v276
    %v294 = vmul.f32 %v223, %v276
    %v295 = vmul.f32 %v224, %v276
    %v296 = vmul.f32 %v225, %v276
    %v297 = vmul.f32 %v226, %v276
    %v298 = vmul.f32 %v227, %v276
    %v299 = vmul.f32 %v228, %v276
    %v300 = vmul.f32 %v229, %v276
    %v301 = vmul.f32 %v230, %v276
    %v302 = vmul.f32 %v231, %v276
    %v303 = vmul.f32 %v232, %v276
    %v304 = vmul.f32 %v233, %v276
    %v305 = vmul.f32 %v234, %v276
    %v306 = vmul.f32 %v235, %v276
    %v307 = vmul.f32 %v236, %v276
    %v308 = vmul.f32 %v237, %v276
    %v309 = vmul.f32 %v238, %v276
    %v310 = vmul.f32 %v239, %v276
    %v311 = vmul.f32 %v240, %v276
    %v312 = vmul.f32 %v241, %v276
    %v313 = vmul.f32 %v242, %v276
    %v314 = vmul.f32 %v243, %v276
    %v315 = vmul.f32 %v244, %v276
    %v316 = vmul.f32 %v245, %v276
    %v317 = vmul.f32 %v246, %v276
    %v318 = vmul.f32 %v247, %v276
    %v319 = vmul.f32 %v248, %v276
    %v320 = vmul.f32 %v249, %v276
    %v321 = vmul.f32 %v250, %v276
    %v322 = vmul.f32 %v251, %v276
    %v323 = vmul.f32 %v252, %v276
    %v324 = vmul.f32 %v253, %v276
    %v325 = vmul.f32 %v254, %v276
    %v326 = vmul.f32 %v255, %v276
    %v327 = vmul.f32 %v256, %v276
    %v328 = vmul.f32 %v257, %v276
    %v329 = vmul.f32 %v258, %v276
    %v330 = vmul.f32 %v259, %v276
    %v331 = vmul.f32 %v260, %v276
    %v332 = vmul.f32 %v261, %v276
    %v333 = vmul.f32 %v262, %v276
    %v334 = vmul.f32 %v263, %v276
    %v335 = vmul.f32 %v264, %v276
    %v336 = vmul.f32 %v265, %v276
    %v337 = vmul.f32 %v266, %v276
    %v338 = vmul.f32 %v267, %v276
    %v339 = vmul.f32 %v268, %v276
    %v340 = vmul.f32 %v269, %v276
    %v341 = vmul.f32 %v270, %v276
    %v342 = vxor.u32 %v278, 2147483648
    %v343 = vxor.u32 %v279, 2147483648
    %v344 = vxor.u32 %v280, 2147483648
    %v345 = vxor.u32 %v281, 2147483648
    %v346 = vxor.u32 %v282, 2147483648
    %v347 = vxor.u32 %v283, 2147483648
    %v348 = vxor.u32 %v284, 2147483648
    %v349 = vxor.u32 %v285, 2147483648
    %v350 = vxor.u32 %v286, 2147483648
    %v351 = vxor.u32 %v287, 2147483648
    %v352 = vxor.u32 %v288, 2147483648
    %v353 = vxor.u32 %v289, 2147483648
    %v354 = vxor.u32 %v290, 2147483648
    %v355 = vxor.u32 %v291, 2147483648
    %v356 = vxor.u32 %v292, 2147483648
    %v357 = vxor.u32 %v293, 2147483648
    %v358 = vxor.u32 %v294, 2147483648
    %v359 = vxor.u32 %v295, 2147483648
    %v360 = vxor.u32 %v296, 2147483648
    %v361 = vxor.u32 %v297, 2147483648
    %v362 = vxor.u32 %v298, 2147483648
    %v363 = vxor.u32 %v299, 2147483648
    %v364 = vxor.u32 %v300, 2147483648
    %v365 = vxor.u32 %v301, 2147483648
    %v366 = vxor.u32 %v302, 2147483648
    %v367 = vxor.u32 %v303, 2147483648
    %v368 = vxor.u32 %v304, 2147483648
    %v369 = vxor.u32 %v305, 2147483648
    %v370 = vxor.u32 %v306, 2147483648
    %v371 = vxor.u32 %v307, 2147483648
    %v372 = vxor.u32 %v308, 2147483648
    %v373 = vxor.u32 %v309, 2147483648
    %v374 = vxor.u32 %v310, 2147483648
    %v375 = vxor.u32 %v311, 2147483648
    %v376 = vxor.u32 %v312, 2147483648
    %v377 = vxor.u32 %v313, 2147483648
    %v378 = vxor.u32 %v314, 2147483648
    %v379 = vxor.u32 %v315, 2147483648
    %v380 = vxor.u32 %v316, 2147483648
    %v381 = vxor.u32 %v317, 2147483648
    %v382 = vxor.u32 %v318, 2147483648
    %v383 = vxor.u32 %v319, 2147483648
    %v384 = vxor.u32 %v320, 2147483648
    %v385 = vxor.u32 %v321, 2147483648
    %v386 = vxor.u32 %v322, 2147483648
    %v387 = vxor.u32 %v323, 2147483648
    %v388 = vxor.u32 %v324, 2147483648
    %v389 = vxor.u32 %v325, 2147483648
    %v390 = vxor.u32 %v326, 2147483648
    %v391 = vxor.u32 %v327, 2147483648
    %v392 = vxor.u32 %v328, 2147483648
    %v393 = vxor.u32 %v329, 2147483648
    %v394 = vxor.u32 %v330, 2147483648
    %v395 = vxor.u32 %v331, 2147483648
    %v396 = vxor.u32 %v332, 2147483648
    %v397 = vxor.u32 %v333, 2147483648
    %v398 = vxor.u32 %v334, 2147483648
    %v399 = vxor.u32 %v335, 2147483648
    %v400 = vxor.u32 %v336, 2147483648
    %v401 = vxor.u32 %v337, 2147483648
    %v402 = vxor.u32 %v338, 2147483648
    %v403 = vxor.u32 %v339, 2147483648
    %v404 = vxor.u32 %v340, 2147483648
    %v405 = vxor.u32 %v341, 2147483648
    %v406 = vmul.f32 %v342, 1.442695
    %v407 = vpow.pop %v406
    %v408 = vmul.f32 %v343, 1.442695
    %v409 = vpow.pop %v408
    %v410 = vmul.f32 %v344, 1.442695
    %v411 = vpow.pop %v410
    %v412 = vmul.f32 %v345, 1.442695
    %v413 = vpow.pop %v412
    %v414 = vmul.f32 %v346, 1.442695
    %v415 = vpow.pop %v414
    %v416 = vmul.f32 %v347, 1.442695
    %v417 = vpow.pop %v416
    %v418 = vmul.f32 %v348, 1.442695
    %v419 = vpow.pop %v418
    %v420 = vmul.f32 %v349, 1.442695
    %v421 = vpow.pop %v420
    %v422 = vmul.f32 %v350, 1.442695
    %v423 = vpow.pop %v422
    %v424 = vmul.f32 %v351, 1.442695
    %v425 = vpow.pop %v424
    %v426 = vmul.f32 %v352, 1.442695
    %v427 = vpow.pop %v426
    %v428 = vmul.f32 %v353, 1.442695
    %v429 = vpow.pop %v428
    %v430 = vmul.f32 %v354, 1.442695
    %v431 = vpow.pop %v430
    %v432 = vmul.f32 %v355, 1.442695
    %v433 = vpow.pop %v432
    %v434 = vmul.f32 %v356, 1.442695
    %v435 = vpow.pop %v434
    %v436 = vmul.f32 %v357, 1.442695
    %v437 = vpow.pop %v436
    %v438 = vmul.f32 %v358, 1.442695
    %v439 = vpow.pop %v438
    %v440 = vmul.f32 %v359, 1.442695
    %v441 = vpow.pop %v440
    %v442 = vmul.f32 %v360, 1.442695
    %v443 = vpow.pop %v442
    %v444 = vmul.f32 %v361, 1.442695
    %v445 = vpow.pop %v444
    %v446 = vmul.f32 %v362, 1.442695
    %v447 = vpow.pop %v446
    %v448 = vmul.f32 %v363, 1.442695
    %v449 = vpow.pop %v448
    %v450 = vmul.f32 %v364, 1.442695
    %v451 = vpow.pop %v450
    %v452 = vmul.f32 %v365, 1.442695
    %v453 = vpow.pop %v452
    %v454 = vmul.f32 %v366, 1.442695
    %v455 = vpow.pop %v454
    %v456 = vmul.f32 %v367, 1.442695
    %v457 = vpow.pop %v456
    %v458 = vmul.f32 %v368, 1.442695
    %v459 = vpow.pop %v458
    %v460 = vmul.f32 %v369, 1.442695
    %v461 = vpow.pop %v460
    %v462 = vmul.f32 %v370, 1.442695
    %v463 = vpow.pop %v462
    %v464 = vmul.f32 %v371, 1.442695
    %v465 = vpow.pop %v464
    %v466 = vmul.f32 %v372, 1.442695
    %v467 = vpow.pop %v466
    %v468 = vmul.f32 %v373, 1.442695
    %v469 = vpow.pop %v468
    %v470 = vmul.f32 %v374, 1.442695
    %v471 = vpow.pop %v470
    %v472 = vmul.f32 %v375, 1.442695
    %v473 = vpow.pop %v472
    %v474 = vmul.f32 %v376, 1.442695
    %v475 = vpow.pop %v474
    %v476 = vmul.f32 %v377, 1.442695
    %v477 = vpow.pop %v476
    %v478 = vmul.f32 %v378, 1.442695
    %v479 = vpow.pop %v478
    %v480 = vmul.f32 %v379, 1.442695
    %v481 = vpow.pop %v480
    %v482 = vmul.f32 %v380, 1.442695
    %v483 = vpow.pop %v482
    %v484 = vmul.f32 %v381, 1.442695
    %v485 = vpow.pop %v484
    %v486 = vmul.f32 %v382, 1.442695
    %v487 = vpow.pop %v486
    %v488 = vmul.f32 %v383, 1.442695
    %v489 = vpow.pop %v488
    %v490 = vmul.f32 %v384, 1.442695
    %v491 = vpow.pop %v490
    %v492 = vmul.f32 %v385, 1.442695
    %v493 = vpow.pop %v492
    %v494 = vmul.f32 %v386, 1.442695
    %v495 = vpow.pop %v494
    %v496 = vmul.f32 %v387, 1.442695
    %v497 = vpow.pop %v496
    %v498 = vmul.f32 %v388, 1.442695
    %v499 = vpow.pop %v498
    %v500 = vmul.f32 %v389, 1.442695
    %v501 = vpow.pop %v500
    %v502 = vmul.f32 %v390, 1.442695
    %v503 = vpow.pop %v502
    %v504 = vmul.f32 %v391, 1.442695
    %v505 = vpow.pop %v504
    %v506 = vmul.f32 %v392, 1.442695
    %v507 = vpow.pop %v506
    %v508 = vmul.f32 %v393, 1.442695
    %v509 = vpow.pop %v508
    %v510 = vmul.f32 %v394, 1.442695
    %v511 = vpow.pop %v510
    %v512 = vmul.f32 %v395, 1.442695
    %v513 = vpow.pop %v512
    %v514 = vmul.f32 %v396, 1.442695
    %v515 = vpow.pop %v514
    %v516 = vmul.f32 %v397, 1.442695
    %v517 = vpow.pop %v516
    %v518 = vmul.f32 %v398, 1.442695
    %v519 = vpow.pop %v518
    %v520 = vmul.f32 %v399, 1.442695
    %v521 = vpow.pop %v520
    %v522 = vmul.f32 %v400, 1.442695
    %v523 = vpow.pop %v522
    %v524 = vmul.f32 %v401, 1.442695
    %v525 = vpow.pop %v524
    %v526 = vmul.f32 %v402, 1.442695
    %v527 = vpow.pop %v526
    %v528 = vmul.f32 %v403, 1.442695
    %v529 = vpow.pop %v528
    %v530 = vmul.f32 %v404, 1.442695
    %v531 = vpow.pop %v530
    %v532 = vmul.f32 %v405, 1.442695
    %v533 = vpow.pop %v532
    %v534 = vadd.f32 %v407, 1.0
    %v535 = vadd.f32 %v409, 1.0
    %v536 = vadd.f32 %v411, 1.0
    %v537 = vadd.f32 %v413, 1.0
    %v538 = vadd.f32 %v415, 1.0
    %v539 = vadd.f32 %v417, 1.0
    %v540 = vadd.f32 %v419, 1.0
    %v541 = vadd.f32 %v421, 1.0
    %v542 = vadd.f32 %v423, 1.0
    %v543 = vadd.f32 %v425, 1.0
    %v544 = vadd.f32 %v427, 1.0
    %v545 = vadd.f32 %v429, 1.0
    %v546 = vadd.f32 %v431, 1.0
    %v547 = vadd.f32 %v433, 1.0
    %v548 = vadd.f32 %v435, 1.0
    %v549 = vadd.f32 %v437, 1.0
    %v550 = vadd.f32 %v439, 1.0
    %v551 = vadd.f32 %v441, 1.0
    %v552 = vadd.f32 %v443, 1.0
    %v553 = vadd.f32 %v445, 1.0
    %v554 = vadd.f32 %v447, 1.0
    %v555 = vadd.f32 %v449, 1.0
    %v556 = vadd.f32 %v451, 1.0
    %v557 = vadd.f32 %v453, 1.0
    %v558 = vadd.f32 %v455, 1.0
    %v559 = vadd.f32 %v457, 1.0
    %v560 = vadd.f32 %v459, 1.0
    %v561 = vadd.f32 %v461, 1.0
    %v562 = vadd.f32 %v463, 1.0
    %v563 = vadd.f32 %v465, 1.0
    %v564 = vadd.f32 %v467, 1.0
    %v565 = vadd.f32 %v469, 1.0
    %v566 = vadd.f32 %v471, 1.0
    %v567 = vadd.f32 %v473, 1.0
    %v568 = vadd.f32 %v475, 1.0
    %v569 = vadd.f32 %v477, 1.0
    %v570 = vadd.f32 %v479, 1.0
    %v571 = vadd.f32 %v481, 1.0
    %v572 = vadd.f32 %v483, 1.0
    %v573 = vadd.f32 %v485, 1.0
    %v574 = vadd.f32 %v487, 1.0
    %v575 = vadd.f32 %v489, 1.0
    %v576 = vadd.f32 %v491, 1.0
    %v577 = vadd.f32 %v493, 1.0
    %v578 = vadd.f32 %v495, 1.0
    %v579 = vadd.f32 %v497, 1.0
    %v580 = vadd.f32 %v499, 1.0
    %v581 = vadd.f32 %v501, 1.0
    %v582 = vadd.f32 %v503, 1.0
    %v583 = vadd.f32 %v505, 1.0
    %v584 = vadd.f32 %v507, 1.0
    %v585 = vadd.f32 %v509, 1.0
    %v586 = vadd.f32 %v511, 1.0
    %v587 = vadd.f32 %v513, 1.0
    %v588 = vadd.f32 %v515, 1.0
    %v589 = vadd.f32 %v517, 1.0
    %v590 = vadd.f32 %v519, 1.0
    %v591 = vadd.f32 %v521, 1.0
    %v592 = vadd.f32 %v523, 1.0
    %v593 = vadd.f32 %v525, 1.0
    %v594 = vadd.f32 %v527, 1.0
    %v595 = vadd.f32 %v529, 1.0
    %v596 = vadd.f32 %v531, 1.0
    %v597 = vadd.f32 %v533, 1.0
    %v598 = vrcp.pop %v534
    %v599 = vmul.f32 1.0, %v598
    %v600 = vrcp.pop %v535
    %v601 = vmul.f32 1.0, %v600
    %v602 = vrcp.pop %v536
    %v603 = vmul.f32 1.0, %v602
    %v604 = vrcp.pop %v537
    %v605 = vmul.f32 1.0, %v604
    %v606 = vrcp.pop %v538
    %v607 = vmul.f32 1.0, %v606
    %v608 = vrcp.pop %v539
    %v609 = vmul.f32 1.0, %v608
    %v610 = vrcp.pop %v540
    %v611 = vmul.f32 1.0, %v610
    %v612 = vrcp.pop %v541
    %v613 = vmul.f32 1.0, %v612
    %v614 = vrcp.pop %v542
    %v615 = vmul.f32 1.0, %v614
    %v616 = vrcp.pop %v543
    %v617 = vmul.f32 1.0, %v616
    %v618 = vrcp.pop %v544
    %v619 = vmul.f32 1.0, %v618
    %v620 = vrcp.pop %v545
    %v621 = vmul.f32 1.0, %v620
    %v622 = vrcp.pop %v546
    %v623 = vmul.f32 1.0, %v622
    %v624 = vrcp.pop %v547
    %v625 = vmul.f32 1.0, %v624
    %v626 = vrcp.pop %v548
    %v627 = vmul.f32 1.0, %v626
    %v628 = vrcp.pop %v549
    %v629 = vmul.f32 1.0, %v628
    %v630 = vrcp.pop %v550
    %v631 = vmul.f32 1.0, %v630
    %v632 = vrcp.pop %v551
    %v633 = vmul.f32 1.0, %v632
    %v634 = vrcp.pop %v552
    %v635 = vmul.f32 1.0, %v634
    %v636 = vrcp.pop %v553
    %v637 = vmul.f32 1.0, %v636
    %v638 = vrcp.pop %v554
    %v639 = vmul.f32 1.0, %v638
    %v640 = vrcp.pop %v555
    %v641 = vmul.f32 1.0, %v640
    %v642 = vrcp.pop %v556
    %v643 = vmul.f32 1.0, %v642
    %v644 = vrcp.pop %v557
    %v645 = vmul.f32 1.0, %v644
    %v646 = vrcp.pop %v558
    %v647 = vmul.f32 1.0, %v646
    %v648 = vrcp.pop %v559
    %v649 = vmul.f32 1.0, %v648
    %v650 = vrcp.pop %v560
    %v651 = vmul.f32 1.0, %v650
    %v652 = vrcp.pop %v561
    %v653 = vmul.f32 1.0, %v652
    %v654 = vrcp.pop %v562
    %v655 = vmul.f32 1.0, %v654
    %v656 = vrcp.pop %v563
    %v657 = vmul.f32 1.0, %v656
    %v658 = vrcp.pop %v564
    %v659 = vmul.f32 1.0, %v658
    %v660 = vrcp.pop %v565
    %v661 = vmul.f32 1.0, %v660
    %v662 = vrcp.pop %v566
    %v663 = vmul.f32 1.0, %v662
    %v664 = vrcp.pop %v567
    %v665 = vmul.f32 1.0, %v664
    %v666 = vrcp.pop %v568
    %v667 = vmul.f32 1.0, %v666
    %v668 = vrcp.pop %v569
    %v669 = vmul.f32 1.0, %v668
    %v670 = vrcp.pop %v570
    %v671 = vmul.f32 1.0, %v670
    %v672 = vrcp.pop %v571
    %v673 = vmul.f32 1.0, %v672
    %v674 = vrcp.pop %v572
    %v675 = vmul.f32 1.0, %v674
    %v676 = vrcp.pop %v573
    %v677 = vmul.f32 1.0, %v676
    %v678 = vrcp.pop %v574
    %v679 = vmul.f32 1.0, %v678
    %v680 = vrcp.pop %v575
    %v681 = vmul.f32 1.0, %v680
    %v682 = vrcp.pop %v576
    %v683 = vmul.f32 1.0, %v682
    %v684 = vrcp.pop %v577
    %v685 = vmul.f32 1.0, %v684
    %v686 = vrcp.pop %v578
    %v687 = vmul.f32 1.0, %v686
    %v688 = vrcp.pop %v579
    %v689 = vmul.f32 1.0, %v688
    %v690 = vrcp.pop %v580
    %v691 = vmul.f32 1.0, %v690
    %v692 = vrcp.pop %v581
    %v693 = vmul.f32 1.0, %v692
    %v694 = vrcp.pop %v582
    %v695 = vmul.f32 1.0, %v694
    %v696 = vrcp.pop %v583
    %v697 = vmul.f32 1.0, %v696
    %v698 = vrcp.pop %v584
    %v699 = vmul.f32 1.0, %v698
    %v700 = vrcp.pop %v585
    %v701 = vmul.f32 1.0, %v700
    %v702 = vrcp.pop %v586
    %v703 = vmul.f32 1.0, %v702
    %v704 = vrcp.pop %v587
    %v705 = vmul.f32 1.0, %v704
    %v706 = vrcp.pop %v588
    %v707 = vmul.f32 1.0, %v706
    %v708 = vrcp.pop %v589
    %v709 = vmul.f32 1.0, %v708
    %v710 = vrcp.pop %v590
    %v711 = vmul.f32 1.0, %v710
    %v712 = vrcp.pop %v591
    %v713 = vmul.f32 1.0, %v712
    %v714 = vrcp.pop %v592
    %v715 = vmul.f32 1.0, %v714
    %v716 = vrcp.pop %v593
    %v717 = vmul.f32 1.0, %v716
    %v718 = vrcp.pop %v594
    %v719 = vmul.f32 1.0, %v718
    %v720 = vrcp.pop %v595
    %v721 = vmul.f32 1.0, %v720
    %v722 = vrcp.pop %v596
    %v723 = vmul.f32 1.0, %v722
    %v724 = vrcp.pop %v597
    %v725 = vmul.f32 1.0, %v724
    %v726 = vmul.f32 %v278, %v599
    %v727 = vmul.f32 %v279, %v601
    %v728 = vmul.f32 %v280, %v603
    %v729 = vmul.f32 %v281, %v605
    %v730 = vmul.f32 %v282, %v607
    %v731 = vmul.f32 %v283, %v609
    %v732 = vmul.f32 %v284, %v611
    %v733 = vmul.f32 %v285, %v613
    %v734 = vmul.f32 %v286, %v615
    %v735 = vmul.f32 %v287, %v617
    %v736 = vmul.f32 %v288, %v619
    %v737 = vmul.f32 %v289, %v621
    %v738 = vmul.f32 %v290, %v623
    %v739 = vmul.f32 %v291, %v625
    %v740 = vmul.f32 %v292, %v627
    %v741 = vmul.f32 %v293, %v629
    %v742 = vmul.f32 %v294, %v631
    %v743 = vmul.f32 %v295, %v633
    %v744 = vmul.f32 %v296, %v635
    %v745 = vmul.f32 %v297, %v637
    %v746 = vmul.f32 %v298, %v639
    %v747 = vmul.f32 %v299, %v641
    %v748 = vmul.f32 %v300, %v643
    %v749 = vmul.f32 %v301, %v645
    %v750 = vmul.f32 %v302, %v647
    %v751 = vmul.f32 %v303, %v649
    %v752 = vmul.f32 %v304, %v651
    %v753 = vmul.f32 %v305, %v653
    %v754 = vmul.f32 %v306, %v655
    %v755 = vmul.f32 %v307, %v657
    %v756 = vmul.f32 %v308, %v659
    %v757 = vmul.f32 %v309, %v661
    %v758 = vmul.f32 %v310, %v663
    %v759 = vmul.f32 %v311, %v665
    %v760 = vmul.f32 %v312, %v667
    %v761 = vmul.f32 %v313, %v669
    %v762 = vmul.f32 %v314, %v671
    %v763 = vmul.f32 %v315, %v673
    %v764 = vmul.f32 %v316, %v675
    %v765 = vmul.f32 %v317, %v677
    %v766 = vmul.f32 %v318, %v679
    %v767 = vmul.f32 %v319, %v681
    %v768 = vmul.f32 %v320, %v683
    %v769 = vmul.f32 %v321, %v685
    %v770 = vmul.f32 %v322, %v687
    %v771 = vmul.f32 %v323, %v689
    %v772 = vmul.f32 %v324, %v691
    %v773 = vmul.f32 %v325, %v693
    %v774 = vmul.f32 %v326, %v695
    %v775 = vmul.f32 %v327, %v697
    %v776 = vmul.f32 %v328, %v699
    %v777 = vmul.f32 %v329, %v701
    %v778 = vmul.f32 %v330, %v703
    %v779 = vmul.f32 %v331, %v705
    %v780 = vmul.f32 %v332, %v707
    %v781 = vmul.f32 %v333, %v709
    %v782 = vmul.f32 %v334, %v711
    %v783 = vmul.f32 %v335, %v713
    %v784 = vmul.f32 %v336, %v715
    %v785 = vmul.f32 %v337, %v717
    %v786 = vmul.f32 %v338, %v719
    %v787 = vmul.f32 %v339, %v721
    %v788 = vmul.f32 %v340, %v723
    %v789 = vmul.f32 %v341, %v725
    %v790 = vpack.c.bf16 %v727, %v726
    %v791 = vpack.c.bf16 %v729, %v728
    %v792 = vpack.c.bf16 %v731, %v730
    %v793 = vpack.c.bf16 %v733, %v732
    %v794 = vpack.c.bf16 %v735, %v734
    %v795 = vpack.c.bf16 %v737, %v736
    %v796 = vpack.c.bf16 %v739, %v738
    %v797 = vpack.c.bf16 %v741, %v740
    %v798 = vpack.c.bf16 %v743, %v742
    %v799 = vpack.c.bf16 %v745, %v744
    %v800 = vpack.c.bf16 %v747, %v746
    %v801 = vpack.c.bf16 %v749, %v748
    %v802 = vpack.c.bf16 %v751, %v750
    %v803 = vpack.c.bf16 %v753, %v752
    %v804 = vpack.c.bf16 %v755, %v754
    %v805 = vpack.c.bf16 %v757, %v756
    %v806 = vpack.c.bf16 %v759, %v758
    %v807 = vpack.c.bf16 %v761, %v760
    %v808 = vpack.c.bf16 %v763, %v762
    %v809 = vpack.c.bf16 %v765, %v764
    %v810 = vpack.c.bf16 %v767, %v766
    %v811 = vpack.c.bf16 %v769, %v768
    %v812 = vpack.c.bf16 %v771, %v770
    %v813 = vpack.c.bf16 %v773, %v772
    %v814 = vpack.c.bf16 %v775, %v774
    %v815 = vpack.c.bf16 %v777, %v776
    %v816 = vpack.c.bf16 %v779, %v778
    %v817 = vpack.c.bf16 %v781, %v780
    %v818 = vpack.c.bf16 %v783, %v782
    %v819 = vpack.c.bf16 %v785, %v784
    %v820 = vpack.c.bf16 %v787, %v786
    %v821 = vpack.c.bf16 %v789, %v788
    %v822 = vld [vmem:[#allocation8] sm:$0x3]
    %vm823 = vcmask 31744
    %v825 = vsel %vm823, %v790, 0
    %v828 = vsel %vm823, %v791, 0
    %v831 = vsel %vm823, %v792, 0
    %v834 = vsel %vm823, %v793, 0
    %v837 = vsel %vm823, %v794, 0
    %v840 = vsel %vm823, %v795, 0
    %v843 = vsel %vm823, %v796, 0
    %v846 = vsel %vm823, %v797, 0
    %v849 = vsel %vm823, %v798, 0
    %v852 = vsel %vm823, %v799, 0
    %v855 = vsel %vm823, %v800, 0
    %v858 = vsel %vm823, %v801, 0
    %v861 = vsel %vm823, %v802, 0
    %v864 = vsel %vm823, %v803, 0
    %v867 = vsel %vm823, %v804, 0
    %v870 = vsel %vm823, %v805, 0
    %v873 = vsel %vm823, %v806, 0
    %v876 = vsel %vm823, %v807, 0
    %v879 = vsel %vm823, %v808, 0
    %v882 = vsel %vm823, %v809, 0
    %v885 = vsel %vm823, %v810, 0
    %v888 = vsel %vm823, %v811, 0
    %v891 = vsel %vm823, %v812, 0
    %v894 = vsel %vm823, %v813, 0
    %v897 = vsel %vm823, %v814, 0
    %v900 = vsel %vm823, %v815, 0
    %v903 = vsel %vm823, %v816, 0
    %v906 = vsel %vm823, %v817, 0
    %v909 = vsel %vm823, %v818, 0
    %v912 = vsel %vm823, %v819, 0
    %v915 = vsel %vm823, %v820, 0
    %v918 = vsel %vm823, %v821, 0
    %vm920 = vcmask 1041408
    %v922 = vsel %vm920, %v822, 0
    %924 = vmatprep.subr.bf16.mxu0 0
    %925 = vmatpush1.bf16.msra.mxu0 %v922
    %926 = vmatprep.subr.bf16.mxu0 0
    %927 = vmatpush1.bf16.msra.mxu0 0
    %928 = vmatprep.subr.bf16.mxu0 0
    %929 = vmatpush1.bf16.msra.mxu0 0
    %930 = vmatprep.subr.bf16.mxu0 0
    %931 = vmatpush1.bf16.msra.mxu0 0
    %932 = vmatprep.subr.bf16.mxu0 0
    %933 = vmatpush1.bf16.msra.mxu0 0
    %934 = vmatprep.subr.bf16.mxu0 0
    %935 = vmatpush1.bf16.msra.mxu0 0
    %936 = vmatprep.subr.bf16.mxu0 0
    %937 = vmatpush1.bf16.msra.mxu0 0
    %938 = vmatprep.subr.bf16.mxu0 0
    %939 = vmatpush1.bf16.msra.mxu0 0
    %940 = vmatprep.subr.bf16.mxu0 0
    %941 = vmatpush1.bf16.msra.mxu0 0
    %942 = vmatprep.subr.bf16.mxu0 0
    %943 = vmatpush1.bf16.msra.mxu0 0
    %944 = vmatprep.subr.bf16.mxu0 0
    %945 = vmatpush1.bf16.msra.mxu0 0
    %946 = vmatprep.subr.bf16.mxu0 0
    %947 = vmatpush1.bf16.msra.mxu0 0
    %948 = vmatprep.subr.bf16.mxu0 0
    %949 = vmatpush1.bf16.msra.mxu0 0
    %950 = vmatprep.subr.bf16.mxu0 0
    %951 = vmatpush1.bf16.msra.mxu0 0
    %952 = vmatprep.subr.bf16.mxu0 0
    %953 = vmatpush1.bf16.msra.mxu0 0
    %954 = vmatprep.subr.bf16.mxu0 0
    %955 = vmatpush1.bf16.msra.mxu0 0
    %956 = vmatprep.mubr.bf16.mxu0 0
    %957 = vmatmul.mubr.bf16.gmra.mrb[0].mxu0 %v825
    %v958 = vpop.f32.mrb[0].mxu0
    %v959 = vadd.f32 0.0, %v958
    %v960 = vpop.f32.mrb[0].mxu0
    %v961 = vpop.f32.mrb[0].mxu0
    %v962 = vadd.f32 0.0, %v961
    %v963 = vpop.f32.mrb[0].mxu0
    %964 = vmatprep.mubr.bf16.mxu0 0
    %965 = vmatmul.mubr.bf16.gmra.mrb[0].mxu0 %v828
    %v966 = vpop.f32.mrb[0].mxu0
    %v967 = vadd.f32 0.0, %v966
    %v968 = vpop.f32.mrb[0].mxu0
    %v969 = vpop.f32.mrb[0].mxu0
    %v970 = vadd.f32 0.0, %v969
    %v971 = vpop.f32.mrb[0].mxu0
    %972 = vmatprep.mubr.bf16.mxu0 0
    %973 = vmatmul.mubr.bf16.gmra.mrb[0].mxu0 %v831
    %v974 = vpop.f32.mrb[0].mxu0
    %v975 = vadd.f32 0.0, %v974
    %v976 = vpop.f32.mrb[0].mxu0
    %v977 = vpop.f32.mrb[0].mxu0
    %v978 = vadd.f32 0.0, %v977
    %v979 = vpop.f32.mrb[0].mxu0
    %980 = vmatprep.mubr.bf16.mxu0 0
    %981 = vmatmul.mubr.bf16.gmra.mrb[0].mxu0 %v834
    %v982 = vpop.f32.mrb[0].mxu0
    %v983 = vadd.f32 0.0, %v982
    %v984 = vpop.f32.mrb[0].mxu0
    %v985 = vpop.f32.mrb[0].mxu0
    %v986 = vadd.f32 0.0, %v985
    %v987 = vpop.f32.mrb[0].mxu0
    %988 = vmatprep.mubr.bf16.mxu0 0
    %989 = vmatmul.mubr.bf16.gmra.mrb[0].mxu0 %v837
    %v990 = vpop.f32.mrb[0].mxu0
    %v991 = vadd.f32 0.0, %v990
    %v992 = vpop.f32.mrb[0].mxu0
    %v993 = vpop.f32.mrb[0].mxu0
    %v994 = vadd.f32 0.0, %v993
    %v995 = vpop.f32.mrb[0].mxu0
    %996 = vmatprep.mubr.bf16.mxu0 0
    %997 = vmatmul.mubr.bf16.gmra.mrb[0].mxu0 %v840
    %v998 = vpop.f32.mrb[0].mxu0
    %v999 = vadd.f32 0.0, %v998
    %v1000 = vpop.f32.mrb[0].mxu0
    %v1001 = vpop.f32.mrb[0].mxu0
    %v1002 = vadd.f32 0.0, %v1001
    %v1003 = vpop.f32.mrb[0].mxu0
    %1004 = vmatprep.mubr.bf16.mxu0 0
    %1005 = vmatmul.mubr.bf16.gmra.mrb[0].mxu0 %v843
    %v1006 = vpop.f32.mrb[0].mxu0
    %v1007 = vadd.f32 0.0, %v1006
    %v1008 = vpop.f32.mrb[0].mxu0
    %v1009 = vpop.f32.mrb[0].mxu0
    %v1010 = vadd.f32 0.0, %v1009
    %v1011 = vpop.f32.mrb[0].mxu0
    %1012 = vmatprep.mubr.bf16.mxu0 0
    %1013 = vmatmul.mubr.bf16.gmra.mrb[0].mxu0 %v846
    %v1014 = vpop.f32.mrb[0].mxu0
    %v1015 = vadd.f32 0.0, %v1014
    %v1016 = vpop.f32.mrb[0].mxu0
    %v1017 = vpop.f32.mrb[0].mxu0
    %v1018 = vadd.f32 0.0, %v1017
    %v1019 = vpop.f32.mrb[0].mxu0
    %1020 = vmatprep.mubr.bf16.mxu0 0
    %1021 = vmatmul.mubr.bf16.gmra.mrb[0].mxu0 %v849
    %v1022 = vpop.f32.mrb[0].mxu0
    %v1023 = vadd.f32 0.0, %v1022
    %v1024 = vpop.f32.mrb[0].mxu0
    %v1025 = vpop.f32.mrb[0].mxu0
    %v1026 = vadd.f32 0.0, %v1025
    %v1027 = vpop.f32.mrb[0].mxu0
    %1028 = vmatprep.mubr.bf16.mxu0 0
    %1029 = vmatmul.mubr.bf16.gmra.mrb[0].mxu0 %v852
    %v1030 = vpop.f32.mrb[0].mxu0
    %v1031 = vadd.f32 0.0, %v1030
    %v1032 = vpop.f32.mrb[0].mxu0
    %v1033 = vpop.f32.mrb[0].mxu0
    %v1034 = vadd.f32 0.0, %v1033
    %v1035 = vpop.f32.mrb[0].mxu0
    %1036 = vmatprep.mubr.bf16.mxu0 0
    %1037 = vmatmul.mubr.bf16.gmra.mrb[0].mxu0 %v855
    %v1038 = vpop.f32.mrb[0].mxu0
    %v1039 = vadd.f32 0.0, %v1038
    %v1040 = vpop.f32.mrb[0].mxu0
    %v1041 = vpop.f32.mrb[0].mxu0
    %v1042 = vadd.f32 0.0, %v1041
    %v1043 = vpop.f32.mrb[0].mxu0
    %1044 = vmatprep.mubr.bf16.mxu0 0
    %1045 = vmatmul.mubr.bf16.gmra.mrb[0].mxu0 %v858
    %v1046 = vpop.f32.mrb[0].mxu0
    %v1047 = vadd.f32 0.0, %v1046
    %v1048 = vpop.f32.mrb[0].mxu0
    %v1049 = vpop.f32.mrb[0].mxu0
    %v1050 = vadd.f32 0.0, %v1049
    %v1051 = vpop.f32.mrb[0].mxu0
    %1052 = vmatprep.mubr.bf16.mxu0 0
    %1053 = vmatmul.mubr.bf16.gmra.mrb[0].mxu0 %v861
    %v1054 = vpop.f32.mrb[0].mxu0
    %v1055 = vadd.f32 0.0, %v1054
    %v1056 = vpop.f32.mrb[0].mxu0
    %v1057 = vpop.f32.mrb[0].mxu0
    %v1058 = vadd.f32 0.0, %v1057
    %v1059 = vpop.f32.mrb[0].mxu0
    %1060 = vmatprep.mubr.bf16.mxu0 0
    %1061 = vmatmul.mubr.bf16.gmra.mrb[0].mxu0 %v864
    %v1062 = vpop.f32.mrb[0].mxu0
    %v1063 = vadd.f32 0.0, %v1062
    %v1064 = vpop.f32.mrb[0].mxu0
    %v1065 = vpop.f32.mrb[0].mxu0
    %v1066 = vadd.f32 0.0, %v1065
    %v1067 = vpop.f32.mrb[0].mxu0
    %1068 = vmatprep.mubr.bf16.mxu0 0
    %1069 = vmatmul.mubr.bf16.gmra.mrb[0].mxu0 %v867
    %v1070 = vpop.f32.mrb[0].mxu0
    %v1071 = vadd.f32 0.0, %v1070
    %v1072 = vpop.f32.mrb[0].mxu0
    %v1073 = vpop.f32.mrb[0].mxu0
    %v1074 = vadd.f32 0.0, %v1073
    %v1075 = vpop.f32.mrb[0].mxu0
    %1076 = vmatprep.mubr.bf16.mxu0 0
    %1077 = vmatmul.mubr.bf16.gmra.mrb[0].mxu0 %v870
    %v1078 = vpop.f32.mrb[0].mxu0
    %v1079 = vadd.f32 0.0, %v1078
    %v1080 = vpop.f32.mrb[0].mxu0
    %v1081 = vpop.f32.mrb[0].mxu0
    %v1082 = vadd.f32 0.0, %v1081
    %v1083 = vpop.f32.mrb[0].mxu0
    %1084 = vmatprep.mubr.bf16.mxu0 0
    %1085 = vmatmul.mubr.bf16.gmra.mrb[0].mxu0 %v873
    %v1086 = vpop.f32.mrb[0].mxu0
    %v1087 = vadd.f32 0.0, %v1086
    %v1088 = vpop.f32.mrb[0].mxu0
    %v1089 = vpop.f32.mrb[0].mxu0
    %v1090 = vadd.f32 0.0, %v1089
    %v1091 = vpop.f32.mrb[0].mxu0
    %1092 = vmatprep.mubr.bf16.mxu0 0
    %1093 = vmatmul.mubr.bf16.gmra.mrb[0].mxu0 %v876
    %v1094 = vpop.f32.mrb[0].mxu0
    %v1095 = vadd.f32 0.0, %v1094
    %v1096 = vpop.f32.mrb[0].mxu0
    %v1097 = vpop.f32.mrb[0].mxu0
    %v1098 = vadd.f32 0.0, %v1097
    %v1099 = vpop.f32.mrb[0].mxu0
    %1100 = vmatprep.mubr.bf16.mxu0 0
    %1101 = vmatmul.mubr.bf16.gmra.mrb[0].mxu0 %v879
    %v1102 = vpop.f32.mrb[0].mxu0
    %v1103 = vadd.f32 0.0, %v1102
    %v1104 = vpop.f32.mrb[0].mxu0
    %v1105 = vpop.f32.mrb[0].mxu0
    %v1106 = vadd.f32 0.0, %v1105
    %v1107 = vpop.f32.mrb[0].mxu0
    %1108 = vmatprep.mubr.bf16.mxu0 0
    %1109 = vmatmul.mubr.bf16.gmra.mrb[0].mxu0 %v882
    %v1110 = vpop.f32.mrb[0].mxu0
    %v1111 = vadd.f32 0.0, %v1110
    %v1112 = vpop.f32.mrb[0].mxu0
    %v1113 = vpop.f32.mrb[0].mxu0
    %v1114 = vadd.f32 0.0, %v1113
    %v1115 = vpop.f32.mrb[0].mxu0
    %1116 = vmatprep.mubr.bf16.mxu0 0
    %1117 = vmatmul.mubr.bf16.gmra.mrb[0].mxu0 %v885
    %v1118 = vpop.f32.mrb[0].mxu0
    %v1119 = vadd.f32 0.0, %v1118
    %v1120 = vpop.f32.mrb[0].mxu0
    %v1121 = vpop.f32.mrb[0].mxu0
    %v1122 = vadd.f32 0.0, %v1121
    %v1123 = vpop.f32.mrb[0].mxu0
    %1124 = vmatprep.mubr.bf16.mxu0 0
    %1125 = vmatmul.mubr.bf16.gmra.mrb[0].mxu0 %v888
    %v1126 = vpop.f32.mrb[0].mxu0
    %v1127 = vadd.f32 0.0, %v1126
    %v1128 = vpop.f32.mrb[0].mxu0
    %v1129 = vpop.f32.mrb[0].mxu0
    %v1130 = vadd.f32 0.0, %v1129
    %v1131 = vpop.f32.mrb[0].mxu0
    %1132 = vmatprep.mubr.bf16.mxu0 0
    %1133 = vmatmul.mubr.bf16.gmra.mrb[0].mxu0 %v891
    %v1134 = vpop.f32.mrb[0].mxu0
    %v1135 = vadd.f32 0.0, %v1134
    %v1136 = vpop.f32.mrb[0].mxu0
    %v1137 = vpop.f32.mrb[0].mxu0
    %v1138 = vadd.f32 0.0, %v1137
    %v1139 = vpop.f32.mrb[0].mxu0
    %1140 = vmatprep.mubr.bf16.mxu0 0
    %1141 = vmatmul.mubr.bf16.gmra.mrb[0].mxu0 %v894
    %v1142 = vpop.f32.mrb[0].mxu0
    %v1143 = vadd.f32 0.0, %v1142
    %v1144 = vpop.f32.mrb[0].mxu0
    %v1145 = vpop.f32.mrb[0].mxu0
    %v1146 = vadd.f32 0.0, %v1145
    %v1147 = vpop.f32.mrb[0].mxu0
    %1148 = vmatprep.mubr.bf16.mxu0 0
    %1149 = vmatmul.mubr.bf16.gmra.mrb[0].mxu0 %v897
    %v1150 = vpop.f32.mrb[0].mxu0
    %v1151 = vadd.f32 0.0, %v1150
    %v1152 = vpop.f32.mrb[0].mxu0
    %v1153 = vpop.f32.mrb[0].mxu0
    %v1154 = vadd.f32 0.0, %v1153
    %v1155 = vpop.f32.mrb[0].mxu0
    %1156 = vmatprep.mubr.bf16.mxu0 0
    %1157 = vmatmul.mubr.bf16.gmra.mrb[0].mxu0 %v900
    %v1158 = vpop.f32.mrb[0].mxu0
    %v1159 = vadd.f32 0.0, %v1158
    %v1160 = vpop.f32.mrb[0].mxu0
    %v1161 = vpop.f32.mrb[0].mxu0
    %v1162 = vadd.f32 0.0, %v1161
    %v1163 = vpop.f32.mrb[0].mxu0
    %1164 = vmatprep.mubr.bf16.mxu0 0
    %1165 = vmatmul.mubr.bf16.gmra.mrb[0].mxu0 %v903
    %v1166 = vpop.f32.mrb[0].mxu0
    %v1167 = vadd.f32 0.0, %v1166
    %v1168 = vpop.f32.mrb[0].mxu0
    %v1169 = vpop.f32.mrb[0].mxu0
    %v1170 = vadd.f32 0.0, %v1169
    %v1171 = vpop.f32.mrb[0].mxu0
    %1172 = vmatprep.mubr.bf16.mxu0 0
    %1173 = vmatmul.mubr.bf16.gmra.mrb[0].mxu0 %v906
    %v1174 = vpop.f32.mrb[0].mxu0
    %v1175 = vadd.f32 0.0, %v1174
    %v1176 = vpop.f32.mrb[0].mxu0
    %v1177 = vpop.f32.mrb[0].mxu0
    %v1178 = vadd.f32 0.0, %v1177
    %v1179 = vpop.f32.mrb[0].mxu0
    %1180 = vmatprep.mubr.bf16.mxu0 0
    %1181 = vmatmul.mubr.bf16.gmra.mrb[0].mxu0 %v909
    %v1182 = vpop.f32.mrb[0].mxu0
    %v1183 = vadd.f32 0.0, %v1182
    %v1184 = vpop.f32.mrb[0].mxu0
    %v1185 = vpop.f32.mrb[0].mxu0
    %v1186 = vadd.f32 0.0, %v1185
    %v1187 = vpop.f32.mrb[0].mxu0
    %1188 = vmatprep.mubr.bf16.mxu0 0
    %1189 = vmatmul.mubr.bf16.gmra.mrb[0].mxu0 %v912
    %v1190 = vpop.f32.mrb[0].mxu0
    %v1191 = vadd.f32 0.0, %v1190
    %v1192 = vpop.f32.mrb[0].mxu0
    %v1193 = vpop.f32.mrb[0].mxu0
    %v1194 = vadd.f32 0.0, %v1193
    %v1195 = vpop.f32.mrb[0].mxu0
    %1196 = vmatprep.mubr.bf16.mxu0 0
    %1197 = vmatmul.mubr.bf16.gmra.mrb[0].mxu0 %v915
    %v1198 = vpop.f32.mrb[0].mxu0
    %v1199 = vadd.f32 0.0, %v1198
    %v1200 = vpop.f32.mrb[0].mxu0
    %v1201 = vpop.f32.mrb[0].mxu0
    %v1202 = vadd.f32 0.0, %v1201
    %v1203 = vpop.f32.mrb[0].mxu0
    %1204 = vmatprep.mubr.bf16.mxu0 0
    %1205 = vmatmul.mubr.bf16.gmra.mrb[0].mxu0 %v918
    %v1206 = vpop.f32.mrb[0].mxu0
    %v1207 = vadd.f32 0.0, %v1206
    %v1208 = vpop.f32.mrb[0].mxu0
    %v1209 = vpop.f32.mrb[0].mxu0
    %v1210 = vadd.f32 0.0, %v1209
    %v1211 = vpop.f32.mrb[0].mxu0
    %1212 = vdwg.mxu0
    %v1213 = vpack.c.bf16 %v962, %v959
    %v1214 = vpack.c.bf16 %v970, %v967
    %v1215 = vpack.c.bf16 %v978, %v975
    %v1216 = vpack.c.bf16 %v986, %v983
    %v1217 = vpack.c.bf16 %v994, %v991
    %v1218 = vpack.c.bf16 %v1002, %v999
    %v1219 = vpack.c.bf16 %v1010, %v1007
    %v1220 = vpack.c.bf16 %v1018, %v1015
    %v1221 = vpack.c.bf16 %v1026, %v1023
    %v1222 = vpack.c.bf16 %v1034, %v1031
    %v1223 = vpack.c.bf16 %v1042, %v1039
    %v1224 = vpack.c.bf16 %v1050, %v1047
    %v1225 = vpack.c.bf16 %v1058, %v1055
    %v1226 = vpack.c.bf16 %v1066, %v1063
    %v1227 = vpack.c.bf16 %v1074, %v1071
    %v1228 = vpack.c.bf16 %v1082, %v1079
    %v1229 = vpack.c.bf16 %v1090, %v1087
    %v1230 = vpack.c.bf16 %v1098, %v1095
    %v1231 = vpack.c.bf16 %v1106, %v1103
    %v1232 = vpack.c.bf16 %v1114, %v1111
    %v1233 = vpack.c.bf16 %v1122, %v1119
    %v1234 = vpack.c.bf16 %v1130, %v1127
    %v1235 = vpack.c.bf16 %v1138, %v1135
    %v1236 = vpack.c.bf16 %v1146, %v1143
    %v1237 = vpack.c.bf16 %v1154, %v1151
    %v1238 = vpack.c.bf16 %v1162, %v1159
    %v1239 = vpack.c.bf16 %v1170, %v1167
    %v1240 = vpack.c.bf16 %v1178, %v1175
    %v1241 = vpack.c.bf16 %v1186, %v1183
    %v1242 = vpack.c.bf16 %v1194, %v1191
    %v1243 = vpack.c.bf16 %v1202, %v1199
    %v1244 = vpack.c.bf16 %v1210, %v1207
    %v1277 = vunpack.c.l.b16 %v1213
    %v1278 = vunpack.c.h.b16 %v1213
    %v1279 = vunpack.c.l.b16 %v1214
    %v1280 = vunpack.c.h.b16 %v1214
    %v1281 = vunpack.c.l.b16 %v1215
    %v1282 = vunpack.c.h.b16 %v1215
    %v1283 = vunpack.c.l.b16 %v1216
    %v1284 = vunpack.c.h.b16 %v1216
    %v1285 = vunpack.c.l.b16 %v1217
    %v1286 = vunpack.c.h.b16 %v1217
    %v1287 = vunpack.c.l.b16 %v1218
    %v1288 = vunpack.c.h.b16 %v1218
    %v1289 = vunpack.c.l.b16 %v1219
    %v1290 = vunpack.c.h.b16 %v1219
    %v1291 = vunpack.c.l.b16 %v1220
    %v1292 = vunpack.c.h.b16 %v1220
    %v1293 = vunpack.c.l.b16 %v1221
    %v1294 = vunpack.c.h.b16 %v1221
    %v1295 = vunpack.c.l.b16 %v1222
    %v1296 = vunpack.c.h.b16 %v1222
    %v1297 = vunpack.c.l.b16 %v1223
    %v1298 = vunpack.c.h.b16 %v1223
    %v1299 = vunpack.c.l.b16 %v1224
    %v1300 = vunpack.c.h.b16 %v1224
    %v1301 = vunpack.c.l.b16 %v1225
    %v1302 = vunpack.c.h.b16 %v1225
    %v1303 = vunpack.c.l.b16 %v1226
    %v1304 = vunpack.c.h.b16 %v1226
    %v1305 = vunpack.c.l.b16 %v1227
    %v1306 = vunpack.c.h.b16 %v1227
    %v1307 = vunpack.c.l.b16 %v1228
    %v1308 = vunpack.c.h.b16 %v1228
    %v1309 = vunpack.c.l.b16 %v1229
    %v1310 = vunpack.c.h.b16 %v1229
    %v1311 = vunpack.c.l.b16 %v1230
    %v1312 = vunpack.c.h.b16 %v1230
    %v1313 = vunpack.c.l.b16 %v1231
    %v1314 = vunpack.c.h.b16 %v1231
    %v1315 = vunpack.c.l.b16 %v1232
    %v1316 = vunpack.c.h.b16 %v1232
    %v1317 = vunpack.c.l.b16 %v1233
    %v1318 = vunpack.c.h.b16 %v1233
    %v1319 = vunpack.c.l.b16 %v1234
    %v1320 = vunpack.c.h.b16 %v1234
    %v1321 = vunpack.c.l.b16 %v1235
    %v1322 = vunpack.c.h.b16 %v1235
    %v1323 = vunpack.c.l.b16 %v1236
    %v1324 = vunpack.c.h.b16 %v1236
    %v1325 = vunpack.c.l.b16 %v1237
    %v1326 = vunpack.c.h.b16 %v1237
    %v1327 = vunpack.c.l.b16 %v1238
    %v1328 = vunpack.c.h.b16 %v1238
    %v1329 = vunpack.c.l.b16 %v1239
    %v1330 = vunpack.c.h.b16 %v1239
    %v1331 = vunpack.c.l.b16 %v1240
    %v1332 = vunpack.c.h.b16 %v1240
    %v1333 = vunpack.c.l.b16 %v1241
    %v1334 = vunpack.c.h.b16 %v1241
    %v1335 = vunpack.c.l.b16 %v1242
    %v1336 = vunpack.c.h.b16 %v1242
    %v1337 = vunpack.c.l.b16 %v1243
    %v1338 = vunpack.c.h.b16 %v1243
    %v1339 = vunpack.c.l.b16 %v1244
    %v1340 = vunpack.c.h.b16 %v1244
    %v1341 = vpack.c.b16 %v1277, %v1277
    %v1342 = vpack.c.b16 %v1278, %v1278
    %v1343 = vpack.c.b16 %v1279, %v1279
    %v1344 = vpack.c.b16 %v1280, %v1280
    %v1345 = vpack.c.b16 %v1281, %v1281
    %v1346 = vpack.c.b16 %v1282, %v1282
    %v1347 = vpack.c.b16 %v1283, %v1283
    %v1348 = vpack.c.b16 %v1284, %v1284
    %v1349 = vpack.c.b16 %v1285, %v1285
    %v1350 = vpack.c.b16 %v1286, %v1286
    %v1351 = vpack.c.b16 %v1287, %v1287
    %v1352 = vpack.c.b16 %v1288, %v1288
    %v1353 = vpack.c.b16 %v1289, %v1289
    %v1354 = vpack.c.b16 %v1290, %v1290
    %v1355 = vpack.c.b16 %v1291, %v1291
    %v1356 = vpack.c.b16 %v1292, %v1292
    %v1357 = vpack.c.b16 %v1293, %v1293
    %v1358 = vpack.c.b16 %v1294, %v1294
    %v1359 = vpack.c.b16 %v1295, %v1295
    %v1360 = vpack.c.b16 %v1296, %v1296
    %v1361 = vpack.c.b16 %v1297, %v1297
    %v1362 = vpack.c.b16 %v1298, %v1298
    %v1363 = vpack.c.b16 %v1299, %v1299
    %v1364 = vpack.c.b16 %v1300, %v1300
    %v1365 = vpack.c.b16 %v1301, %v1301
    %v1366 = vpack.c.b16 %v1302, %v1302
    %v1367 = vpack.c.b16 %v1303, %v1303
    %v1368 = vpack.c.b16 %v1304, %v1304
    %v1369 = vpack.c.b16 %v1305, %v1305
    %v1370 = vpack.c.b16 %v1306, %v1306
    %v1371 = vpack.c.b16 %v1307, %v1307
    %v1372 = vpack.c.b16 %v1308, %v1308
    %v1373 = vpack.c.b16 %v1309, %v1309
    %v1374 = vpack.c.b16 %v1310, %v1310
    %v1375 = vpack.c.b16 %v1311, %v1311
    %v1376 = vpack.c.b16 %v1312, %v1312
    %v1377 = vpack.c.b16 %v1313, %v1313
    %v1378 = vpack.c.b16 %v1314, %v1314
    %v1379 = vpack.c.b16 %v1315, %v1315
    %v1380 = vpack.c.b16 %v1316, %v1316
    %v1381 = vpack.c.b16 %v1317, %v1317
    %v1382 = vpack.c.b16 %v1318, %v1318
    %v1383 = vpack.c.b16 %v1319, %v1319
    %v1384 = vpack.c.b16 %v1320, %v1320
    %v1385 = vpack.c.b16 %v1321, %v1321
    %v1386 = vpack.c.b16 %v1322, %v1322
    %v1387 = vpack.c.b16 %v1323, %v1323
    %v1388 = vpack.c.b16 %v1324, %v1324
    %v1389 = vpack.c.b16 %v1325, %v1325
    %v1390 = vpack.c.b16 %v1326, %v1326
    %v1391 = vpack.c.b16 %v1327, %v1327
    %v1392 = vpack.c.b16 %v1328, %v1328
    %v1393 = vpack.c.b16 %v1329, %v1329
    %v1394 = vpack.c.b16 %v1330, %v1330
    %v1395 = vpack.c.b16 %v1331, %v1331
    %v1396 = vpack.c.b16 %v1332, %v1332
    %v1397 = vpack.c.b16 %v1333, %v1333
    %v1398 = vpack.c.b16 %v1334, %v1334
    %v1399 = vpack.c.b16 %v1335, %v1335
    %v1400 = vpack.c.b16 %v1336, %v1336
    %v1401 = vpack.c.b16 %v1337, %v1337
    %v1402 = vpack.c.b16 %v1338, %v1338
    %v1403 = vpack.c.b16 %v1339, %v1339
    %v1404 = vpack.c.b16 %v1340, %v1340
    %vm1469 = vcmask 125952
    %1470 = vst.msk [vmem:[#allocation10] sm:$0xf] %vm1469, %v1341
    %1471 = vst.msk [vmem:[#allocation10 + $0x4] sm:$0xf] %vm1469, %v1342
    %1472 = vst.msk [vmem:[#allocation10 + $0x8] sm:$0xf] %vm1469, %v1343
    %1473 = vst.msk [vmem:[#allocation10 + $0xc] sm:$0xf] %vm1469, %v1344
    %1474 = vst.msk [vmem:[#allocation10 + $0x10] sm:$0xf] %vm1469, %v1345
    %1475 = vst.msk [vmem:[#allocation10 + $0x14] sm:$0xf] %vm1469, %v1346
    %1476 = vst.msk [vmem:[#allocation10 + $0x18] sm:$0xf] %vm1469, %v1347
    %1477 = vst.msk [vmem:[#allocation10 + $0x1c] sm:$0xf] %vm1469, %v1348
    %1478 = vst.msk [vmem:[#allocation10 + $0x20] sm:$0xf] %vm1469, %v1349
    %1479 = vst.msk [vmem:[#allocation10 + $0x24] sm:$0xf] %vm1469, %v1350
    %1480 = vst.msk [vmem:[#allocation10 + $0x28] sm:$0xf] %vm1469, %v1351
    %1481 = vst.msk [vmem:[#allocation10 + $0x2c] sm:$0xf] %vm1469, %v1352
    %1482 = vst.msk [vmem:[#allocation10 + $0x30] sm:$0xf] %vm1469, %v1353
    %1483 = vst.msk [vmem:[#allocation10 + $0x34] sm:$0xf] %vm1469, %v1354
    %1484 = vst.msk [vmem:[#allocation10 + $0x38] sm:$0xf] %vm1469, %v1355
    %1485 = vst.msk [vmem:[#allocation10 + $0x3c] sm:$0xf] %vm1469, %v1356
    %1486 = vst.msk [vmem:[#allocation10 + $0x40] sm:$0xf] %vm1469, %v1357
    %1487 = vst.msk [vmem:[#allocation10 + $0x44] sm:$0xf] %vm1469, %v1358
    %1488 = vst.msk [vmem:[#allocation10 + $0x48] sm:$0xf] %vm1469, %v1359
    %1489 = vst.msk [vmem:[#allocation10 + $0x4c] sm:$0xf] %vm1469, %v1360
    %1490 = vst.msk [vmem:[#allocation10 + $0x50] sm:$0xf] %vm1469, %v1361
    %1491 = vst.msk [vmem:[#allocation10 + $0x54] sm:$0xf] %vm1469, %v1362
    %1492 = vst.msk [vmem:[#allocation10 + $0x58] sm:$0xf] %vm1469, %v1363
    %1493 = vst.msk [vmem:[#allocation10 + $0x5c] sm:$0xf] %vm1469, %v1364
    %1494 = vst.msk [vmem:[#allocation10 + $0x60] sm:$0xf] %vm1469, %v1365
    %1495 = vst.msk [vmem:[#allocation10 + $0x64] sm:$0xf] %vm1469, %v1366
    %1496 = vst.msk [vmem:[#allocation10 + $0x68] sm:$0xf] %vm1469, %v1367
    %1497 = vst.msk [vmem:[#allocation10 + $0x6c] sm:$0xf] %vm1469, %v1368
    %1498 = vst.msk [vmem:[#allocation10 + $0x70] sm:$0xf] %vm1469, %v1369
    %1499 = vst.msk [vmem:[#allocation10 + $0x74] sm:$0xf] %vm1469, %v1370
    %1500 = vst.msk [vmem:[#allocation10 + $0x78] sm:$0xf] %vm1469, %v1371
    %1501 = vst.msk [vmem:[#allocation10 + $0x7c] sm:$0xf] %vm1469, %v1372
    %1502 = vst.msk [vmem:[#allocation10 + $0x80] sm:$0xf] %vm1469, %v1373
    %1503 = vst.msk [vmem:[#allocation10 + $0x84] sm:$0xf] %vm1469, %v1374
    %1504 = vst.msk [vmem:[#allocation10 + $0x88] sm:$0xf] %vm1469, %v1375
    %1505 = vst.msk [vmem:[#allocation10 + $0x8c] sm:$0xf] %vm1469, %v1376
    %1506 = vst.msk [vmem:[#allocation10 + $0x90] sm:$0xf] %vm1469, %v1377
    %1507 = vst.msk [vmem:[#allocation10 + $0x94] sm:$0xf] %vm1469, %v1378
    %1508 = vst.msk [vmem:[#allocation10 + $0x98] sm:$0xf] %vm1469, %v1379
    %1509 = vst.msk [vmem:[#allocation10 + $0x9c] sm:$0xf] %vm1469, %v1380
    %1510 = vst.msk [vmem:[#allocation10 + $0xa0] sm:$0xf] %vm1469, %v1381
    %1511 = vst.msk [vmem:[#allocation10 + $0xa4] sm:$0xf] %vm1469, %v1382
    %1512 = vst.msk [vmem:[#allocation10 + $0xa8] sm:$0xf] %vm1469, %v1383
    %1513 = vst.msk [vmem:[#allocation10 + $0xac] sm:$0xf] %vm1469, %v1384
    %1514 = vst.msk [vmem:[#allocation10 + $0xb0] sm:$0xf] %vm1469, %v1385
    %1515 = vst.msk [vmem:[#allocation10 + $0xb4] sm:$0xf] %vm1469, %v1386
    %1516 = vst.msk [vmem:[#allocation10 + $0xb8] sm:$0xf] %vm1469, %v1387
    %1517 = vst.msk [vmem:[#allocation10 + $0xbc] sm:$0xf] %vm1469, %v1388
    %1518 = vst.msk [vmem:[#allocation10 + $0xc0] sm:$0xf] %vm1469, %v1389
    %1519 = vst.msk [vmem:[#allocation10 + $0xc4] sm:$0xf] %vm1469, %v1390
    %1520 = vst.msk [vmem:[#allocation10 + $0xc8] sm:$0xf] %vm1469, %v1391
    %1521 = vst.msk [vmem:[#allocation10 + $0xcc] sm:$0xf] %vm1469, %v1392
    %1522 = vst.msk [vmem:[#allocation10 + $0xd0] sm:$0xf] %vm1469, %v1393
    %1523 = vst.msk [vmem:[#allocation10 + $0xd4] sm:$0xf] %vm1469, %v1394
    %1524 = vst.msk [vmem:[#allocation10 + $0xd8] sm:$0xf] %vm1469, %v1395
    %1525 = vst.msk [vmem:[#allocation10 + $0xdc] sm:$0xf] %vm1469, %v1396
    %1526 = vst.msk [vmem:[#allocation10 + $0xe0] sm:$0xf] %vm1469, %v1397
    %1527 = vst.msk [vmem:[#allocation10 + $0xe4] sm:$0xf] %vm1469, %v1398
    %1528 = vst.msk [vmem:[#allocation10 + $0xe8] sm:$0xf] %vm1469, %v1399
    %1529 = vst.msk [vmem:[#allocation10 + $0xec] sm:$0xf] %vm1469, %v1400
    %1530 = vst.msk [vmem:[#allocation10 + $0xf0] sm:$0xf] %vm1469, %v1401
    %1531 = vst.msk [vmem:[#allocation10 + $0xf4] sm:$0xf] %vm1469, %v1402
    %1532 = vst.msk [vmem:[#allocation10 + $0xf8] sm:$0xf] %vm1469, %v1403
    %1533 = vst.msk [vmem:[#allocation10 + $0xfc] sm:$0xf] %vm1469, %v1404
    %vm1534 = vcmask 130048
    %v1535 = vsel %vm1534, %v959, 0.0
    %v1536 = vsel %vm1534, %v962, 0.0
    %v1537 = vadd.f32 %v1535, %v1536
    %v1538 = vsel %vm1534, %v967, 0.0
    %v1539 = vadd.f32 %v1537, %v1538
    %v1540 = vsel %vm1534, %v970, 0.0
    %v1541 = vadd.f32 %v1539, %v1540
    %v1542 = vsel %vm1534, %v975, 0.0
    %v1543 = vadd.f32 %v1541, %v1542
    %v1544 = vsel %vm1534, %v978, 0.0
    %v1545 = vadd.f32 %v1543, %v1544
    %v1546 = vsel %vm1534, %v983, 0.0
    %v1547 = vadd.f32 %v1545, %v1546
    %v1548 = vsel %vm1534, %v986, 0.0
    %v1549 = vadd.f32 %v1547, %v1548
    %v1550 = vsel %vm1534, %v991, 0.0
    %v1551 = vadd.f32 %v1549, %v1550
    %v1552 = vsel %vm1534, %v994, 0.0
    %v1553 = vadd.f32 %v1551, %v1552
    %v1554 = vsel %vm1534, %v999, 0.0
    %v1555 = vadd.f32 %v1553, %v1554
    %v1556 = vsel %vm1534, %v1002, 0.0
    %v1557 = vadd.f32 %v1555, %v1556
    %v1558 = vsel %vm1534, %v1007, 0.0
    %v1559 = vadd.f32 %v1557, %v1558
    %v1560 = vsel %vm1534, %v1010, 0.0
    %v1561 = vadd.f32 %v1559, %v1560
    %v1562 = vsel %vm1534, %v1015, 0.0
    %v1563 = vadd.f32 %v1561, %v1562
    %v1564 = vsel %vm1534, %v1018, 0.0
    %v1565 = vadd.f32 %v1563, %v1564
    %v1566 = vsel %vm1534, %v1023, 0.0
    %v1567 = vadd.f32 %v1565, %v1566
    %v1568 = vsel %vm1534, %v1026, 0.0
    %v1569 = vadd.f32 %v1567, %v1568
    %v1570 = vsel %vm1534, %v1031, 0.0
    %v1571 = vadd.f32 %v1569, %v1570
    %v1572 = vsel %vm1534, %v1034, 0.0
    %v1573 = vadd.f32 %v1571, %v1572
    %v1574 = vsel %vm1534, %v1039, 0.0
    %v1575 = vadd.f32 %v1573, %v1574
    %v1576 = vsel %vm1534, %v1042, 0.0
    %v1577 = vadd.f32 %v1575, %v1576
    %v1578 = vsel %vm1534, %v1047, 0.0
    %v1579 = vadd.f32 %v1577, %v1578
    %v1580 = vsel %vm1534, %v1050, 0.0
    %v1581 = vadd.f32 %v1579, %v1580
    %v1582 = vsel %vm1534, %v1055, 0.0
    %v1583 = vadd.f32 %v1581, %v1582
    %v1584 = vsel %vm1534, %v1058, 0.0
    %v1585 = vadd.f32 %v1583, %v1584
    %v1586 = vsel %vm1534, %v1063, 0.0
    %v1587 = vadd.f32 %v1585, %v1586
    %v1588 = vsel %vm1534, %v1066, 0.0
    %v1589 = vadd.f32 %v1587, %v1588
    %v1590 = vsel %vm1534, %v1071, 0.0
    %v1591 = vadd.f32 %v1589, %v1590
    %v1592 = vsel %vm1534, %v1074, 0.0
    %v1593 = vadd.f32 %v1591, %v1592
    %v1594 = vsel %vm1534, %v1079, 0.0
    %v1595 = vadd.f32 %v1593, %v1594
    %v1596 = vsel %vm1534, %v1082, 0.0
    %v1597 = vadd.f32 %v1595, %v1596
    %v1598 = vsel %vm1534, %v1087, 0.0
    %v1599 = vadd.f32 %v1597, %v1598
    %v1600 = vsel %vm1534, %v1090, 0.0
    %v1601 = vadd.f32 %v1599, %v1600
    %v1602 = vsel %vm1534, %v1095, 0.0
    %v1603 = vadd.f32 %v1601, %v1602
    %v1604 = vsel %vm1534, %v1098, 0.0
    %v1605 = vadd.f32 %v1603, %v1604
    %v1606 = vsel %vm1534, %v1103, 0.0
    %v1607 = vadd.f32 %v1605, %v1606
    %v1608 = vsel %vm1534, %v1106, 0.0
    %v1609 = vadd.f32 %v1607, %v1608
    %v1610 = vsel %vm1534, %v1111, 0.0
    %v1611 = vadd.f32 %v1609, %v1610
    %v1612 = vsel %vm1534, %v1114, 0.0
    %v1613 = vadd.f32 %v1611, %v1612
    %v1614 = vsel %vm1534, %v1119, 0.0
    %v1615 = vadd.f32 %v1613, %v1614
    %v1616 = vsel %vm1534, %v1122, 0.0
    %v1617 = vadd.f32 %v1615, %v1616
    %v1618 = vsel %vm1534, %v1127, 0.0
    %v1619 = vadd.f32 %v1617, %v1618
    %v1620 = vsel %vm1534, %v1130, 0.0
    %v1621 = vadd.f32 %v1619, %v1620
    %v1622 = vsel %vm1534, %v1135, 0.0
    %v1623 = vadd.f32 %v1621, %v1622
    %v1624 = vsel %vm1534, %v1138, 0.0
    %v1625 = vadd.f32 %v1623, %v1624
    %v1626 = vsel %vm1534, %v1143, 0.0
    %v1627 = vadd.f32 %v1625, %v1626
    %v1628 = vsel %vm1534, %v1146, 0.0
    %v1629 = vadd.f32 %v1627, %v1628
    %v1630 = vsel %vm1534, %v1151, 0.0
    %v1631 = vadd.f32 %v1629, %v1630
    %v1632 = vsel %vm1534, %v1154, 0.0
    %v1633 = vadd.f32 %v1631, %v1632
    %v1634 = vsel %vm1534, %v1159, 0.0
    %v1635 = vadd.f32 %v1633, %v1634
    %v1636 = vsel %vm1534, %v1162, 0.0
    %v1637 = vadd.f32 %v1635, %v1636
    %v1638 = vsel %vm1534, %v1167, 0.0
    %v1639 = vadd.f32 %v1637, %v1638
    %v1640 = vsel %vm1534, %v1170, 0.0
    %v1641 = vadd.f32 %v1639, %v1640
    %v1642 = vsel %vm1534, %v1175, 0.0
    %v1643 = vadd.f32 %v1641, %v1642
    %v1644 = vsel %vm1534, %v1178, 0.0
    %v1645 = vadd.f32 %v1643, %v1644
    %v1646 = vsel %vm1534, %v1183, 0.0
    %v1647 = vadd.f32 %v1645, %v1646
    %v1648 = vsel %vm1534, %v1186, 0.0
    %v1649 = vadd.f32 %v1647, %v1648
    %v1650 = vsel %vm1534, %v1191, 0.0
    %v1651 = vadd.f32 %v1649, %v1650
    %v1652 = vsel %vm1534, %v1194, 0.0
    %v1653 = vadd.f32 %v1651, %v1652
    %v1654 = vsel %vm1534, %v1199, 0.0
    %v1655 = vadd.f32 %v1653, %v1654
    %v1656 = vsel %vm1534, %v1202, 0.0
    %v1657 = vadd.f32 %v1655, %v1656
    %v1658 = vsel %vm1534, %v1207, 0.0
    %v1659 = vadd.f32 %v1657, %v1658
    %v1660 = vsel %vm1534, %v1210, 0.0
    %v1661 = vadd.f32 %v1659, %v1660
    %v1662 = vrot.slane %v1661, 4
    %v1663 = vadd.f32 %v1661, %v1662
    %v1664 = vrot.slane %v1663, 2
    %v1665 = vadd.f32 %v1663, %v1664
    %v1666 = vrot.slane %v1665, 1
    %v1667 = vadd.f32 %v1665, %v1666
    %vm1668 = vcmask 122880
    %1669 = vst.msk [vmem:[#allocation11] sm:$0x1] %vm1668, %v1667
    %v1670 = vmul.f32 %v959, %v959
    %v1671 = vmul.f32 %v962, %v962
    %v1672 = vmul.f32 %v967, %v967
    %v1673 = vmul.f32 %v970, %v970
    %v1674 = vmul.f32 %v975, %v975
    %v1675 = vmul.f32 %v978, %v978
    %v1676 = vmul.f32 %v983, %v983
    %v1677 = vmul.f32 %v986, %v986
    %v1678 = vmul.f32 %v991, %v991
    %v1679 = vmul.f32 %v994, %v994
    %v1680 = vmul.f32 %v999, %v999
    %v1681 = vmul.f32 %v1002, %v1002
    %v1682 = vmul.f32 %v1007, %v1007
    %v1683 = vmul.f32 %v1010, %v1010
    %v1684 = vmul.f32 %v1015, %v1015
    %v1685 = vmul.f32 %v1018, %v1018
    %v1686 = vmul.f32 %v1023, %v1023
    %v1687 = vmul.f32 %v1026, %v1026
    %v1688 = vmul.f32 %v1031, %v1031
    %v1689 = vmul.f32 %v1034, %v1034
    %v1690 = vmul.f32 %v1039, %v1039
    %v1691 = vmul.f32 %v1042, %v1042
    %v1692 = vmul.f32 %v1047, %v1047
    %v1693 = vmul.f32 %v1050, %v1050
    %v1694 = vmul.f32 %v1055, %v1055
    %v1695 = vmul.f32 %v1058, %v1058
    %v1696 = vmul.f32 %v1063, %v1063
    %v1697 = vmul.f32 %v1066, %v1066
    %v1698 = vmul.f32 %v1071, %v1071
    %v1699 = vmul.f32 %v1074, %v1074
    %v1700 = vmul.f32 %v1079, %v1079
    %v1701 = vmul.f32 %v1082, %v1082
    %v1702 = vmul.f32 %v1087, %v1087
    %v1703 = vmul.f32 %v1090, %v1090
    %v1704 = vmul.f32 %v1095, %v1095
    %v1705 = vmul.f32 %v1098, %v1098
    %v1706 = vmul.f32 %v1103, %v1103
    %v1707 = vmul.f32 %v1106, %v1106
    %v1708 = vmul.f32 %v1111, %v1111
    %v1709 = vmul.f32 %v1114, %v1114
    %v1710 = vmul.f32 %v1119, %v1119
    %v1711 = vmul.f32 %v1122, %v1122
    %v1712 = vmul.f32 %v1127, %v1127
    %v1713 = vmul.f32 %v1130, %v1130
    %v1714 = vmul.f32 %v1135, %v1135
    %v1715 = vmul.f32 %v1138, %v1138
    %v1716 = vmul.f32 %v1143, %v1143
    %v1717 = vmul.f32 %v1146, %v1146
    %v1718 = vmul.f32 %v1151, %v1151
    %v1719 = vmul.f32 %v1154, %v1154
    %v1720 = vmul.f32 %v1159, %v1159
    %v1721 = vmul.f32 %v1162, %v1162
    %v1722 = vmul.f32 %v1167, %v1167
    %v1723 = vmul.f32 %v1170, %v1170
    %v1724 = vmul.f32 %v1175, %v1175
    %v1725 = vmul.f32 %v1178, %v1178
    %v1726 = vmul.f32 %v1183, %v1183
    %v1727 = vmul.f32 %v1186, %v1186
    %v1728 = vmul.f32 %v1191, %v1191
    %v1729 = vmul.f32 %v1194, %v1194
    %v1730 = vmul.f32 %v1199, %v1199
    %v1731 = vmul.f32 %v1202, %v1202
    %v1732 = vmul.f32 %v1207, %v1207
    %v1733 = vmul.f32 %v1210, %v1210
    %v1734 = vsel %vm1534, %v1670, 0.0
    %v1735 = vsel %vm1534, %v1671, 0.0
    %v1736 = vadd.f32 %v1734, %v1735
    %v1737 = vsel %vm1534, %v1672, 0.0
    %v1738 = vadd.f32 %v1736, %v1737
    %v1739 = vsel %vm1534, %v1673, 0.0
    %v1740 = vadd.f32 %v1738, %v1739
    %v1741 = vsel %vm1534, %v1674, 0.0
    %v1742 = vadd.f32 %v1740, %v1741
    %v1743 = vsel %vm1534, %v1675, 0.0
    %v1744 = vadd.f32 %v1742, %v1743
    %v1745 = vsel %vm1534, %v1676, 0.0
    %v1746 = vadd.f32 %v1744, %v1745
    %v1747 = vsel %vm1534, %v1677, 0.0
    %v1748 = vadd.f32 %v1746, %v1747
    %v1749 = vsel %vm1534, %v1678, 0.0
    %v1750 = vadd.f32 %v1748, %v1749
    %v1751 = vsel %vm1534, %v1679, 0.0
    %v1752 = vadd.f32 %v1750, %v1751
    %v1753 = vsel %vm1534, %v1680, 0.0
    %v1754 = vadd.f32 %v1752, %v1753
    %v1755 = vsel %vm1534, %v1681, 0.0
    %v1756 = vadd.f32 %v1754, %v1755
    %v1757 = vsel %vm1534, %v1682, 0.0
    %v1758 = vadd.f32 %v1756, %v1757
    %v1759 = vsel %vm1534, %v1683, 0.0
    %v1760 = vadd.f32 %v1758, %v1759
    %v1761 = vsel %vm1534, %v1684, 0.0
    %v1762 = vadd.f32 %v1760, %v1761
    %v1763 = vsel %vm1534, %v1685, 0.0
    %v1764 = vadd.f32 %v1762, %v1763
    %v1765 = vsel %vm1534, %v1686, 0.0
    %v1766 = vadd.f32 %v1764, %v1765
    %v1767 = vsel %vm1534, %v1687, 0.0
    %v1768 = vadd.f32 %v1766, %v1767
    %v1769 = vsel %vm1534, %v1688, 0.0
    %v1770 = vadd.f32 %v1768, %v1769
    %v1771 = vsel %vm1534, %v1689, 0.0
    %v1772 = vadd.f32 %v1770, %v1771
    %v1773 = vsel %vm1534, %v1690, 0.0
    %v1774 = vadd.f32 %v1772, %v1773
    %v1775 = vsel %vm1534, %v1691, 0.0
    %v1776 = vadd.f32 %v1774, %v1775
    %v1777 = vsel %vm1534, %v1692, 0.0
    %v1778 = vadd.f32 %v1776, %v1777
    %v1779 = vsel %vm1534, %v1693, 0.0
    %v1780 = vadd.f32 %v1778, %v1779
    %v1781 = vsel %vm1534, %v1694, 0.0
    %v1782 = vadd.f32 %v1780, %v1781
    %v1783 = vsel %vm1534, %v1695, 0.0
    %v1784 = vadd.f32 %v1782, %v1783
    %v1785 = vsel %vm1534, %v1696, 0.0
    %v1786 = vadd.f32 %v1784, %v1785
    %v1787 = vsel %vm1534, %v1697, 0.0
    %v1788 = vadd.f32 %v1786, %v1787
    %v1789 = vsel %vm1534, %v1698, 0.0
    %v1790 = vadd.f32 %v1788, %v1789
    %v1791 = vsel %vm1534, %v1699, 0.0
    %v1792 = vadd.f32 %v1790, %v1791
    %v1793 = vsel %vm1534, %v1700, 0.0
    %v1794 = vadd.f32 %v1792, %v1793
    %v1795 = vsel %vm1534, %v1701, 0.0
    %v1796 = vadd.f32 %v1794, %v1795
    %v1797 = vsel %vm1534, %v1702, 0.0
    %v1798 = vadd.f32 %v1796, %v1797
    %v1799 = vsel %vm1534, %v1703, 0.0
    %v1800 = vadd.f32 %v1798, %v1799
    %v1801 = vsel %vm1534, %v1704, 0.0
    %v1802 = vadd.f32 %v1800, %v1801
    %v1803 = vsel %vm1534, %v1705, 0.0
    %v1804 = vadd.f32 %v1802, %v1803
    %v1805 = vsel %vm1534, %v1706, 0.0
    %v1806 = vadd.f32 %v1804, %v1805
    %v1807 = vsel %vm1534, %v1707, 0.0
    %v1808 = vadd.f32 %v1806, %v1807
    %v1809 = vsel %vm1534, %v1708, 0.0
    %v1810 = vadd.f32 %v1808, %v1809
    %v1811 = vsel %vm1534, %v1709, 0.0
    %v1812 = vadd.f32 %v1810, %v1811
    %v1813 = vsel %vm1534, %v1710, 0.0
    %v1814 = vadd.f32 %v1812, %v1813
    %v1815 = vsel %vm1534, %v1711, 0.0
    %v1816 = vadd.f32 %v1814, %v1815
    %v1817 = vsel %vm1534, %v1712, 0.0
    %v1818 = vadd.f32 %v1816, %v1817
    %v1819 = vsel %vm1534, %v1713, 0.0
    %v1820 = vadd.f32 %v1818, %v1819
    %v1821 = vsel %vm1534, %v1714, 0.0
    %v1822 = vadd.f32 %v1820, %v1821
    %v1823 = vsel %vm1534, %v1715, 0.0
    %v1824 = vadd.f32 %v1822, %v1823
    %v1825 = vsel %vm1534, %v1716, 0.0
    %v1826 = vadd.f32 %v1824, %v1825
    %v1827 = vsel %vm1534, %v1717, 0.0
    %v1828 = vadd.f32 %v1826, %v1827
    %v1829 = vsel %vm1534, %v1718, 0.0
    %v1830 = vadd.f32 %v1828, %v1829
    %v1831 = vsel %vm1534, %v1719, 0.0
    %v1832 = vadd.f32 %v1830, %v1831
    %v1833 = vsel %vm1534, %v1720, 0.0
    %v1834 = vadd.f32 %v1832, %v1833
    %v1835 = vsel %vm1534, %v1721, 0.0
    %v1836 = vadd.f32 %v1834, %v1835
    %v1837 = vsel %vm1534, %v1722, 0.0
    %v1838 = vadd.f32 %v1836, %v1837
    %v1839 = vsel %vm1534, %v1723, 0.0
    %v1840 = vadd.f32 %v1838, %v1839
    %v1841 = vsel %vm1534, %v1724, 0.0
    %v1842 = vadd.f32 %v1840, %v1841
    %v1843 = vsel %vm1534, %v1725, 0.0
    %v1844 = vadd.f32 %v1842, %v1843
    %v1845 = vsel %vm1534, %v1726, 0.0
    %v1846 = vadd.f32 %v1844, %v1845
    %v1847 = vsel %vm1534, %v1727, 0.0
    %v1848 = vadd.f32 %v1846, %v1847
    %v1849 = vsel %vm1534, %v1728, 0.0
    %v1850 = vadd.f32 %v1848, %v1849
    %v1851 = vsel %vm1534, %v1729, 0.0
    %v1852 = vadd.f32 %v1850, %v1851
    %v1853 = vsel %vm1534, %v1730, 0.0
    %v1854 = vadd.f32 %v1852, %v1853
    %v1855 = vsel %vm1534, %v1731, 0.0
    %v1856 = vadd.f32 %v1854, %v1855
    %v1857 = vsel %vm1534, %v1732, 0.0
    %v1858 = vadd.f32 %v1856, %v1857
    %v1859 = vsel %vm1534, %v1733, 0.0
    %v1860 = vadd.f32 %v1858, %v1859
    %v1861 = vrot.slane %v1860, 4
    %v1862 = vadd.f32 %v1860, %v1861
    %v1863 = vrot.slane %v1862, 2
    %v1864 = vadd.f32 %v1862, %v1863
    %v1865 = vrot.slane %v1864, 1
    %v1866 = vadd.f32 %v1864, %v1865
    %1867 = vst.msk [vmem:[#allocation13] sm:$0x1] %vm1668, %v1866
    // Predicated region
    $region34: #{resnet_block_forward.6} parent=1 // pred_check
      _
    $region35: #{resnet_block_forward.6} parent=1 // pred_check_branch
      %1869 = sbr.rel (0) target = $region37
    $region36: #{resnet_block_forward.6} parent=1 // pred_region
      %s1871 = ssub.s32 4096, 4096
      %1872 = vsyncadd [#allocation4], %s1871
      %s1873 = sshll.u32 [#allocation10], 4
      %s1874 = int_to_ptr.vmem [resolvable:$true] %s1873
      %1879 = dma.vmem_to_hbm [thread:$0]  %s1874, 4096, %s4, [#allocation4], 64, 64, 4
    $region37: #{resnet_block_forward.6} parent=1 // pred_fallthru
      _
    // Predicated region
    $region38: #{resnet_block_forward.6} parent=1 // pred_check
      _
    $region39: #{resnet_block_forward.6} parent=1 // pred_check_branch
      %1881 = sbr.rel (0) target = $region41
    $region40: #{resnet_block_forward.6} parent=1 // pred_region
      %s1883 = ssub.s32 16, 16
      %1884 = vsyncadd [#allocation12], %s1883
      %s1886 = sshll.u32 [#allocation11], 4
      %s1887 = int_to_ptr.vmem [resolvable:$true] %s1886
      %1889 = dma.vmem_to_hbm [thread:$0]  %s1887, 16, %s5, [#allocation12]
    $region41: #{resnet_block_forward.6} parent=1 // pred_fallthru
      _
    // Predicated region
    $region42: #{resnet_block_forward.6} parent=1 // pred_check
      _
    $region43: #{resnet_block_forward.6} parent=1 // pred_check_branch
      %1891 = sbr.rel (0) target = $region45
    $region44: #{resnet_block_forward.6} parent=1 // pred_region
      %s1893 = ssub.s32 16, 16
      %1894 = vsyncadd [#allocation12], %s1893
      %s1896 = sshll.u32 [#allocation13], 4
      %s1897 = int_to_ptr.vmem [resolvable:$true] %s1896
      %1899 = dma.vmem_to_hbm [thread:$0]  %s1897, 16, %s6, [#allocation12]
    $region45: #{resnet_block_forward.6} parent=1 // pred_fallthru
      _
    // Predicated region
    $region46: #{resnet_block_forward.6} parent=1 // pred_check
      _
    $region47: #{resnet_block_forward.6} parent=1 // pred_check_branch
      %1901 = sbr.rel (0) target = $region49
    $region48: #{resnet_block_forward.6} parent=1 // pred_region
      %1902 = dma.done [#allocation4], 4096
    $region49: #{resnet_block_forward.6} parent=1 // pred_fallthru
      _
    // Predicated region
    $region50: #{resnet_block_forward.6} parent=1 // pred_check
      _
    $region51: #{resnet_block_forward.6} parent=1 // pred_check_branch
      %1904 = sbr.rel (0) target = $region53
    $region52: #{resnet_block_forward.6} parent=1 // pred_region
      %1905 = dma.done [#allocation12], 16
    $region53: #{resnet_block_forward.6} parent=1 // pred_fallthru
      _
    // Predicated region
    $region54: #{resnet_block_forward.6} parent=1 // pred_check
      _
    $region55: #{resnet_block_forward.6} parent=1 // pred_check_branch
      %1907 = sbr.rel (0) target = $region57
    $region56: #{resnet_block_forward.6} parent=1 // pred_region
      %1908 = dma.done [#allocation12], 16
    $region57: #{resnet_block_forward.6} parent=1 // pred_fallthru
      _
    %1909 = vsyncpa [#allocation3], 1
    %1910 = vsyncpa [#allocation6], 1
    %1911 = vsyncpa [#allocation9], 1
    %1912 = vsyncpa [#allocation4], 1
    %1913 = vsyncpa [#allocation12], 1

// kernel: resnet_block_forward.7
$region0: #{resnet_block_forward.7}
  #allocation0 [shape = 'u32[]', space=smem, size = 0x4, offset = 0x4, fixed_abs, tag = 'smem constant byte address 0x4 - core index']
  #allocation1 [shape = 'u32[144,128]{1,0:T(1,128)}', space=vmem, size = 0x12000, scoped, tag = 'internal scratch']
  %s0 = inlined_call_operand.hbm [shape: bf16[512,16], index: 0, kind: input, shape index: {}]
  %s1 = inlined_call_operand.hbm [shape: f32[1,16], index: 1, kind: input, shape index: {}]
  %s2 = inlined_call_operand.hbm [shape: f32[1,16], index: 2, kind: input, shape index: {}]
  %s3 = inlined_call_operand.hbm [shape: bf16[512,16], index: 3, kind: input, shape index: {}]
  %s4 = inlined_call_operand.hbm [shape: f32[1,16], index: 4, kind: input, shape index: {}]
  %s5 = inlined_call_operand.hbm [shape: f32[1,16], index: 5, kind: input, shape index: {}]
  %s6 = inlined_call_operand.hbm [shape: f32[512,16], index: 6, kind: output, shape index: {}]
  %s7 = sld [smem:[#allocation0]]
  $region58: #{resnet_block_forward.7} parent=0
    _
  %s9 = ssub.s32 1, %s7
  %s10 = scalar_select 0, %s9, %s7
  $region1: #{resnet_block_forward.7} parent=0
    #allocation2 [shape = 'u8[131072]{0}', space=vmem, size = 0x20000, scoped, tag = 'input window, operand 0, single buffered']
    #allocation3 [shape = 's32[1]{0}', space=sflag, size = 0x4, scoped, tag = 'scoped memory for resnet_block_forward.7']
    #allocation4 [shape = 's32[1]{0}', space=sflag, size = 0x4, scoped, tag = 'scoped memory for resnet_block_forward.7']
    #allocation5 [shape = 'u8[512]{0}', space=vmem, size = 0x400, scoped, tag = 'input window, operand 1, single buffered']
    #allocation6 [shape = 's32[1]{0}', space=sflag, size = 0x4, scoped, tag = 'scoped memory for resnet_block_forward.7']
    #allocation7 [shape = 'u8[512]{0}', space=vmem, size = 0x400, scoped, tag = 'input window, operand 2, single buffered']
    #allocation8 [shape = 'u8[131072]{0}', space=vmem, size = 0x20000, scoped, tag = 'input window, operand 3, single buffered']
    #allocation9 [shape = 's32[1]{0}', space=sflag, size = 0x4, scoped, tag = 'scoped memory for resnet_block_forward.7']
    #allocation10 [shape = 'u8[512]{0}', space=vmem, size = 0x400, scoped, tag = 'input window, operand 4, single buffered']
    #allocation11 [shape = 'u8[512]{0}', space=vmem, size = 0x400, scoped, tag = 'input window, operand 5, single buffered']
    #allocation12 [shape = 's32[1]{0}', space=sflag, size = 0x4, scoped, tag = 'scoped memory for resnet_block_forward.7']
    #allocation13 [shape = 'u8[262144]{0}', space=vmem, size = 0x40000, scoped, tag = 'output window, operand 0, single buffered']
    %11 = vsyncpa [#allocation3], 0
    %12 = vsyncpa [#allocation6], 0
    %13 = vsyncpa [#allocation9], 0
    %14 = vsyncpa [#allocation12], 0
    %15 = vsyncpa [#allocation4], 0
    // Predicated region
    $region2: #{resnet_block_forward.7} parent=1 // pred_check
      _
    $region3: #{resnet_block_forward.7} parent=1 // pred_check_branch
      %17 = sbr.rel (0) target = $region5
    $region4: #{resnet_block_forward.7} parent=1 // pred_region
      %s19 = ssub.s32 4096, 4096
      %20 = vsyncadd [#allocation3], %s19
      %s21 = sshll.u32 [#allocation2], 4
      %s22 = int_to_ptr.vmem [resolvable:$true] %s21
      %27 = dma.hbm_to_vmem [thread:$0]  %s0, 4096, %s22, [#allocation3], 64, 64, 4
    $region5: #{resnet_block_forward.7} parent=1 // pred_fallthru
      _
    // Predicated region
    $region6: #{resnet_block_forward.7} parent=1 // pred_check
      _
    $region7: #{resnet_block_forward.7} parent=1 // pred_check_branch
      %29 = sbr.rel (0) target = $region9
    $region8: #{resnet_block_forward.7} parent=1 // pred_region
      %s31 = ssub.s32 16, 16
      %32 = vsyncadd [#allocation6], %s31
      %s34 = sshll.u32 [#allocation5], 4
      %s35 = int_to_ptr.vmem [resolvable:$true] %s34
      %37 = dma.hbm_to_vmem [thread:$0]  %s1, 16, %s35, [#allocation6]
    $region9: #{resnet_block_forward.7} parent=1 // pred_fallthru
      _
    // Predicated region
    $region10: #{resnet_block_forward.7} parent=1 // pred_check
      _
    $region11: #{resnet_block_forward.7} parent=1 // pred_check_branch
      %39 = sbr.rel (0) target = $region13
    $region12: #{resnet_block_forward.7} parent=1 // pred_region
      %s41 = ssub.s32 16, 16
      %42 = vsyncadd [#allocation6], %s41
      %s44 = sshll.u32 [#allocation7], 4
      %s45 = int_to_ptr.vmem [resolvable:$true] %s44
      %47 = dma.hbm_to_vmem [thread:$0]  %s2, 16, %s45, [#allocation6]
    $region13: #{resnet_block_forward.7} parent=1 // pred_fallthru
      _
    // Predicated region
    $region14: #{resnet_block_forward.7} parent=1 // pred_check
      _
    $region15: #{resnet_block_forward.7} parent=1 // pred_check_branch
      %49 = sbr.rel (0) target = $region17
    $region16: #{resnet_block_forward.7} parent=1 // pred_region
      %s51 = ssub.s32 4096, 4096
      %52 = vsyncadd [#allocation9], %s51
      %s53 = sshll.u32 [#allocation8], 4
      %s54 = int_to_ptr.vmem [resolvable:$true] %s53
      %59 = dma.hbm_to_vmem [thread:$0]  %s3, 4096, %s54, [#allocation9], 64, 64, 4
    $region17: #{resnet_block_forward.7} parent=1 // pred_fallthru
      _
    // Predicated region
    $region18: #{resnet_block_forward.7} parent=1 // pred_check
      _
    $region19: #{resnet_block_forward.7} parent=1 // pred_check_branch
      %61 = sbr.rel (0) target = $region21
    $region20: #{resnet_block_forward.7} parent=1 // pred_region
      %s63 = ssub.s32 16, 16
      %64 = vsyncadd [#allocation9], %s63
      %s66 = sshll.u32 [#allocation10], 4
      %s67 = int_to_ptr.vmem [resolvable:$true] %s66
      %69 = dma.hbm_to_vmem [thread:$0]  %s4, 16, %s67, [#allocation9]
    $region21: #{resnet_block_forward.7} parent=1 // pred_fallthru
      _
    // Predicated region
    $region22: #{resnet_block_forward.7} parent=1 // pred_check
      _
    $region23: #{resnet_block_forward.7} parent=1 // pred_check_branch
      %71 = sbr.rel (0) target = $region25
    $region24: #{resnet_block_forward.7} parent=1 // pred_region
      %s73 = ssub.s32 16, 16
      %74 = vsyncadd [#allocation12], %s73
      %s76 = sshll.u32 [#allocation11], 4
      %s77 = int_to_ptr.vmem [resolvable:$true] %s76
      %79 = dma.hbm_to_vmem [thread:$0]  %s5, 16, %s77, [#allocation12]
    $region25: #{resnet_block_forward.7} parent=1 // pred_fallthru
      _
    // Predicated region
    $region26: #{resnet_block_forward.7} parent=1 // pred_check
      _
    $region27: #{resnet_block_forward.7} parent=1 // pred_check_branch
      %81 = sbr.rel (0) target = $region29
    $region28: #{resnet_block_forward.7} parent=1 // pred_region
      %82 = dma.done [#allocation3], 4096
    $region29: #{resnet_block_forward.7} parent=1 // pred_fallthru
      _
    // Predicated region
    $region30: #{resnet_block_forward.7} parent=1 // pred_check
      _
    $region31: #{resnet_block_forward.7} parent=1 // pred_check_branch
      %84 = sbr.rel (0) target = $region33
    $region32: #{resnet_block_forward.7} parent=1 // pred_region
      %85 = dma.done [#allocation6], 16
    $region33: #{resnet_block_forward.7} parent=1 // pred_fallthru
      _
    // Predicated region
    $region34: #{resnet_block_forward.7} parent=1 // pred_check
      _
    $region35: #{resnet_block_forward.7} parent=1 // pred_check_branch
      %87 = sbr.rel (0) target = $region37
    $region36: #{resnet_block_forward.7} parent=1 // pred_region
      %88 = dma.done [#allocation6], 16
    $region37: #{resnet_block_forward.7} parent=1 // pred_fallthru
      _
    // Predicated region
    $region38: #{resnet_block_forward.7} parent=1 // pred_check
      _
    $region39: #{resnet_block_forward.7} parent=1 // pred_check_branch
      %90 = sbr.rel (0) target = $region41
    $region40: #{resnet_block_forward.7} parent=1 // pred_region
      %91 = dma.done [#allocation9], 4096
    $region41: #{resnet_block_forward.7} parent=1 // pred_fallthru
      _
    // Predicated region
    $region42: #{resnet_block_forward.7} parent=1 // pred_check
      _
    $region43: #{resnet_block_forward.7} parent=1 // pred_check_branch
      %93 = sbr.rel (0) target = $region45
    $region44: #{resnet_block_forward.7} parent=1 // pred_region
      %94 = dma.done [#allocation9], 16
    $region45: #{resnet_block_forward.7} parent=1 // pred_fallthru
      _
    // Predicated region
    $region46: #{resnet_block_forward.7} parent=1 // pred_check
      _
    $region47: #{resnet_block_forward.7} parent=1 // pred_check_branch
      %96 = sbr.rel (0) target = $region49
    $region48: #{resnet_block_forward.7} parent=1 // pred_region
      %97 = dma.done [#allocation12], 16
    $region49: #{resnet_block_forward.7} parent=1 // pred_fallthru
      _
    %v98 = vld [vmem:[#allocation2] sm:$0xf]
    %v99 = vld [vmem:[#allocation2 + $0x4] sm:$0xf]
    %v100 = vld [vmem:[#allocation2 + $0x8] sm:$0xf]
    %v101 = vld [vmem:[#allocation2 + $0xc] sm:$0xf]
    %v102 = vld [vmem:[#allocation2 + $0x10] sm:$0xf]
    %v103 = vld [vmem:[#allocation2 + $0x14] sm:$0xf]
    %v104 = vld [vmem:[#allocation2 + $0x18] sm:$0xf]
    %v105 = vld [vmem:[#allocation2 + $0x1c] sm:$0xf]
    %v106 = vld [vmem:[#allocation2 + $0x20] sm:$0xf]
    %v107 = vld [vmem:[#allocation2 + $0x24] sm:$0xf]
    %v108 = vld [vmem:[#allocation2 + $0x28] sm:$0xf]
    %v109 = vld [vmem:[#allocation2 + $0x2c] sm:$0xf]
    %v110 = vld [vmem:[#allocation2 + $0x30] sm:$0xf]
    %v111 = vld [vmem:[#allocation2 + $0x34] sm:$0xf]
    %v112 = vld [vmem:[#allocation2 + $0x38] sm:$0xf]
    %v113 = vld [vmem:[#allocation2 + $0x3c] sm:$0xf]
    %v114 = vld [vmem:[#allocation2 + $0x40] sm:$0xf]
    %v115 = vld [vmem:[#allocation2 + $0x44] sm:$0xf]
    %v116 = vld [vmem:[#allocation2 + $0x48] sm:$0xf]
    %v117 = vld [vmem:[#allocation2 + $0x4c] sm:$0xf]
    %v118 = vld [vmem:[#allocation2 + $0x50] sm:$0xf]
    %v119 = vld [vmem:[#allocation2 + $0x54] sm:$0xf]
    %v120 = vld [vmem:[#allocation2 + $0x58] sm:$0xf]
    %v121 = vld [vmem:[#allocation2 + $0x5c] sm:$0xf]
    %v122 = vld [vmem:[#allocation2 + $0x60] sm:$0xf]
    %v123 = vld [vmem:[#allocation2 + $0x64] sm:$0xf]
    %v124 = vld [vmem:[#allocation2 + $0x68] sm:$0xf]
    %v125 = vld [vmem:[#allocation2 + $0x6c] sm:$0xf]
    %v126 = vld [vmem:[#allocation2 + $0x70] sm:$0xf]
    %v127 = vld [vmem:[#allocation2 + $0x74] sm:$0xf]
    %v128 = vld [vmem:[#allocation2 + $0x78] sm:$0xf]
    %v129 = vld [vmem:[#allocation2 + $0x7c] sm:$0xf]
    %v130 = vld [vmem:[#allocation2 + $0x80] sm:$0xf]
    %v131 = vld [vmem:[#allocation2 + $0x84] sm:$0xf]
    %v132 = vld [vmem:[#allocation2 + $0x88] sm:$0xf]
    %v133 = vld [vmem:[#allocation2 + $0x8c] sm:$0xf]
    %v134 = vld [vmem:[#allocation2 + $0x90] sm:$0xf]
    %v135 = vld [vmem:[#allocation2 + $0x94] sm:$0xf]
    %v136 = vld [vmem:[#allocation2 + $0x98] sm:$0xf]
    %v137 = vld [vmem:[#allocation2 + $0x9c] sm:$0xf]
    %v138 = vld [vmem:[#allocation2 + $0xa0] sm:$0xf]
    %v139 = vld [vmem:[#allocation2 + $0xa4] sm:$0xf]
    %v140 = vld [vmem:[#allocation2 + $0xa8] sm:$0xf]
    %v141 = vld [vmem:[#allocation2 + $0xac] sm:$0xf]
    %v142 = vld [vmem:[#allocation2 + $0xb0] sm:$0xf]
    %v143 = vld [vmem:[#allocation2 + $0xb4] sm:$0xf]
    %v144 = vld [vmem:[#allocation2 + $0xb8] sm:$0xf]
    %v145 = vld [vmem:[#allocation2 + $0xbc] sm:$0xf]
    %v146 = vld [vmem:[#allocation2 + $0xc0] sm:$0xf]
    %v147 = vld [vmem:[#allocation2 + $0xc4] sm:$0xf]
    %v148 = vld [vmem:[#allocation2 + $0xc8] sm:$0xf]
    %v149 = vld [vmem:[#allocation2 + $0xcc] sm:$0xf]
    %v150 = vld [vmem:[#allocation2 + $0xd0] sm:$0xf]
    %v151 = vld [vmem:[#allocation2 + $0xd4] sm:$0xf]
    %v152 = vld [vmem:[#allocation2 + $0xd8] sm:$0xf]
    %v153 = vld [vmem:[#allocation2 + $0xdc] sm:$0xf]
    %v154 = vld [vmem:[#allocation2 + $0xe0] sm:$0xf]
    %v155 = vld [vmem:[#allocation2 + $0xe4] sm:$0xf]
    %v156 = vld [vmem:[#allocation2 + $0xe8] sm:$0xf]
    %v157 = vld [vmem:[#allocation2 + $0xec] sm:$0xf]
    %v158 = vld [vmem:[#allocation2 + $0xf0] sm:$0xf]
    %v159 = vld [vmem:[#allocation2 + $0xf4] sm:$0xf]
    %v160 = vld [vmem:[#allocation2 + $0xf8] sm:$0xf]
    %v161 = vld [vmem:[#allocation2 + $0xfc] sm:$0xf]
    %v162 = vunpack.c.l.bf16 %v98
    %v163 = vunpack.c.l.bf16 %v99
    %v164 = vunpack.c.l.bf16 %v100
    %v165 = vunpack.c.l.bf16 %v101
    %v166 = vunpack.c.l.bf16 %v102
    %v167 = vunpack.c.l.bf16 %v103
    %v168 = vunpack.c.l.bf16 %v104
    %v169 = vunpack.c.l.bf16 %v105
    %v170 = vunpack.c.l.bf16 %v106
    %v171 = vunpack.c.l.bf16 %v107
    %v172 = vunpack.c.l.bf16 %v108
    %v173 = vunpack.c.l.bf16 %v109
    %v174 = vunpack.c.l.bf16 %v110
    %v175 = vunpack.c.l.bf16 %v111
    %v176 = vunpack.c.l.bf16 %v112
    %v177 = vunpack.c.l.bf16 %v113
    %v178 = vunpack.c.l.bf16 %v114
    %v179 = vunpack.c.l.bf16 %v115
    %v180 = vunpack.c.l.bf16 %v116
    %v181 = vunpack.c.l.bf16 %v117
    %v182 = vunpack.c.l.bf16 %v118
    %v183 = vunpack.c.l.bf16 %v119
    %v184 = vunpack.c.l.bf16 %v120
    %v185 = vunpack.c.l.bf16 %v121
    %v186 = vunpack.c.l.bf16 %v122
    %v187 = vunpack.c.l.bf16 %v123
    %v188 = vunpack.c.l.bf16 %v124
    %v189 = vunpack.c.l.bf16 %v125
    %v190 = vunpack.c.l.bf16 %v126
    %v191 = vunpack.c.l.bf16 %v127
    %v192 = vunpack.c.l.bf16 %v128
    %v193 = vunpack.c.l.bf16 %v129
    %v194 = vunpack.c.l.bf16 %v130
    %v195 = vunpack.c.l.bf16 %v131
    %v196 = vunpack.c.l.bf16 %v132
    %v197 = vunpack.c.l.bf16 %v133
    %v198 = vunpack.c.l.bf16 %v134
    %v199 = vunpack.c.l.bf16 %v135
    %v200 = vunpack.c.l.bf16 %v136
    %v201 = vunpack.c.l.bf16 %v137
    %v202 = vunpack.c.l.bf16 %v138
    %v203 = vunpack.c.l.bf16 %v139
    %v204 = vunpack.c.l.bf16 %v140
    %v205 = vunpack.c.l.bf16 %v141
    %v206 = vunpack.c.l.bf16 %v142
    %v207 = vunpack.c.l.bf16 %v143
    %v208 = vunpack.c.l.bf16 %v144
    %v209 = vunpack.c.l.bf16 %v145
    %v210 = vunpack.c.l.bf16 %v146
    %v211 = vunpack.c.l.bf16 %v147
    %v212 = vunpack.c.l.bf16 %v148
    %v213 = vunpack.c.l.bf16 %v149
    %v214 = vunpack.c.l.bf16 %v150
    %v215 = vunpack.c.l.bf16 %v151
    %v216 = vunpack.c.l.bf16 %v152
    %v217 = vunpack.c.l.bf16 %v153
    %v218 = vunpack.c.l.bf16 %v154
    %v219 = vunpack.c.l.bf16 %v155
    %v220 = vunpack.c.l.bf16 %v156
    %v221 = vunpack.c.l.bf16 %v157
    %v222 = vunpack.c.l.bf16 %v158
    %v223 = vunpack.c.l.bf16 %v159
    %v224 = vunpack.c.l.bf16 %v160
    %v225 = vunpack.c.l.bf16 %v161
    %v226 = vld [vmem:[#allocation5] sm:$0x1]
    %v228 = vlaneseq
    %v229 = vshrl.u32 %v228, 7
    %v230 = vsub.s32 0, %v229
    %v231 = vrot.slane %v226, %v230
    %v233 = vsub.f32 %v162, %v231
    %v234 = vsub.f32 %v163, %v231
    %v235 = vsub.f32 %v164, %v231
    %v236 = vsub.f32 %v165, %v231
    %v237 = vsub.f32 %v166, %v231
    %v238 = vsub.f32 %v167, %v231
    %v239 = vsub.f32 %v168, %v231
    %v240 = vsub.f32 %v169, %v231
    %v241 = vsub.f32 %v170, %v231
    %v242 = vsub.f32 %v171, %v231
    %v243 = vsub.f32 %v172, %v231
    %v244 = vsub.f32 %v173, %v231
    %v245 = vsub.f32 %v174, %v231
    %v246 = vsub.f32 %v175, %v231
    %v247 = vsub.f32 %v176, %v231
    %v248 = vsub.f32 %v177, %v231
    %v249 = vsub.f32 %v178, %v231
    %v250 = vsub.f32 %v179, %v231
    %v251 = vsub.f32 %v180, %v231
    %v252 = vsub.f32 %v181, %v231
    %v253 = vsub.f32 %v182, %v231
    %v254 = vsub.f32 %v183, %v231
    %v255 = vsub.f32 %v184, %v231
    %v256 = vsub.f32 %v185, %v231
    %v257 = vsub.f32 %v186, %v231
    %v258 = vsub.f32 %v187, %v231
    %v259 = vsub.f32 %v188, %v231
    %v260 = vsub.f32 %v189, %v231
    %v261 = vsub.f32 %v190, %v231
    %v262 = vsub.f32 %v191, %v231
    %v263 = vsub.f32 %v192, %v231
    %v264 = vsub.f32 %v193, %v231
    %v265 = vsub.f32 %v194, %v231
    %v266 = vsub.f32 %v195, %v231
    %v267 = vsub.f32 %v196, %v231
    %v268 = vsub.f32 %v197, %v231
    %v269 = vsub.f32 %v198, %v231
    %v270 = vsub.f32 %v199, %v231
    %v271 = vsub.f32 %v200, %v231
    %v272 = vsub.f32 %v201, %v231
    %v273 = vsub.f32 %v202, %v231
    %v274 = vsub.f32 %v203, %v231
    %v275 = vsub.f32 %v204, %v231
    %v276 = vsub.f32 %v205, %v231
    %v277 = vsub.f32 %v206, %v231
    %v278 = vsub.f32 %v207, %v231
    %v279 = vsub.f32 %v208, %v231
    %v280 = vsub.f32 %v209, %v231
    %v281 = vsub.f32 %v210, %v231
    %v282 = vsub.f32 %v211, %v231
    %v283 = vsub.f32 %v212, %v231
    %v284 = vsub.f32 %v213, %v231
    %v285 = vsub.f32 %v214, %v231
    %v286 = vsub.f32 %v215, %v231
    %v287 = vsub.f32 %v216, %v231
    %v288 = vsub.f32 %v217, %v231
    %v289 = vsub.f32 %v218, %v231
    %v290 = vsub.f32 %v219, %v231
    %v291 = vsub.f32 %v220, %v231
    %v292 = vsub.f32 %v221, %v231
    %v293 = vsub.f32 %v222, %v231
    %v294 = vsub.f32 %v223, %v231
    %v295 = vsub.f32 %v224, %v231
    %v296 = vsub.f32 %v225, %v231
    %v297 = vld [vmem:[#allocation7] sm:$0x1]
    %v299 = vlaneseq
    %v300 = vshrl.u32 %v299, 7
    %v301 = vsub.s32 0, %v300
    %v302 = vrot.slane %v297, %v301
    %v304 = vmul.f32 %v233, %v302
    %v305 = vmul.f32 %v234, %v302
    %v306 = vmul.f32 %v235, %v302
    %v307 = vmul.f32 %v236, %v302
    %v308 = vmul.f32 %v237, %v302
    %v309 = vmul.f32 %v238, %v302
    %v310 = vmul.f32 %v239, %v302
    %v311 = vmul.f32 %v240, %v302
    %v312 = vmul.f32 %v241, %v302
    %v313 = vmul.f32 %v242, %v302
    %v314 = vmul.f32 %v243, %v302
    %v315 = vmul.f32 %v244, %v302
    %v316 = vmul.f32 %v245, %v302
    %v317 = vmul.f32 %v246, %v302
    %v318 = vmul.f32 %v247, %v302
    %v319 = vmul.f32 %v248, %v302
    %v320 = vmul.f32 %v249, %v302
    %v321 = vmul.f32 %v250, %v302
    %v322 = vmul.f32 %v251, %v302
    %v323 = vmul.f32 %v252, %v302
    %v324 = vmul.f32 %v253, %v302
    %v325 = vmul.f32 %v254, %v302
    %v326 = vmul.f32 %v255, %v302
    %v327 = vmul.f32 %v256, %v302
    %v328 = vmul.f32 %v257, %v302
    %v329 = vmul.f32 %v258, %v302
    %v330 = vmul.f32 %v259, %v302
    %v331 = vmul.f32 %v260, %v302
    %v332 = vmul.f32 %v261, %v302
    %v333 = vmul.f32 %v262, %v302
    %v334 = vmul.f32 %v263, %v302
    %v335 = vmul.f32 %v264, %v302
    %v336 = vmul.f32 %v265, %v302
    %v337 = vmul.f32 %v266, %v302
    %v338 = vmul.f32 %v267, %v302
    %v339 = vmul.f32 %v268, %v302
    %v340 = vmul.f32 %v269, %v302
    %v341 = vmul.f32 %v270, %v302
    %v342 = vmul.f32 %v271, %v302
    %v343 = vmul.f32 %v272, %v302
    %v344 = vmul.f32 %v273, %v302
    %v345 = vmul.f32 %v274, %v302
    %v346 = vmul.f32 %v275, %v302
    %v347 = vmul.f32 %v276, %v302
    %v348 = vmul.f32 %v277, %v302
    %v349 = vmul.f32 %v278, %v302
    %v350 = vmul.f32 %v279, %v302
    %v351 = vmul.f32 %v280, %v302
    %v352 = vmul.f32 %v281, %v302
    %v353 = vmul.f32 %v282, %v302
    %v354 = vmul.f32 %v283, %v302
    %v355 = vmul.f32 %v284, %v302
    %v356 = vmul.f32 %v285, %v302
    %v357 = vmul.f32 %v286, %v302
    %v358 = vmul.f32 %v287, %v302
    %v359 = vmul.f32 %v288, %v302
    %v360 = vmul.f32 %v289, %v302
    %v361 = vmul.f32 %v290, %v302
    %v362 = vmul.f32 %v291, %v302
    %v363 = vmul.f32 %v292, %v302
    %v364 = vmul.f32 %v293, %v302
    %v365 = vmul.f32 %v294, %v302
    %v366 = vmul.f32 %v295, %v302
    %v367 = vmul.f32 %v296, %v302
    %v368 = vld [vmem:[#allocation8] sm:$0xf]
    %v369 = vld [vmem:[#allocation8 + $0x4] sm:$0xf]
    %v370 = vld [vmem:[#allocation8 + $0x8] sm:$0xf]
    %v371 = vld [vmem:[#allocation8 + $0xc] sm:$0xf]
    %v372 = vld [vmem:[#allocation8 + $0x10] sm:$0xf]
    %v373 = vld [vmem:[#allocation8 + $0x14] sm:$0xf]
    %v374 = vld [vmem:[#allocation8 + $0x18] sm:$0xf]
    %v375 = vld [vmem:[#allocation8 + $0x1c] sm:$0xf]
    %v376 = vld [vmem:[#allocation8 + $0x20] sm:$0xf]
    %v377 = vld [vmem:[#allocation8 + $0x24] sm:$0xf]
    %v378 = vld [vmem:[#allocation8 + $0x28] sm:$0xf]
    %v379 = vld [vmem:[#allocation8 + $0x2c] sm:$0xf]
    %v380 = vld [vmem:[#allocation8 + $0x30] sm:$0xf]
    %v381 = vld [vmem:[#allocation8 + $0x34] sm:$0xf]
    %v382 = vld [vmem:[#allocation8 + $0x38] sm:$0xf]
    %v383 = vld [vmem:[#allocation8 + $0x3c] sm:$0xf]
    %v384 = vld [vmem:[#allocation8 + $0x40] sm:$0xf]
    %v385 = vld [vmem:[#allocation8 + $0x44] sm:$0xf]
    %v386 = vld [vmem:[#allocation8 + $0x48] sm:$0xf]
    %v387 = vld [vmem:[#allocation8 + $0x4c] sm:$0xf]
    %v388 = vld [vmem:[#allocation8 + $0x50] sm:$0xf]
    %v389 = vld [vmem:[#allocation8 + $0x54] sm:$0xf]
    %v390 = vld [vmem:[#allocation8 + $0x58] sm:$0xf]
    %v391 = vld [vmem:[#allocation8 + $0x5c] sm:$0xf]
    %v392 = vld [vmem:[#allocation8 + $0x60] sm:$0xf]
    %v393 = vld [vmem:[#allocation8 + $0x64] sm:$0xf]
    %v394 = vld [vmem:[#allocation8 + $0x68] sm:$0xf]
    %v395 = vld [vmem:[#allocation8 + $0x6c] sm:$0xf]
    %v396 = vld [vmem:[#allocation8 + $0x70] sm:$0xf]
    %v397 = vld [vmem:[#allocation8 + $0x74] sm:$0xf]
    %v398 = vld [vmem:[#allocation8 + $0x78] sm:$0xf]
    %v399 = vld [vmem:[#allocation8 + $0x7c] sm:$0xf]
    %v400 = vld [vmem:[#allocation8 + $0x80] sm:$0xf]
    %v401 = vld [vmem:[#allocation8 + $0x84] sm:$0xf]
    %v402 = vld [vmem:[#allocation8 + $0x88] sm:$0xf]
    %v403 = vld [vmem:[#allocation8 + $0x8c] sm:$0xf]
    %v404 = vld [vmem:[#allocation8 + $0x90] sm:$0xf]
    %v405 = vld [vmem:[#allocation8 + $0x94] sm:$0xf]
    %v406 = vld [vmem:[#allocation8 + $0x98] sm:$0xf]
    %v407 = vld [vmem:[#allocation8 + $0x9c] sm:$0xf]
    %v408 = vld [vmem:[#allocation8 + $0xa0] sm:$0xf]
    %v409 = vld [vmem:[#allocation8 + $0xa4] sm:$0xf]
    %v410 = vld [vmem:[#allocation8 + $0xa8] sm:$0xf]
    %v411 = vld [vmem:[#allocation8 + $0xac] sm:$0xf]
    %v412 = vld [vmem:[#allocation8 + $0xb0] sm:$0xf]
    %v413 = vld [vmem:[#allocation8 + $0xb4] sm:$0xf]
    %v414 = vld [vmem:[#allocation8 + $0xb8] sm:$0xf]
    %v415 = vld [vmem:[#allocation8 + $0xbc] sm:$0xf]
    %v416 = vld [vmem:[#allocation8 + $0xc0] sm:$0xf]
    %v417 = vld [vmem:[#allocation8 + $0xc4] sm:$0xf]
    %v418 = vld [vmem:[#allocation8 + $0xc8] sm:$0xf]
    %v419 = vld [vmem:[#allocation8 + $0xcc] sm:$0xf]
    %v420 = vld [vmem:[#allocation8 + $0xd0] sm:$0xf]
    %v421 = vld [vmem:[#allocation8 + $0xd4] sm:$0xf]
    %v422 = vld [vmem:[#allocation8 + $0xd8] sm:$0xf]
    %v423 = vld [vmem:[#allocation8 + $0xdc] sm:$0xf]
    %v424 = vld [vmem:[#allocation8 + $0xe0] sm:$0xf]
    %v425 = vld [vmem:[#allocation8 + $0xe4] sm:$0xf]
    %v426 = vld [vmem:[#allocation8 + $0xe8] sm:$0xf]
    %v427 = vld [vmem:[#allocation8 + $0xec] sm:$0xf]
    %v428 = vld [vmem:[#allocation8 + $0xf0] sm:$0xf]
    %v429 = vld [vmem:[#allocation8 + $0xf4] sm:$0xf]
    %v430 = vld [vmem:[#allocation8 + $0xf8] sm:$0xf]
    %v431 = vld [vmem:[#allocation8 + $0xfc] sm:$0xf]
    %v432 = vunpack.c.l.bf16 %v368
    %v433 = vunpack.c.l.bf16 %v369
    %v434 = vunpack.c.l.bf16 %v370
    %v435 = vunpack.c.l.bf16 %v371
    %v436 = vunpack.c.l.bf16 %v372
    %v437 = vunpack.c.l.bf16 %v373
    %v438 = vunpack.c.l.bf16 %v374
    %v439 = vunpack.c.l.bf16 %v375
    %v440 = vunpack.c.l.bf16 %v376
    %v441 = vunpack.c.l.bf16 %v377
    %v442 = vunpack.c.l.bf16 %v378
    %v443 = vunpack.c.l.bf16 %v379
    %v444 = vunpack.c.l.bf16 %v380
    %v445 = vunpack.c.l.bf16 %v381
    %v446 = vunpack.c.l.bf16 %v382
    %v447 = vunpack.c.l.bf16 %v383
    %v448 = vunpack.c.l.bf16 %v384
    %v449 = vunpack.c.l.bf16 %v385
    %v450 = vunpack.c.l.bf16 %v386
    %v451 = vunpack.c.l.bf16 %v387
    %v452 = vunpack.c.l.bf16 %v388
    %v453 = vunpack.c.l.bf16 %v389
    %v454 = vunpack.c.l.bf16 %v390
    %v455 = vunpack.c.l.bf16 %v391
    %v456 = vunpack.c.l.bf16 %v392
    %v457 = vunpack.c.l.bf16 %v393
    %v458 = vunpack.c.l.bf16 %v394
    %v459 = vunpack.c.l.bf16 %v395
    %v460 = vunpack.c.l.bf16 %v396
    %v461 = vunpack.c.l.bf16 %v397
    %v462 = vunpack.c.l.bf16 %v398
    %v463 = vunpack.c.l.bf16 %v399
    %v464 = vunpack.c.l.bf16 %v400
    %v465 = vunpack.c.l.bf16 %v401
    %v466 = vunpack.c.l.bf16 %v402
    %v467 = vunpack.c.l.bf16 %v403
    %v468 = vunpack.c.l.bf16 %v404
    %v469 = vunpack.c.l.bf16 %v405
    %v470 = vunpack.c.l.bf16 %v406
    %v471 = vunpack.c.l.bf16 %v407
    %v472 = vunpack.c.l.bf16 %v408
    %v473 = vunpack.c.l.bf16 %v409
    %v474 = vunpack.c.l.bf16 %v410
    %v475 = vunpack.c.l.bf16 %v411
    %v476 = vunpack.c.l.bf16 %v412
    %v477 = vunpack.c.l.bf16 %v413
    %v478 = vunpack.c.l.bf16 %v414
    %v479 = vunpack.c.l.bf16 %v415
    %v480 = vunpack.c.l.bf16 %v416
    %v481 = vunpack.c.l.bf16 %v417
    %v482 = vunpack.c.l.bf16 %v418
    %v483 = vunpack.c.l.bf16 %v419
    %v484 = vunpack.c.l.bf16 %v420
    %v485 = vunpack.c.l.bf16 %v421
    %v486 = vunpack.c.l.bf16 %v422
    %v487 = vunpack.c.l.bf16 %v423
    %v488 = vunpack.c.l.bf16 %v424
    %v489 = vunpack.c.l.bf16 %v425
    %v490 = vunpack.c.l.bf16 %v426
    %v491 = vunpack.c.l.bf16 %v427
    %v492 = vunpack.c.l.bf16 %v428
    %v493 = vunpack.c.l.bf16 %v429
    %v494 = vunpack.c.l.bf16 %v430
    %v495 = vunpack.c.l.bf16 %v431
    %v496 = vld [vmem:[#allocation10] sm:$0x1]
    %v498 = vlaneseq
    %v499 = vshrl.u32 %v498, 7
    %v500 = vsub.s32 0, %v499
    %v501 = vrot.slane %v496, %v500
    %v503 = vsub.f32 %v432, %v501
    %v504 = vsub.f32 %v433, %v501
    %v505 = vsub.f32 %v434, %v501
    %v506 = vsub.f32 %v435, %v501
    %v507 = vsub.f32 %v436, %v501
    %v508 = vsub.f32 %v437, %v501
    %v509 = vsub.f32 %v438, %v501
    %v510 = vsub.f32 %v439, %v501
    %v511 = vsub.f32 %v440, %v501
    %v512 = vsub.f32 %v441, %v501
    %v513 = vsub.f32 %v442, %v501
    %v514 = vsub.f32 %v443, %v501
    %v515 = vsub.f32 %v444, %v501
    %v516 = vsub.f32 %v445, %v501
    %v517 = vsub.f32 %v446, %v501
    %v518 = vsub.f32 %v447, %v501
    %v519 = vsub.f32 %v448, %v501
    %v520 = vsub.f32 %v449, %v501
    %v521 = vsub.f32 %v450, %v501
    %v522 = vsub.f32 %v451, %v501
    %v523 = vsub.f32 %v452, %v501
    %v524 = vsub.f32 %v453, %v501
    %v525 = vsub.f32 %v454, %v501
    %v526 = vsub.f32 %v455, %v501
    %v527 = vsub.f32 %v456, %v501
    %v528 = vsub.f32 %v457, %v501
    %v529 = vsub.f32 %v458, %v501
    %v530 = vsub.f32 %v459, %v501
    %v531 = vsub.f32 %v460, %v501
    %v532 = vsub.f32 %v461, %v501
    %v533 = vsub.f32 %v462, %v501
    %v534 = vsub.f32 %v463, %v501
    %v535 = vsub.f32 %v464, %v501
    %v536 = vsub.f32 %v465, %v501
    %v537 = vsub.f32 %v466, %v501
    %v538 = vsub.f32 %v467, %v501
    %v539 = vsub.f32 %v468, %v501
    %v540 = vsub.f32 %v469, %v501
    %v541 = vsub.f32 %v470, %v501
    %v542 = vsub.f32 %v471, %v501
    %v543 = vsub.f32 %v472, %v501
    %v544 = vsub.f32 %v473, %v501
    %v545 = vsub.f32 %v474, %v501
    %v546 = vsub.f32 %v475, %v501
    %v547 = vsub.f32 %v476, %v501
    %v548 = vsub.f32 %v477, %v501
    %v549 = vsub.f32 %v478, %v501
    %v550 = vsub.f32 %v479, %v501
    %v551 = vsub.f32 %v480, %v501
    %v552 = vsub.f32 %v481, %v501
    %v553 = vsub.f32 %v482, %v501
    %v554 = vsub.f32 %v483, %v501
    %v555 = vsub.f32 %v484, %v501
    %v556 = vsub.f32 %v485, %v501
    %v557 = vsub.f32 %v486, %v501
    %v558 = vsub.f32 %v487, %v501
    %v559 = vsub.f32 %v488, %v501
    %v560 = vsub.f32 %v489, %v501
    %v561 = vsub.f32 %v490, %v501
    %v562 = vsub.f32 %v491, %v501
    %v563 = vsub.f32 %v492, %v501
    %v564 = vsub.f32 %v493, %v501
    %v565 = vsub.f32 %v494, %v501
    %v566 = vsub.f32 %v495, %v501
    %v567 = vld [vmem:[#allocation11] sm:$0x1]
    %v569 = vlaneseq
    %v570 = vshrl.u32 %v569, 7
    %v571 = vsub.s32 0, %v570
    %v572 = vrot.slane %v567, %v571
    %v574 = vmul.f32 %v503, %v572
    %v575 = vmul.f32 %v504, %v572
    %v576 = vmul.f32 %v505, %v572
    %v577 = vmul.f32 %v506, %v572
    %v578 = vmul.f32 %v507, %v572
    %v579 = vmul.f32 %v508, %v572
    %v580 = vmul.f32 %v509, %v572
    %v581 = vmul.f32 %v510, %v572
    %v582 = vmul.f32 %v511, %v572
    %v583 = vmul.f32 %v512, %v572
    %v584 = vmul.f32 %v513, %v572
    %v585 = vmul.f32 %v514, %v572
    %v586 = vmul.f32 %v515, %v572
    %v587 = vmul.f32 %v516, %v572
    %v588 = vmul.f32 %v517, %v572
    %v589 = vmul.f32 %v518, %v572
    %v590 = vmul.f32 %v519, %v572
    %v591 = vmul.f32 %v520, %v572
    %v592 = vmul.f32 %v521, %v572
    %v593 = vmul.f32 %v522, %v572
    %v594 = vmul.f32 %v523, %v572
    %v595 = vmul.f32 %v524, %v572
    %v596 = vmul.f32 %v525, %v572
    %v597 = vmul.f32 %v526, %v572
    %v598 = vmul.f32 %v527, %v572
    %v599 = vmul.f32 %v528, %v572
    %v600 = vmul.f32 %v529, %v572
    %v601 = vmul.f32 %v530, %v572
    %v602 = vmul.f32 %v531, %v572
    %v603 = vmul.f32 %v532, %v572
    %v604 = vmul.f32 %v533, %v572
    %v605 = vmul.f32 %v534, %v572
    %v606 = vmul.f32 %v535, %v572
    %v607 = vmul.f32 %v536, %v572
    %v608 = vmul.f32 %v537, %v572
    %v609 = vmul.f32 %v538, %v572
    %v610 = vmul.f32 %v539, %v572
    %v611 = vmul.f32 %v540, %v572
    %v612 = vmul.f32 %v541, %v572
    %v613 = vmul.f32 %v542, %v572
    %v614 = vmul.f32 %v543, %v572
    %v615 = vmul.f32 %v544, %v572
    %v616 = vmul.f32 %v545, %v572
    %v617 = vmul.f32 %v546, %v572
    %v618 = vmul.f32 %v547, %v572
    %v619 = vmul.f32 %v548, %v572
    %v620 = vmul.f32 %v549, %v572
    %v621 = vmul.f32 %v550, %v572
    %v622 = vmul.f32 %v551, %v572
    %v623 = vmul.f32 %v552, %v572
    %v624 = vmul.f32 %v553, %v572
    %v625 = vmul.f32 %v554, %v572
    %v626 = vmul.f32 %v555, %v572
    %v627 = vmul.f32 %v556, %v572
    %v628 = vmul.f32 %v557, %v572
    %v629 = vmul.f32 %v558, %v572
    %v630 = vmul.f32 %v559, %v572
    %v631 = vmul.f32 %v560, %v572
    %v632 = vmul.f32 %v561, %v572
    %v633 = vmul.f32 %v562, %v572
    %v634 = vmul.f32 %v563, %v572
    %v635 = vmul.f32 %v564, %v572
    %v636 = vmul.f32 %v565, %v572
    %v637 = vmul.f32 %v566, %v572
    %v638 = vadd.f32 %v304, %v574
    %v639 = vadd.f32 %v305, %v575
    %v640 = vadd.f32 %v306, %v576
    %v641 = vadd.f32 %v307, %v577
    %v642 = vadd.f32 %v308, %v578
    %v643 = vadd.f32 %v309, %v579
    %v644 = vadd.f32 %v310, %v580
    %v645 = vadd.f32 %v311, %v581
    %v646 = vadd.f32 %v312, %v582
    %v647 = vadd.f32 %v313, %v583
    %v648 = vadd.f32 %v314, %v584
    %v649 = vadd.f32 %v315, %v585
    %v650 = vadd.f32 %v316, %v586
    %v651 = vadd.f32 %v317, %v587
    %v652 = vadd.f32 %v318, %v588
    %v653 = vadd.f32 %v319, %v589
    %v654 = vadd.f32 %v320, %v590
    %v655 = vadd.f32 %v321, %v591
    %v656 = vadd.f32 %v322, %v592
    %v657 = vadd.f32 %v323, %v593
    %v658 = vadd.f32 %v324, %v594
    %v659 = vadd.f32 %v325, %v595
    %v660 = vadd.f32 %v326, %v596
    %v661 = vadd.f32 %v327, %v597
    %v662 = vadd.f32 %v328, %v598
    %v663 = vadd.f32 %v329, %v599
    %v664 = vadd.f32 %v330, %v600
    %v665 = vadd.f32 %v331, %v601
    %v666 = vadd.f32 %v332, %v602
    %v667 = vadd.f32 %v333, %v603
    %v668 = vadd.f32 %v334, %v604
    %v669 = vadd.f32 %v335, %v605
    %v670 = vadd.f32 %v336, %v606
    %v671 = vadd.f32 %v337, %v607
    %v672 = vadd.f32 %v338, %v608
    %v673 = vadd.f32 %v339, %v609
    %v674 = vadd.f32 %v340, %v610
    %v675 = vadd.f32 %v341, %v611
    %v676 = vadd.f32 %v342, %v612
    %v677 = vadd.f32 %v343, %v613
    %v678 = vadd.f32 %v344, %v614
    %v679 = vadd.f32 %v345, %v615
    %v680 = vadd.f32 %v346, %v616
    %v681 = vadd.f32 %v347, %v617
    %v682 = vadd.f32 %v348, %v618
    %v683 = vadd.f32 %v349, %v619
    %v684 = vadd.f32 %v350, %v620
    %v685 = vadd.f32 %v351, %v621
    %v686 = vadd.f32 %v352, %v622
    %v687 = vadd.f32 %v353, %v623
    %v688 = vadd.f32 %v354, %v624
    %v689 = vadd.f32 %v355, %v625
    %v690 = vadd.f32 %v356, %v626
    %v691 = vadd.f32 %v357, %v627
    %v692 = vadd.f32 %v358, %v628
    %v693 = vadd.f32 %v359, %v629
    %v694 = vadd.f32 %v360, %v630
    %v695 = vadd.f32 %v361, %v631
    %v696 = vadd.f32 %v362, %v632
    %v697 = vadd.f32 %v363, %v633
    %v698 = vadd.f32 %v364, %v634
    %v699 = vadd.f32 %v365, %v635
    %v700 = vadd.f32 %v366, %v636
    %v701 = vadd.f32 %v367, %v637
    %v702 = vxor.u32 %v638, 2147483648
    %v703 = vxor.u32 %v639, 2147483648
    %v704 = vxor.u32 %v640, 2147483648
    %v705 = vxor.u32 %v641, 2147483648
    %v706 = vxor.u32 %v642, 2147483648
    %v707 = vxor.u32 %v643, 2147483648
    %v708 = vxor.u32 %v644, 2147483648
    %v709 = vxor.u32 %v645, 2147483648
    %v710 = vxor.u32 %v646, 2147483648
    %v711 = vxor.u32 %v647, 2147483648
    %v712 = vxor.u32 %v648, 2147483648
    %v713 = vxor.u32 %v649, 2147483648
    %v714 = vxor.u32 %v650, 2147483648
    %v715 = vxor.u32 %v651, 2147483648
    %v716 = vxor.u32 %v652, 2147483648
    %v717 = vxor.u32 %v653, 2147483648
    %v718 = vxor.u32 %v654, 2147483648
    %v719 = vxor.u32 %v655, 2147483648
    %v720 = vxor.u32 %v656, 2147483648
    %v721 = vxor.u32 %v657, 2147483648
    %v722 = vxor.u32 %v658, 2147483648
    %v723 = vxor.u32 %v659, 2147483648
    %v724 = vxor.u32 %v660, 2147483648
    %v725 = vxor.u32 %v661, 2147483648
    %v726 = vxor.u32 %v662, 2147483648
    %v727 = vxor.u32 %v663, 2147483648
    %v728 = vxor.u32 %v664, 2147483648
    %v729 = vxor.u32 %v665, 2147483648
    %v730 = vxor.u32 %v666, 2147483648
    %v731 = vxor.u32 %v667, 2147483648
    %v732 = vxor.u32 %v668, 2147483648
    %v733 = vxor.u32 %v669, 2147483648
    %v734 = vxor.u32 %v670, 2147483648
    %v735 = vxor.u32 %v671, 2147483648
    %v736 = vxor.u32 %v672, 2147483648
    %v737 = vxor.u32 %v673, 2147483648
    %v738 = vxor.u32 %v674, 2147483648
    %v739 = vxor.u32 %v675, 2147483648
    %v740 = vxor.u32 %v676, 2147483648
    %v741 = vxor.u32 %v677, 2147483648
    %v742 = vxor.u32 %v678, 2147483648
    %v743 = vxor.u32 %v679, 2147483648
    %v744 = vxor.u32 %v680, 2147483648
    %v745 = vxor.u32 %v681, 2147483648
    %v746 = vxor.u32 %v682, 2147483648
    %v747 = vxor.u32 %v683, 2147483648
    %v748 = vxor.u32 %v684, 2147483648
    %v749 = vxor.u32 %v685, 2147483648
    %v750 = vxor.u32 %v686, 2147483648
    %v751 = vxor.u32 %v687, 2147483648
    %v752 = vxor.u32 %v688, 2147483648
    %v753 = vxor.u32 %v689, 2147483648
    %v754 = vxor.u32 %v690, 2147483648
    %v755 = vxor.u32 %v691, 2147483648
    %v756 = vxor.u32 %v692, 2147483648
    %v757 = vxor.u32 %v693, 2147483648
    %v758 = vxor.u32 %v694, 2147483648
    %v759 = vxor.u32 %v695, 2147483648
    %v760 = vxor.u32 %v696, 2147483648
    %v761 = vxor.u32 %v697, 2147483648
    %v762 = vxor.u32 %v698, 2147483648
    %v763 = vxor.u32 %v699, 2147483648
    %v764 = vxor.u32 %v700, 2147483648
    %v765 = vxor.u32 %v701, 2147483648
    %v766 = vmul.f32 %v702, 1.442695
    %v767 = vpow.pop %v766
    %v768 = vmul.f32 %v703, 1.442695
    %v769 = vpow.pop %v768
    %v770 = vmul.f32 %v704, 1.442695
    %v771 = vpow.pop %v770
    %v772 = vmul.f32 %v705, 1.442695
    %v773 = vpow.pop %v772
    %v774 = vmul.f32 %v706, 1.442695
    %v775 = vpow.pop %v774
    %v776 = vmul.f32 %v707, 1.442695
    %v777 = vpow.pop %v776
    %v778 = vmul.f32 %v708, 1.442695
    %v779 = vpow.pop %v778
    %v780 = vmul.f32 %v709, 1.442695
    %v781 = vpow.pop %v780
    %v782 = vmul.f32 %v710, 1.442695
    %v783 = vpow.pop %v782
    %v784 = vmul.f32 %v711, 1.442695
    %v785 = vpow.pop %v784
    %v786 = vmul.f32 %v712, 1.442695
    %v787 = vpow.pop %v786
    %v788 = vmul.f32 %v713, 1.442695
    %v789 = vpow.pop %v788
    %v790 = vmul.f32 %v714, 1.442695
    %v791 = vpow.pop %v790
    %v792 = vmul.f32 %v715, 1.442695
    %v793 = vpow.pop %v792
    %v794 = vmul.f32 %v716, 1.442695
    %v795 = vpow.pop %v794
    %v796 = vmul.f32 %v717, 1.442695
    %v797 = vpow.pop %v796
    %v798 = vmul.f32 %v718, 1.442695
    %v799 = vpow.pop %v798
    %v800 = vmul.f32 %v719, 1.442695
    %v801 = vpow.pop %v800
    %v802 = vmul.f32 %v720, 1.442695
    %v803 = vpow.pop %v802
    %v804 = vmul.f32 %v721, 1.442695
    %v805 = vpow.pop %v804
    %v806 = vmul.f32 %v722, 1.442695
    %v807 = vpow.pop %v806
    %v808 = vmul.f32 %v723, 1.442695
    %v809 = vpow.pop %v808
    %v810 = vmul.f32 %v724, 1.442695
    %v811 = vpow.pop %v810
    %v812 = vmul.f32 %v725, 1.442695
    %v813 = vpow.pop %v812
    %v814 = vmul.f32 %v726, 1.442695
    %v815 = vpow.pop %v814
    %v816 = vmul.f32 %v727, 1.442695
    %v817 = vpow.pop %v816
    %v818 = vmul.f32 %v728, 1.442695
    %v819 = vpow.pop %v818
    %v820 = vmul.f32 %v729, 1.442695
    %v821 = vpow.pop %v820
    %v822 = vmul.f32 %v730, 1.442695
    %v823 = vpow.pop %v822
    %v824 = vmul.f32 %v731, 1.442695
    %v825 = vpow.pop %v824
    %v826 = vmul.f32 %v732, 1.442695
    %v827 = vpow.pop %v826
    %v828 = vmul.f32 %v733, 1.442695
    %v829 = vpow.pop %v828
    %v830 = vmul.f32 %v734, 1.442695
    %v831 = vpow.pop %v830
    %v832 = vmul.f32 %v735, 1.442695
    %v833 = vpow.pop %v832
    %v834 = vmul.f32 %v736, 1.442695
    %v835 = vpow.pop %v834
    %v836 = vmul.f32 %v737, 1.442695
    %v837 = vpow.pop %v836
    %v838 = vmul.f32 %v738, 1.442695
    %v839 = vpow.pop %v838
    %v840 = vmul.f32 %v739, 1.442695
    %v841 = vpow.pop %v840
    %v842 = vmul.f32 %v740, 1.442695
    %v843 = vpow.pop %v842
    %v844 = vmul.f32 %v741, 1.442695
    %v845 = vpow.pop %v844
    %v846 = vmul.f32 %v742, 1.442695
    %v847 = vpow.pop %v846
    %v848 = vmul.f32 %v743, 1.442695
    %v849 = vpow.pop %v848
    %v850 = vmul.f32 %v744, 1.442695
    %v851 = vpow.pop %v850
    %v852 = vmul.f32 %v745, 1.442695
    %v853 = vpow.pop %v852
    %v854 = vmul.f32 %v746, 1.442695
    %v855 = vpow.pop %v854
    %v856 = vmul.f32 %v747, 1.442695
    %v857 = vpow.pop %v856
    %v858 = vmul.f32 %v748, 1.442695
    %v859 = vpow.pop %v858
    %v860 = vmul.f32 %v749, 1.442695
    %v861 = vpow.pop %v860
    %v862 = vmul.f32 %v750, 1.442695
    %v863 = vpow.pop %v862
    %v864 = vmul.f32 %v751, 1.442695
    %v865 = vpow.pop %v864
    %v866 = vmul.f32 %v752, 1.442695
    %v867 = vpow.pop %v866
    %v868 = vmul.f32 %v753, 1.442695
    %v869 = vpow.pop %v868
    %v870 = vmul.f32 %v754, 1.442695
    %v871 = vpow.pop %v870
    %v872 = vmul.f32 %v755, 1.442695
    %v873 = vpow.pop %v872
    %v874 = vmul.f32 %v756, 1.442695
    %v875 = vpow.pop %v874
    %v876 = vmul.f32 %v757, 1.442695
    %v877 = vpow.pop %v876
    %v878 = vmul.f32 %v758, 1.442695
    %v879 = vpow.pop %v878
    %v880 = vmul.f32 %v759, 1.442695
    %v881 = vpow.pop %v880
    %v882 = vmul.f32 %v760, 1.442695
    %v883 = vpow.pop %v882
    %v884 = vmul.f32 %v761, 1.442695
    %v885 = vpow.pop %v884
    %v886 = vmul.f32 %v762, 1.442695
    %v887 = vpow.pop %v886
    %v888 = vmul.f32 %v763, 1.442695
    %v889 = vpow.pop %v888
    %v890 = vmul.f32 %v764, 1.442695
    %v891 = vpow.pop %v890
    %v892 = vmul.f32 %v765, 1.442695
    %v893 = vpow.pop %v892
    %v894 = vadd.f32 %v767, 1.0
    %v895 = vadd.f32 %v769, 1.0
    %v896 = vadd.f32 %v771, 1.0
    %v897 = vadd.f32 %v773, 1.0
    %v898 = vadd.f32 %v775, 1.0
    %v899 = vadd.f32 %v777, 1.0
    %v900 = vadd.f32 %v779, 1.0
    %v901 = vadd.f32 %v781, 1.0
    %v902 = vadd.f32 %v783, 1.0
    %v903 = vadd.f32 %v785, 1.0
    %v904 = vadd.f32 %v787, 1.0
    %v905 = vadd.f32 %v789, 1.0
    %v906 = vadd.f32 %v791, 1.0
    %v907 = vadd.f32 %v793, 1.0
    %v908 = vadd.f32 %v795, 1.0
    %v909 = vadd.f32 %v797, 1.0
    %v910 = vadd.f32 %v799, 1.0
    %v911 = vadd.f32 %v801, 1.0
    %v912 = vadd.f32 %v803, 1.0
    %v913 = vadd.f32 %v805, 1.0
    %v914 = vadd.f32 %v807, 1.0
    %v915 = vadd.f32 %v809, 1.0
    %v916 = vadd.f32 %v811, 1.0
    %v917 = vadd.f32 %v813, 1.0
    %v918 = vadd.f32 %v815, 1.0
    %v919 = vadd.f32 %v817, 1.0
    %v920 = vadd.f32 %v819, 1.0
    %v921 = vadd.f32 %v821, 1.0
    %v922 = vadd.f32 %v823, 1.0
    %v923 = vadd.f32 %v825, 1.0
    %v924 = vadd.f32 %v827, 1.0
    %v925 = vadd.f32 %v829, 1.0
    %v926 = vadd.f32 %v831, 1.0
    %v927 = vadd.f32 %v833, 1.0
    %v928 = vadd.f32 %v835, 1.0
    %v929 = vadd.f32 %v837, 1.0
    %v930 = vadd.f32 %v839, 1.0
    %v931 = vadd.f32 %v841, 1.0
    %v932 = vadd.f32 %v843, 1.0
    %v933 = vadd.f32 %v845, 1.0
    %v934 = vadd.f32 %v847, 1.0
    %v935 = vadd.f32 %v849, 1.0
    %v936 = vadd.f32 %v851, 1.0
    %v937 = vadd.f32 %v853, 1.0
    %v938 = vadd.f32 %v855, 1.0
    %v939 = vadd.f32 %v857, 1.0
    %v940 = vadd.f32 %v859, 1.0
    %v941 = vadd.f32 %v861, 1.0
    %v942 = vadd.f32 %v863, 1.0
    %v943 = vadd.f32 %v865, 1.0
    %v944 = vadd.f32 %v867, 1.0
    %v945 = vadd.f32 %v869, 1.0
    %v946 = vadd.f32 %v871, 1.0
    %v947 = vadd.f32 %v873, 1.0
    %v948 = vadd.f32 %v875, 1.0
    %v949 = vadd.f32 %v877, 1.0
    %v950 = vadd.f32 %v879, 1.0
    %v951 = vadd.f32 %v881, 1.0
    %v952 = vadd.f32 %v883, 1.0
    %v953 = vadd.f32 %v885, 1.0
    %v954 = vadd.f32 %v887, 1.0
    %v955 = vadd.f32 %v889, 1.0
    %v956 = vadd.f32 %v891, 1.0
    %v957 = vadd.f32 %v893, 1.0
    %v958 = vrcp.pop %v894
    %v959 = vmul.f32 1.0, %v958
    %v960 = vrcp.pop %v895
    %v961 = vmul.f32 1.0, %v960
    %v962 = vrcp.pop %v896
    %v963 = vmul.f32 1.0, %v962
    %v964 = vrcp.pop %v897
    %v965 = vmul.f32 1.0, %v964
    %v966 = vrcp.pop %v898
    %v967 = vmul.f32 1.0, %v966
    %v968 = vrcp.pop %v899
    %v969 = vmul.f32 1.0, %v968
    %v970 = vrcp.pop %v900
    %v971 = vmul.f32 1.0, %v970
    %v972 = vrcp.pop %v901
    %v973 = vmul.f32 1.0, %v972
    %v974 = vrcp.pop %v902
    %v975 = vmul.f32 1.0, %v974
    %v976 = vrcp.pop %v903
    %v977 = vmul.f32 1.0, %v976
    %v978 = vrcp.pop %v904
    %v979 = vmul.f32 1.0, %v978
    %v980 = vrcp.pop %v905
    %v981 = vmul.f32 1.0, %v980
    %v982 = vrcp.pop %v906
    %v983 = vmul.f32 1.0, %v982
    %v984 = vrcp.pop %v907
    %v985 = vmul.f32 1.0, %v984
    %v986 = vrcp.pop %v908
    %v987 = vmul.f32 1.0, %v986
    %v988 = vrcp.pop %v909
    %v989 = vmul.f32 1.0, %v988
    %v990 = vrcp.pop %v910
    %v991 = vmul.f32 1.0, %v990
    %v992 = vrcp.pop %v911
    %v993 = vmul.f32 1.0, %v992
    %v994 = vrcp.pop %v912
    %v995 = vmul.f32 1.0, %v994
    %v996 = vrcp.pop %v913
    %v997 = vmul.f32 1.0, %v996
    %v998 = vrcp.pop %v914
    %v999 = vmul.f32 1.0, %v998
    %v1000 = vrcp.pop %v915
    %v1001 = vmul.f32 1.0, %v1000
    %v1002 = vrcp.pop %v916
    %v1003 = vmul.f32 1.0, %v1002
    %v1004 = vrcp.pop %v917
    %v1005 = vmul.f32 1.0, %v1004
    %v1006 = vrcp.pop %v918
    %v1007 = vmul.f32 1.0, %v1006
    %v1008 = vrcp.pop %v919
    %v1009 = vmul.f32 1.0, %v1008
    %v1010 = vrcp.pop %v920
    %v1011 = vmul.f32 1.0, %v1010
    %v1012 = vrcp.pop %v921
    %v1013 = vmul.f32 1.0, %v1012
    %v1014 = vrcp.pop %v922
    %v1015 = vmul.f32 1.0, %v1014
    %v1016 = vrcp.pop %v923
    %v1017 = vmul.f32 1.0, %v1016
    %v1018 = vrcp.pop %v924
    %v1019 = vmul.f32 1.0, %v1018
    %v1020 = vrcp.pop %v925
    %v1021 = vmul.f32 1.0, %v1020
    %v1022 = vrcp.pop %v926
    %v1023 = vmul.f32 1.0, %v1022
    %v1024 = vrcp.pop %v927
    %v1025 = vmul.f32 1.0, %v1024
    %v1026 = vrcp.pop %v928
    %v1027 = vmul.f32 1.0, %v1026
    %v1028 = vrcp.pop %v929
    %v1029 = vmul.f32 1.0, %v1028
    %v1030 = vrcp.pop %v930
    %v1031 = vmul.f32 1.0, %v1030
    %v1032 = vrcp.pop %v931
    %v1033 = vmul.f32 1.0, %v1032
    %v1034 = vrcp.pop %v932
    %v1035 = vmul.f32 1.0, %v1034
    %v1036 = vrcp.pop %v933
    %v1037 = vmul.f32 1.0, %v1036
    %v1038 = vrcp.pop %v934
    %v1039 = vmul.f32 1.0, %v1038
    %v1040 = vrcp.pop %v935
    %v1041 = vmul.f32 1.0, %v1040
    %v1042 = vrcp.pop %v936
    %v1043 = vmul.f32 1.0, %v1042
    %v1044 = vrcp.pop %v937
    %v1045 = vmul.f32 1.0, %v1044
    %v1046 = vrcp.pop %v938
    %v1047 = vmul.f32 1.0, %v1046
    %v1048 = vrcp.pop %v939
    %v1049 = vmul.f32 1.0, %v1048
    %v1050 = vrcp.pop %v940
    %v1051 = vmul.f32 1.0, %v1050
    %v1052 = vrcp.pop %v941
    %v1053 = vmul.f32 1.0, %v1052
    %v1054 = vrcp.pop %v942
    %v1055 = vmul.f32 1.0, %v1054
    %v1056 = vrcp.pop %v943
    %v1057 = vmul.f32 1.0, %v1056
    %v1058 = vrcp.pop %v944
    %v1059 = vmul.f32 1.0, %v1058
    %v1060 = vrcp.pop %v945
    %v1061 = vmul.f32 1.0, %v1060
    %v1062 = vrcp.pop %v946
    %v1063 = vmul.f32 1.0, %v1062
    %v1064 = vrcp.pop %v947
    %v1065 = vmul.f32 1.0, %v1064
    %v1066 = vrcp.pop %v948
    %v1067 = vmul.f32 1.0, %v1066
    %v1068 = vrcp.pop %v949
    %v1069 = vmul.f32 1.0, %v1068
    %v1070 = vrcp.pop %v950
    %v1071 = vmul.f32 1.0, %v1070
    %v1072 = vrcp.pop %v951
    %v1073 = vmul.f32 1.0, %v1072
    %v1074 = vrcp.pop %v952
    %v1075 = vmul.f32 1.0, %v1074
    %v1076 = vrcp.pop %v953
    %v1077 = vmul.f32 1.0, %v1076
    %v1078 = vrcp.pop %v954
    %v1079 = vmul.f32 1.0, %v1078
    %v1080 = vrcp.pop %v955
    %v1081 = vmul.f32 1.0, %v1080
    %v1082 = vrcp.pop %v956
    %v1083 = vmul.f32 1.0, %v1082
    %v1084 = vrcp.pop %v957
    %v1085 = vmul.f32 1.0, %v1084
    %v1086 = vmul.f32 %v638, %v959
    %v1087 = vmul.f32 %v639, %v961
    %v1088 = vmul.f32 %v640, %v963
    %v1089 = vmul.f32 %v641, %v965
    %v1090 = vmul.f32 %v642, %v967
    %v1091 = vmul.f32 %v643, %v969
    %v1092 = vmul.f32 %v644, %v971
    %v1093 = vmul.f32 %v645, %v973
    %v1094 = vmul.f32 %v646, %v975
    %v1095 = vmul.f32 %v647, %v977
    %v1096 = vmul.f32 %v648, %v979
    %v1097 = vmul.f32 %v649, %v981
    %v1098 = vmul.f32 %v650, %v983
    %v1099 = vmul.f32 %v651, %v985
    %v1100 = vmul.f32 %v652, %v987
    %v1101 = vmul.f32 %v653, %v989
    %v1102 = vmul.f32 %v654, %v991
    %v1103 = vmul.f32 %v655, %v993
    %v1104 = vmul.f32 %v656, %v995
    %v1105 = vmul.f32 %v657, %v997
    %v1106 = vmul.f32 %v658, %v999
    %v1107 = vmul.f32 %v659, %v1001
    %v1108 = vmul.f32 %v660, %v1003
    %v1109 = vmul.f32 %v661, %v1005
    %v1110 = vmul.f32 %v662, %v1007
    %v1111 = vmul.f32 %v663, %v1009
    %v1112 = vmul.f32 %v664, %v1011
    %v1113 = vmul.f32 %v665, %v1013
    %v1114 = vmul.f32 %v666, %v1015
    %v1115 = vmul.f32 %v667, %v1017
    %v1116 = vmul.f32 %v668, %v1019
    %v1117 = vmul.f32 %v669, %v1021
    %v1118 = vmul.f32 %v670, %v1023
    %v1119 = vmul.f32 %v671, %v1025
    %v1120 = vmul.f32 %v672, %v1027
    %v1121 = vmul.f32 %v673, %v1029
    %v1122 = vmul.f32 %v674, %v1031
    %v1123 = vmul.f32 %v675, %v1033
    %v1124 = vmul.f32 %v676, %v1035
    %v1125 = vmul.f32 %v677, %v1037
    %v1126 = vmul.f32 %v678, %v1039
    %v1127 = vmul.f32 %v679, %v1041
    %v1128 = vmul.f32 %v680, %v1043
    %v1129 = vmul.f32 %v681, %v1045
    %v1130 = vmul.f32 %v682, %v1047
    %v1131 = vmul.f32 %v683, %v1049
    %v1132 = vmul.f32 %v684, %v1051
    %v1133 = vmul.f32 %v685, %v1053
    %v1134 = vmul.f32 %v686, %v1055
    %v1135 = vmul.f32 %v687, %v1057
    %v1136 = vmul.f32 %v688, %v1059
    %v1137 = vmul.f32 %v689, %v1061
    %v1138 = vmul.f32 %v690, %v1063
    %v1139 = vmul.f32 %v691, %v1065
    %v1140 = vmul.f32 %v692, %v1067
    %v1141 = vmul.f32 %v693, %v1069
    %v1142 = vmul.f32 %v694, %v1071
    %v1143 = vmul.f32 %v695, %v1073
    %v1144 = vmul.f32 %v696, %v1075
    %v1145 = vmul.f32 %v697, %v1077
    %v1146 = vmul.f32 %v698, %v1079
    %v1147 = vmul.f32 %v699, %v1081
    %v1148 = vmul.f32 %v700, %v1083
    %v1149 = vmul.f32 %v701, %v1085
    %vm1150 = vcmask 130048
    %1151 = vst.msk [vmem:[#allocation13] sm:$0xff] %vm1150, %v1086
    %1152 = vst.msk [vmem:[#allocation13 + $0x8] sm:$0xff] %vm1150, %v1087
    %1153 = vst.msk [vmem:[#allocation13 + $0x10] sm:$0xff] %vm1150, %v1088
    %1154 = vst.msk [vmem:[#allocation13 + $0x18] sm:$0xff] %vm1150, %v1089
    %1155 = vst.msk [vmem:[#allocation13 + $0x20] sm:$0xff] %vm1150, %v1090
    %1156 = vst.msk [vmem:[#allocation13 + $0x28] sm:$0xff] %vm1150, %v1091
    %1157 = vst.msk [vmem:[#allocation13 + $0x30] sm:$0xff] %vm1150, %v1092
    %1158 = vst.msk [vmem:[#allocation13 + $0x38] sm:$0xff] %vm1150, %v1093
    %1159 = vst.msk [vmem:[#allocation13 + $0x40] sm:$0xff] %vm1150, %v1094
    %1160 = vst.msk [vmem:[#allocation13 + $0x48] sm:$0xff] %vm1150, %v1095
    %1161 = vst.msk [vmem:[#allocation13 + $0x50] sm:$0xff] %vm1150, %v1096
    %1162 = vst.msk [vmem:[#allocation13 + $0x58] sm:$0xff] %vm1150, %v1097
    %1163 = vst.msk [vmem:[#allocation13 + $0x60] sm:$0xff] %vm1150, %v1098
    %1164 = vst.msk [vmem:[#allocation13 + $0x68] sm:$0xff] %vm1150, %v1099
    %1165 = vst.msk [vmem:[#allocation13 + $0x70] sm:$0xff] %vm1150, %v1100
    %1166 = vst.msk [vmem:[#allocation13 + $0x78] sm:$0xff] %vm1150, %v1101
    %1167 = vst.msk [vmem:[#allocation13 + $0x80] sm:$0xff] %vm1150, %v1102
    %1168 = vst.msk [vmem:[#allocation13 + $0x88] sm:$0xff] %vm1150, %v1103
    %1169 = vst.msk [vmem:[#allocation13 + $0x90] sm:$0xff] %vm1150, %v1104
    %1170 = vst.msk [vmem:[#allocation13 + $0x98] sm:$0xff] %vm1150, %v1105
    %1171 = vst.msk [vmem:[#allocation13 + $0xa0] sm:$0xff] %vm1150, %v1106
    %1172 = vst.msk [vmem:[#allocation13 + $0xa8] sm:$0xff] %vm1150, %v1107
    %1173 = vst.msk [vmem:[#allocation13 + $0xb0] sm:$0xff] %vm1150, %v1108
    %1174 = vst.msk [vmem:[#allocation13 + $0xb8] sm:$0xff] %vm1150, %v1109
    %1175 = vst.msk [vmem:[#allocation13 + $0xc0] sm:$0xff] %vm1150, %v1110
    %1176 = vst.msk [vmem:[#allocation13 + $0xc8] sm:$0xff] %vm1150, %v1111
    %1177 = vst.msk [vmem:[#allocation13 + $0xd0] sm:$0xff] %vm1150, %v1112
    %1178 = vst.msk [vmem:[#allocation13 + $0xd8] sm:$0xff] %vm1150, %v1113
    %1179 = vst.msk [vmem:[#allocation13 + $0xe0] sm:$0xff] %vm1150, %v1114
    %1180 = vst.msk [vmem:[#allocation13 + $0xe8] sm:$0xff] %vm1150, %v1115
    %1181 = vst.msk [vmem:[#allocation13 + $0xf0] sm:$0xff] %vm1150, %v1116
    %1182 = vst.msk [vmem:[#allocation13 + $0xf8] sm:$0xff] %vm1150, %v1117
    %1183 = vst.msk [vmem:[#allocation13 + $0x100] sm:$0xff] %vm1150, %v1118
    %1184 = vst.msk [vmem:[#allocation13 + $0x108] sm:$0xff] %vm1150, %v1119
    %1185 = vst.msk [vmem:[#allocation13 + $0x110] sm:$0xff] %vm1150, %v1120
    %1186 = vst.msk [vmem:[#allocation13 + $0x118] sm:$0xff] %vm1150, %v1121
    %1187 = vst.msk [vmem:[#allocation13 + $0x120] sm:$0xff] %vm1150, %v1122
    %1188 = vst.msk [vmem:[#allocation13 + $0x128] sm:$0xff] %vm1150, %v1123
    %1189 = vst.msk [vmem:[#allocation13 + $0x130] sm:$0xff] %vm1150, %v1124
    %1190 = vst.msk [vmem:[#allocation13 + $0x138] sm:$0xff] %vm1150, %v1125
    %1191 = vst.msk [vmem:[#allocation13 + $0x140] sm:$0xff] %vm1150, %v1126
    %1192 = vst.msk [vmem:[#allocation13 + $0x148] sm:$0xff] %vm1150, %v1127
    %1193 = vst.msk [vmem:[#allocation13 + $0x150] sm:$0xff] %vm1150, %v1128
    %1194 = vst.msk [vmem:[#allocation13 + $0x158] sm:$0xff] %vm1150, %v1129
    %1195 = vst.msk [vmem:[#allocation13 + $0x160] sm:$0xff] %vm1150, %v1130
    %1196 = vst.msk [vmem:[#allocation13 + $0x168] sm:$0xff] %vm1150, %v1131
    %1197 = vst.msk [vmem:[#allocation13 + $0x170] sm:$0xff] %vm1150, %v1132
    %1198 = vst.msk [vmem:[#allocation13 + $0x178] sm:$0xff] %vm1150, %v1133
    %1199 = vst.msk [vmem:[#allocation13 + $0x180] sm:$0xff] %vm1150, %v1134
    %1200 = vst.msk [vmem:[#allocation13 + $0x188] sm:$0xff] %vm1150, %v1135
    %1201 = vst.msk [vmem:[#allocation13 + $0x190] sm:$0xff] %vm1150, %v1136
    %1202 = vst.msk [vmem:[#allocation13 + $0x198] sm:$0xff] %vm1150, %v1137
    %1203 = vst.msk [vmem:[#allocation13 + $0x1a0] sm:$0xff] %vm1150, %v1138
    %1204 = vst.msk [vmem:[#allocation13 + $0x1a8] sm:$0xff] %vm1150, %v1139
    %1205 = vst.msk [vmem:[#allocation13 + $0x1b0] sm:$0xff] %vm1150, %v1140
    %1206 = vst.msk [vmem:[#allocation13 + $0x1b8] sm:$0xff] %vm1150, %v1141
    %1207 = vst.msk [vmem:[#allocation13 + $0x1c0] sm:$0xff] %vm1150, %v1142
    %1208 = vst.msk [vmem:[#allocation13 + $0x1c8] sm:$0xff] %vm1150, %v1143
    %1209 = vst.msk [vmem:[#allocation13 + $0x1d0] sm:$0xff] %vm1150, %v1144
    %1210 = vst.msk [vmem:[#allocation13 + $0x1d8] sm:$0xff] %vm1150, %v1145
    %1211 = vst.msk [vmem:[#allocation13 + $0x1e0] sm:$0xff] %vm1150, %v1146
    %1212 = vst.msk [vmem:[#allocation13 + $0x1e8] sm:$0xff] %vm1150, %v1147
    %1213 = vst.msk [vmem:[#allocation13 + $0x1f0] sm:$0xff] %vm1150, %v1148
    %1214 = vst.msk [vmem:[#allocation13 + $0x1f8] sm:$0xff] %vm1150, %v1149
    // Predicated region
    $region50: #{resnet_block_forward.7} parent=1 // pred_check
      _
    $region51: #{resnet_block_forward.7} parent=1 // pred_check_branch
      %1216 = sbr.rel (0) target = $region53
    $region52: #{resnet_block_forward.7} parent=1 // pred_region
      %s1218 = ssub.s32 8192, 8192
      %1219 = vsyncadd [#allocation4], %s1218
      %s1220 = sshll.u32 [#allocation13], 4
      %s1221 = int_to_ptr.vmem [resolvable:$true] %s1220
      %1226 = dma.vmem_to_hbm [thread:$0]  %s1221, 8192, %s6, [#allocation4], 128, 128, 8
    $region53: #{resnet_block_forward.7} parent=1 // pred_fallthru
      _
    // Predicated region
    $region54: #{resnet_block_forward.7} parent=1 // pred_check
      _
    $region55: #{resnet_block_forward.7} parent=1 // pred_check_branch
      %1228 = sbr.rel (0) target = $region57
    $region56: #{resnet_block_forward.7} parent=1 // pred_region
      %1229 = dma.done [#allocation4], 8192
    $region57: #{resnet_block_forward.7} parent=1 // pred_fallthru
      _
    %1230 = vsyncpa [#allocation3], 1
    %1231 = vsyncpa [#allocation6], 1
    %1232 = vsyncpa [#allocation9], 1
    %1233 = vsyncpa [#allocation12], 1
    %1234 = vsyncpa [#allocation4], 1

// kernel: resnet_block_forward.4
$region0: #{resnet_block_forward.4}
  #allocation0 [shape = 'u32[]', space=smem, size = 0x4, offset = 0x4, fixed_abs, tag = 'smem constant byte address 0x4 - core index']
  #allocation1 [shape = 'u32[144,128]{1,0:T(1,128)}', space=vmem, size = 0x12000, scoped, tag = 'internal scratch']
  %s0 = inlined_call_operand.hbm [shape: bf16[512,8], index: 0, kind: input, shape index: {}]
  %s1 = inlined_call_operand.hbm [shape: bf16[8,4], index: 1, kind: input, shape index: {}]
  %s2 = inlined_call_operand.hbm [shape: bf16[8,16], index: 2, kind: input, shape index: {}]
  %s3 = inlined_call_operand.hbm [shape: bf16[512,4], index: 3, kind: output, shape index: {0}]
  %s4 = inlined_call_operand.hbm [shape: f32[1,1,4], index: 4, kind: output, shape index: {1}]
  %s5 = inlined_call_operand.hbm [shape: f32[1,1,4], index: 5, kind: output, shape index: {2}]
  %s6 = inlined_call_operand.hbm [shape: bf16[512,16], index: 6, kind: output, shape index: {3}]
  %s7 = inlined_call_operand.hbm [shape: f32[1,1,16], index: 7, kind: output, shape index: {4}]
  %s8 = inlined_call_operand.hbm [shape: f32[1,1,16], index: 8, kind: output, shape index: {5}]
  %9 = xla_tuple %s3, %s4, %s5, %s6, %s7, %s8
  %s10 = sld [smem:[#allocation0]]
  $region74: #{resnet_block_forward.4} parent=0
    _
  %s12 = ssub.s32 1, %s10
  %s13 = scalar_select 0, %s12, %s10
  $region1: #{resnet_block_forward.4} parent=0
    #allocation2 [shape = 'u8[131072]{0}', space=vmem, size = 0x20000, scoped, tag = 'input window, operand 0, single buffered']
    #allocation3 [shape = 's32[1]{0}', space=sflag, size = 0x4, scoped, tag = 'scoped memory for resnet_block_forward.4']
    #allocation4 [shape = 's32[1]{0}', space=sflag, size = 0x4, scoped, tag = 'scoped memory for resnet_block_forward.4']
    #allocation5 [shape = 'u8[2048]{0}', space=vmem, size = 0x800, scoped, tag = 'input window, operand 1, single buffered']
    #allocation6 [shape = 's32[1]{0}', space=sflag, size = 0x4, scoped, tag = 'scoped memory for resnet_block_forward.4']
    #allocation7 [shape = 'u8[2048]{0}', space=vmem, size = 0x800, scoped, tag = 'input window, operand 2, single buffered']
    #allocation8 [shape = 'u8[131072]{0}', space=vmem, size = 0x20000, scoped, tag = 'output window, operand 0, single buffered']
    #allocation9 [shape = 'u8[512]{0}', space=vmem, size = 0x400, scoped, tag = 'output window, operand 1, single buffered']
    #allocation10 [shape = 's32[1]{0}', space=sflag, size = 0x4, scoped, tag = 'scoped memory for resnet_block_forward.4']
    #allocation11 [shape = 'u8[512]{0}', space=vmem, size = 0x400, scoped, tag = 'output window, operand 2, single buffered']
    #allocation12 [shape = 'u8[131072]{0}', space=vmem, size = 0x20000, scoped, tag = 'output window, operand 3, single buffered']
    #allocation13 [shape = 's32[1]{0}', space=sflag, size = 0x4, scoped, tag = 'scoped memory for resnet_block_forward.4']
    #allocation14 [shape = 'u8[512]{0}', space=vmem, size = 0x400, scoped, tag = 'output window, operand 4, single buffered']
    #allocation15 [shape = 'u8[512]{0}', space=vmem, size = 0x400, scoped, tag = 'output window, operand 5, single buffered']
    #allocation16 [shape = 's32[1]{0}', space=sflag, size = 0x4, scoped, tag = 'scoped memory for resnet_block_forward.4']
    %14 = vsyncpa [#allocation3], 0
    %15 = vsyncpa [#allocation6], 0
    %16 = vsyncpa [#allocation4], 0
    %17 = vsyncpa [#allocation10], 0
    %18 = vsyncpa [#allocation13], 0
    %19 = vsyncpa [#allocation16], 0
    // Predicated region
    $region2: #{resnet_block_forward.4} parent=1 // pred_check
      _
    $region3: #{resnet_block_forward.4} parent=1 // pred_check_branch
      %21 = sbr.rel (0) target = $region5
    $region4: #{resnet_block_forward.4} parent=1 // pred_region
      %s23 = ssub.s32 4096, 4096
      %24 = vsyncadd [#allocation3], %s23
      %s25 = sshll.u32 [#allocation2], 4
      %s26 = int_to_ptr.vmem [resolvable:$true] %s25
      %31 = dma.hbm_to_vmem [thread:$0]  %s0, 4096, %s26, [#allocation3], 64, 64, 4
    $region5: #{resnet_block_forward.4} parent=1 // pred_fallthru
      _
    // Predicated region
    $region6: #{resnet_block_forward.4} parent=1 // pred_check
      _
    $region7: #{resnet_block_forward.4} parent=1 // pred_check_branch
      %33 = sbr.rel (0) target = $region9
    $region8: #{resnet_block_forward.4} parent=1 // pred_region
      %s35 = ssub.s32 64, 64
      %36 = vsyncadd [#allocation6], %s35
      %s38 = sshll.u32 [#allocation5], 4
      %s39 = int_to_ptr.vmem [resolvable:$true] %s38
      %41 = dma.hbm_to_vmem [thread:$0]  %s1, 64, %s39, [#allocation6]
    $region9: #{resnet_block_forward.4} parent=1 // pred_fallthru
      _
    // Predicated region
    $region10: #{resnet_block_forward.4} parent=1 // pred_check
      _
    $region11: #{resnet_block_forward.4} parent=1 // pred_check_branch
      %43 = sbr.rel (0) target = $region13
    $region12: #{resnet_block_forward.4} parent=1 // pred_region
      %s45 = ssub.s32 64, 64
      %46 = vsyncadd [#allocation6], %s45
      %s48 = sshll.u32 [#allocation7], 4
      %s49 = int_to_ptr.vmem [resolvable:$true] %s48
      %51 = dma.hbm_to_vmem [thread:$0]  %s2, 64, %s49, [#allocation6]
    $region13: #{resnet_block_forward.4} parent=1 // pred_fallthru
      _
    // Predicated region
    $region14: #{resnet_block_forward.4} parent=1 // pred_check
      _
    $region15: #{resnet_block_forward.4} parent=1 // pred_check_branch
      %53 = sbr.rel (0) target = $region17
    $region16: #{resnet_block_forward.4} parent=1 // pred_region
      %54 = dma.done [#allocation3], 4096
    $region17: #{resnet_block_forward.4} parent=1 // pred_fallthru
      _
    // Predicated region
    $region18: #{resnet_block_forward.4} parent=1 // pred_check
      _
    $region19: #{resnet_block_forward.4} parent=1 // pred_check_branch
      %56 = sbr.rel (0) target = $region21
    $region20: #{resnet_block_forward.4} parent=1 // pred_region
      %57 = dma.done [#allocation6], 64
    $region21: #{resnet_block_forward.4} parent=1 // pred_fallthru
      _
    // Predicated region
    $region22: #{resnet_block_forward.4} parent=1 // pred_check
      _
    $region23: #{resnet_block_forward.4} parent=1 // pred_check_branch
      %59 = sbr.rel (0) target = $region25
    $region24: #{resnet_block_forward.4} parent=1 // pred_region
      %60 = dma.done [#allocation6], 64
    $region25: #{resnet_block_forward.4} parent=1 // pred_fallthru
      _
    %v62 = vld [vmem:[#allocation2] sm:$0xf]
    %v63 = vld [vmem:[#allocation2 + $0x4] sm:$0xf]
    %v64 = vld [vmem:[#allocation2 + $0x8] sm:$0xf]
    %v65 = vld [vmem:[#allocation2 + $0xc] sm:$0xf]
    %v66 = vld [vmem:[#allocation2 + $0x10] sm:$0xf]
    %v67 = vld [vmem:[#allocation2 + $0x14] sm:$0xf]
    %v68 = vld [vmem:[#allocation2 + $0x18] sm:$0xf]
    %v69 = vld [vmem:[#allocation2 + $0x1c] sm:$0xf]
    %v70 = vld [vmem:[#allocation2 + $0x20] sm:$0xf]
    %v71 = vld [vmem:[#allocation2 + $0x24] sm:$0xf]
    %v72 = vld [vmem:[#allocation2 + $0x28] sm:$0xf]
    %v73 = vld [vmem:[#allocation2 + $0x2c] sm:$0xf]
    %v74 = vld [vmem:[#allocation2 + $0x30] sm:$0xf]
    %v75 = vld [vmem:[#allocation2 + $0x34] sm:$0xf]
    %v76 = vld [vmem:[#allocation2 + $0x38] sm:$0xf]
    %v77 = vld [vmem:[#allocation2 + $0x3c] sm:$0xf]
    %v78 = vld [vmem:[#allocation2 + $0x40] sm:$0xf]
    %v79 = vld [vmem:[#allocation2 + $0x44] sm:$0xf]
    %v80 = vld [vmem:[#allocation2 + $0x48] sm:$0xf]
    %v81 = vld [vmem:[#allocation2 + $0x4c] sm:$0xf]
    %v82 = vld [vmem:[#allocation2 + $0x50] sm:$0xf]
    %v83 = vld [vmem:[#allocation2 + $0x54] sm:$0xf]
    %v84 = vld [vmem:[#allocation2 + $0x58] sm:$0xf]
    %v85 = vld [vmem:[#allocation2 + $0x5c] sm:$0xf]
    %v86 = vld [vmem:[#allocation2 + $0x60] sm:$0xf]
    %v87 = vld [vmem:[#allocation2 + $0x64] sm:$0xf]
    %v88 = vld [vmem:[#allocation2 + $0x68] sm:$0xf]
    %v89 = vld [vmem:[#allocation2 + $0x6c] sm:$0xf]
    %v90 = vld [vmem:[#allocation2 + $0x70] sm:$0xf]
    %v91 = vld [vmem:[#allocation2 + $0x74] sm:$0xf]
    %v92 = vld [vmem:[#allocation2 + $0x78] sm:$0xf]
    %v93 = vld [vmem:[#allocation2 + $0x7c] sm:$0xf]
    %v94 = vld [vmem:[#allocation2 + $0x80] sm:$0xf]
    %v95 = vld [vmem:[#allocation2 + $0x84] sm:$0xf]
    %v96 = vld [vmem:[#allocation2 + $0x88] sm:$0xf]
    %v97 = vld [vmem:[#allocation2 + $0x8c] sm:$0xf]
    %v98 = vld [vmem:[#allocation2 + $0x90] sm:$0xf]
    %v99 = vld [vmem:[#allocation2 + $0x94] sm:$0xf]
    %v100 = vld [vmem:[#allocation2 + $0x98] sm:$0xf]
    %v101 = vld [vmem:[#allocation2 + $0x9c] sm:$0xf]
    %v102 = vld [vmem:[#allocation2 + $0xa0] sm:$0xf]
    %v103 = vld [vmem:[#allocation2 + $0xa4] sm:$0xf]
    %v104 = vld [vmem:[#allocation2 + $0xa8] sm:$0xf]
    %v105 = vld [vmem:[#allocation2 + $0xac] sm:$0xf]
    %v106 = vld [vmem:[#allocation2 + $0xb0] sm:$0xf]
    %v107 = vld [vmem:[#allocation2 + $0xb4] sm:$0xf]
    %v108 = vld [vmem:[#allocation2 + $0xb8] sm:$0xf]
    %v109 = vld [vmem:[#allocation2 + $0xbc] sm:$0xf]
    %v110 = vld [vmem:[#allocation2 + $0xc0] sm:$0xf]
    %v111 = vld [vmem:[#allocation2 + $0xc4] sm:$0xf]
    %v112 = vld [vmem:[#allocation2 + $0xc8] sm:$0xf]
    %v113 = vld [vmem:[#allocation2 + $0xcc] sm:$0xf]
    %v114 = vld [vmem:[#allocation2 + $0xd0] sm:$0xf]
    %v115 = vld [vmem:[#allocation2 + $0xd4] sm:$0xf]
    %v116 = vld [vmem:[#allocation2 + $0xd8] sm:$0xf]
    %v117 = vld [vmem:[#allocation2 + $0xdc] sm:$0xf]
    %v118 = vld [vmem:[#allocation2 + $0xe0] sm:$0xf]
    %v119 = vld [vmem:[#allocation2 + $0xe4] sm:$0xf]
    %v120 = vld [vmem:[#allocation2 + $0xe8] sm:$0xf]
    %v121 = vld [vmem:[#allocation2 + $0xec] sm:$0xf]
    %v122 = vld [vmem:[#allocation2 + $0xf0] sm:$0xf]
    %v123 = vld [vmem:[#allocation2 + $0xf4] sm:$0xf]
    %v124 = vld [vmem:[#allocation2 + $0xf8] sm:$0xf]
    %v125 = vld [vmem:[#allocation2 + $0xfc] sm:$0xf]
    %v126 = vld [vmem:[#allocation5] sm:$0xf]
    %v191 = vunpack.c.l.b16 %v62
    %v192 = vunpack.c.l.b16 %v63
    %v193 = vunpack.c.l.b16 %v64
    %v194 = vunpack.c.l.b16 %v65
    %v195 = vunpack.c.l.b16 %v66
    %v196 = vunpack.c.l.b16 %v67
    %v197 = vunpack.c.l.b16 %v68
    %v198 = vunpack.c.l.b16 %v69
    %v199 = vunpack.c.l.b16 %v70
    %v200 = vunpack.c.l.b16 %v71
    %v201 = vunpack.c.l.b16 %v72
    %v202 = vunpack.c.l.b16 %v73
    %v203 = vunpack.c.l.b16 %v74
    %v204 = vunpack.c.l.b16 %v75
    %v205 = vunpack.c.l.b16 %v76
    %v206 = vunpack.c.l.b16 %v77
    %v207 = vunpack.c.l.b16 %v78
    %v208 = vunpack.c.l.b16 %v79
    %v209 = vunpack.c.l.b16 %v80
    %v210 = vunpack.c.l.b16 %v81
    %v211 = vunpack.c.l.b16 %v82
    %v212 = vunpack.c.l.b16 %v83
    %v213 = vunpack.c.l.b16 %v84
    %v214 = vunpack.c.l.b16 %v85
    %v215 = vunpack.c.l.b16 %v86
    %v216 = vunpack.c.l.b16 %v87
    %v217 = vunpack.c.l.b16 %v88
    %v218 = vunpack.c.l.b16 %v89
    %v219 = vunpack.c.l.b16 %v90
    %v220 = vunpack.c.l.b16 %v91
    %v221 = vunpack.c.l.b16 %v92
    %v222 = vunpack.c.l.b16 %v93
    %v223 = vunpack.c.l.b16 %v94
    %v224 = vunpack.c.l.b16 %v95
    %v225 = vunpack.c.l.b16 %v96
    %v226 = vunpack.c.l.b16 %v97
    %v227 = vunpack.c.l.b16 %v98
    %v228 = vunpack.c.l.b16 %v99
    %v229 = vunpack.c.l.b16 %v100
    %v230 = vunpack.c.l.b16 %v101
    %v231 = vunpack.c.l.b16 %v102
    %v232 = vunpack.c.l.b16 %v103
    %v233 = vunpack.c.l.b16 %v104
    %v234 = vunpack.c.l.b16 %v105
    %v235 = vunpack.c.l.b16 %v106
    %v236 = vunpack.c.l.b16 %v107
    %v237 = vunpack.c.l.b16 %v108
    %v238 = vunpack.c.l.b16 %v109
    %v239 = vunpack.c.l.b16 %v110
    %v240 = vunpack.c.l.b16 %v111
    %v241 = vunpack.c.l.b16 %v112
    %v242 = vunpack.c.l.b16 %v113
    %v243 = vunpack.c.l.b16 %v114
    %v244 = vunpack.c.l.b16 %v115
    %v245 = vunpack.c.l.b16 %v116
    %v246 = vunpack.c.l.b16 %v117
    %v247 = vunpack.c.l.b16 %v118
    %v248 = vunpack.c.l.b16 %v119
    %v249 = vunpack.c.l.b16 %v120
    %v250 = vunpack.c.l.b16 %v121
    %v251 = vunpack.c.l.b16 %v122
    %v252 = vunpack.c.l.b16 %v123
    %v253 = vunpack.c.l.b16 %v124
    %v254 = vunpack.c.l.b16 %v125
    %v255 = vpack.c.b16 %v192, %v191
    %v256 = vpack.c.b16 %v194, %v193
    %v257 = vpack.c.b16 %v196, %v195
    %v258 = vpack.c.b16 %v198, %v197
    %v259 = vpack.c.b16 %v200, %v199
    %v260 = vpack.c.b16 %v202, %v201
    %v261 = vpack.c.b16 %v204, %v203
    %v262 = vpack.c.b16 %v206, %v205
    %v263 = vpack.c.b16 %v208, %v207
    %v264 = vpack.c.b16 %v210, %v209
    %v265 = vpack.c.b16 %v212, %v211
    %v266 = vpack.c.b16 %v214, %v213
    %v267 = vpack.c.b16 %v216, %v215
    %v268 = vpack.c.b16 %v218, %v217
    %v269 = vpack.c.b16 %v220, %v219
    %v270 = vpack.c.b16 %v222, %v221
    %v271 = vpack.c.b16 %v224, %v223
    %v272 = vpack.c.b16 %v226, %v225
    %v273 = vpack.c.b16 %v228, %v227
    %v274 = vpack.c.b16 %v230, %v229
    %v275 = vpack.c.b16 %v232, %v231
    %v276 = vpack.c.b16 %v234, %v233
    %v277 = vpack.c.b16 %v236, %v235
    %v278 = vpack.c.b16 %v238, %v237
    %v279 = vpack.c.b16 %v240, %v239
    %v280 = vpack.c.b16 %v242, %v241
    %v281 = vpack.c.b16 %v244, %v243
    %v282 = vpack.c.b16 %v246, %v245
    %v283 = vpack.c.b16 %v248, %v247
    %v284 = vpack.c.b16 %v250, %v249
    %v285 = vpack.c.b16 %v252, %v251
    %v286 = vpack.c.b16 %v254, %v253
    %vm287 = vcmask 64512
    %v289 = vsel %vm287, %v255, 0
    %v292 = vsel %vm287, %v256, 0
    %v295 = vsel %vm287, %v257, 0
    %v298 = vsel %vm287, %v258, 0
    %v301 = vsel %vm287, %v259, 0
    %v304 = vsel %vm287, %v260, 0
    %v307 = vsel %vm287, %v261, 0
    %v310 = vsel %vm287, %v262, 0
    %v313 = vsel %vm287, %v263, 0
    %v316 = vsel %vm287, %v264, 0
    %v319 = vsel %vm287, %v265, 0
    %v322 = vsel %vm287, %v266, 0
    %v325 = vsel %vm287, %v267, 0
    %v328 = vsel %vm287, %v268, 0
    %v331 = vsel %vm287, %v269, 0
    %v334 = vsel %vm287, %v270, 0
    %v337 = vsel %vm287, %v271, 0
    %v340 = vsel %vm287, %v272, 0
    %v343 = vsel %vm287, %v273, 0
    %v346 = vsel %vm287, %v274, 0
    %v349 = vsel %vm287, %v275, 0
    %v352 = vsel %vm287, %v276, 0
    %v355 = vsel %vm287, %v277, 0
    %v358 = vsel %vm287, %v278, 0
    %v361 = vsel %vm287, %v279, 0
    %v364 = vsel %vm287, %v280, 0
    %v367 = vsel %vm287, %v281, 0
    %v370 = vsel %vm287, %v282, 0
    %v373 = vsel %vm287, %v283, 0
    %v376 = vsel %vm287, %v284, 0
    %v379 = vsel %vm287, %v285, 0
    %v382 = vsel %vm287, %v286, 0
    %vm384 = vcmask 1043456
    %v386 = vsel %vm384, %v126, 0
    %388 = vmatprep.subr.bf16.mxu0 0
    %389 = vmatpush1.bf16.msra.mxu0 %v386
    %390 = vmatprep.subr.bf16.mxu0 0
    %391 = vmatpush1.bf16.msra.mxu0 0
    %392 = vmatprep.subr.bf16.mxu0 0
    %393 = vmatpush1.bf16.msra.mxu0 0
    %394 = vmatprep.subr.bf16.mxu0 0
    %395 = vmatpush1.bf16.msra.mxu0 0
    %396 = vmatprep.subr.bf16.mxu0 0
    %397 = vmatpush1.bf16.msra.mxu0 0
    %398 = vmatprep.subr.bf16.mxu0 0
    %399 = vmatpush1.bf16.msra.mxu0 0
    %400 = vmatprep.subr.bf16.mxu0 0
    %401 = vmatpush1.bf16.msra.mxu0 0
    %402 = vmatprep.subr.bf16.mxu0 0
    %403 = vmatpush1.bf16.msra.mxu0 0
    %404 = vmatprep.subr.bf16.mxu0 0
    %405 = vmatpush1.bf16.msra.mxu0 0
    %406 = vmatprep.subr.bf16.mxu0 0
    %407 = vmatpush1.bf16.msra.mxu0 0
    %408 = vmatprep.subr.bf16.mxu0 0
    %409 = vmatpush1.bf16.msra.mxu0 0
    %410 = vmatprep.subr.bf16.mxu0 0
    %411 = vmatpush1.bf16.msra.mxu0 0
    %412 = vmatprep.subr.bf16.mxu0 0
    %413 = vmatpush1.bf16.msra.mxu0 0
    %414 = vmatprep.subr.bf16.mxu0 0
    %415 = vmatpush1.bf16.msra.mxu0 0
    %416 = vmatprep.subr.bf16.mxu0 0
    %417 = vmatpush1.bf16.msra.mxu0 0
    %418 = vmatprep.subr.bf16.mxu0 0
    %419 = vmatpush1.bf16.msra.mxu0 0
    %420 = vmatprep.mubr.bf16.mxu0 0
    %421 = vmatmul.mubr.bf16.gmra.mrb[0].mxu0 %v289
    %v422 = vpop.f32.mrb[0].mxu0
    %v423 = vadd.f32 0.0, %v422
    %v424 = vpop.f32.mrb[0].mxu0
    %v425 = vpop.f32.mrb[0].mxu0
    %v426 = vadd.f32 0.0, %v425
    %v427 = vpop.f32.mrb[0].mxu0
    %428 = vmatprep.mubr.bf16.mxu0 0
    %429 = vmatmul.mubr.bf16.gmra.mrb[0].mxu0 %v292
    %v430 = vpop.f32.mrb[0].mxu0
    %v431 = vadd.f32 0.0, %v430
    %v432 = vpop.f32.mrb[0].mxu0
    %v433 = vpop.f32.mrb[0].mxu0
    %v434 = vadd.f32 0.0, %v433
    %v435 = vpop.f32.mrb[0].mxu0
    %436 = vmatprep.mubr.bf16.mxu0 0
    %437 = vmatmul.mubr.bf16.gmra.mrb[0].mxu0 %v295
    %v438 = vpop.f32.mrb[0].mxu0
    %v439 = vadd.f32 0.0, %v438
    %v440 = vpop.f32.mrb[0].mxu0
    %v441 = vpop.f32.mrb[0].mxu0
    %v442 = vadd.f32 0.0, %v441
    %v443 = vpop.f32.mrb[0].mxu0
    %444 = vmatprep.mubr.bf16.mxu0 0
    %445 = vmatmul.mubr.bf16.gmra.mrb[0].mxu0 %v298
    %v446 = vpop.f32.mrb[0].mxu0
    %v447 = vadd.f32 0.0, %v446
    %v448 = vpop.f32.mrb[0].mxu0
    %v449 = vpop.f32.mrb[0].mxu0
    %v450 = vadd.f32 0.0, %v449
    %v451 = vpop.f32.mrb[0].mxu0
    %452 = vmatprep.mubr.bf16.mxu0 0
    %453 = vmatmul.mubr.bf16.gmra.mrb[0].mxu0 %v301
    %v454 = vpop.f32.mrb[0].mxu0
    %v455 = vadd.f32 0.0, %v454
    %v456 = vpop.f32.mrb[0].mxu0
    %v457 = vpop.f32.mrb[0].mxu0
    %v458 = vadd.f32 0.0, %v457
    %v459 = vpop.f32.mrb[0].mxu0
    %460 = vmatprep.mubr.bf16.mxu0 0
    %461 = vmatmul.mubr.bf16.gmra.mrb[0].mxu0 %v304
    %v462 = vpop.f32.mrb[0].mxu0
    %v463 = vadd.f32 0.0, %v462
    %v464 = vpop.f32.mrb[0].mxu0
    %v465 = vpop.f32.mrb[0].mxu0
    %v466 = vadd.f32 0.0, %v465
    %v467 = vpop.f32.mrb[0].mxu0
    %468 = vmatprep.mubr.bf16.mxu0 0
    %469 = vmatmul.mubr.bf16.gmra.mrb[0].mxu0 %v307
    %v470 = vpop.f32.mrb[0].mxu0
    %v471 = vadd.f32 0.0, %v470
    %v472 = vpop.f32.mrb[0].mxu0
    %v473 = vpop.f32.mrb[0].mxu0
    %v474 = vadd.f32 0.0, %v473
    %v475 = vpop.f32.mrb[0].mxu0
    %476 = vmatprep.mubr.bf16.mxu0 0
    %477 = vmatmul.mubr.bf16.gmra.mrb[0].mxu0 %v310
    %v478 = vpop.f32.mrb[0].mxu0
    %v479 = vadd.f32 0.0, %v478
    %v480 = vpop.f32.mrb[0].mxu0
    %v481 = vpop.f32.mrb[0].mxu0
    %v482 = vadd.f32 0.0, %v481
    %v483 = vpop.f32.mrb[0].mxu0
    %484 = vmatprep.mubr.bf16.mxu0 0
    %485 = vmatmul.mubr.bf16.gmra.mrb[0].mxu0 %v313
    %v486 = vpop.f32.mrb[0].mxu0
    %v487 = vadd.f32 0.0, %v486
    %v488 = vpop.f32.mrb[0].mxu0
    %v489 = vpop.f32.mrb[0].mxu0
    %v490 = vadd.f32 0.0, %v489
    %v491 = vpop.f32.mrb[0].mxu0
    %492 = vmatprep.mubr.bf16.mxu0 0
    %493 = vmatmul.mubr.bf16.gmra.mrb[0].mxu0 %v316
    %v494 = vpop.f32.mrb[0].mxu0
    %v495 = vadd.f32 0.0, %v494
    %v496 = vpop.f32.mrb[0].mxu0
    %v497 = vpop.f32.mrb[0].mxu0
    %v498 = vadd.f32 0.0, %v497
    %v499 = vpop.f32.mrb[0].mxu0
    %500 = vmatprep.mubr.bf16.mxu0 0
    %501 = vmatmul.mubr.bf16.gmra.mrb[0].mxu0 %v319
    %v502 = vpop.f32.mrb[0].mxu0
    %v503 = vadd.f32 0.0, %v502
    %v504 = vpop.f32.mrb[0].mxu0
    %v505 = vpop.f32.mrb[0].mxu0
    %v506 = vadd.f32 0.0, %v505
    %v507 = vpop.f32.mrb[0].mxu0
    %508 = vmatprep.mubr.bf16.mxu0 0
    %509 = vmatmul.mubr.bf16.gmra.mrb[0].mxu0 %v322
    %v510 = vpop.f32.mrb[0].mxu0
    %v511 = vadd.f32 0.0, %v510
    %v512 = vpop.f32.mrb[0].mxu0
    %v513 = vpop.f32.mrb[0].mxu0
    %v514 = vadd.f32 0.0, %v513
    %v515 = vpop.f32.mrb[0].mxu0
    %516 = vmatprep.mubr.bf16.mxu0 0
    %517 = vmatmul.mubr.bf16.gmra.mrb[0].mxu0 %v325
    %v518 = vpop.f32.mrb[0].mxu0
    %v519 = vadd.f32 0.0, %v518
    %v520 = vpop.f32.mrb[0].mxu0
    %v521 = vpop.f32.mrb[0].mxu0
    %v522 = vadd.f32 0.0, %v521
    %v523 = vpop.f32.mrb[0].mxu0
    %524 = vmatprep.mubr.bf16.mxu0 0
    %525 = vmatmul.mubr.bf16.gmra.mrb[0].mxu0 %v328
    %v526 = vpop.f32.mrb[0].mxu0
    %v527 = vadd.f32 0.0, %v526
    %v528 = vpop.f32.mrb[0].mxu0
    %v529 = vpop.f32.mrb[0].mxu0
    %v530 = vadd.f32 0.0, %v529
    %v531 = vpop.f32.mrb[0].mxu0
    %532 = vmatprep.mubr.bf16.mxu0 0
    %533 = vmatmul.mubr.bf16.gmra.mrb[0].mxu0 %v331
    %v534 = vpop.f32.mrb[0].mxu0
    %v535 = vadd.f32 0.0, %v534
    %v536 = vpop.f32.mrb[0].mxu0
    %v537 = vpop.f32.mrb[0].mxu0
    %v538 = vadd.f32 0.0, %v537
    %v539 = vpop.f32.mrb[0].mxu0
    %540 = vmatprep.mubr.bf16.mxu0 0
    %541 = vmatmul.mubr.bf16.gmra.mrb[0].mxu0 %v334
    %v542 = vpop.f32.mrb[0].mxu0
    %v543 = vadd.f32 0.0, %v542
    %v544 = vpop.f32.mrb[0].mxu0
    %v545 = vpop.f32.mrb[0].mxu0
    %v546 = vadd.f32 0.0, %v545
    %v547 = vpop.f32.mrb[0].mxu0
    %548 = vmatprep.mubr.bf16.mxu0 0
    %549 = vmatmul.mubr.bf16.gmra.mrb[0].mxu0 %v337
    %v550 = vpop.f32.mrb[0].mxu0
    %v551 = vadd.f32 0.0, %v550
    %v552 = vpop.f32.mrb[0].mxu0
    %v553 = vpop.f32.mrb[0].mxu0
    %v554 = vadd.f32 0.0, %v553
    %v555 = vpop.f32.mrb[0].mxu0
    %556 = vmatprep.mubr.bf16.mxu0 0
    %557 = vmatmul.mubr.bf16.gmra.mrb[0].mxu0 %v340
    %v558 = vpop.f32.mrb[0].mxu0
    %v559 = vadd.f32 0.0, %v558
    %v560 = vpop.f32.mrb[0].mxu0
    %v561 = vpop.f32.mrb[0].mxu0
    %v562 = vadd.f32 0.0, %v561
    %v563 = vpop.f32.mrb[0].mxu0
    %564 = vmatprep.mubr.bf16.mxu0 0
    %565 = vmatmul.mubr.bf16.gmra.mrb[0].mxu0 %v343
    %v566 = vpop.f32.mrb[0].mxu0
    %v567 = vadd.f32 0.0, %v566
    %v568 = vpop.f32.mrb[0].mxu0
    %v569 = vpop.f32.mrb[0].mxu0
    %v570 = vadd.f32 0.0, %v569
    %v571 = vpop.f32.mrb[0].mxu0
    %572 = vmatprep.mubr.bf16.mxu0 0
    %573 = vmatmul.mubr.bf16.gmra.mrb[0].mxu0 %v346
    %v574 = vpop.f32.mrb[0].mxu0
    %v575 = vadd.f32 0.0, %v574
    %v576 = vpop.f32.mrb[0].mxu0
    %v577 = vpop.f32.mrb[0].mxu0
    %v578 = vadd.f32 0.0, %v577
    %v579 = vpop.f32.mrb[0].mxu0
    %580 = vmatprep.mubr.bf16.mxu0 0
    %581 = vmatmul.mubr.bf16.gmra.mrb[0].mxu0 %v349
    %v582 = vpop.f32.mrb[0].mxu0
    %v583 = vadd.f32 0.0, %v582
    %v584 = vpop.f32.mrb[0].mxu0
    %v585 = vpop.f32.mrb[0].mxu0
    %v586 = vadd.f32 0.0, %v585
    %v587 = vpop.f32.mrb[0].mxu0
    %588 = vmatprep.mubr.bf16.mxu0 0
    %589 = vmatmul.mubr.bf16.gmra.mrb[0].mxu0 %v352
    %v590 = vpop.f32.mrb[0].mxu0
    %v591 = vadd.f32 0.0, %v590
    %v592 = vpop.f32.mrb[0].mxu0
    %v593 = vpop.f32.mrb[0].mxu0
    %v594 = vadd.f32 0.0, %v593
    %v595 = vpop.f32.mrb[0].mxu0
    %596 = vmatprep.mubr.bf16.mxu0 0
    %597 = vmatmul.mubr.bf16.gmra.mrb[0].mxu0 %v355
    %v598 = vpop.f32.mrb[0].mxu0
    %v599 = vadd.f32 0.0, %v598
    %v600 = vpop.f32.mrb[0].mxu0
    %v601 = vpop.f32.mrb[0].mxu0
    %v602 = vadd.f32 0.0, %v601
    %v603 = vpop.f32.mrb[0].mxu0
    %604 = vmatprep.mubr.bf16.mxu0 0
    %605 = vmatmul.mubr.bf16.gmra.mrb[0].mxu0 %v358
    %v606 = vpop.f32.mrb[0].mxu0
    %v607 = vadd.f32 0.0, %v606
    %v608 = vpop.f32.mrb[0].mxu0
    %v609 = vpop.f32.mrb[0].mxu0
    %v610 = vadd.f32 0.0, %v609
    %v611 = vpop.f32.mrb[0].mxu0
    %612 = vmatprep.mubr.bf16.mxu0 0
    %613 = vmatmul.mubr.bf16.gmra.mrb[0].mxu0 %v361
    %v614 = vpop.f32.mrb[0].mxu0
    %v615 = vadd.f32 0.0, %v614
    %v616 = vpop.f32.mrb[0].mxu0
    %v617 = vpop.f32.mrb[0].mxu0
    %v618 = vadd.f32 0.0, %v617
    %v619 = vpop.f32.mrb[0].mxu0
    %620 = vmatprep.mubr.bf16.mxu0 0
    %621 = vmatmul.mubr.bf16.gmra.mrb[0].mxu0 %v364
    %v622 = vpop.f32.mrb[0].mxu0
    %v623 = vadd.f32 0.0, %v622
    %v624 = vpop.f32.mrb[0].mxu0
    %v625 = vpop.f32.mrb[0].mxu0
    %v626 = vadd.f32 0.0, %v625
    %v627 = vpop.f32.mrb[0].mxu0
    %628 = vmatprep.mubr.bf16.mxu0 0
    %629 = vmatmul.mubr.bf16.gmra.mrb[0].mxu0 %v367
    %v630 = vpop.f32.mrb[0].mxu0
    %v631 = vadd.f32 0.0, %v630
    %v632 = vpop.f32.mrb[0].mxu0
    %v633 = vpop.f32.mrb[0].mxu0
    %v634 = vadd.f32 0.0, %v633
    %v635 = vpop.f32.mrb[0].mxu0
    %636 = vmatprep.mubr.bf16.mxu0 0
    %637 = vmatmul.mubr.bf16.gmra.mrb[0].mxu0 %v370
    %v638 = vpop.f32.mrb[0].mxu0
    %v639 = vadd.f32 0.0, %v638
    %v640 = vpop.f32.mrb[0].mxu0
    %v641 = vpop.f32.mrb[0].mxu0
    %v642 = vadd.f32 0.0, %v641
    %v643 = vpop.f32.mrb[0].mxu0
    %644 = vmatprep.mubr.bf16.mxu0 0
    %645 = vmatmul.mubr.bf16.gmra.mrb[0].mxu0 %v373
    %v646 = vpop.f32.mrb[0].mxu0
    %v647 = vadd.f32 0.0, %v646
    %v648 = vpop.f32.mrb[0].mxu0
    %v649 = vpop.f32.mrb[0].mxu0
    %v650 = vadd.f32 0.0, %v649
    %v651 = vpop.f32.mrb[0].mxu0
    %652 = vmatprep.mubr.bf16.mxu0 0
    %653 = vmatmul.mubr.bf16.gmra.mrb[0].mxu0 %v376
    %v654 = vpop.f32.mrb[0].mxu0
    %v655 = vadd.f32 0.0, %v654
    %v656 = vpop.f32.mrb[0].mxu0
    %v657 = vpop.f32.mrb[0].mxu0
    %v658 = vadd.f32 0.0, %v657
    %v659 = vpop.f32.mrb[0].mxu0
    %660 = vmatprep.mubr.bf16.mxu0 0
    %661 = vmatmul.mubr.bf16.gmra.mrb[0].mxu0 %v379
    %v662 = vpop.f32.mrb[0].mxu0
    %v663 = vadd.f32 0.0, %v662
    %v664 = vpop.f32.mrb[0].mxu0
    %v665 = vpop.f32.mrb[0].mxu0
    %v666 = vadd.f32 0.0, %v665
    %v667 = vpop.f32.mrb[0].mxu0
    %668 = vmatprep.mubr.bf16.mxu0 0
    %669 = vmatmul.mubr.bf16.gmra.mrb[0].mxu0 %v382
    %v670 = vpop.f32.mrb[0].mxu0
    %v671 = vadd.f32 0.0, %v670
    %v672 = vpop.f32.mrb[0].mxu0
    %v673 = vpop.f32.mrb[0].mxu0
    %v674 = vadd.f32 0.0, %v673
    %v675 = vpop.f32.mrb[0].mxu0
    %676 = vdwg.mxu0
    %v677 = vpack.c.bf16 %v426, %v423
    %v678 = vpack.c.bf16 %v434, %v431
    %v679 = vpack.c.bf16 %v442, %v439
    %v680 = vpack.c.bf16 %v450, %v447
    %v681 = vpack.c.bf16 %v458, %v455
    %v682 = vpack.c.bf16 %v466, %v463
    %v683 = vpack.c.bf16 %v474, %v471
    %v684 = vpack.c.bf16 %v482, %v479
    %v685 = vpack.c.bf16 %v490, %v487
    %v686 = vpack.c.bf16 %v498, %v495
    %v687 = vpack.c.bf16 %v506, %v503
    %v688 = vpack.c.bf16 %v514, %v511
    %v689 = vpack.c.bf16 %v522, %v519
    %v690 = vpack.c.bf16 %v530, %v527
    %v691 = vpack.c.bf16 %v538, %v535
    %v692 = vpack.c.bf16 %v546, %v543
    %v693 = vpack.c.bf16 %v554, %v551
    %v694 = vpack.c.bf16 %v562, %v559
    %v695 = vpack.c.bf16 %v570, %v567
    %v696 = vpack.c.bf16 %v578, %v575
    %v697 = vpack.c.bf16 %v586, %v583
    %v698 = vpack.c.bf16 %v594, %v591
    %v699 = vpack.c.bf16 %v602, %v599
    %v700 = vpack.c.bf16 %v610, %v607
    %v701 = vpack.c.bf16 %v618, %v615
    %v702 = vpack.c.bf16 %v626, %v623
    %v703 = vpack.c.bf16 %v634, %v631
    %v704 = vpack.c.bf16 %v642, %v639
    %v705 = vpack.c.bf16 %v650, %v647
    %v706 = vpack.c.bf16 %v658, %v655
    %v707 = vpack.c.bf16 %v666, %v663
    %v708 = vpack.c.bf16 %v674, %v671
    %v741 = vunpack.c.l.b16 %v677
    %v742 = vunpack.c.h.b16 %v677
    %v743 = vunpack.c.l.b16 %v678
    %v744 = vunpack.c.h.b16 %v678
    %v745 = vunpack.c.l.b16 %v679
    %v746 = vunpack.c.h.b16 %v679
    %v747 = vunpack.c.l.b16 %v680
    %v748 = vunpack.c.h.b16 %v680
    %v749 = vunpack.c.l.b16 %v681
    %v750 = vunpack.c.h.b16 %v681
    %v751 = vunpack.c.l.b16 %v682
    %v752 = vunpack.c.h.b16 %v682
    %v753 = vunpack.c.l.b16 %v683
    %v754 = vunpack.c.h.b16 %v683
    %v755 = vunpack.c.l.b16 %v684
    %v756 = vunpack.c.h.b16 %v684
    %v757 = vunpack.c.l.b16 %v685
    %v758 = vunpack.c.h.b16 %v685
    %v759 = vunpack.c.l.b16 %v686
    %v760 = vunpack.c.h.b16 %v686
    %v761 = vunpack.c.l.b16 %v687
    %v762 = vunpack.c.h.b16 %v687
    %v763 = vunpack.c.l.b16 %v688
    %v764 = vunpack.c.h.b16 %v688
    %v765 = vunpack.c.l.b16 %v689
    %v766 = vunpack.c.h.b16 %v689
    %v767 = vunpack.c.l.b16 %v690
    %v768 = vunpack.c.h.b16 %v690
    %v769 = vunpack.c.l.b16 %v691
    %v770 = vunpack.c.h.b16 %v691
    %v771 = vunpack.c.l.b16 %v692
    %v772 = vunpack.c.h.b16 %v692
    %v773 = vunpack.c.l.b16 %v693
    %v774 = vunpack.c.h.b16 %v693
    %v775 = vunpack.c.l.b16 %v694
    %v776 = vunpack.c.h.b16 %v694
    %v777 = vunpack.c.l.b16 %v695
    %v778 = vunpack.c.h.b16 %v695
    %v779 = vunpack.c.l.b16 %v696
    %v780 = vunpack.c.h.b16 %v696
    %v781 = vunpack.c.l.b16 %v697
    %v782 = vunpack.c.h.b16 %v697
    %v783 = vunpack.c.l.b16 %v698
    %v784 = vunpack.c.h.b16 %v698
    %v785 = vunpack.c.l.b16 %v699
    %v786 = vunpack.c.h.b16 %v699
    %v787 = vunpack.c.l.b16 %v700
    %v788 = vunpack.c.h.b16 %v700
    %v789 = vunpack.c.l.b16 %v701
    %v790 = vunpack.c.h.b16 %v701
    %v791 = vunpack.c.l.b16 %v702
    %v792 = vunpack.c.h.b16 %v702
    %v793 = vunpack.c.l.b16 %v703
    %v794 = vunpack.c.h.b16 %v703
    %v795 = vunpack.c.l.b16 %v704
    %v796 = vunpack.c.h.b16 %v704
    %v797 = vunpack.c.l.b16 %v705
    %v798 = vunpack.c.h.b16 %v705
    %v799 = vunpack.c.l.b16 %v706
    %v800 = vunpack.c.h.b16 %v706
    %v801 = vunpack.c.l.b16 %v707
    %v802 = vunpack.c.h.b16 %v707
    %v803 = vunpack.c.l.b16 %v708
    %v804 = vunpack.c.h.b16 %v708
    %v805 = vpack.c.b16 %v741, %v741
    %v806 = vpack.c.b16 %v742, %v742
    %v807 = vpack.c.b16 %v743, %v743
    %v808 = vpack.c.b16 %v744, %v744
    %v809 = vpack.c.b16 %v745, %v745
    %v810 = vpack.c.b16 %v746, %v746
    %v811 = vpack.c.b16 %v747, %v747
    %v812 = vpack.c.b16 %v748, %v748
    %v813 = vpack.c.b16 %v749, %v749
    %v814 = vpack.c.b16 %v750, %v750
    %v815 = vpack.c.b16 %v751, %v751
    %v816 = vpack.c.b16 %v752, %v752
    %v817 = vpack.c.b16 %v753, %v753
    %v818 = vpack.c.b16 %v754, %v754
    %v819 = vpack.c.b16 %v755, %v755
    %v820 = vpack.c.b16 %v756, %v756
    %v821 = vpack.c.b16 %v757, %v757
    %v822 = vpack.c.b16 %v758, %v758
    %v823 = vpack.c.b16 %v759, %v759
    %v824 = vpack.c.b16 %v760, %v760
    %v825 = vpack.c.b16 %v761, %v761
    %v826 = vpack.c.b16 %v762, %v762
    %v827 = vpack.c.b16 %v763, %v763
    %v828 = vpack.c.b16 %v764, %v764
    %v829 = vpack.c.b16 %v765, %v765
    %v830 = vpack.c.b16 %v766, %v766
    %v831 = vpack.c.b16 %v767, %v767
    %v832 = vpack.c.b16 %v768, %v768
    %v833 = vpack.c.b16 %v769, %v769
    %v834 = vpack.c.b16 %v770, %v770
    %v835 = vpack.c.b16 %v771, %v771
    %v836 = vpack.c.b16 %v772, %v772
    %v837 = vpack.c.b16 %v773, %v773
    %v838 = vpack.c.b16 %v774, %v774
    %v839 = vpack.c.b16 %v775, %v775
    %v840 = vpack.c.b16 %v776, %v776
    %v841 = vpack.c.b16 %v777, %v777
    %v842 = vpack.c.b16 %v778, %v778
    %v843 = vpack.c.b16 %v779, %v779
    %v844 = vpack.c.b16 %v780, %v780
    %v845 = vpack.c.b16 %v781, %v781
    %v846 = vpack.c.b16 %v782, %v782
    %v847 = vpack.c.b16 %v783, %v783
    %v848 = vpack.c.b16 %v784, %v784
    %v849 = vpack.c.b16 %v785, %v785
    %v850 = vpack.c.b16 %v786, %v786
    %v851 = vpack.c.b16 %v787, %v787
    %v852 = vpack.c.b16 %v788, %v788
    %v853 = vpack.c.b16 %v789, %v789
    %v854 = vpack.c.b16 %v790, %v790
    %v855 = vpack.c.b16 %v791, %v791
    %v856 = vpack.c.b16 %v792, %v792
    %v857 = vpack.c.b16 %v793, %v793
    %v858 = vpack.c.b16 %v794, %v794
    %v859 = vpack.c.b16 %v795, %v795
    %v860 = vpack.c.b16 %v796, %v796
    %v861 = vpack.c.b16 %v797, %v797
    %v862 = vpack.c.b16 %v798, %v798
    %v863 = vpack.c.b16 %v799, %v799
    %v864 = vpack.c.b16 %v800, %v800
    %v865 = vpack.c.b16 %v801, %v801
    %v866 = vpack.c.b16 %v802, %v802
    %v867 = vpack.c.b16 %v803, %v803
    %v868 = vpack.c.b16 %v804, %v804
    %vm933 = vcmask 27648
    %934 = vst.msk [vmem:[#allocation8] sm:$0xf] %vm933, %v805
    %935 = vst.msk [vmem:[#allocation8 + $0x4] sm:$0xf] %vm933, %v806
    %936 = vst.msk [vmem:[#allocation8 + $0x8] sm:$0xf] %vm933, %v807
    %937 = vst.msk [vmem:[#allocation8 + $0xc] sm:$0xf] %vm933, %v808
    %938 = vst.msk [vmem:[#allocation8 + $0x10] sm:$0xf] %vm933, %v809
    %939 = vst.msk [vmem:[#allocation8 + $0x14] sm:$0xf] %vm933, %v810
    %940 = vst.msk [vmem:[#allocation8 + $0x18] sm:$0xf] %vm933, %v811
    %941 = vst.msk [vmem:[#allocation8 + $0x1c] sm:$0xf] %vm933, %v812
    %942 = vst.msk [vmem:[#allocation8 + $0x20] sm:$0xf] %vm933, %v813
    %943 = vst.msk [vmem:[#allocation8 + $0x24] sm:$0xf] %vm933, %v814
    %944 = vst.msk [vmem:[#allocation8 + $0x28] sm:$0xf] %vm933, %v815
    %945 = vst.msk [vmem:[#allocation8 + $0x2c] sm:$0xf] %vm933, %v816
    %946 = vst.msk [vmem:[#allocation8 + $0x30] sm:$0xf] %vm933, %v817
    %947 = vst.msk [vmem:[#allocation8 + $0x34] sm:$0xf] %vm933, %v818
    %948 = vst.msk [vmem:[#allocation8 + $0x38] sm:$0xf] %vm933, %v819
    %949 = vst.msk [vmem:[#allocation8 + $0x3c] sm:$0xf] %vm933, %v820
    %950 = vst.msk [vmem:[#allocation8 + $0x40] sm:$0xf] %vm933, %v821
    %951 = vst.msk [vmem:[#allocation8 + $0x44] sm:$0xf] %vm933, %v822
    %952 = vst.msk [vmem:[#allocation8 + $0x48] sm:$0xf] %vm933, %v823
    %953 = vst.msk [vmem:[#allocation8 + $0x4c] sm:$0xf] %vm933, %v824
    %954 = vst.msk [vmem:[#allocation8 + $0x50] sm:$0xf] %vm933, %v825
    %955 = vst.msk [vmem:[#allocation8 + $0x54] sm:$0xf] %vm933, %v826
    %956 = vst.msk [vmem:[#allocation8 + $0x58] sm:$0xf] %vm933, %v827
    %957 = vst.msk [vmem:[#allocation8 + $0x5c] sm:$0xf] %vm933, %v828
    %958 = vst.msk [vmem:[#allocation8 + $0x60] sm:$0xf] %vm933, %v829
    %959 = vst.msk [vmem:[#allocation8 + $0x64] sm:$0xf] %vm933, %v830
    %960 = vst.msk [vmem:[#allocation8 + $0x68] sm:$0xf] %vm933, %v831
    %961 = vst.msk [vmem:[#allocation8 + $0x6c] sm:$0xf] %vm933, %v832
    %962 = vst.msk [vmem:[#allocation8 + $0x70] sm:$0xf] %vm933, %v833
    %963 = vst.msk [vmem:[#allocation8 + $0x74] sm:$0xf] %vm933, %v834
    %964 = vst.msk [vmem:[#allocation8 + $0x78] sm:$0xf] %vm933, %v835
    %965 = vst.msk [vmem:[#allocation8 + $0x7c] sm:$0xf] %vm933, %v836
    %966 = vst.msk [vmem:[#allocation8 + $0x80] sm:$0xf] %vm933, %v837
    %967 = vst.msk [vmem:[#allocation8 + $0x84] sm:$0xf] %vm933, %v838
    %968 = vst.msk [vmem:[#allocation8 + $0x88] sm:$0xf] %vm933, %v839
    %969 = vst.msk [vmem:[#allocation8 + $0x8c] sm:$0xf] %vm933, %v840
    %970 = vst.msk [vmem:[#allocation8 + $0x90] sm:$0xf] %vm933, %v841
    %971 = vst.msk [vmem:[#allocation8 + $0x94] sm:$0xf] %vm933, %v842
    %972 = vst.msk [vmem:[#allocation8 + $0x98] sm:$0xf] %vm933, %v843
    %973 = vst.msk [vmem:[#allocation8 + $0x9c] sm:$0xf] %vm933, %v844
    %974 = vst.msk [vmem:[#allocation8 + $0xa0] sm:$0xf] %vm933, %v845
    %975 = vst.msk [vmem:[#allocation8 + $0xa4] sm:$0xf] %vm933, %v846
    %976 = vst.msk [vmem:[#allocation8 + $0xa8] sm:$0xf] %vm933, %v847
    %977 = vst.msk [vmem:[#allocation8 + $0xac] sm:$0xf] %vm933, %v848
    %978 = vst.msk [vmem:[#allocation8 + $0xb0] sm:$0xf] %vm933, %v849
    %979 = vst.msk [vmem:[#allocation8 + $0xb4] sm:$0xf] %vm933, %v850
    %980 = vst.msk [vmem:[#allocation8 + $0xb8] sm:$0xf] %vm933, %v851
    %981 = vst.msk [vmem:[#allocation8 + $0xbc] sm:$0xf] %vm933, %v852
    %982 = vst.msk [vmem:[#allocation8 + $0xc0] sm:$0xf] %vm933, %v853
    %983 = vst.msk [vmem:[#allocation8 + $0xc4] sm:$0xf] %vm933, %v854
    %984 = vst.msk [vmem:[#allocation8 + $0xc8] sm:$0xf] %vm933, %v855
    %985 = vst.msk [vmem:[#allocation8 + $0xcc] sm:$0xf] %vm933, %v856
    %986 = vst.msk [vmem:[#allocation8 + $0xd0] sm:$0xf] %vm933, %v857
    %987 = vst.msk [vmem:[#allocation8 + $0xd4] sm:$0xf] %vm933, %v858
    %988 = vst.msk [vmem:[#allocation8 + $0xd8] sm:$0xf] %vm933, %v859
    %989 = vst.msk [vmem:[#allocation8 + $0xdc] sm:$0xf] %vm933, %v860
    %990 = vst.msk [vmem:[#allocation8 + $0xe0] sm:$0xf] %vm933, %v861
    %991 = vst.msk [vmem:[#allocation8 + $0xe4] sm:$0xf] %vm933, %v862
    %992 = vst.msk [vmem:[#allocation8 + $0xe8] sm:$0xf] %vm933, %v863
    %993 = vst.msk [vmem:[#allocation8 + $0xec] sm:$0xf] %vm933, %v864
    %994 = vst.msk [vmem:[#allocation8 + $0xf0] sm:$0xf] %vm933, %v865
    %995 = vst.msk [vmem:[#allocation8 + $0xf4] sm:$0xf] %vm933, %v866
    %996 = vst.msk [vmem:[#allocation8 + $0xf8] sm:$0xf] %vm933, %v867
    %997 = vst.msk [vmem:[#allocation8 + $0xfc] sm:$0xf] %vm933, %v868
    %vm998 = vcmask 31744
    %v999 = vsel %vm998, %v423, 0.0
    %v1000 = vsel %vm998, %v426, 0.0
    %v1001 = vadd.f32 %v999, %v1000
    %v1002 = vsel %vm998, %v431, 0.0
    %v1003 = vadd.f32 %v1001, %v1002
    %v1004 = vsel %vm998, %v434, 0.0
    %v1005 = vadd.f32 %v1003, %v1004
    %v1006 = vsel %vm998, %v439, 0.0
    %v1007 = vadd.f32 %v1005, %v1006
    %v1008 = vsel %vm998, %v442, 0.0
    %v1009 = vadd.f32 %v1007, %v1008
    %v1010 = vsel %vm998, %v447, 0.0
    %v1011 = vadd.f32 %v1009, %v1010
    %v1012 = vsel %vm998, %v450, 0.0
    %v1013 = vadd.f32 %v1011, %v1012
    %v1014 = vsel %vm998, %v455, 0.0
    %v1015 = vadd.f32 %v1013, %v1014
    %v1016 = vsel %vm998, %v458, 0.0
    %v1017 = vadd.f32 %v1015, %v1016
    %v1018 = vsel %vm998, %v463, 0.0
    %v1019 = vadd.f32 %v1017, %v1018
    %v1020 = vsel %vm998, %v466, 0.0
    %v1021 = vadd.f32 %v1019, %v1020
    %v1022 = vsel %vm998, %v471, 0.0
    %v1023 = vadd.f32 %v1021, %v1022
    %v1024 = vsel %vm998, %v474, 0.0
    %v1025 = vadd.f32 %v1023, %v1024
    %v1026 = vsel %vm998, %v479, 0.0
    %v1027 = vadd.f32 %v1025, %v1026
    %v1028 = vsel %vm998, %v482, 0.0
    %v1029 = vadd.f32 %v1027, %v1028
    %v1030 = vsel %vm998, %v487, 0.0
    %v1031 = vadd.f32 %v1029, %v1030
    %v1032 = vsel %vm998, %v490, 0.0
    %v1033 = vadd.f32 %v1031, %v1032
    %v1034 = vsel %vm998, %v495, 0.0
    %v1035 = vadd.f32 %v1033, %v1034
    %v1036 = vsel %vm998, %v498, 0.0
    %v1037 = vadd.f32 %v1035, %v1036
    %v1038 = vsel %vm998, %v503, 0.0
    %v1039 = vadd.f32 %v1037, %v1038
    %v1040 = vsel %vm998, %v506, 0.0
    %v1041 = vadd.f32 %v1039, %v1040
    %v1042 = vsel %vm998, %v511, 0.0
    %v1043 = vadd.f32 %v1041, %v1042
    %v1044 = vsel %vm998, %v514, 0.0
    %v1045 = vadd.f32 %v1043, %v1044
    %v1046 = vsel %vm998, %v519, 0.0
    %v1047 = vadd.f32 %v1045, %v1046
    %v1048 = vsel %vm998, %v522, 0.0
    %v1049 = vadd.f32 %v1047, %v1048
    %v1050 = vsel %vm998, %v527, 0.0
    %v1051 = vadd.f32 %v1049, %v1050
    %v1052 = vsel %vm998, %v530, 0.0
    %v1053 = vadd.f32 %v1051, %v1052
    %v1054 = vsel %vm998, %v535, 0.0
    %v1055 = vadd.f32 %v1053, %v1054
    %v1056 = vsel %vm998, %v538, 0.0
    %v1057 = vadd.f32 %v1055, %v1056
    %v1058 = vsel %vm998, %v543, 0.0
    %v1059 = vadd.f32 %v1057, %v1058
    %v1060 = vsel %vm998, %v546, 0.0
    %v1061 = vadd.f32 %v1059, %v1060
    %v1062 = vsel %vm998, %v551, 0.0
    %v1063 = vadd.f32 %v1061, %v1062
    %v1064 = vsel %vm998, %v554, 0.0
    %v1065 = vadd.f32 %v1063, %v1064
    %v1066 = vsel %vm998, %v559, 0.0
    %v1067 = vadd.f32 %v1065, %v1066
    %v1068 = vsel %vm998, %v562, 0.0
    %v1069 = vadd.f32 %v1067, %v1068
    %v1070 = vsel %vm998, %v567, 0.0
    %v1071 = vadd.f32 %v1069, %v1070
    %v1072 = vsel %vm998, %v570, 0.0
    %v1073 = vadd.f32 %v1071, %v1072
    %v1074 = vsel %vm998, %v575, 0.0
    %v1075 = vadd.f32 %v1073, %v1074
    %v1076 = vsel %vm998, %v578, 0.0
    %v1077 = vadd.f32 %v1075, %v1076
    %v1078 = vsel %vm998, %v583, 0.0
    %v1079 = vadd.f32 %v1077, %v1078
    %v1080 = vsel %vm998, %v586, 0.0
    %v1081 = vadd.f32 %v1079, %v1080
    %v1082 = vsel %vm998, %v591, 0.0
    %v1083 = vadd.f32 %v1081, %v1082
    %v1084 = vsel %vm998, %v594, 0.0
    %v1085 = vadd.f32 %v1083, %v1084
    %v1086 = vsel %vm998, %v599, 0.0
    %v1087 = vadd.f32 %v1085, %v1086
    %v1088 = vsel %vm998, %v602, 0.0
    %v1089 = vadd.f32 %v1087, %v1088
    %v1090 = vsel %vm998, %v607, 0.0
    %v1091 = vadd.f32 %v1089, %v1090
    %v1092 = vsel %vm998, %v610, 0.0
    %v1093 = vadd.f32 %v1091, %v1092
    %v1094 = vsel %vm998, %v615, 0.0
    %v1095 = vadd.f32 %v1093, %v1094
    %v1096 = vsel %vm998, %v618, 0.0
    %v1097 = vadd.f32 %v1095, %v1096
    %v1098 = vsel %vm998, %v623, 0.0
    %v1099 = vadd.f32 %v1097, %v1098
    %v1100 = vsel %vm998, %v626, 0.0
    %v1101 = vadd.f32 %v1099, %v1100
    %v1102 = vsel %vm998, %v631, 0.0
    %v1103 = vadd.f32 %v1101, %v1102
    %v1104 = vsel %vm998, %v634, 0.0
    %v1105 = vadd.f32 %v1103, %v1104
    %v1106 = vsel %vm998, %v639, 0.0
    %v1107 = vadd.f32 %v1105, %v1106
    %v1108 = vsel %vm998, %v642, 0.0
    %v1109 = vadd.f32 %v1107, %v1108
    %v1110 = vsel %vm998, %v647, 0.0
    %v1111 = vadd.f32 %v1109, %v1110
    %v1112 = vsel %vm998, %v650, 0.0
    %v1113 = vadd.f32 %v1111, %v1112
    %v1114 = vsel %vm998, %v655, 0.0
    %v1115 = vadd.f32 %v1113, %v1114
    %v1116 = vsel %vm998, %v658, 0.0
    %v1117 = vadd.f32 %v1115, %v1116
    %v1118 = vsel %vm998, %v663, 0.0
    %v1119 = vadd.f32 %v1117, %v1118
    %v1120 = vsel %vm998, %v666, 0.0
    %v1121 = vadd.f32 %v1119, %v1120
    %v1122 = vsel %vm998, %v671, 0.0
    %v1123 = vadd.f32 %v1121, %v1122
    %v1124 = vsel %vm998, %v674, 0.0
    %v1125 = vadd.f32 %v1123, %v1124
    %v1126 = vrot.slane %v1125, 4
    %v1127 = vadd.f32 %v1125, %v1126
    %v1128 = vrot.slane %v1127, 2
    %v1129 = vadd.f32 %v1127, %v1128
    %v1130 = vrot.slane %v1129, 1
    %v1131 = vadd.f32 %v1129, %v1130
    %vm1132 = vcmask 24576
    %1133 = vst.msk [vmem:[#allocation9] sm:$0x1] %vm1132, %v1131
    %v1134 = vmul.f32 %v423, %v423
    %v1135 = vmul.f32 %v426, %v426
    %v1136 = vmul.f32 %v431, %v431
    %v1137 = vmul.f32 %v434, %v434
    %v1138 = vmul.f32 %v439, %v439
    %v1139 = vmul.f32 %v442, %v442
    %v1140 = vmul.f32 %v447, %v447
    %v1141 = vmul.f32 %v450, %v450
    %v1142 = vmul.f32 %v455, %v455
    %v1143 = vmul.f32 %v458, %v458
    %v1144 = vmul.f32 %v463, %v463
    %v1145 = vmul.f32 %v466, %v466
    %v1146 = vmul.f32 %v471, %v471
    %v1147 = vmul.f32 %v474, %v474
    %v1148 = vmul.f32 %v479, %v479
    %v1149 = vmul.f32 %v482, %v482
    %v1150 = vmul.f32 %v487, %v487
    %v1151 = vmul.f32 %v490, %v490
    %v1152 = vmul.f32 %v495, %v495
    %v1153 = vmul.f32 %v498, %v498
    %v1154 = vmul.f32 %v503, %v503
    %v1155 = vmul.f32 %v506, %v506
    %v1156 = vmul.f32 %v511, %v511
    %v1157 = vmul.f32 %v514, %v514
    %v1158 = vmul.f32 %v519, %v519
    %v1159 = vmul.f32 %v522, %v522
    %v1160 = vmul.f32 %v527, %v527
    %v1161 = vmul.f32 %v530, %v530
    %v1162 = vmul.f32 %v535, %v535
    %v1163 = vmul.f32 %v538, %v538
    %v1164 = vmul.f32 %v543, %v543
    %v1165 = vmul.f32 %v546, %v546
    %v1166 = vmul.f32 %v551, %v551
    %v1167 = vmul.f32 %v554, %v554
    %v1168 = vmul.f32 %v559, %v559
    %v1169 = vmul.f32 %v562, %v562
    %v1170 = vmul.f32 %v567, %v567
    %v1171 = vmul.f32 %v570, %v570
    %v1172 = vmul.f32 %v575, %v575
    %v1173 = vmul.f32 %v578, %v578
    %v1174 = vmul.f32 %v583, %v583
    %v1175 = vmul.f32 %v586, %v586
    %v1176 = vmul.f32 %v591, %v591
    %v1177 = vmul.f32 %v594, %v594
    %v1178 = vmul.f32 %v599, %v599
    %v1179 = vmul.f32 %v602, %v602
    %v1180 = vmul.f32 %v607, %v607
    %v1181 = vmul.f32 %v610, %v610
    %v1182 = vmul.f32 %v615, %v615
    %v1183 = vmul.f32 %v618, %v618
    %v1184 = vmul.f32 %v623, %v623
    %v1185 = vmul.f32 %v626, %v626
    %v1186 = vmul.f32 %v631, %v631
    %v1187 = vmul.f32 %v634, %v634
    %v1188 = vmul.f32 %v639, %v639
    %v1189 = vmul.f32 %v642, %v642
    %v1190 = vmul.f32 %v647, %v647
    %v1191 = vmul.f32 %v650, %v650
    %v1192 = vmul.f32 %v655, %v655
    %v1193 = vmul.f32 %v658, %v658
    %v1194 = vmul.f32 %v663, %v663
    %v1195 = vmul.f32 %v666, %v666
    %v1196 = vmul.f32 %v671, %v671
    %v1197 = vmul.f32 %v674, %v674
    %v1198 = vsel %vm998, %v1134, 0.0
    %v1199 = vsel %vm998, %v1135, 0.0
    %v1200 = vadd.f32 %v1198, %v1199
    %v1201 = vsel %vm998, %v1136, 0.0
    %v1202 = vadd.f32 %v1200, %v1201
    %v1203 = vsel %vm998, %v1137, 0.0
    %v1204 = vadd.f32 %v1202, %v1203
    %v1205 = vsel %vm998, %v1138, 0.0
    %v1206 = vadd.f32 %v1204, %v1205
    %v1207 = vsel %vm998, %v1139, 0.0
    %v1208 = vadd.f32 %v1206, %v1207
    %v1209 = vsel %vm998, %v1140, 0.0
    %v1210 = vadd.f32 %v1208, %v1209
    %v1211 = vsel %vm998, %v1141, 0.0
    %v1212 = vadd.f32 %v1210, %v1211
    %v1213 = vsel %vm998, %v1142, 0.0
    %v1214 = vadd.f32 %v1212, %v1213
    %v1215 = vsel %vm998, %v1143, 0.0
    %v1216 = vadd.f32 %v1214, %v1215
    %v1217 = vsel %vm998, %v1144, 0.0
    %v1218 = vadd.f32 %v1216, %v1217
    %v1219 = vsel %vm998, %v1145, 0.0
    %v1220 = vadd.f32 %v1218, %v1219
    %v1221 = vsel %vm998, %v1146, 0.0
    %v1222 = vadd.f32 %v1220, %v1221
    %v1223 = vsel %vm998, %v1147, 0.0
    %v1224 = vadd.f32 %v1222, %v1223
    %v1225 = vsel %vm998, %v1148, 0.0
    %v1226 = vadd.f32 %v1224, %v1225
    %v1227 = vsel %vm998, %v1149, 0.0
    %v1228 = vadd.f32 %v1226, %v1227
    %v1229 = vsel %vm998, %v1150, 0.0
    %v1230 = vadd.f32 %v1228, %v1229
    %v1231 = vsel %vm998, %v1151, 0.0
    %v1232 = vadd.f32 %v1230, %v1231
    %v1233 = vsel %vm998, %v1152, 0.0
    %v1234 = vadd.f32 %v1232, %v1233
    %v1235 = vsel %vm998, %v1153, 0.0
    %v1236 = vadd.f32 %v1234, %v1235
    %v1237 = vsel %vm998, %v1154, 0.0
    %v1238 = vadd.f32 %v1236, %v1237
    %v1239 = vsel %vm998, %v1155, 0.0
    %v1240 = vadd.f32 %v1238, %v1239
    %v1241 = vsel %vm998, %v1156, 0.0
    %v1242 = vadd.f32 %v1240, %v1241
    %v1243 = vsel %vm998, %v1157, 0.0
    %v1244 = vadd.f32 %v1242, %v1243
    %v1245 = vsel %vm998, %v1158, 0.0
    %v1246 = vadd.f32 %v1244, %v1245
    %v1247 = vsel %vm998, %v1159, 0.0
    %v1248 = vadd.f32 %v1246, %v1247
    %v1249 = vsel %vm998, %v1160, 0.0
    %v1250 = vadd.f32 %v1248, %v1249
    %v1251 = vsel %vm998, %v1161, 0.0
    %v1252 = vadd.f32 %v1250, %v1251
    %v1253 = vsel %vm998, %v1162, 0.0
    %v1254 = vadd.f32 %v1252, %v1253
    %v1255 = vsel %vm998, %v1163, 0.0
    %v1256 = vadd.f32 %v1254, %v1255
    %v1257 = vsel %vm998, %v1164, 0.0
    %v1258 = vadd.f32 %v1256, %v1257
    %v1259 = vsel %vm998, %v1165, 0.0
    %v1260 = vadd.f32 %v1258, %v1259
    %v1261 = vsel %vm998, %v1166, 0.0
    %v1262 = vadd.f32 %v1260, %v1261
    %v1263 = vsel %vm998, %v1167, 0.0
    %v1264 = vadd.f32 %v1262, %v1263
    %v1265 = vsel %vm998, %v1168, 0.0
    %v1266 = vadd.f32 %v1264, %v1265
    %v1267 = vsel %vm998, %v1169, 0.0
    %v1268 = vadd.f32 %v1266, %v1267
    %v1269 = vsel %vm998, %v1170, 0.0
    %v1270 = vadd.f32 %v1268, %v1269
    %v1271 = vsel %vm998, %v1171, 0.0
    %v1272 = vadd.f32 %v1270, %v1271
    %v1273 = vsel %vm998, %v1172, 0.0
    %v1274 = vadd.f32 %v1272, %v1273
    %v1275 = vsel %vm998, %v1173, 0.0
    %v1276 = vadd.f32 %v1274, %v1275
    %v1277 = vsel %vm998, %v1174, 0.0
    %v1278 = vadd.f32 %v1276, %v1277
    %v1279 = vsel %vm998, %v1175, 0.0
    %v1280 = vadd.f32 %v1278, %v1279
    %v1281 = vsel %vm998, %v1176, 0.0
    %v1282 = vadd.f32 %v1280, %v1281
    %v1283 = vsel %vm998, %v1177, 0.0
    %v1284 = vadd.f32 %v1282, %v1283
    %v1285 = vsel %vm998, %v1178, 0.0
    %v1286 = vadd.f32 %v1284, %v1285
    %v1287 = vsel %vm998, %v1179, 0.0
    %v1288 = vadd.f32 %v1286, %v1287
    %v1289 = vsel %vm998, %v1180, 0.0
    %v1290 = vadd.f32 %v1288, %v1289
    %v1291 = vsel %vm998, %v1181, 0.0
    %v1292 = vadd.f32 %v1290, %v1291
    %v1293 = vsel %vm998, %v1182, 0.0
    %v1294 = vadd.f32 %v1292, %v1293
    %v1295 = vsel %vm998, %v1183, 0.0
    %v1296 = vadd.f32 %v1294, %v1295
    %v1297 = vsel %vm998, %v1184, 0.0
    %v1298 = vadd.f32 %v1296, %v1297
    %v1299 = vsel %vm998, %v1185, 0.0
    %v1300 = vadd.f32 %v1298, %v1299
    %v1301 = vsel %vm998, %v1186, 0.0
    %v1302 = vadd.f32 %v1300, %v1301
    %v1303 = vsel %vm998, %v1187, 0.0
    %v1304 = vadd.f32 %v1302, %v1303
    %v1305 = vsel %vm998, %v1188, 0.0
    %v1306 = vadd.f32 %v1304, %v1305
    %v1307 = vsel %vm998, %v1189, 0.0
    %v1308 = vadd.f32 %v1306, %v1307
    %v1309 = vsel %vm998, %v1190, 0.0
    %v1310 = vadd.f32 %v1308, %v1309
    %v1311 = vsel %vm998, %v1191, 0.0
    %v1312 = vadd.f32 %v1310, %v1311
    %v1313 = vsel %vm998, %v1192, 0.0
    %v1314 = vadd.f32 %v1312, %v1313
    %v1315 = vsel %vm998, %v1193, 0.0
    %v1316 = vadd.f32 %v1314, %v1315
    %v1317 = vsel %vm998, %v1194, 0.0
    %v1318 = vadd.f32 %v1316, %v1317
    %v1319 = vsel %vm998, %v1195, 0.0
    %v1320 = vadd.f32 %v1318, %v1319
    %v1321 = vsel %vm998, %v1196, 0.0
    %v1322 = vadd.f32 %v1320, %v1321
    %v1323 = vsel %vm998, %v1197, 0.0
    %v1324 = vadd.f32 %v1322, %v1323
    %v1325 = vrot.slane %v1324, 4
    %v1326 = vadd.f32 %v1324, %v1325
    %v1327 = vrot.slane %v1326, 2
    %v1328 = vadd.f32 %v1326, %v1327
    %v1329 = vrot.slane %v1328, 1
    %v1330 = vadd.f32 %v1328, %v1329
    %1331 = vst.msk [vmem:[#allocation11] sm:$0x1] %vm1132, %v1330
    %v1332 = vld [vmem:[#allocation7] sm:$0xf]
    %v1334 = vsel %vm384, %v1332, 0
    %1336 = vmatprep.subr.bf16.mxu0 0
    %1337 = vmatpush1.bf16.msra.mxu0 %v1334
    %1338 = vmatprep.subr.bf16.mxu0 0
    %1339 = vmatpush1.bf16.msra.mxu0 0
    %1340 = vmatprep.subr.bf16.mxu0 0
    %1341 = vmatpush1.bf16.msra.mxu0 0
    %1342 = vmatprep.subr.bf16.mxu0 0
    %1343 = vmatpush1.bf16.msra.mxu0 0
    %1344 = vmatprep.subr.bf16.mxu0 0
    %1345 = vmatpush1.bf16.msra.mxu0 0
    %1346 = vmatprep.subr.bf16.mxu0 0
    %1347 = vmatpush1.bf16.msra.mxu0 0
    %1348 = vmatprep.subr.bf16.mxu0 0
    %1349 = vmatpush1.bf16.msra.mxu0 0
    %1350 = vmatprep.subr.bf16.mxu0 0
    %1351 = vmatpush1.bf16.msra.mxu0 0
    %1352 = vmatprep.subr.bf16.mxu0 0
    %1353 = vmatpush1.bf16.msra.mxu0 0
    %1354 = vmatprep.subr.bf16.mxu0 0
    %1355 = vmatpush1.bf16.msra.mxu0 0
    %1356 = vmatprep.subr.bf16.mxu0 0
    %1357 = vmatpush1.bf16.msra.mxu0 0
    %1358 = vmatprep.subr.bf16.mxu0 0
    %1359 = vmatpush1.bf16.msra.mxu0 0
    %1360 = vmatprep.subr.bf16.mxu0 0
    %1361 = vmatpush1.bf16.msra.mxu0 0
    %1362 = vmatprep.subr.bf16.mxu0 0
    %1363 = vmatpush1.bf16.msra.mxu0 0
    %1364 = vmatprep.subr.bf16.mxu0 0
    %1365 = vmatpush1.bf16.msra.mxu0 0
    %1366 = vmatprep.subr.bf16.mxu0 0
    %1367 = vmatpush1.bf16.msra.mxu0 0
    %1368 = vmatprep.mubr.bf16.mxu0 0
    %1369 = vmatmul.mubr.bf16.gmra.mrb[0].mxu0 %v289
    %v1370 = vpop.f32.mrb[0].mxu0
    %v1371 = vadd.f32 0.0, %v1370
    %v1372 = vpop.f32.mrb[0].mxu0
    %v1373 = vpop.f32.mrb[0].mxu0
    %v1374 = vadd.f32 0.0, %v1373
    %v1375 = vpop.f32.mrb[0].mxu0
    %1376 = vmatprep.mubr.bf16.mxu0 0
    %1377 = vmatmul.mubr.bf16.gmra.mrb[0].mxu0 %v292
    %v1378 = vpop.f32.mrb[0].mxu0
    %v1379 = vadd.f32 0.0, %v1378
    %v1380 = vpop.f32.mrb[0].mxu0
    %v1381 = vpop.f32.mrb[0].mxu0
    %v1382 = vadd.f32 0.0, %v1381
    %v1383 = vpop.f32.mrb[0].mxu0
    %1384 = vmatprep.mubr.bf16.mxu0 0
    %1385 = vmatmul.mubr.bf16.gmra.mrb[0].mxu0 %v295
    %v1386 = vpop.f32.mrb[0].mxu0
    %v1387 = vadd.f32 0.0, %v1386
    %v1388 = vpop.f32.mrb[0].mxu0
    %v1389 = vpop.f32.mrb[0].mxu0
    %v1390 = vadd.f32 0.0, %v1389
    %v1391 = vpop.f32.mrb[0].mxu0
    %1392 = vmatprep.mubr.bf16.mxu0 0
    %1393 = vmatmul.mubr.bf16.gmra.mrb[0].mxu0 %v298
    %v1394 = vpop.f32.mrb[0].mxu0
    %v1395 = vadd.f32 0.0, %v1394
    %v1396 = vpop.f32.mrb[0].mxu0
    %v1397 = vpop.f32.mrb[0].mxu0
    %v1398 = vadd.f32 0.0, %v1397
    %v1399 = vpop.f32.mrb[0].mxu0
    %1400 = vmatprep.mubr.bf16.mxu0 0
    %1401 = vmatmul.mubr.bf16.gmra.mrb[0].mxu0 %v301
    %v1402 = vpop.f32.mrb[0].mxu0
    %v1403 = vadd.f32 0.0, %v1402
    %v1404 = vpop.f32.mrb[0].mxu0
    %v1405 = vpop.f32.mrb[0].mxu0
    %v1406 = vadd.f32 0.0, %v1405
    %v1407 = vpop.f32.mrb[0].mxu0
    %1408 = vmatprep.mubr.bf16.mxu0 0
    %1409 = vmatmul.mubr.bf16.gmra.mrb[0].mxu0 %v304
    %v1410 = vpop.f32.mrb[0].mxu0
    %v1411 = vadd.f32 0.0, %v1410
    %v1412 = vpop.f32.mrb[0].mxu0
    %v1413 = vpop.f32.mrb[0].mxu0
    %v1414 = vadd.f32 0.0, %v1413
    %v1415 = vpop.f32.mrb[0].mxu0
    %1416 = vmatprep.mubr.bf16.mxu0 0
    %1417 = vmatmul.mubr.bf16.gmra.mrb[0].mxu0 %v307
    %v1418 = vpop.f32.mrb[0].mxu0
    %v1419 = vadd.f32 0.0, %v1418
    %v1420 = vpop.f32.mrb[0].mxu0
    %v1421 = vpop.f32.mrb[0].mxu0
    %v1422 = vadd.f32 0.0, %v1421
    %v1423 = vpop.f32.mrb[0].mxu0
    %1424 = vmatprep.mubr.bf16.mxu0 0
    %1425 = vmatmul.mubr.bf16.gmra.mrb[0].mxu0 %v310
    %v1426 = vpop.f32.mrb[0].mxu0
    %v1427 = vadd.f32 0.0, %v1426
    %v1428 = vpop.f32.mrb[0].mxu0
    %v1429 = vpop.f32.mrb[0].mxu0
    %v1430 = vadd.f32 0.0, %v1429
    %v1431 = vpop.f32.mrb[0].mxu0
    %1432 = vmatprep.mubr.bf16.mxu0 0
    %1433 = vmatmul.mubr.bf16.gmra.mrb[0].mxu0 %v313
    %v1434 = vpop.f32.mrb[0].mxu0
    %v1435 = vadd.f32 0.0, %v1434
    %v1436 = vpop.f32.mrb[0].mxu0
    %v1437 = vpop.f32.mrb[0].mxu0
    %v1438 = vadd.f32 0.0, %v1437
    %v1439 = vpop.f32.mrb[0].mxu0
    %1440 = vmatprep.mubr.bf16.mxu0 0
    %1441 = vmatmul.mubr.bf16.gmra.mrb[0].mxu0 %v316
    %v1442 = vpop.f32.mrb[0].mxu0
    %v1443 = vadd.f32 0.0, %v1442
    %v1444 = vpop.f32.mrb[0].mxu0
    %v1445 = vpop.f32.mrb[0].mxu0
    %v1446 = vadd.f32 0.0, %v1445
    %v1447 = vpop.f32.mrb[0].mxu0
    %1448 = vmatprep.mubr.bf16.mxu0 0
    %1449 = vmatmul.mubr.bf16.gmra.mrb[0].mxu0 %v319
    %v1450 = vpop.f32.mrb[0].mxu0
    %v1451 = vadd.f32 0.0, %v1450
    %v1452 = vpop.f32.mrb[0].mxu0
    %v1453 = vpop.f32.mrb[0].mxu0
    %v1454 = vadd.f32 0.0, %v1453
    %v1455 = vpop.f32.mrb[0].mxu0
    %1456 = vmatprep.mubr.bf16.mxu0 0
    %1457 = vmatmul.mubr.bf16.gmra.mrb[0].mxu0 %v322
    %v1458 = vpop.f32.mrb[0].mxu0
    %v1459 = vadd.f32 0.0, %v1458
    %v1460 = vpop.f32.mrb[0].mxu0
    %v1461 = vpop.f32.mrb[0].mxu0
    %v1462 = vadd.f32 0.0, %v1461
    %v1463 = vpop.f32.mrb[0].mxu0
    %1464 = vmatprep.mubr.bf16.mxu0 0
    %1465 = vmatmul.mubr.bf16.gmra.mrb[0].mxu0 %v325
    %v1466 = vpop.f32.mrb[0].mxu0
    %v1467 = vadd.f32 0.0, %v1466
    %v1468 = vpop.f32.mrb[0].mxu0
    %v1469 = vpop.f32.mrb[0].mxu0
    %v1470 = vadd.f32 0.0, %v1469
    %v1471 = vpop.f32.mrb[0].mxu0
    %1472 = vmatprep.mubr.bf16.mxu0 0
    %1473 = vmatmul.mubr.bf16.gmra.mrb[0].mxu0 %v328
    %v1474 = vpop.f32.mrb[0].mxu0
    %v1475 = vadd.f32 0.0, %v1474
    %v1476 = vpop.f32.mrb[0].mxu0
    %v1477 = vpop.f32.mrb[0].mxu0
    %v1478 = vadd.f32 0.0, %v1477
    %v1479 = vpop.f32.mrb[0].mxu0
    %1480 = vmatprep.mubr.bf16.mxu0 0
    %1481 = vmatmul.mubr.bf16.gmra.mrb[0].mxu0 %v331
    %v1482 = vpop.f32.mrb[0].mxu0
    %v1483 = vadd.f32 0.0, %v1482
    %v1484 = vpop.f32.mrb[0].mxu0
    %v1485 = vpop.f32.mrb[0].mxu0
    %v1486 = vadd.f32 0.0, %v1485
    %v1487 = vpop.f32.mrb[0].mxu0
    %1488 = vmatprep.mubr.bf16.mxu0 0
    %1489 = vmatmul.mubr.bf16.gmra.mrb[0].mxu0 %v334
    %v1490 = vpop.f32.mrb[0].mxu0
    %v1491 = vadd.f32 0.0, %v1490
    %v1492 = vpop.f32.mrb[0].mxu0
    %v1493 = vpop.f32.mrb[0].mxu0
    %v1494 = vadd.f32 0.0, %v1493
    %v1495 = vpop.f32.mrb[0].mxu0
    %1496 = vmatprep.mubr.bf16.mxu0 0
    %1497 = vmatmul.mubr.bf16.gmra.mrb[0].mxu0 %v337
    %v1498 = vpop.f32.mrb[0].mxu0
    %v1499 = vadd.f32 0.0, %v1498
    %v1500 = vpop.f32.mrb[0].mxu0
    %v1501 = vpop.f32.mrb[0].mxu0
    %v1502 = vadd.f32 0.0, %v1501
    %v1503 = vpop.f32.mrb[0].mxu0
    %1504 = vmatprep.mubr.bf16.mxu0 0
    %1505 = vmatmul.mubr.bf16.gmra.mrb[0].mxu0 %v340
    %v1506 = vpop.f32.mrb[0].mxu0
    %v1507 = vadd.f32 0.0, %v1506
    %v1508 = vpop.f32.mrb[0].mxu0
    %v1509 = vpop.f32.mrb[0].mxu0
    %v1510 = vadd.f32 0.0, %v1509
    %v1511 = vpop.f32.mrb[0].mxu0
    %1512 = vmatprep.mubr.bf16.mxu0 0
    %1513 = vmatmul.mubr.bf16.gmra.mrb[0].mxu0 %v343
    %v1514 = vpop.f32.mrb[0].mxu0
    %v1515 = vadd.f32 0.0, %v1514
    %v1516 = vpop.f32.mrb[0].mxu0
    %v1517 = vpop.f32.mrb[0].mxu0
    %v1518 = vadd.f32 0.0, %v1517
    %v1519 = vpop.f32.mrb[0].mxu0
    %1520 = vmatprep.mubr.bf16.mxu0 0
    %1521 = vmatmul.mubr.bf16.gmra.mrb[0].mxu0 %v346
    %v1522 = vpop.f32.mrb[0].mxu0
    %v1523 = vadd.f32 0.0, %v1522
    %v1524 = vpop.f32.mrb[0].mxu0
    %v1525 = vpop.f32.mrb[0].mxu0
    %v1526 = vadd.f32 0.0, %v1525
    %v1527 = vpop.f32.mrb[0].mxu0
    %1528 = vmatprep.mubr.bf16.mxu0 0
    %1529 = vmatmul.mubr.bf16.gmra.mrb[0].mxu0 %v349
    %v1530 = vpop.f32.mrb[0].mxu0
    %v1531 = vadd.f32 0.0, %v1530
    %v1532 = vpop.f32.mrb[0].mxu0
    %v1533 = vpop.f32.mrb[0].mxu0
    %v1534 = vadd.f32 0.0, %v1533
    %v1535 = vpop.f32.mrb[0].mxu0
    %1536 = vmatprep.mubr.bf16.mxu0 0
    %1537 = vmatmul.mubr.bf16.gmra.mrb[0].mxu0 %v352
    %v1538 = vpop.f32.mrb[0].mxu0
    %v1539 = vadd.f32 0.0, %v1538
    %v1540 = vpop.f32.mrb[0].mxu0
    %v1541 = vpop.f32.mrb[0].mxu0
    %v1542 = vadd.f32 0.0, %v1541
    %v1543 = vpop.f32.mrb[0].mxu0
    %1544 = vmatprep.mubr.bf16.mxu0 0
    %1545 = vmatmul.mubr.bf16.gmra.mrb[0].mxu0 %v355
    %v1546 = vpop.f32.mrb[0].mxu0
    %v1547 = vadd.f32 0.0, %v1546
    %v1548 = vpop.f32.mrb[0].mxu0
    %v1549 = vpop.f32.mrb[0].mxu0
    %v1550 = vadd.f32 0.0, %v1549
    %v1551 = vpop.f32.mrb[0].mxu0
    %1552 = vmatprep.mubr.bf16.mxu0 0
    %1553 = vmatmul.mubr.bf16.gmra.mrb[0].mxu0 %v358
    %v1554 = vpop.f32.mrb[0].mxu0
    %v1555 = vadd.f32 0.0, %v1554
    %v1556 = vpop.f32.mrb[0].mxu0
    %v1557 = vpop.f32.mrb[0].mxu0
    %v1558 = vadd.f32 0.0, %v1557
    %v1559 = vpop.f32.mrb[0].mxu0
    %1560 = vmatprep.mubr.bf16.mxu0 0
    %1561 = vmatmul.mubr.bf16.gmra.mrb[0].mxu0 %v361
    %v1562 = vpop.f32.mrb[0].mxu0
    %v1563 = vadd.f32 0.0, %v1562
    %v1564 = vpop.f32.mrb[0].mxu0
    %v1565 = vpop.f32.mrb[0].mxu0
    %v1566 = vadd.f32 0.0, %v1565
    %v1567 = vpop.f32.mrb[0].mxu0
    %1568 = vmatprep.mubr.bf16.mxu0 0
    %1569 = vmatmul.mubr.bf16.gmra.mrb[0].mxu0 %v364
    %v1570 = vpop.f32.mrb[0].mxu0
    %v1571 = vadd.f32 0.0, %v1570
    %v1572 = vpop.f32.mrb[0].mxu0
    %v1573 = vpop.f32.mrb[0].mxu0
    %v1574 = vadd.f32 0.0, %v1573
    %v1575 = vpop.f32.mrb[0].mxu0
    %1576 = vmatprep.mubr.bf16.mxu0 0
    %1577 = vmatmul.mubr.bf16.gmra.mrb[0].mxu0 %v367
    %v1578 = vpop.f32.mrb[0].mxu0
    %v1579 = vadd.f32 0.0, %v1578
    %v1580 = vpop.f32.mrb[0].mxu0
    %v1581 = vpop.f32.mrb[0].mxu0
    %v1582 = vadd.f32 0.0, %v1581
    %v1583 = vpop.f32.mrb[0].mxu0
    %1584 = vmatprep.mubr.bf16.mxu0 0
    %1585 = vmatmul.mubr.bf16.gmra.mrb[0].mxu0 %v370
    %v1586 = vpop.f32.mrb[0].mxu0
    %v1587 = vadd.f32 0.0, %v1586
    %v1588 = vpop.f32.mrb[0].mxu0
    %v1589 = vpop.f32.mrb[0].mxu0
    %v1590 = vadd.f32 0.0, %v1589
    %v1591 = vpop.f32.mrb[0].mxu0
    %1592 = vmatprep.mubr.bf16.mxu0 0
    %1593 = vmatmul.mubr.bf16.gmra.mrb[0].mxu0 %v373
    %v1594 = vpop.f32.mrb[0].mxu0
    %v1595 = vadd.f32 0.0, %v1594
    %v1596 = vpop.f32.mrb[0].mxu0
    %v1597 = vpop.f32.mrb[0].mxu0
    %v1598 = vadd.f32 0.0, %v1597
    %v1599 = vpop.f32.mrb[0].mxu0
    %1600 = vmatprep.mubr.bf16.mxu0 0
    %1601 = vmatmul.mubr.bf16.gmra.mrb[0].mxu0 %v376
    %v1602 = vpop.f32.mrb[0].mxu0
    %v1603 = vadd.f32 0.0, %v1602
    %v1604 = vpop.f32.mrb[0].mxu0
    %v1605 = vpop.f32.mrb[0].mxu0
    %v1606 = vadd.f32 0.0, %v1605
    %v1607 = vpop.f32.mrb[0].mxu0
    %1608 = vmatprep.mubr.bf16.mxu0 0
    %1609 = vmatmul.mubr.bf16.gmra.mrb[0].mxu0 %v379
    %v1610 = vpop.f32.mrb[0].mxu0
    %v1611 = vadd.f32 0.0, %v1610
    %v1612 = vpop.f32.mrb[0].mxu0
    %v1613 = vpop.f32.mrb[0].mxu0
    %v1614 = vadd.f32 0.0, %v1613
    %v1615 = vpop.f32.mrb[0].mxu0
    %1616 = vmatprep.mubr.bf16.mxu0 0
    %1617 = vmatmul.mubr.bf16.gmra.mrb[0].mxu0 %v382
    %v1618 = vpop.f32.mrb[0].mxu0
    %v1619 = vadd.f32 0.0, %v1618
    %v1620 = vpop.f32.mrb[0].mxu0
    %v1621 = vpop.f32.mrb[0].mxu0
    %v1622 = vadd.f32 0.0, %v1621
    %v1623 = vpop.f32.mrb[0].mxu0
    %1624 = vdwg.mxu0
    %v1625 = vpack.c.bf16 %v1374, %v1371
    %v1626 = vpack.c.bf16 %v1382, %v1379
    %v1627 = vpack.c.bf16 %v1390, %v1387
    %v1628 = vpack.c.bf16 %v1398, %v1395
    %v1629 = vpack.c.bf16 %v1406, %v1403
    %v1630 = vpack.c.bf16 %v1414, %v1411
    %v1631 = vpack.c.bf16 %v1422, %v1419
    %v1632 = vpack.c.bf16 %v1430, %v1427
    %v1633 = vpack.c.bf16 %v1438, %v1435
    %v1634 = vpack.c.bf16 %v1446, %v1443
    %v1635 = vpack.c.bf16 %v1454, %v1451
    %v1636 = vpack.c.bf16 %v1462, %v1459
    %v1637 = vpack.c.bf16 %v1470, %v1467
    %v1638 = vpack.c.bf16 %v1478, %v1475
    %v1639 = vpack.c.bf16 %v1486, %v1483
    %v1640 = vpack.c.bf16 %v1494, %v1491
    %v1641 = vpack.c.bf16 %v1502, %v1499
    %v1642 = vpack.c.bf16 %v1510, %v1507
    %v1643 = vpack.c.bf16 %v1518, %v1515
    %v1644 = vpack.c.bf16 %v1526, %v1523
    %v1645 = vpack.c.bf16 %v1534, %v1531
    %v1646 = vpack.c.bf16 %v1542, %v1539
    %v1647 = vpack.c.bf16 %v1550, %v1547
    %v1648 = vpack.c.bf16 %v1558, %v1555
    %v1649 = vpack.c.bf16 %v1566, %v1563
    %v1650 = vpack.c.bf16 %v1574, %v1571
    %v1651 = vpack.c.bf16 %v1582, %v1579
    %v1652 = vpack.c.bf16 %v1590, %v1587
    %v1653 = vpack.c.bf16 %v1598, %v1595
    %v1654 = vpack.c.bf16 %v1606, %v1603
    %v1655 = vpack.c.bf16 %v1614, %v1611
    %v1656 = vpack.c.bf16 %v1622, %v1619
    %v1689 = vunpack.c.l.b16 %v1625
    %v1690 = vunpack.c.h.b16 %v1625
    %v1691 = vunpack.c.l.b16 %v1626
    %v1692 = vunpack.c.h.b16 %v1626
    %v1693 = vunpack.c.l.b16 %v1627
    %v1694 = vunpack.c.h.b16 %v1627
    %v1695 = vunpack.c.l.b16 %v1628
    %v1696 = vunpack.c.h.b16 %v1628
    %v1697 = vunpack.c.l.b16 %v1629
    %v1698 = vunpack.c.h.b16 %v1629
    %v1699 = vunpack.c.l.b16 %v1630
    %v1700 = vunpack.c.h.b16 %v1630
    %v1701 = vunpack.c.l.b16 %v1631
    %v1702 = vunpack.c.h.b16 %v1631
    %v1703 = vunpack.c.l.b16 %v1632
    %v1704 = vunpack.c.h.b16 %v1632
    %v1705 = vunpack.c.l.b16 %v1633
    %v1706 = vunpack.c.h.b16 %v1633
    %v1707 = vunpack.c.l.b16 %v1634
    %v1708 = vunpack.c.h.b16 %v1634
    %v1709 = vunpack.c.l.b16 %v1635
    %v1710 = vunpack.c.h.b16 %v1635
    %v1711 = vunpack.c.l.b16 %v1636
    %v1712 = vunpack.c.h.b16 %v1636
    %v1713 = vunpack.c.l.b16 %v1637
    %v1714 = vunpack.c.h.b16 %v1637
    %v1715 = vunpack.c.l.b16 %v1638
    %v1716 = vunpack.c.h.b16 %v1638
    %v1717 = vunpack.c.l.b16 %v1639
    %v1718 = vunpack.c.h.b16 %v1639
    %v1719 = vunpack.c.l.b16 %v1640
    %v1720 = vunpack.c.h.b16 %v1640
    %v1721 = vunpack.c.l.b16 %v1641
    %v1722 = vunpack.c.h.b16 %v1641
    %v1723 = vunpack.c.l.b16 %v1642
    %v1724 = vunpack.c.h.b16 %v1642
    %v1725 = vunpack.c.l.b16 %v1643
    %v1726 = vunpack.c.h.b16 %v1643
    %v1727 = vunpack.c.l.b16 %v1644
    %v1728 = vunpack.c.h.b16 %v1644
    %v1729 = vunpack.c.l.b16 %v1645
    %v1730 = vunpack.c.h.b16 %v1645
    %v1731 = vunpack.c.l.b16 %v1646
    %v1732 = vunpack.c.h.b16 %v1646
    %v1733 = vunpack.c.l.b16 %v1647
    %v1734 = vunpack.c.h.b16 %v1647
    %v1735 = vunpack.c.l.b16 %v1648
    %v1736 = vunpack.c.h.b16 %v1648
    %v1737 = vunpack.c.l.b16 %v1649
    %v1738 = vunpack.c.h.b16 %v1649
    %v1739 = vunpack.c.l.b16 %v1650
    %v1740 = vunpack.c.h.b16 %v1650
    %v1741 = vunpack.c.l.b16 %v1651
    %v1742 = vunpack.c.h.b16 %v1651
    %v1743 = vunpack.c.l.b16 %v1652
    %v1744 = vunpack.c.h.b16 %v1652
    %v1745 = vunpack.c.l.b16 %v1653
    %v1746 = vunpack.c.h.b16 %v1653
    %v1747 = vunpack.c.l.b16 %v1654
    %v1748 = vunpack.c.h.b16 %v1654
    %v1749 = vunpack.c.l.b16 %v1655
    %v1750 = vunpack.c.h.b16 %v1655
    %v1751 = vunpack.c.l.b16 %v1656
    %v1752 = vunpack.c.h.b16 %v1656
    %v1753 = vpack.c.b16 %v1689, %v1689
    %v1754 = vpack.c.b16 %v1690, %v1690
    %v1755 = vpack.c.b16 %v1691, %v1691
    %v1756 = vpack.c.b16 %v1692, %v1692
    %v1757 = vpack.c.b16 %v1693, %v1693
    %v1758 = vpack.c.b16 %v1694, %v1694
    %v1759 = vpack.c.b16 %v1695, %v1695
    %v1760 = vpack.c.b16 %v1696, %v1696
    %v1761 = vpack.c.b16 %v1697, %v1697
    %v1762 = vpack.c.b16 %v1698, %v1698
    %v1763 = vpack.c.b16 %v1699, %v1699
    %v1764 = vpack.c.b16 %v1700, %v1700
    %v1765 = vpack.c.b16 %v1701, %v1701
    %v1766 = vpack.c.b16 %v1702, %v1702
    %v1767 = vpack.c.b16 %v1703, %v1703
    %v1768 = vpack.c.b16 %v1704, %v1704
    %v1769 = vpack.c.b16 %v1705, %v1705
    %v1770 = vpack.c.b16 %v1706, %v1706
    %v1771 = vpack.c.b16 %v1707, %v1707
    %v1772 = vpack.c.b16 %v1708, %v1708
    %v1773 = vpack.c.b16 %v1709, %v1709
    %v1774 = vpack.c.b16 %v1710, %v1710
    %v1775 = vpack.c.b16 %v1711, %v1711
    %v1776 = vpack.c.b16 %v1712, %v1712
    %v1777 = vpack.c.b16 %v1713, %v1713
    %v1778 = vpack.c.b16 %v1714, %v1714
    %v1779 = vpack.c.b16 %v1715, %v1715
    %v1780 = vpack.c.b16 %v1716, %v1716
    %v1781 = vpack.c.b16 %v1717, %v1717
    %v1782 = vpack.c.b16 %v1718, %v1718
    %v1783 = vpack.c.b16 %v1719, %v1719
    %v1784 = vpack.c.b16 %v1720, %v1720
    %v1785 = vpack.c.b16 %v1721, %v1721
    %v1786 = vpack.c.b16 %v1722, %v1722
    %v1787 = vpack.c.b16 %v1723, %v1723
    %v1788 = vpack.c.b16 %v1724, %v1724
    %v1789 = vpack.c.b16 %v1725, %v1725
    %v1790 = vpack.c.b16 %v1726, %v1726
    %v1791 = vpack.c.b16 %v1727, %v1727
    %v1792 = vpack.c.b16 %v1728, %v1728
    %v1793 = vpack.c.b16 %v1729, %v1729
    %v1794 = vpack.c.b16 %v1730, %v1730
    %v1795 = vpack.c.b16 %v1731, %v1731
    %v1796 = vpack.c.b16 %v1732, %v1732
    %v1797 = vpack.c.b16 %v1733, %v1733
    %v1798 = vpack.c.b16 %v1734, %v1734
    %v1799 = vpack.c.b16 %v1735, %v1735
    %v1800 = vpack.c.b16 %v1736, %v1736
    %v1801 = vpack.c.b16 %v1737, %v1737
    %v1802 = vpack.c.b16 %v1738, %v1738
    %v1803 = vpack.c.b16 %v1739, %v1739
    %v1804 = vpack.c.b16 %v1740, %v1740
    %v1805 = vpack.c.b16 %v1741, %v1741
    %v1806 = vpack.c.b16 %v1742, %v1742
    %v1807 = vpack.c.b16 %v1743, %v1743
    %v1808 = vpack.c.b16 %v1744, %v1744
    %v1809 = vpack.c.b16 %v1745, %v1745
    %v1810 = vpack.c.b16 %v1746, %v1746
    %v1811 = vpack.c.b16 %v1747, %v1747
    %v1812 = vpack.c.b16 %v1748, %v1748
    %v1813 = vpack.c.b16 %v1749, %v1749
    %v1814 = vpack.c.b16 %v1750, %v1750
    %v1815 = vpack.c.b16 %v1751, %v1751
    %v1816 = vpack.c.b16 %v1752, %v1752
    %vm1881 = vcmask 125952
    %1882 = vst.msk [vmem:[#allocation12] sm:$0xf] %vm1881, %v1753
    %1883 = vst.msk [vmem:[#allocation12 + $0x4] sm:$0xf] %vm1881, %v1754
    %1884 = vst.msk [vmem:[#allocation12 + $0x8] sm:$0xf] %vm1881, %v1755
    %1885 = vst.msk [vmem:[#allocation12 + $0xc] sm:$0xf] %vm1881, %v1756
    %1886 = vst.msk [vmem:[#allocation12 + $0x10] sm:$0xf] %vm1881, %v1757
    %1887 = vst.msk [vmem:[#allocation12 + $0x14] sm:$0xf] %vm1881, %v1758
    %1888 = vst.msk [vmem:[#allocation12 + $0x18] sm:$0xf] %vm1881, %v1759
    %1889 = vst.msk [vmem:[#allocation12 + $0x1c] sm:$0xf] %vm1881, %v1760
    %1890 = vst.msk [vmem:[#allocation12 + $0x20] sm:$0xf] %vm1881, %v1761
    %1891 = vst.msk [vmem:[#allocation12 + $0x24] sm:$0xf] %vm1881, %v1762
    %1892 = vst.msk [vmem:[#allocation12 + $0x28] sm:$0xf] %vm1881, %v1763
    %1893 = vst.msk [vmem:[#allocation12 + $0x2c] sm:$0xf] %vm1881, %v1764
    %1894 = vst.msk [vmem:[#allocation12 + $0x30] sm:$0xf] %vm1881, %v1765
    %1895 = vst.msk [vmem:[#allocation12 + $0x34] sm:$0xf] %vm1881, %v1766
    %1896 = vst.msk [vmem:[#allocation12 + $0x38] sm:$0xf] %vm1881, %v1767
    %1897 = vst.msk [vmem:[#allocation12 + $0x3c] sm:$0xf] %vm1881, %v1768
    %1898 = vst.msk [vmem:[#allocation12 + $0x40] sm:$0xf] %vm1881, %v1769
    %1899 = vst.msk [vmem:[#allocation12 + $0x44] sm:$0xf] %vm1881, %v1770
    %1900 = vst.msk [vmem:[#allocation12 + $0x48] sm:$0xf] %vm1881, %v1771
    %1901 = vst.msk [vmem:[#allocation12 + $0x4c] sm:$0xf] %vm1881, %v1772
    %1902 = vst.msk [vmem:[#allocation12 + $0x50] sm:$0xf] %vm1881, %v1773
    %1903 = vst.msk [vmem:[#allocation12 + $0x54] sm:$0xf] %vm1881, %v1774
    %1904 = vst.msk [vmem:[#allocation12 + $0x58] sm:$0xf] %vm1881, %v1775
    %1905 = vst.msk [vmem:[#allocation12 + $0x5c] sm:$0xf] %vm1881, %v1776
    %1906 = vst.msk [vmem:[#allocation12 + $0x60] sm:$0xf] %vm1881, %v1777
    %1907 = vst.msk [vmem:[#allocation12 + $0x64] sm:$0xf] %vm1881, %v1778
    %1908 = vst.msk [vmem:[#allocation12 + $0x68] sm:$0xf] %vm1881, %v1779
    %1909 = vst.msk [vmem:[#allocation12 + $0x6c] sm:$0xf] %vm1881, %v1780
    %1910 = vst.msk [vmem:[#allocation12 + $0x70] sm:$0xf] %vm1881, %v1781
    %1911 = vst.msk [vmem:[#allocation12 + $0x74] sm:$0xf] %vm1881, %v1782
    %1912 = vst.msk [vmem:[#allocation12 + $0x78] sm:$0xf] %vm1881, %v1783
    %1913 = vst.msk [vmem:[#allocation12 + $0x7c] sm:$0xf] %vm1881, %v1784
    %1914 = vst.msk [vmem:[#allocation12 + $0x80] sm:$0xf] %vm1881, %v1785
    %1915 = vst.msk [vmem:[#allocation12 + $0x84] sm:$0xf] %vm1881, %v1786
    %1916 = vst.msk [vmem:[#allocation12 + $0x88] sm:$0xf] %vm1881, %v1787
    %1917 = vst.msk [vmem:[#allocation12 + $0x8c] sm:$0xf] %vm1881, %v1788
    %1918 = vst.msk [vmem:[#allocation12 + $0x90] sm:$0xf] %vm1881, %v1789
    %1919 = vst.msk [vmem:[#allocation12 + $0x94] sm:$0xf] %vm1881, %v1790
    %1920 = vst.msk [vmem:[#allocation12 + $0x98] sm:$0xf] %vm1881, %v1791
    %1921 = vst.msk [vmem:[#allocation12 + $0x9c] sm:$0xf] %vm1881, %v1792
    %1922 = vst.msk [vmem:[#allocation12 + $0xa0] sm:$0xf] %vm1881, %v1793
    %1923 = vst.msk [vmem:[#allocation12 + $0xa4] sm:$0xf] %vm1881, %v1794
    %1924 = vst.msk [vmem:[#allocation12 + $0xa8] sm:$0xf] %vm1881, %v1795
    %1925 = vst.msk [vmem:[#allocation12 + $0xac] sm:$0xf] %vm1881, %v1796
    %1926 = vst.msk [vmem:[#allocation12 + $0xb0] sm:$0xf] %vm1881, %v1797
    %1927 = vst.msk [vmem:[#allocation12 + $0xb4] sm:$0xf] %vm1881, %v1798
    %1928 = vst.msk [vmem:[#allocation12 + $0xb8] sm:$0xf] %vm1881, %v1799
    %1929 = vst.msk [vmem:[#allocation12 + $0xbc] sm:$0xf] %vm1881, %v1800
    %1930 = vst.msk [vmem:[#allocation12 + $0xc0] sm:$0xf] %vm1881, %v1801
    %1931 = vst.msk [vmem:[#allocation12 + $0xc4] sm:$0xf] %vm1881, %v1802
    %1932 = vst.msk [vmem:[#allocation12 + $0xc8] sm:$0xf] %vm1881, %v1803
    %1933 = vst.msk [vmem:[#allocation12 + $0xcc] sm:$0xf] %vm1881, %v1804
    %1934 = vst.msk [vmem:[#allocation12 + $0xd0] sm:$0xf] %vm1881, %v1805
    %1935 = vst.msk [vmem:[#allocation12 + $0xd4] sm:$0xf] %vm1881, %v1806
    %1936 = vst.msk [vmem:[#allocation12 + $0xd8] sm:$0xf] %vm1881, %v1807
    %1937 = vst.msk [vmem:[#allocation12 + $0xdc] sm:$0xf] %vm1881, %v1808
    %1938 = vst.msk [vmem:[#allocation12 + $0xe0] sm:$0xf] %vm1881, %v1809
    %1939 = vst.msk [vmem:[#allocation12 + $0xe4] sm:$0xf] %vm1881, %v1810
    %1940 = vst.msk [vmem:[#allocation12 + $0xe8] sm:$0xf] %vm1881, %v1811
    %1941 = vst.msk [vmem:[#allocation12 + $0xec] sm:$0xf] %vm1881, %v1812
    %1942 = vst.msk [vmem:[#allocation12 + $0xf0] sm:$0xf] %vm1881, %v1813
    %1943 = vst.msk [vmem:[#allocation12 + $0xf4] sm:$0xf] %vm1881, %v1814
    %1944 = vst.msk [vmem:[#allocation12 + $0xf8] sm:$0xf] %vm1881, %v1815
    %1945 = vst.msk [vmem:[#allocation12 + $0xfc] sm:$0xf] %vm1881, %v1816
    %vm1946 = vcmask 130048
    %v1947 = vsel %vm1946, %v1371, 0.0
    %v1948 = vsel %vm1946, %v1374, 0.0
    %v1949 = vadd.f32 %v1947, %v1948
    %v1950 = vsel %vm1946, %v1379, 0.0
    %v1951 = vadd.f32 %v1949, %v1950
    %v1952 = vsel %vm1946, %v1382, 0.0
    %v1953 = vadd.f32 %v1951, %v1952
    %v1954 = vsel %vm1946, %v1387, 0.0
    %v1955 = vadd.f32 %v1953, %v1954
    %v1956 = vsel %vm1946, %v1390, 0.0
    %v1957 = vadd.f32 %v1955, %v1956
    %v1958 = vsel %vm1946, %v1395, 0.0
    %v1959 = vadd.f32 %v1957, %v1958
    %v1960 = vsel %vm1946, %v1398, 0.0
    %v1961 = vadd.f32 %v1959, %v1960
    %v1962 = vsel %vm1946, %v1403, 0.0
    %v1963 = vadd.f32 %v1961, %v1962
    %v1964 = vsel %vm1946, %v1406, 0.0
    %v1965 = vadd.f32 %v1963, %v1964
    %v1966 = vsel %vm1946, %v1411, 0.0
    %v1967 = vadd.f32 %v1965, %v1966
    %v1968 = vsel %vm1946, %v1414, 0.0
    %v1969 = vadd.f32 %v1967, %v1968
    %v1970 = vsel %vm1946, %v1419, 0.0
    %v1971 = vadd.f32 %v1969, %v1970
    %v1972 = vsel %vm1946, %v1422, 0.0
    %v1973 = vadd.f32 %v1971, %v1972
    %v1974 = vsel %vm1946, %v1427, 0.0
    %v1975 = vadd.f32 %v1973, %v1974
    %v1976 = vsel %vm1946, %v1430, 0.0
    %v1977 = vadd.f32 %v1975, %v1976
    %v1978 = vsel %vm1946, %v1435, 0.0
    %v1979 = vadd.f32 %v1977, %v1978
    %v1980 = vsel %vm1946, %v1438, 0.0
    %v1981 = vadd.f32 %v1979, %v1980
    %v1982 = vsel %vm1946, %v1443, 0.0
    %v1983 = vadd.f32 %v1981, %v1982
    %v1984 = vsel %vm1946, %v1446, 0.0
    %v1985 = vadd.f32 %v1983, %v1984
    %v1986 = vsel %vm1946, %v1451, 0.0
    %v1987 = vadd.f32 %v1985, %v1986
    %v1988 = vsel %vm1946, %v1454, 0.0
    %v1989 = vadd.f32 %v1987, %v1988
    %v1990 = vsel %vm1946, %v1459, 0.0
    %v1991 = vadd.f32 %v1989, %v1990
    %v1992 = vsel %vm1946, %v1462, 0.0
    %v1993 = vadd.f32 %v1991, %v1992
    %v1994 = vsel %vm1946, %v1467, 0.0
    %v1995 = vadd.f32 %v1993, %v1994
    %v1996 = vsel %vm1946, %v1470, 0.0
    %v1997 = vadd.f32 %v1995, %v1996
    %v1998 = vsel %vm1946, %v1475, 0.0
    %v1999 = vadd.f32 %v1997, %v1998
    %v2000 = vsel %vm1946, %v1478, 0.0
    %v2001 = vadd.f32 %v1999, %v2000
    %v2002 = vsel %vm1946, %v1483, 0.0
    %v2003 = vadd.f32 %v2001, %v2002
    %v2004 = vsel %vm1946, %v1486, 0.0
    %v2005 = vadd.f32 %v2003, %v2004
    %v2006 = vsel %vm1946, %v1491, 0.0
    %v2007 = vadd.f32 %v2005, %v2006
    %v2008 = vsel %vm1946, %v1494, 0.0
    %v2009 = vadd.f32 %v2007, %v2008
    %v2010 = vsel %vm1946, %v1499, 0.0
    %v2011 = vadd.f32 %v2009, %v2010
    %v2012 = vsel %vm1946, %v1502, 0.0
    %v2013 = vadd.f32 %v2011, %v2012
    %v2014 = vsel %vm1946, %v1507, 0.0
    %v2015 = vadd.f32 %v2013, %v2014
    %v2016 = vsel %vm1946, %v1510, 0.0
    %v2017 = vadd.f32 %v2015, %v2016
    %v2018 = vsel %vm1946, %v1515, 0.0
    %v2019 = vadd.f32 %v2017, %v2018
    %v2020 = vsel %vm1946, %v1518, 0.0
    %v2021 = vadd.f32 %v2019, %v2020
    %v2022 = vsel %vm1946, %v1523, 0.0
    %v2023 = vadd.f32 %v2021, %v2022
    %v2024 = vsel %vm1946, %v1526, 0.0
    %v2025 = vadd.f32 %v2023, %v2024
    %v2026 = vsel %vm1946, %v1531, 0.0
    %v2027 = vadd.f32 %v2025, %v2026
    %v2028 = vsel %vm1946, %v1534, 0.0
    %v2029 = vadd.f32 %v2027, %v2028
    %v2030 = vsel %vm1946, %v1539, 0.0
    %v2031 = vadd.f32 %v2029, %v2030
    %v2032 = vsel %vm1946, %v1542, 0.0
    %v2033 = vadd.f32 %v2031, %v2032
    %v2034 = vsel %vm1946, %v1547, 0.0
    %v2035 = vadd.f32 %v2033, %v2034
    %v2036 = vsel %vm1946, %v1550, 0.0
    %v2037 = vadd.f32 %v2035, %v2036
    %v2038 = vsel %vm1946, %v1555, 0.0
    %v2039 = vadd.f32 %v2037, %v2038
    %v2040 = vsel %vm1946, %v1558, 0.0
    %v2041 = vadd.f32 %v2039, %v2040
    %v2042 = vsel %vm1946, %v1563, 0.0
    %v2043 = vadd.f32 %v2041, %v2042
    %v2044 = vsel %vm1946, %v1566, 0.0
    %v2045 = vadd.f32 %v2043, %v2044
    %v2046 = vsel %vm1946, %v1571, 0.0
    %v2047 = vadd.f32 %v2045, %v2046
    %v2048 = vsel %vm1946, %v1574, 0.0
    %v2049 = vadd.f32 %v2047, %v2048
    %v2050 = vsel %vm1946, %v1579, 0.0
    %v2051 = vadd.f32 %v2049, %v2050
    %v2052 = vsel %vm1946, %v1582, 0.0
    %v2053 = vadd.f32 %v2051, %v2052
    %v2054 = vsel %vm1946, %v1587, 0.0
    %v2055 = vadd.f32 %v2053, %v2054
    %v2056 = vsel %vm1946, %v1590, 0.0
    %v2057 = vadd.f32 %v2055, %v2056
    %v2058 = vsel %vm1946, %v1595, 0.0
    %v2059 = vadd.f32 %v2057, %v2058
    %v2060 = vsel %vm1946, %v1598, 0.0
    %v2061 = vadd.f32 %v2059, %v2060
    %v2062 = vsel %vm1946, %v1603, 0.0
    %v2063 = vadd.f32 %v2061, %v2062
    %v2064 = vsel %vm1946, %v1606, 0.0
    %v2065 = vadd.f32 %v2063, %v2064
    %v2066 = vsel %vm1946, %v1611, 0.0
    %v2067 = vadd.f32 %v2065, %v2066
    %v2068 = vsel %vm1946, %v1614, 0.0
    %v2069 = vadd.f32 %v2067, %v2068
    %v2070 = vsel %vm1946, %v1619, 0.0
    %v2071 = vadd.f32 %v2069, %v2070
    %v2072 = vsel %vm1946, %v1622, 0.0
    %v2073 = vadd.f32 %v2071, %v2072
    %v2074 = vrot.slane %v2073, 4
    %v2075 = vadd.f32 %v2073, %v2074
    %v2076 = vrot.slane %v2075, 2
    %v2077 = vadd.f32 %v2075, %v2076
    %v2078 = vrot.slane %v2077, 1
    %v2079 = vadd.f32 %v2077, %v2078
    %vm2080 = vcmask 122880
    %2081 = vst.msk [vmem:[#allocation14] sm:$0x1] %vm2080, %v2079
    %v2082 = vmul.f32 %v1371, %v1371
    %v2083 = vmul.f32 %v1374, %v1374
    %v2084 = vmul.f32 %v1379, %v1379
    %v2085 = vmul.f32 %v1382, %v1382
    %v2086 = vmul.f32 %v1387, %v1387
    %v2087 = vmul.f32 %v1390, %v1390
    %v2088 = vmul.f32 %v1395, %v1395
    %v2089 = vmul.f32 %v1398, %v1398
    %v2090 = vmul.f32 %v1403, %v1403
    %v2091 = vmul.f32 %v1406, %v1406
    %v2092 = vmul.f32 %v1411, %v1411
    %v2093 = vmul.f32 %v1414, %v1414
    %v2094 = vmul.f32 %v1419, %v1419
    %v2095 = vmul.f32 %v1422, %v1422
    %v2096 = vmul.f32 %v1427, %v1427
    %v2097 = vmul.f32 %v1430, %v1430
    %v2098 = vmul.f32 %v1435, %v1435
    %v2099 = vmul.f32 %v1438, %v1438
    %v2100 = vmul.f32 %v1443, %v1443
    %v2101 = vmul.f32 %v1446, %v1446
    %v2102 = vmul.f32 %v1451, %v1451
    %v2103 = vmul.f32 %v1454, %v1454
    %v2104 = vmul.f32 %v1459, %v1459
    %v2105 = vmul.f32 %v1462, %v1462
    %v2106 = vmul.f32 %v1467, %v1467
    %v2107 = vmul.f32 %v1470, %v1470
    %v2108 = vmul.f32 %v1475, %v1475
    %v2109 = vmul.f32 %v1478, %v1478
    %v2110 = vmul.f32 %v1483, %v1483
    %v2111 = vmul.f32 %v1486, %v1486
    %v2112 = vmul.f32 %v1491, %v1491
    %v2113 = vmul.f32 %v1494, %v1494
    %v2114 = vmul.f32 %v1499, %v1499
    %v2115 = vmul.f32 %v1502, %v1502
    %v2116 = vmul.f32 %v1507, %v1507
    %v2117 = vmul.f32 %v1510, %v1510
    %v2118 = vmul.f32 %v1515, %v1515
    %v2119 = vmul.f32 %v1518, %v1518
    %v2120 = vmul.f32 %v1523, %v1523
    %v2121 = vmul.f32 %v1526, %v1526
    %v2122 = vmul.f32 %v1531, %v1531
    %v2123 = vmul.f32 %v1534, %v1534
    %v2124 = vmul.f32 %v1539, %v1539
    %v2125 = vmul.f32 %v1542, %v1542
    %v2126 = vmul.f32 %v1547, %v1547
    %v2127 = vmul.f32 %v1550, %v1550
    %v2128 = vmul.f32 %v1555, %v1555
    %v2129 = vmul.f32 %v1558, %v1558
    %v2130 = vmul.f32 %v1563, %v1563
    %v2131 = vmul.f32 %v1566, %v1566
    %v2132 = vmul.f32 %v1571, %v1571
    %v2133 = vmul.f32 %v1574, %v1574
    %v2134 = vmul.f32 %v1579, %v1579
    %v2135 = vmul.f32 %v1582, %v1582
    %v2136 = vmul.f32 %v1587, %v1587
    %v2137 = vmul.f32 %v1590, %v1590
    %v2138 = vmul.f32 %v1595, %v1595
    %v2139 = vmul.f32 %v1598, %v1598
    %v2140 = vmul.f32 %v1603, %v1603
    %v2141 = vmul.f32 %v1606, %v1606
    %v2142 = vmul.f32 %v1611, %v1611
    %v2143 = vmul.f32 %v1614, %v1614
    %v2144 = vmul.f32 %v1619, %v1619
    %v2145 = vmul.f32 %v1622, %v1622
    %v2146 = vsel %vm1946, %v2082, 0.0
    %v2147 = vsel %vm1946, %v2083, 0.0
    %v2148 = vadd.f32 %v2146, %v2147
    %v2149 = vsel %vm1946, %v2084, 0.0
    %v2150 = vadd.f32 %v2148, %v2149
    %v2151 = vsel %vm1946, %v2085, 0.0
    %v2152 = vadd.f32 %v2150, %v2151
    %v2153 = vsel %vm1946, %v2086, 0.0
    %v2154 = vadd.f32 %v2152, %v2153
    %v2155 = vsel %vm1946, %v2087, 0.0
    %v2156 = vadd.f32 %v2154, %v2155
    %v2157 = vsel %vm1946, %v2088, 0.0
    %v2158 = vadd.f32 %v2156, %v2157
    %v2159 = vsel %vm1946, %v2089, 0.0
    %v2160 = vadd.f32 %v2158, %v2159
    %v2161 = vsel %vm1946, %v2090, 0.0
    %v2162 = vadd.f32 %v2160, %v2161
    %v2163 = vsel %vm1946, %v2091, 0.0
    %v2164 = vadd.f32 %v2162, %v2163
    %v2165 = vsel %vm1946, %v2092, 0.0
    %v2166 = vadd.f32 %v2164, %v2165
    %v2167 = vsel %vm1946, %v2093, 0.0
    %v2168 = vadd.f32 %v2166, %v2167
    %v2169 = vsel %vm1946, %v2094, 0.0
    %v2170 = vadd.f32 %v2168, %v2169
    %v2171 = vsel %vm1946, %v2095, 0.0
    %v2172 = vadd.f32 %v2170, %v2171
    %v2173 = vsel %vm1946, %v2096, 0.0
    %v2174 = vadd.f32 %v2172, %v2173
    %v2175 = vsel %vm1946, %v2097, 0.0
    %v2176 = vadd.f32 %v2174, %v2175
    %v2177 = vsel %vm1946, %v2098, 0.0
    %v2178 = vadd.f32 %v2176, %v2177
    %v2179 = vsel %vm1946, %v2099, 0.0
    %v2180 = vadd.f32 %v2178, %v2179
    %v2181 = vsel %vm1946, %v2100, 0.0
    %v2182 = vadd.f32 %v2180, %v2181
    %v2183 = vsel %vm1946, %v2101, 0.0
    %v2184 = vadd.f32 %v2182, %v2183
    %v2185 = vsel %vm1946, %v2102, 0.0
    %v2186 = vadd.f32 %v2184, %v2185
    %v2187 = vsel %vm1946, %v2103, 0.0
    %v2188 = vadd.f32 %v2186, %v2187
    %v2189 = vsel %vm1946, %v2104, 0.0
    %v2190 = vadd.f32 %v2188, %v2189
    %v2191 = vsel %vm1946, %v2105, 0.0
    %v2192 = vadd.f32 %v2190, %v2191
    %v2193 = vsel %vm1946, %v2106, 0.0
    %v2194 = vadd.f32 %v2192, %v2193
    %v2195 = vsel %vm1946, %v2107, 0.0
    %v2196 = vadd.f32 %v2194, %v2195
    %v2197 = vsel %vm1946, %v2108, 0.0
    %v2198 = vadd.f32 %v2196, %v2197
    %v2199 = vsel %vm1946, %v2109, 0.0
    %v2200 = vadd.f32 %v2198, %v2199
    %v2201 = vsel %vm1946, %v2110, 0.0
    %v2202 = vadd.f32 %v2200, %v2201
    %v2203 = vsel %vm1946, %v2111, 0.0
    %v2204 = vadd.f32 %v2202, %v2203
    %v2205 = vsel %vm1946, %v2112, 0.0
    %v2206 = vadd.f32 %v2204, %v2205
    %v2207 = vsel %vm1946, %v2113, 0.0
    %v2208 = vadd.f32 %v2206, %v2207
    %v2209 = vsel %vm1946, %v2114, 0.0
    %v2210 = vadd.f32 %v2208, %v2209
    %v2211 = vsel %vm1946, %v2115, 0.0
    %v2212 = vadd.f32 %v2210, %v2211
    %v2213 = vsel %vm1946, %v2116, 0.0
    %v2214 = vadd.f32 %v2212, %v2213
    %v2215 = vsel %vm1946, %v2117, 0.0
    %v2216 = vadd.f32 %v2214, %v2215
    %v2217 = vsel %vm1946, %v2118, 0.0
    %v2218 = vadd.f32 %v2216, %v2217
    %v2219 = vsel %vm1946, %v2119, 0.0
    %v2220 = vadd.f32 %v2218, %v2219
    %v2221 = vsel %vm1946, %v2120, 0.0
    %v2222 = vadd.f32 %v2220, %v2221
    %v2223 = vsel %vm1946, %v2121, 0.0
    %v2224 = vadd.f32 %v2222, %v2223
    %v2225 = vsel %vm1946, %v2122, 0.0
    %v2226 = vadd.f32 %v2224, %v2225
    %v2227 = vsel %vm1946, %v2123, 0.0
    %v2228 = vadd.f32 %v2226, %v2227
    %v2229 = vsel %vm1946, %v2124, 0.0
    %v2230 = vadd.f32 %v2228, %v2229
    %v2231 = vsel %vm1946, %v2125, 0.0
    %v2232 = vadd.f32 %v2230, %v2231
    %v2233 = vsel %vm1946, %v2126, 0.0
    %v2234 = vadd.f32 %v2232, %v2233
    %v2235 = vsel %vm1946, %v2127, 0.0
    %v2236 = vadd.f32 %v2234, %v2235
    %v2237 = vsel %vm1946, %v2128, 0.0
    %v2238 = vadd.f32 %v2236, %v2237
    %v2239 = vsel %vm1946, %v2129, 0.0
    %v2240 = vadd.f32 %v2238, %v2239
    %v2241 = vsel %vm1946, %v2130, 0.0
    %v2242 = vadd.f32 %v2240, %v2241
    %v2243 = vsel %vm1946, %v2131, 0.0
    %v2244 = vadd.f32 %v2242, %v2243
    %v2245 = vsel %vm1946, %v2132, 0.0
    %v2246 = vadd.f32 %v2244, %v2245
    %v2247 = vsel %vm1946, %v2133, 0.0
    %v2248 = vadd.f32 %v2246, %v2247
    %v2249 = vsel %vm1946, %v2134, 0.0
    %v2250 = vadd.f32 %v2248, %v2249
    %v2251 = vsel %vm1946, %v2135, 0.0
    %v2252 = vadd.f32 %v2250, %v2251
    %v2253 = vsel %vm1946, %v2136, 0.0
    %v2254 = vadd.f32 %v2252, %v2253
    %v2255 = vsel %vm1946, %v2137, 0.0
    %v2256 = vadd.f32 %v2254, %v2255
    %v2257 = vsel %vm1946, %v2138, 0.0
    %v2258 = vadd.f32 %v2256, %v2257
    %v2259 = vsel %vm1946, %v2139, 0.0
    %v2260 = vadd.f32 %v2258, %v2259
    %v2261 = vsel %vm1946, %v2140, 0.0
    %v2262 = vadd.f32 %v2260, %v2261
    %v2263 = vsel %vm1946, %v2141, 0.0
    %v2264 = vadd.f32 %v2262, %v2263
    %v2265 = vsel %vm1946, %v2142, 0.0
    %v2266 = vadd.f32 %v2264, %v2265
    %v2267 = vsel %vm1946, %v2143, 0.0
    %v2268 = vadd.f32 %v2266, %v2267
    %v2269 = vsel %vm1946, %v2144, 0.0
    %v2270 = vadd.f32 %v2268, %v2269
    %v2271 = vsel %vm1946, %v2145, 0.0
    %v2272 = vadd.f32 %v2270, %v2271
    %v2273 = vrot.slane %v2272, 4
    %v2274 = vadd.f32 %v2272, %v2273
    %v2275 = vrot.slane %v2274, 2
    %v2276 = vadd.f32 %v2274, %v2275
    %v2277 = vrot.slane %v2276, 1
    %v2278 = vadd.f32 %v2276, %v2277
    %2279 = vst.msk [vmem:[#allocation15] sm:$0x1] %vm2080, %v2278
    // Predicated region
    $region26: #{resnet_block_forward.4} parent=1 // pred_check
      _
    $region27: #{resnet_block_forward.4} parent=1 // pred_check_branch
      %2281 = sbr.rel (0) target = $region29
    $region28: #{resnet_block_forward.4} parent=1 // pred_region
      %s2283 = ssub.s32 4096, 4096
      %2284 = vsyncadd [#allocation4], %s2283
      %s2285 = sshll.u32 [#allocation8], 4
      %s2286 = int_to_ptr.vmem [resolvable:$true] %s2285
      %2291 = dma.vmem_to_hbm [thread:$0]  %s2286, 4096, %s3, [#allocation4], 64, 64, 4
    $region29: #{resnet_block_forward.4} parent=1 // pred_fallthru
      _
    // Predicated region
    $region30: #{resnet_block_forward.4} parent=1 // pred_check
      _
    $region31: #{resnet_block_forward.4} parent=1 // pred_check_branch
      %2293 = sbr.rel (0) target = $region33
    $region32: #{resnet_block_forward.4} parent=1 // pred_region
      %s2295 = ssub.s32 16, 16
      %2296 = vsyncadd [#allocation10], %s2295
      %s2298 = sshll.u32 [#allocation9], 4
      %s2299 = int_to_ptr.vmem [resolvable:$true] %s2298
      %2301 = dma.vmem_to_hbm [thread:$0]  %s2299, 16, %s4, [#allocation10]
    $region33: #{resnet_block_forward.4} parent=1 // pred_fallthru
      _
    // Predicated region
    $region34: #{resnet_block_forward.4} parent=1 // pred_check
      _
    $region35: #{resnet_block_forward.4} parent=1 // pred_check_branch
      %2303 = sbr.rel (0) target = $region37
    $region36: #{resnet_block_forward.4} parent=1 // pred_region
      %s2305 = ssub.s32 16, 16
      %2306 = vsyncadd [#allocation10], %s2305
      %s2308 = sshll.u32 [#allocation11], 4
      %s2309 = int_to_ptr.vmem [resolvable:$true] %s2308
      %2311 = dma.vmem_to_hbm [thread:$0]  %s2309, 16, %s5, [#allocation10]
    $region37: #{resnet_block_forward.4} parent=1 // pred_fallthru
      _
    // Predicated region
    $region38: #{resnet_block_forward.4} parent=1 // pred_check
      _
    $region39: #{resnet_block_forward.4} parent=1 // pred_check_branch
      %2313 = sbr.rel (0) target = $region41
    $region40: #{resnet_block_forward.4} parent=1 // pred_region
      %s2315 = ssub.s32 4096, 4096
      %2316 = vsyncadd [#allocation13], %s2315
      %s2317 = sshll.u32 [#allocation12], 4
      %s2318 = int_to_ptr.vmem [resolvable:$true] %s2317
      %2323 = dma.vmem_to_hbm [thread:$0]  %s2318, 4096, %s6, [#allocation13], 64, 64, 4
    $region41: #{resnet_block_forward.4} parent=1 // pred_fallthru
      _
    // Predicated region
    $region42: #{resnet_block_forward.4} parent=1 // pred_check
      _
    $region43: #{resnet_block_forward.4} parent=1 // pred_check_branch
      %2325 = sbr.rel (0) target = $region45
    $region44: #{resnet_block_forward.4} parent=1 // pred_region
      %s2327 = ssub.s32 16, 16
      %2328 = vsyncadd [#allocation13], %s2327
      %s2330 = sshll.u32 [#allocation14], 4
      %s2331 = int_to_ptr.vmem [resolvable:$true] %s2330
      %2333 = dma.vmem_to_hbm [thread:$0]  %s2331, 16, %s7, [#allocation13]
    $region45: #{resnet_block_forward.4} parent=1 // pred_fallthru
      _
    // Predicated region
    $region46: #{resnet_block_forward.4} parent=1 // pred_check
      _
    $region47: #{resnet_block_forward.4} parent=1 // pred_check_branch
      %2335 = sbr.rel (0) target = $region49
    $region48: #{resnet_block_forward.4} parent=1 // pred_region
      %s2337 = ssub.s32 16, 16
      %2338 = vsyncadd [#allocation16], %s2337
      %s2340 = sshll.u32 [#allocation15], 4
      %s2341 = int_to_ptr.vmem [resolvable:$true] %s2340
      %2343 = dma.vmem_to_hbm [thread:$0]  %s2341, 16, %s8, [#allocation16]
    $region49: #{resnet_block_forward.4} parent=1 // pred_fallthru
      _
    // Predicated region
    $region50: #{resnet_block_forward.4} parent=1 // pred_check
      _
    $region51: #{resnet_block_forward.4} parent=1 // pred_check_branch
      %2345 = sbr.rel (0) target = $region53
    $region52: #{resnet_block_forward.4} parent=1 // pred_region
      %2346 = dma.done [#allocation4], 4096
    $region53: #{resnet_block_forward.4} parent=1 // pred_fallthru
      _
    // Predicated region
    $region54: #{resnet_block_forward.4} parent=1 // pred_check
      _
    $region55: #{resnet_block_forward.4} parent=1 // pred_check_branch
      %2348 = sbr.rel (0) target = $region57
    $region56: #{resnet_block_forward.4} parent=1 // pred_region
      %2349 = dma.done [#allocation10], 16
    $region57: #{resnet_block_forward.4} parent=1 // pred_fallthru
      _
    // Predicated region
    $region58: #{resnet_block_forward.4} parent=1 // pred_check
      _
    $region59: #{resnet_block_forward.4} parent=1 // pred_check_branch
      %2351 = sbr.rel (0) target = $region61
    $region60: #{resnet_block_forward.4} parent=1 // pred_region
      %2352 = dma.done [#allocation10], 16
    $region61: #{resnet_block_forward.4} parent=1 // pred_fallthru
      _
    // Predicated region
    $region62: #{resnet_block_forward.4} parent=1 // pred_check
      _
    $region63: #{resnet_block_forward.4} parent=1 // pred_check_branch
      %2354 = sbr.rel (0) target = $region65
    $region64: #{resnet_block_forward.4} parent=1 // pred_region
      %2355 = dma.done [#allocation13], 4096
    $region65: #{resnet_block_forward.4} parent=1 // pred_fallthru
      _
    // Predicated region
    $region66: #{resnet_block_forward.4} parent=1 // pred_check
      _
    $region67: #{resnet_block_forward.4} parent=1 // pred_check_branch
      %2357 = sbr.rel (0) target = $region69
    $region68: #{resnet_block_forward.4} parent=1 // pred_region
      %2358 = dma.done [#allocation13], 16
    $region69: #{resnet_block_forward.4} parent=1 // pred_fallthru
      _
    // Predicated region
    $region70: #{resnet_block_forward.4} parent=1 // pred_check
      _
    $region71: #{resnet_block_forward.4} parent=1 // pred_check_branch
      %2360 = sbr.rel (0) target = $region73
    $region72: #{resnet_block_forward.4} parent=1 // pred_region
      %2361 = dma.done [#allocation16], 16
    $region73: #{resnet_block_forward.4} parent=1 // pred_fallthru
      _
    %2362 = vsyncpa [#allocation3], 1
    %2363 = vsyncpa [#allocation6], 1
    %2364 = vsyncpa [#allocation4], 1
    %2365 = vsyncpa [#allocation10], 1
    %2366 = vsyncpa [#allocation13], 1
    %2367 = vsyncpa [#allocation16], 1

// kernel: resnet_block_forward.5
$region0: #{resnet_block_forward.5}
  #allocation0 [shape = 'u32[]', space=smem, size = 0x4, offset = 0x4, fixed_abs, tag = 'smem constant byte address 0x4 - core index']
  #allocation1 [shape = 'u32[144,128]{1,0:T(1,128)}', space=vmem, size = 0x12000, scoped, tag = 'internal scratch']
  #allocation2 [shape = 'bf16[332,4]{1,0:T(8,128)(2,1)}', space=vmem, size = 0x15000, scoped, tag = 'scratch operand']
  %s0 = inlined_call_operand.hbm [shape: bf16[512,4], index: 0, kind: input, shape index: {}]
  %s1 = inlined_call_operand.hbm [shape: f32[1,4], index: 1, kind: input, shape index: {}]
  %s2 = inlined_call_operand.hbm [shape: f32[1,4], index: 2, kind: input, shape index: {}]
  %s3 = inlined_call_operand.hbm [shape: bf16[36,4], index: 3, kind: input, shape index: {}]
  %s4 = inlined_call_operand.hbm [shape: bf16[512,4], index: 4, kind: output, shape index: {0}]
  %s5 = inlined_call_operand.hbm [shape: f32[2,1,4], index: 5, kind: output, shape index: {1}]
  %s6 = inlined_call_operand.hbm [shape: f32[2,1,4], index: 6, kind: output, shape index: {2}]
  %7 = xla_tuple %s4, %s5, %s6
  %s8 = sld [smem:[#allocation0]]
  $region81: #{resnet_block_forward.5} parent=0
    _
  %s10 = ssub.s32 1, %s8
  %s11 = scalar_select 0, %s10, %s8
  $region1: #{resnet_block_forward.5} parent=0
    #allocation3 [shape = 'u8[131072]{0}', space=vmem, size = 0x20000, scoped, tag = 'input window, operand 0']
    #allocation4 [shape = 's32[2]{0}', space=sflag, size = 0x8, scoped, tag = 'scoped memory for resnet_block_forward.5']
    #allocation5 [shape = 's32[2]{0}', space=sflag, size = 0x8, scoped, tag = 'scoped memory for resnet_block_forward.5']
    #allocation6 [shape = 'u8[512]{0}', space=vmem, size = 0x400, scoped, tag = 'input window, operand 1, single buffered']
    #allocation7 [shape = 's32[1]{0}', space=sflag, size = 0x4, scoped, tag = 'scoped memory for resnet_block_forward.5']
    #allocation8 [shape = 'u8[512]{0}', space=vmem, size = 0x400, scoped, tag = 'input window, operand 2, single buffered']
    #allocation9 [shape = 'u8[10240]{0}', space=vmem, size = 0x2800, scoped, tag = 'input window, operand 3, single buffered']
    #allocation10 [shape = 's32[1]{0}', space=sflag, size = 0x4, scoped, tag = 'scoped memory for resnet_block_forward.5']
    #allocation11 [shape = 'u8[131072]{0}', space=vmem, size = 0x20000, scoped, tag = 'output window, operand 0']
    #allocation12 [shape = 'u8[1024]{0}', space=vmem, size = 0x400, scoped, tag = 'output window, operand 1']
    #allocation13 [shape = 's32[2]{0}', space=sflag, size = 0x8, scoped, tag = 'scoped memory for resnet_block_forward.5']
    #allocation14 [shape = 'u8[1024]{0}', space=vmem, size = 0x400, scoped, tag = 'output window, operand 2']
    %12 = vsyncpa [#allocation4], 0
    %s13 = scalar_lea.sflag [#allocation4], 1
    %14 = vsyncpa %s13, 0
    %15 = vsyncpa [#allocation7], 0
    %16 = vsyncpa [#allocation10], 0
    %17 = vsyncpa [#allocation5], 0
    %s18 = scalar_lea.sflag [#allocation5], 1
    %19 = vsyncpa %s18, 0
    %20 = vsyncpa [#allocation13], 0
    %s21 = scalar_lea.sflag [#allocation13], 1
    %22 = vsyncpa %s21, 0
    loop: start=0, step=1, limit=4
    $region2: #{resnet_block_forward.5} parent=1 // loop_pre_header
      _
    $region3: #{resnet_block_forward.5} parent=1 // loop_header
      %s24 = sphi 0, %s28
      %p25 = scmp.ge.s32.totalorder %s24, 4
      %s34 = sphi 0, %s36
      %s37 = sphi 0, %s34
      %s38 = sphi 0, %s37
      %s54 = sphi 0, %s38
      %s58 = sphi 0, %s58
      %s60 = sphi 0, %s58
      %s61 = sphi 0, %s60
      %s75 = sphi 0, %s61
      %s79 = sphi 0, %s79
      %s81 = sphi 0, %s79
      %s82 = sphi 0, %s81
      %s96 = sphi 0, %s82
      %s100 = sphi 0, %s100
      %s102 = sphi 0, %s100
      %s103 = sphi 0, %s102
      %s117 = sphi 0, %s103
      %s123 = sphi 0, %s125
      %s126 = sphi 0, %s123
      %s127 = sphi 0, %s126
      %s143 = sphi 0, %s127
      %s149 = sphi 0, %s151
      %s152 = sphi 0, %s149
      %s153 = sphi 0, %s152
      %s169 = sphi 0, %s153
      %s175 = sphi 0, %s177
      %s178 = sphi 0, %s175
      %s179 = sphi 0, %s178
      %s195 = sphi 0, %s179
    $region4: #{resnet_block_forward.5} parent=1 // loop_header_branch
      %27 = sbr.rel (%p25) target = $region8
    $region5: #{resnet_block_forward.5} parent=1 // loop_body
      %s29 = ssub.s32 %s24, 1
      %s30 = ssub.s32 %s24, 2
      %s31 = sadd.s32 %s24, 1
      %s32 = ssub.s32 %s24, %s31
      %p33 = scmp.eq.s32.totalorder %s32, 0
      %s35 = sadd.s32 %s34, 1
      %s36 = scalar_select %p33, %s34, %s35
      %p39 = pneg %p33
      %p40 = scmp.eq.s32.totalorder %s24, 1
      %p41 = por %p39, %p40
      %p42 = scmp.ne.s32.totalorder %s34, %s37
      %p43 = scmp.eq.s32.totalorder %s24, 0
      %p44 = por %p42, %p43
      %p45 = scmp.ne.s32.totalorder %s34, %s37
      %p46 = scmp.eq.s32.totalorder %s29, 1
      %p47 = por %p45, %p46
      %p48 = scmp.ne.s32.totalorder %s37, %s38
      %p49 = scmp.eq.s32.totalorder %s29, 0
      %p50 = por %p48, %p49
      %p51 = scmp.ne.s32.totalorder %s37, %s38
      %p52 = scmp.eq.s32.totalorder %s30, 1
      %p53 = por %p51, %p52
      %p55 = scmp.ne.s32.totalorder %s38, %s54
      %p56 = scmp.eq.s32.totalorder %s30, 0
      %p57 = por %p55, %p56
      %s59 = sadd.s32 %s58, 1
      %p62 = scmp.eq.s32.totalorder %s24, 1
      %p63 = scmp.ne.s32.totalorder %s58, %s60
      %p64 = scmp.eq.s32.totalorder %s24, 0
      %p65 = por %p63, %p64
      %p66 = scmp.ne.s32.totalorder %s58, %s60
      %p67 = scmp.eq.s32.totalorder %s29, 1
      %p68 = por %p66, %p67
      %p69 = scmp.ne.s32.totalorder %s60, %s61
      %p70 = scmp.eq.s32.totalorder %s29, 0
      %p71 = por %p69, %p70
      %p72 = scmp.ne.s32.totalorder %s60, %s61
      %p73 = scmp.eq.s32.totalorder %s30, 1
      %p74 = por %p72, %p73
      %p76 = scmp.ne.s32.totalorder %s61, %s75
      %p77 = scmp.eq.s32.totalorder %s30, 0
      %p78 = por %p76, %p77
      %s80 = sadd.s32 %s79, 1
      %p83 = scmp.eq.s32.totalorder %s24, 1
      %p84 = scmp.ne.s32.totalorder %s79, %s81
      %p85 = scmp.eq.s32.totalorder %s24, 0
      %p86 = por %p84, %p85
      %p87 = scmp.ne.s32.totalorder %s79, %s81
      %p88 = scmp.eq.s32.totalorder %s29, 1
      %p89 = por %p87, %p88
      %p90 = scmp.ne.s32.totalorder %s81, %s82
      %p91 = scmp.eq.s32.totalorder %s29, 0
      %p92 = por %p90, %p91
      %p93 = scmp.ne.s32.totalorder %s81, %s82
      %p94 = scmp.eq.s32.totalorder %s30, 1
      %p95 = por %p93, %p94
      %p97 = scmp.ne.s32.totalorder %s82, %s96
      %p98 = scmp.eq.s32.totalorder %s30, 0
      %p99 = por %p97, %p98
      %s101 = sadd.s32 %s100, 1
      %p104 = scmp.eq.s32.totalorder %s24, 1
      %p105 = scmp.ne.s32.totalorder %s100, %s102
      %p106 = scmp.eq.s32.totalorder %s24, 0
      %p107 = por %p105, %p106
      %p108 = scmp.ne.s32.totalorder %s100, %s102
      %p109 = scmp.eq.s32.totalorder %s29, 1
      %p110 = por %p108, %p109
      %p111 = scmp.ne.s32.totalorder %s102, %s103
      %p112 = scmp.eq.s32.totalorder %s29, 0
      %p113 = por %p111, %p112
      %p114 = scmp.ne.s32.totalorder %s102, %s103
      %p115 = scmp.eq.s32.totalorder %s30, 1
      %p116 = por %p114, %p115
      %p118 = scmp.ne.s32.totalorder %s103, %s117
      %p119 = scmp.eq.s32.totalorder %s30, 0
      %p120 = por %p118, %p119
      %s121 = ssub.s32 %s24, %s31
      %p122 = scmp.eq.s32.totalorder %s121, 0
      %s124 = sadd.s32 %s123, 1
      %s125 = scalar_select %p122, %s123, %s124
      %p128 = pneg %p122
      %p129 = scmp.eq.s32.totalorder %s24, 1
      %p130 = por %p128, %p129
      %p131 = scmp.ne.s32.totalorder %s123, %s126
      %p132 = scmp.eq.s32.totalorder %s24, 0
      %p133 = por %p131, %p132
      %p134 = scmp.ne.s32.totalorder %s123, %s126
      %p135 = scmp.eq.s32.totalorder %s29, 1
      %p136 = por %p134, %p135
      %p137 = scmp.ne.s32.totalorder %s126, %s127
      %p138 = scmp.eq.s32.totalorder %s29, 0
      %p139 = por %p137, %p138
      %p140 = scmp.ne.s32.totalorder %s126, %s127
      %p141 = scmp.eq.s32.totalorder %s30, 1
      %p142 = por %p140, %p141
      %p144 = scmp.ne.s32.totalorder %s127, %s143
      %p145 = scmp.eq.s32.totalorder %s30, 0
      %p146 = por %p144, %p145
      %s147 = ssub.s32 %s24, %s31
      %p148 = scmp.eq.s32.totalorder %s147, 0
      %s150 = sadd.s32 %s149, 1
      %s151 = scalar_select %p148, %s149, %s150
      %p154 = pneg %p148
      %p155 = scmp.eq.s32.totalorder %s24, 1
      %p156 = por %p154, %p155
      %p157 = scmp.ne.s32.totalorder %s149, %s152
      %p158 = scmp.eq.s32.totalorder %s24, 0
      %p159 = por %p157, %p158
      %p160 = scmp.ne.s32.totalorder %s149, %s152
      %p161 = scmp.eq.s32.totalorder %s29, 1
      %p162 = por %p160, %p161
      %p163 = scmp.ne.s32.totalorder %s152, %s153
      %p164 = scmp.eq.s32.totalorder %s29, 0
      %p165 = por %p163, %p164
      %p166 = scmp.ne.s32.totalorder %s152, %s153
      %p167 = scmp.eq.s32.totalorder %s30, 1
      %p168 = por %p166, %p167
      %p170 = scmp.ne.s32.totalorder %s153, %s169
      %p171 = scmp.eq.s32.totalorder %s30, 0
      %p172 = por %p170, %p171
      %s173 = ssub.s32 %s24, %s31
      %p174 = scmp.eq.s32.totalorder %s173, 0
      %s176 = sadd.s32 %s175, 1
      %s177 = scalar_select %p174, %s175, %s176
      %p180 = pneg %p174
      %p181 = scmp.eq.s32.totalorder %s24, 1
      %p182 = por %p180, %p181
      %p183 = scmp.ne.s32.totalorder %s175, %s178
      %p184 = scmp.eq.s32.totalorder %s24, 0
      %p185 = por %p183, %p184
      %p186 = scmp.ne.s32.totalorder %s175, %s178
      %p187 = scmp.eq.s32.totalorder %s29, 1
      %p188 = por %p186, %p187
      %p189 = scmp.ne.s32.totalorder %s178, %s179
      %p190 = scmp.eq.s32.totalorder %s29, 0
      %p191 = por %p189, %p190
      %p192 = scmp.ne.s32.totalorder %s178, %s179
      %p193 = scmp.eq.s32.totalorder %s30, 1
      %p194 = por %p192, %p193
      %p196 = scmp.ne.s32.totalorder %s179, %s195
      %p197 = scmp.eq.s32.totalorder %s30, 0
      %p198 = por %p196, %p197
      %p199 = scmp.le.s32.totalorder 1, %s24
      %p200 = scmp.lt.s32.totalorder %s24, 3
      %p201 = pnand %p199, %p200
      %p202 = pneg %p201
      // Predicated region
      $region9: #{resnet_block_forward.5} parent=5 // pred_check
        _
      $region10: #{resnet_block_forward.5} parent=5 // pred_check_branch
        %204 = sbr.rel (%p201) target = $region12
      $region11: #{resnet_block_forward.5} parent=5 // pred_region
        %s205 = ssub.s32 %s24, 1
        // Predicated region
        $region13: #{resnet_block_forward.5} parent=11 // pred_check
          %p206 = pneg %p71
        $region14: #{resnet_block_forward.5} parent=11 // pred_check_branch
          %208 = sbr.rel (%p206) target = $region16
        $region15: #{resnet_block_forward.5} parent=11 // pred_region
          %s210 = ssub.s32 16, 16
          %211 = vsyncadd [#allocation7], %s210
          %s213 = sshll.u32 [#allocation6], 4
          %s214 = int_to_ptr.vmem [resolvable:$true] %s213
          %216 = dma.hbm_to_vmem [thread:$0]  %s1, 16, %s214, [#allocation7]
        $region16: #{resnet_block_forward.5} parent=11 // pred_fallthru
          _
        // Predicated region
        $region17: #{resnet_block_forward.5} parent=11 // pred_check
          %p217 = pneg %p92
        $region18: #{resnet_block_forward.5} parent=11 // pred_check_branch
          %219 = sbr.rel (%p217) target = $region20
        $region19: #{resnet_block_forward.5} parent=11 // pred_region
          %s221 = ssub.s32 16, 16
          %222 = vsyncadd [#allocation7], %s221
          %s224 = sshll.u32 [#allocation8], 4
          %s225 = int_to_ptr.vmem [resolvable:$true] %s224
          %227 = dma.hbm_to_vmem [thread:$0]  %s2, 16, %s225, [#allocation7]
        $region20: #{resnet_block_forward.5} parent=11 // pred_fallthru
          _
        // Predicated region
        $region21: #{resnet_block_forward.5} parent=11 // pred_check
          %p228 = pneg %p113
        $region22: #{resnet_block_forward.5} parent=11 // pred_check_branch
          %230 = sbr.rel (%p228) target = $region24
        $region23: #{resnet_block_forward.5} parent=11 // pred_region
          %s232 = ssub.s32 320, 320
          %233 = vsyncadd [#allocation10], %s232
          %s234 = sshll.u32 [#allocation9], 4
          %s235 = int_to_ptr.vmem [resolvable:$true] %s234
          %240 = dma.hbm_to_vmem [thread:$0]  %s3, 320, %s235, [#allocation10], 64, 64, 4
        $region24: #{resnet_block_forward.5} parent=11 // pred_fallthru
          _
      $region12: #{resnet_block_forward.5} parent=5 // pred_fallthru
        _
      %p241 = scmp.lt.s32.totalorder %s24, 2
      // Predicated region
      $region25: #{resnet_block_forward.5} parent=5 // pred_check
        %p242 = pneg %p241
      $region26: #{resnet_block_forward.5} parent=5 // pred_check_branch
        %244 = sbr.rel (%p242) target = $region28
      $region27: #{resnet_block_forward.5} parent=5 // pred_region
        // Predicated region
        $region29: #{resnet_block_forward.5} parent=27 // pred_check
          %p245 = pneg %p44
        $region30: #{resnet_block_forward.5} parent=27 // pred_check_branch
          %247 = sbr.rel (%p245) target = $region32
        $region31: #{resnet_block_forward.5} parent=27 // pred_region
          %s248 = sand.u32 %s34, 1
          %s249 = scalar_lea.sflag [#allocation4], %s248
          %s250 = sand.u32 %s34, 1
          %s251 = smul.addr %s250, 128
          %s252 = scalar_lea.vmem [#allocation3], %s251
          %s253 = smul.u32 32, %s24
          %s255 = ssub.s32 2048, 2048
          %256 = vsyncadd %s249, %s255
          %s257 = smul.addr %s253, 64
          %s258 = scalar_lea.hbm %s0, %s257
          %s259 = sshll.u32 %s252, 4
          %s260 = int_to_ptr.vmem [resolvable:$true] %s259
          %265 = dma.hbm_to_vmem [thread:$0]  %s258, 2048, %s260, %s249, 64, 64, 4
        $region32: #{resnet_block_forward.5} parent=27 // pred_fallthru
          _
      $region28: #{resnet_block_forward.5} parent=5 // pred_fallthru
        _
      %p266 = scmp.le.s32.totalorder 1, %s24
      %p267 = scmp.lt.s32.totalorder %s24, 3
      %p268 = pnand %p266, %p267
      %p269 = pneg %p268
      // Predicated region
      $region33: #{resnet_block_forward.5} parent=5 // pred_check
        _
      $region34: #{resnet_block_forward.5} parent=5 // pred_check_branch
        %271 = sbr.rel (%p268) target = $region36
      $region35: #{resnet_block_forward.5} parent=5 // pred_region
        %s272 = ssub.s32 %s24, 1
        %s273 = sand.u32 %s37, 1
        %s274 = scalar_lea.sflag [#allocation4], %s273
        %s275 = sand.u32 %s37, 1
        %s276 = smul.addr %s275, 128
        %s277 = scalar_lea.vmem [#allocation3], %s276
        // Predicated region
        $region37: #{resnet_block_forward.5} parent=35 // pred_check
          %p278 = pneg %p50
        $region38: #{resnet_block_forward.5} parent=35 // pred_check_branch
          %280 = sbr.rel (%p278) target = $region40
        $region39: #{resnet_block_forward.5} parent=35 // pred_region
          %281 = dma.done %s274, 2048
        $region40: #{resnet_block_forward.5} parent=35 // pred_fallthru
          _
        // Predicated region
        $region41: #{resnet_block_forward.5} parent=35 // pred_check
          %p282 = pneg %p71
        $region42: #{resnet_block_forward.5} parent=35 // pred_check_branch
          %284 = sbr.rel (%p282) target = $region44
        $region43: #{resnet_block_forward.5} parent=35 // pred_region
          %285 = dma.done [#allocation7], 16
        $region44: #{resnet_block_forward.5} parent=35 // pred_fallthru
          _
        // Predicated region
        $region45: #{resnet_block_forward.5} parent=35 // pred_check
          %p286 = pneg %p92
        $region46: #{resnet_block_forward.5} parent=35 // pred_check_branch
          %288 = sbr.rel (%p286) target = $region48
        $region47: #{resnet_block_forward.5} parent=35 // pred_region
          %289 = dma.done [#allocation7], 16
        $region48: #{resnet_block_forward.5} parent=35 // pred_fallthru
          _
        // Predicated region
        $region49: #{resnet_block_forward.5} parent=35 // pred_check
          %p290 = pneg %p113
        $region50: #{resnet_block_forward.5} parent=35 // pred_check_branch
          %292 = sbr.rel (%p290) target = $region52
        $region51: #{resnet_block_forward.5} parent=35 // pred_region
          %293 = dma.done [#allocation10], 320
        $region52: #{resnet_block_forward.5} parent=35 // pred_fallthru
          _
        %s294 = sand.u32 %s37, 1
        %s295 = scalar_lea.sflag [#allocation4], %s294
        %s296 = sand.u32 %s37, 1
        %s297 = smul.addr %s296, 128
        %s298 = scalar_lea.vmem [#allocation3], %s297
        %p299 = pneg %p50
        %p300 = pneg %p47
        %p301 = pneg %p71
        %p302 = pneg %p68
        %p303 = pneg %p92
        %p304 = pneg %p89
        %p305 = pneg %p113
        %p306 = pneg %p110
        %p307 = pneg %p139
        %p308 = pneg %p136
        %s309 = sand.u32 %s126, 1
        %s310 = scalar_lea.sflag [#allocation5], %s309
        %s311 = sand.u32 %s126, 1
        %s312 = smul.addr %s311, 128
        %s313 = scalar_lea.vmem [#allocation11], %s312
        %p314 = pneg %p165
        %p315 = pneg %p162
        %s316 = sand.u32 %s29, 1
        %s317 = scalar_lea.sflag [#allocation13], %s316
        %s318 = sand.u32 %s152, 1
        %s319 = scalar_lea.vmem [#allocation12], %s318
        %p320 = pneg %p191
        %p321 = pneg %p188
        %s322 = sand.u32 %s29, 1
        %s323 = scalar_lea.sflag [#allocation13], %s322
        %s324 = sand.u32 %s178, 1
        %s325 = scalar_lea.vmem [#allocation14], %s324
        %s326 = smul.u32 32, %s29
        %s327 = smul.u32 32, %s29
        %vm329 = vcmask 27648
        %330 = vst.msk [vmem:[#allocation2] sm:$0xf] %vm329, 0
        %331 = vst.msk [vmem:[#allocation2 + $0x4] sm:$0xf] %vm329, 0
        %332 = vst.msk [vmem:[#allocation2 + $0x8] sm:$0xf] %vm329, 0
        %333 = vst.msk [vmem:[#allocation2 + $0xc] sm:$0xf] %vm329, 0
        %334 = vst.msk [vmem:[#allocation2 + $0x10] sm:$0xf] %vm329, 0
        %335 = vst.msk [vmem:[#allocation2 + $0x14] sm:$0xf] %vm329, 0
        %336 = vst.msk [vmem:[#allocation2 + $0x18] sm:$0xf] %vm329, 0
        %337 = vst.msk [vmem:[#allocation2 + $0x1c] sm:$0xf] %vm329, 0
        %338 = vst.msk [vmem:[#allocation2 + $0x20] sm:$0xf] %vm329, 0
        %339 = vst.msk [vmem:[#allocation2 + $0x24] sm:$0xf] %vm329, 0
        %340 = vst.msk [vmem:[#allocation2 + $0x28] sm:$0xf] %vm329, 0
        %341 = vst.msk [vmem:[#allocation2 + $0x2c] sm:$0xf] %vm329, 0
        %342 = vst.msk [vmem:[#allocation2 + $0x30] sm:$0xf] %vm329, 0
        %343 = vst.msk [vmem:[#allocation2 + $0x34] sm:$0xf] %vm329, 0
        %344 = vst.msk [vmem:[#allocation2 + $0x38] sm:$0xf] %vm329, 0
        %345 = vst.msk [vmem:[#allocation2 + $0x3c] sm:$0xf] %vm329, 0
        %346 = vst.msk [vmem:[#allocation2 + $0x40] sm:$0xf] %vm329, 0
        %347 = vst.msk [vmem:[#allocation2 + $0x44] sm:$0xf] %vm329, 0
        %348 = vst.msk [vmem:[#allocation2 + $0x48] sm:$0xf] %vm329, 0
        %349 = vst.msk [vmem:[#allocation2 + $0x4c] sm:$0xf] %vm329, 0
        %350 = vst.msk [vmem:[#allocation2 + $0x50] sm:$0xf] %vm329, 0
        %351 = vst.msk [vmem:[#allocation2 + $0x54] sm:$0xf] %vm329, 0
        %352 = vst.msk [vmem:[#allocation2 + $0x58] sm:$0xf] %vm329, 0
        %353 = vst.msk [vmem:[#allocation2 + $0x5c] sm:$0xf] %vm329, 0
        %354 = vst.msk [vmem:[#allocation2 + $0x60] sm:$0xf] %vm329, 0
        %355 = vst.msk [vmem:[#allocation2 + $0x64] sm:$0xf] %vm329, 0
        %356 = vst.msk [vmem:[#allocation2 + $0x68] sm:$0xf] %vm329, 0
        %357 = vst.msk [vmem:[#allocation2 + $0x6c] sm:$0xf] %vm329, 0
        %358 = vst.msk [vmem:[#allocation2 + $0x70] sm:$0xf] %vm329, 0
        %359 = vst.msk [vmem:[#allocation2 + $0x74] sm:$0xf] %vm329, 0
        %360 = vst.msk [vmem:[#allocation2 + $0x78] sm:$0xf] %vm329, 0
        %361 = vst.msk [vmem:[#allocation2 + $0x7c] sm:$0xf] %vm329, 0
        %362 = vst.msk [vmem:[#allocation2 + $0x80] sm:$0xf] %vm329, 0
        %363 = vst.msk [vmem:[#allocation2 + $0x84] sm:$0xf] %vm329, 0
        %364 = vst.msk [vmem:[#allocation2 + $0x88] sm:$0xf] %vm329, 0
        %365 = vst.msk [vmem:[#allocation2 + $0x8c] sm:$0xf] %vm329, 0
        %366 = vst.msk [vmem:[#allocation2 + $0x90] sm:$0xf] %vm329, 0
        %367 = vst.msk [vmem:[#allocation2 + $0x94] sm:$0xf] %vm329, 0
        %368 = vst.msk [vmem:[#allocation2 + $0x98] sm:$0xf] %vm329, 0
        %369 = vst.msk [vmem:[#allocation2 + $0x9c] sm:$0xf] %vm329, 0
        %370 = vst.msk [vmem:[#allocation2 + $0xa0] sm:$0xf] %vm329, 0
        %vm371 = vcmask 25600
        %372 = vst.msk [vmem:[#allocation2 + $0xa4] sm:$0x3] %vm371, 0
        %v373 = vld [vmem:[%s277] sm:$0xf]
        %v374 = vld [vmem:[%s277 + $0x4] sm:$0xf]
        %v375 = vld [vmem:[%s277 + $0x8] sm:$0xf]
        %v376 = vld [vmem:[%s277 + $0xc] sm:$0xf]
        %v377 = vld [vmem:[%s277 + $0x10] sm:$0xf]
        %v378 = vld [vmem:[%s277 + $0x14] sm:$0xf]
        %v379 = vld [vmem:[%s277 + $0x18] sm:$0xf]
        %v380 = vld [vmem:[%s277 + $0x1c] sm:$0xf]
        %v381 = vld [vmem:[%s277 + $0x20] sm:$0xf]
        %v382 = vld [vmem:[%s277 + $0x24] sm:$0xf]
        %v383 = vld [vmem:[%s277 + $0x28] sm:$0xf]
        %v384 = vld [vmem:[%s277 + $0x2c] sm:$0xf]
        %v385 = vld [vmem:[%s277 + $0x30] sm:$0xf]
        %v386 = vld [vmem:[%s277 + $0x34] sm:$0xf]
        %v387 = vld [vmem:[%s277 + $0x38] sm:$0xf]
        %v388 = vld [vmem:[%s277 + $0x3c] sm:$0xf]
        %v389 = vld [vmem:[%s277 + $0x40] sm:$0xf]
        %v390 = vld [vmem:[%s277 + $0x44] sm:$0xf]
        %v391 = vld [vmem:[%s277 + $0x48] sm:$0xf]
        %v392 = vld [vmem:[%s277 + $0x4c] sm:$0xf]
        %v393 = vld [vmem:[%s277 + $0x50] sm:$0xf]
        %v394 = vld [vmem:[%s277 + $0x54] sm:$0xf]
        %v395 = vld [vmem:[%s277 + $0x58] sm:$0xf]
        %v396 = vld [vmem:[%s277 + $0x5c] sm:$0xf]
        %v397 = vld [vmem:[%s277 + $0x60] sm:$0xf]
        %v398 = vld [vmem:[%s277 + $0x64] sm:$0xf]
        %v399 = vld [vmem:[%s277 + $0x68] sm:$0xf]
        %v400 = vld [vmem:[%s277 + $0x6c] sm:$0xf]
        %v401 = vld [vmem:[%s277 + $0x70] sm:$0xf]
        %v402 = vld [vmem:[%s277 + $0x74] sm:$0xf]
        %v403 = vld [vmem:[%s277 + $0x78] sm:$0xf]
        %v404 = vld [vmem:[%s277 + $0x7c] sm:$0xf]
        %v405 = vunpack.c.l.bf16 %v373
        %v406 = vunpack.c.l.bf16 %v374
        %v407 = vunpack.c.l.bf16 %v375
        %v408 = vunpack.c.l.bf16 %v376
        %v409 = vunpack.c.l.bf16 %v377
        %v410 = vunpack.c.l.bf16 %v378
        %v411 = vunpack.c.l.bf16 %v379
        %v412 = vunpack.c.l.bf16 %v380
        %v413 = vunpack.c.l.bf16 %v381
        %v414 = vunpack.c.l.bf16 %v382
        %v415 = vunpack.c.l.bf16 %v383
        %v416 = vunpack.c.l.bf16 %v384
        %v417 = vunpack.c.l.bf16 %v385
        %v418 = vunpack.c.l.bf16 %v386
        %v419 = vunpack.c.l.bf16 %v387
        %v420 = vunpack.c.l.bf16 %v388
        %v421 = vunpack.c.l.bf16 %v389
        %v422 = vunpack.c.l.bf16 %v390
        %v423 = vunpack.c.l.bf16 %v391
        %v424 = vunpack.c.l.bf16 %v392
        %v425 = vunpack.c.l.bf16 %v393
        %v426 = vunpack.c.l.bf16 %v394
        %v427 = vunpack.c.l.bf16 %v395
        %v428 = vunpack.c.l.bf16 %v396
        %v429 = vunpack.c.l.bf16 %v397
        %v430 = vunpack.c.l.bf16 %v398
        %v431 = vunpack.c.l.bf16 %v399
        %v432 = vunpack.c.l.bf16 %v400
        %v433 = vunpack.c.l.bf16 %v401
        %v434 = vunpack.c.l.bf16 %v402
        %v435 = vunpack.c.l.bf16 %v403
        %v436 = vunpack.c.l.bf16 %v404
        %v437 = vld [vmem:[#allocation6] sm:$0x1]
        %v439 = vlaneseq
        %v440 = vshrl.u32 %v439, 7
        %v441 = vsub.s32 0, %v440
        %v442 = vrot.slane %v437, %v441
        %v444 = vsub.f32 %v405, %v442
        %v445 = vsub.f32 %v406, %v442
        %v446 = vsub.f32 %v407, %v442
        %v447 = vsub.f32 %v408, %v442
        %v448 = vsub.f32 %v409, %v442
        %v449 = vsub.f32 %v410, %v442
        %v450 = vsub.f32 %v411, %v442
        %v451 = vsub.f32 %v412, %v442
        %v452 = vsub.f32 %v413, %v442
        %v453 = vsub.f32 %v414, %v442
        %v454 = vsub.f32 %v415, %v442
        %v455 = vsub.f32 %v416, %v442
        %v456 = vsub.f32 %v417, %v442
        %v457 = vsub.f32 %v418, %v442
        %v458 = vsub.f32 %v419, %v442
        %v459 = vsub.f32 %v420, %v442
        %v460 = vsub.f32 %v421, %v442
        %v461 = vsub.f32 %v422, %v442
        %v462 = vsub.f32 %v423, %v442
        %v463 = vsub.f32 %v424, %v442
        %v464 = vsub.f32 %v425, %v442
        %v465 = vsub.f32 %v426, %v442
        %v466 = vsub.f32 %v427, %v442
        %v467 = vsub.f32 %v428, %v442
        %v468 = vsub.f32 %v429, %v442
        %v469 = vsub.f32 %v430, %v442
        %v470 = vsub.f32 %v431, %v442
        %v471 = vsub.f32 %v432, %v442
        %v472 = vsub.f32 %v433, %v442
        %v473 = vsub.f32 %v434, %v442
        %v474 = vsub.f32 %v435, %v442
        %v475 = vsub.f32 %v436, %v442
        %v476 = vld [vmem:[#allocation8] sm:$0x1]
        %v478 = vlaneseq
        %v479 = vshrl.u32 %v478, 7
        %v480 = vsub.s32 0, %v479
        %v481 = vrot.slane %v476, %v480
        %v483 = vmul.f32 %v444, %v481
        %v484 = vmul.f32 %v445, %v481
        %v485 = vmul.f32 %v446, %v481
        %v486 = vmul.f32 %v447, %v481
        %v487 = vmul.f32 %v448, %v481
        %v488 = vmul.f32 %v449, %v481
        %v489 = vmul.f32 %v450, %v481
        %v490 = vmul.f32 %v451, %v481
        %v491 = vmul.f32 %v452, %v481
        %v492 = vmul.f32 %v453, %v481
        %v493 = vmul.f32 %v454, %v481
        %v494 = vmul.f32 %v455, %v481
        %v495 = vmul.f32 %v456, %v481
        %v496 = vmul.f32 %v457, %v481
        %v497 = vmul.f32 %v458, %v481
        %v498 = vmul.f32 %v459, %v481
        %v499 = vmul.f32 %v460, %v481
        %v500 = vmul.f32 %v461, %v481
        %v501 = vmul.f32 %v462, %v481
        %v502 = vmul.f32 %v463, %v481
        %v503 = vmul.f32 %v464, %v481
        %v504 = vmul.f32 %v465, %v481
        %v505 = vmul.f32 %v466, %v481
        %v506 = vmul.f32 %v467, %v481
        %v507 = vmul.f32 %v468, %v481
        %v508 = vmul.f32 %v469, %v481
        %v509 = vmul.f32 %v470, %v481
        %v510 = vmul.f32 %v471, %v481
        %v511 = vmul.f32 %v472, %v481
        %v512 = vmul.f32 %v473, %v481
        %v513 = vmul.f32 %v474, %v481
        %v514 = vmul.f32 %v475, %v481
        %v515 = vxor.u32 %v483, 2147483648
        %v516 = vxor.u32 %v484, 2147483648
        %v517 = vxor.u32 %v485, 2147483648
        %v518 = vxor.u32 %v486, 2147483648
        %v519 = vxor.u32 %v487, 2147483648
        %v520 = vxor.u32 %v488, 2147483648
        %v521 = vxor.u32 %v489, 2147483648
        %v522 = vxor.u32 %v490, 2147483648
        %v523 = vxor.u32 %v491, 2147483648
        %v524 = vxor.u32 %v492, 2147483648
        %v525 = vxor.u32 %v493, 2147483648
        %v526 = vxor.u32 %v494, 2147483648
        %v527 = vxor.u32 %v495, 2147483648
        %v528 = vxor.u32 %v496, 2147483648
        %v529 = vxor.u32 %v497, 2147483648
        %v530 = vxor.u32 %v498, 2147483648
        %v531 = vxor.u32 %v499, 2147483648
        %v532 = vxor.u32 %v500, 2147483648
        %v533 = vxor.u32 %v501, 2147483648
        %v534 = vxor.u32 %v502, 2147483648
        %v535 = vxor.u32 %v503, 2147483648
        %v536 = vxor.u32 %v504, 2147483648
        %v537 = vxor.u32 %v505, 2147483648
        %v538 = vxor.u32 %v506, 2147483648
        %v539 = vxor.u32 %v507, 2147483648
        %v540 = vxor.u32 %v508, 2147483648
        %v541 = vxor.u32 %v509, 2147483648
        %v542 = vxor.u32 %v510, 2147483648
        %v543 = vxor.u32 %v511, 2147483648
        %v544 = vxor.u32 %v512, 2147483648
        %v545 = vxor.u32 %v513, 2147483648
        %v546 = vxor.u32 %v514, 2147483648
        %v547 = vmul.f32 %v515, 1.442695
        %v548 = vpow.pop %v547
        %v549 = vmul.f32 %v516, 1.442695
        %v550 = vpow.pop %v549
        %v551 = vmul.f32 %v517, 1.442695
        %v552 = vpow.pop %v551
        %v553 = vmul.f32 %v518, 1.442695
        %v554 = vpow.pop %v553
        %v555 = vmul.f32 %v519, 1.442695
        %v556 = vpow.pop %v555
        %v557 = vmul.f32 %v520, 1.442695
        %v558 = vpow.pop %v557
        %v559 = vmul.f32 %v521, 1.442695
        %v560 = vpow.pop %v559
        %v561 = vmul.f32 %v522, 1.442695
        %v562 = vpow.pop %v561
        %v563 = vmul.f32 %v523, 1.442695
        %v564 = vpow.pop %v563
        %v565 = vmul.f32 %v524, 1.442695
        %v566 = vpow.pop %v565
        %v567 = vmul.f32 %v525, 1.442695
        %v568 = vpow.pop %v567
        %v569 = vmul.f32 %v526, 1.442695
        %v570 = vpow.pop %v569
        %v571 = vmul.f32 %v527, 1.442695
        %v572 = vpow.pop %v571
        %v573 = vmul.f32 %v528, 1.442695
        %v574 = vpow.pop %v573
        %v575 = vmul.f32 %v529, 1.442695
        %v576 = vpow.pop %v575
        %v577 = vmul.f32 %v530, 1.442695
        %v578 = vpow.pop %v577
        %v579 = vmul.f32 %v531, 1.442695
        %v580 = vpow.pop %v579
        %v581 = vmul.f32 %v532, 1.442695
        %v582 = vpow.pop %v581
        %v583 = vmul.f32 %v533, 1.442695
        %v584 = vpow.pop %v583
        %v585 = vmul.f32 %v534, 1.442695
        %v586 = vpow.pop %v585
        %v587 = vmul.f32 %v535, 1.442695
        %v588 = vpow.pop %v587
        %v589 = vmul.f32 %v536, 1.442695
        %v590 = vpow.pop %v589
        %v591 = vmul.f32 %v537, 1.442695
        %v592 = vpow.pop %v591
        %v593 = vmul.f32 %v538, 1.442695
        %v594 = vpow.pop %v593
        %v595 = vmul.f32 %v539, 1.442695
        %v596 = vpow.pop %v595
        %v597 = vmul.f32 %v540, 1.442695
        %v598 = vpow.pop %v597
        %v599 = vmul.f32 %v541, 1.442695
        %v600 = vpow.pop %v599
        %v601 = vmul.f32 %v542, 1.442695
        %v602 = vpow.pop %v601
        %v603 = vmul.f32 %v543, 1.442695
        %v604 = vpow.pop %v603
        %v605 = vmul.f32 %v544, 1.442695
        %v606 = vpow.pop %v605
        %v607 = vmul.f32 %v545, 1.442695
        %v608 = vpow.pop %v607
        %v609 = vmul.f32 %v546, 1.442695
        %v610 = vpow.pop %v609
        %v611 = vadd.f32 %v548, 1.0
        %v612 = vadd.f32 %v550, 1.0
        %v613 = vadd.f32 %v552, 1.0
        %v614 = vadd.f32 %v554, 1.0
        %v615 = vadd.f32 %v556, 1.0
        %v616 = vadd.f32 %v558, 1.0
        %v617 = vadd.f32 %v560, 1.0
        %v618 = vadd.f32 %v562, 1.0
        %v619 = vadd.f32 %v564, 1.0
        %v620 = vadd.f32 %v566, 1.0
        %v621 = vadd.f32 %v568, 1.0
        %v622 = vadd.f32 %v570, 1.0
        %v623 = vadd.f32 %v572, 1.0
        %v624 = vadd.f32 %v574, 1.0
        %v625 = vadd.f32 %v576, 1.0
        %v626 = vadd.f32 %v578, 1.0
        %v627 = vadd.f32 %v580, 1.0
        %v628 = vadd.f32 %v582, 1.0
        %v629 = vadd.f32 %v584, 1.0
        %v630 = vadd.f32 %v586, 1.0
        %v631 = vadd.f32 %v588, 1.0
        %v632 = vadd.f32 %v590, 1.0
        %v633 = vadd.f32 %v592, 1.0
        %v634 = vadd.f32 %v594, 1.0
        %v635 = vadd.f32 %v596, 1.0
        %v636 = vadd.f32 %v598, 1.0
        %v637 = vadd.f32 %v600, 1.0
        %v638 = vadd.f32 %v602, 1.0
        %v639 = vadd.f32 %v604, 1.0
        %v640 = vadd.f32 %v606, 1.0
        %v641 = vadd.f32 %v608, 1.0
        %v642 = vadd.f32 %v610, 1.0
        %v643 = vrcp.pop %v611
        %v644 = vmul.f32 1.0, %v643
        %v645 = vrcp.pop %v612
        %v646 = vmul.f32 1.0, %v645
        %v647 = vrcp.pop %v613
        %v648 = vmul.f32 1.0, %v647
        %v649 = vrcp.pop %v614
        %v650 = vmul.f32 1.0, %v649
        %v651 = vrcp.pop %v615
        %v652 = vmul.f32 1.0, %v651
        %v653 = vrcp.pop %v616
        %v654 = vmul.f32 1.0, %v653
        %v655 = vrcp.pop %v617
        %v656 = vmul.f32 1.0, %v655
        %v657 = vrcp.pop %v618
        %v658 = vmul.f32 1.0, %v657
        %v659 = vrcp.pop %v619
        %v660 = vmul.f32 1.0, %v659
        %v661 = vrcp.pop %v620
        %v662 = vmul.f32 1.0, %v661
        %v663 = vrcp.pop %v621
        %v664 = vmul.f32 1.0, %v663
        %v665 = vrcp.pop %v622
        %v666 = vmul.f32 1.0, %v665
        %v667 = vrcp.pop %v623
        %v668 = vmul.f32 1.0, %v667
        %v669 = vrcp.pop %v624
        %v670 = vmul.f32 1.0, %v669
        %v671 = vrcp.pop %v625
        %v672 = vmul.f32 1.0, %v671
        %v673 = vrcp.pop %v626
        %v674 = vmul.f32 1.0, %v673
        %v675 = vrcp.pop %v627
        %v676 = vmul.f32 1.0, %v675
        %v677 = vrcp.pop %v628
        %v678 = vmul.f32 1.0, %v677
        %v679 = vrcp.pop %v629
        %v680 = vmul.f32 1.0, %v679
        %v681 = vrcp.pop %v630
        %v682 = vmul.f32 1.0, %v681
        %v683 = vrcp.pop %v631
        %v684 = vmul.f32 1.0, %v683
        %v685 = vrcp.pop %v632
        %v686 = vmul.f32 1.0, %v685
        %v687 = vrcp.pop %v633
        %v688 = vmul.f32 1.0, %v687
        %v689 = vrcp.pop %v634
        %v690 = vmul.f32 1.0, %v689
        %v691 = vrcp.pop %v635
        %v692 = vmul.f32 1.0, %v691
        %v693 = vrcp.pop %v636
        %v694 = vmul.f32 1.0, %v693
        %v695 = vrcp.pop %v637
        %v696 = vmul.f32 1.0, %v695
        %v697 = vrcp.pop %v638
        %v698 = vmul.f32 1.0, %v697
        %v699 = vrcp.pop %v639
        %v700 = vmul.f32 1.0, %v699
        %v701 = vrcp.pop %v640
        %v702 = vmul.f32 1.0, %v701
        %v703 = vrcp.pop %v641
        %v704 = vmul.f32 1.0, %v703
        %v705 = vrcp.pop %v642
        %v706 = vmul.f32 1.0, %v705
        %v707 = vmul.f32 %v483, %v644
        %v708 = vmul.f32 %v484, %v646
        %v709 = vmul.f32 %v485, %v648
        %v710 = vmul.f32 %v486, %v650
        %v711 = vmul.f32 %v487, %v652
        %v712 = vmul.f32 %v488, %v654
        %v713 = vmul.f32 %v489, %v656
        %v714 = vmul.f32 %v490, %v658
        %v715 = vmul.f32 %v491, %v660
        %v716 = vmul.f32 %v492, %v662
        %v717 = vmul.f32 %v493, %v664
        %v718 = vmul.f32 %v494, %v666
        %v719 = vmul.f32 %v495, %v668
        %v720 = vmul.f32 %v496, %v670
        %v721 = vmul.f32 %v497, %v672
        %v722 = vmul.f32 %v498, %v674
        %v723 = vmul.f32 %v499, %v676
        %v724 = vmul.f32 %v500, %v678
        %v725 = vmul.f32 %v501, %v680
        %v726 = vmul.f32 %v502, %v682
        %v727 = vmul.f32 %v503, %v684
        %v728 = vmul.f32 %v504, %v686
        %v729 = vmul.f32 %v505, %v688
        %v730 = vmul.f32 %v506, %v690
        %v731 = vmul.f32 %v507, %v692
        %v732 = vmul.f32 %v508, %v694
        %v733 = vmul.f32 %v509, %v696
        %v734 = vmul.f32 %v510, %v698
        %v735 = vmul.f32 %v511, %v700
        %v736 = vmul.f32 %v512, %v702
        %v737 = vmul.f32 %v513, %v704
        %v738 = vmul.f32 %v514, %v706
        %v739 = vpack.c.bf16 %v708, %v707
        %v740 = vpack.c.bf16 %v710, %v709
        %v741 = vpack.c.bf16 %v712, %v711
        %v742 = vpack.c.bf16 %v714, %v713
        %v743 = vpack.c.bf16 %v716, %v715
        %v744 = vpack.c.bf16 %v718, %v717
        %v745 = vpack.c.bf16 %v720, %v719
        %v746 = vpack.c.bf16 %v722, %v721
        %v747 = vpack.c.bf16 %v724, %v723
        %v748 = vpack.c.bf16 %v726, %v725
        %v749 = vpack.c.bf16 %v728, %v727
        %v750 = vpack.c.bf16 %v730, %v729
        %v751 = vpack.c.bf16 %v732, %v731
        %v752 = vpack.c.bf16 %v734, %v733
        %v753 = vpack.c.bf16 %v736, %v735
        %v754 = vpack.c.bf16 %v738, %v737
        %v756 = vunpack.c.l.b16 %v739
        %v757 = vunpack.c.h.b16 %v739
        %v758 = vpack.c.b16 %v756, %v756
        %v759 = vpack.c.b16 %v757, %v757
        %vm760 = vsmask.f32 1280
        %vm761 = vsmask.f32 5392
        %vm762 = vmor %vm760, %vm761
        %v764 = vshrl.u32 %v758, 16
        %v766 = vrot.slane %v764, 6
        %v767 = vshll.u32 %v758, 16
        %v769 = vrot.slane %v767, 7
        %v770 = vor.u32 %v766, %v769
        %v771 = vrot.slane %v770, 4
        %v773 = vshrl.u32 %v759, 16
        %v775 = vrot.slane %v773, 6
        %v776 = vshll.u32 %v759, 16
        %v778 = vrot.slane %v776, 7
        %v779 = vor.u32 %v775, %v778
        %v780 = vsel %vm762, %v771, %v779
        %v781 = vrot.slane %v779, 4
        %vm785 = vcmask 27649
        %vm786 = vsmask.f32 7942
        %vm787 = vmand %vm785, %vm786
        %v788 = vld [vmem:[#allocation2 + $0x8] sm:$0xe]
        %v789 = vsel %vm787, %v770, %v788
        %790 = vst [vmem:[#allocation2 + $0x8] sm:$0xe] %v789
        %791 = vst.msk [vmem:[#allocation2 + $0xc] sm:$0xf] %vm329, %v780
        %vm792 = vcmask 25600
        %vm793 = vmand %vm792, %vm760
        %v794 = vld [vmem:[#allocation2 + $0x10] sm:$0x3]
        %v795 = vsel %vm793, %v781, %v794
        %796 = vst [vmem:[#allocation2 + $0x10] sm:$0x3] %v795
        %v798 = vunpack.c.l.b16 %v740
        %v799 = vunpack.c.h.b16 %v740
        %v800 = vpack.c.b16 %v798, %v798
        %v801 = vpack.c.b16 %v799, %v799
        %vm802 = vsmask.f32 2304
        %vm803 = vsmask.f32 6416
        %vm804 = vmor %vm802, %vm803
        %v806 = vshrl.u32 %v800, 16
        %v808 = vrot.slane %v806, 5
        %v809 = vshll.u32 %v800, 16
        %v811 = vrot.slane %v809, 6
        %v812 = vor.u32 %v808, %v811
        %v813 = vrot.slane %v812, 4
        %v815 = vshrl.u32 %v801, 16
        %v817 = vrot.slane %v815, 5
        %v818 = vshll.u32 %v801, 16
        %v820 = vrot.slane %v818, 6
        %v821 = vor.u32 %v817, %v820
        %v822 = vsel %vm804, %v813, %v821
        %v823 = vrot.slane %v821, 4
        %vm827 = vcmask 27650
        %vm828 = vsmask.f32 7946
        %vm829 = vmand %vm827, %vm828
        %v830 = vld [vmem:[#allocation2 + $0x10] sm:$0xc]
        %v831 = vsel %vm829, %v812, %v830
        %832 = vst [vmem:[#allocation2 + $0x10] sm:$0xc] %v831
        %833 = vst.msk [vmem:[#allocation2 + $0x14] sm:$0xf] %vm329, %v822
        %vm834 = vcmask 26624
        %vm835 = vmand %vm834, %vm802
        %v836 = vld [vmem:[#allocation2 + $0x18] sm:$0x7]
        %v837 = vsel %vm835, %v823, %v836
        %838 = vst [vmem:[#allocation2 + $0x18] sm:$0x7] %v837
        %v840 = vunpack.c.l.b16 %v741
        %v841 = vunpack.c.h.b16 %v741
        %v842 = vpack.c.b16 %v840, %v840
        %v843 = vpack.c.b16 %v841, %v841
        %vm844 = vsmask.f32 3328
        %vm845 = vsmask.f32 7440
        %vm846 = vmor %vm844, %vm845
        %v848 = vshll.u32 %v842, 16
        %v850 = vrot.slane %v848, 5
        %v851 = vshrl.u32 %v842, 16
        %v853 = vrot.slane %v851, 4
        %v854 = vor.u32 %v853, %v850
        %v855 = vrot.slane %v854, 4
        %v857 = vshll.u32 %v843, 16
        %v859 = vrot.slane %v857, 5
        %v860 = vsel %vm846, %v855, %v859
        %v861 = vshrl.u32 %v843, 16
        %v863 = vrot.slane %v861, 4
        %v864 = vor.u32 %v863, %v859
        %v865 = vrot.slane %v864, 4
        %vm869 = vcmask 27651
        %vm870 = vsmask.f32 7950
        %vm871 = vmand %vm869, %vm870
        %v872 = vld [vmem:[#allocation2 + $0x18] sm:$0x8]
        %v873 = vsel %vm871, %v850, %v872
        %874 = vst [vmem:[#allocation2 + $0x18] sm:$0x8] %v873
        %875 = vst.msk [vmem:[#allocation2 + $0x1c] sm:$0xf] %vm329, %v860
        %vm876 = vcmask 27648
        %vm877 = vmand %vm876, %vm844
        %v878 = vld [vmem:[#allocation2 + $0x20] sm:$0xf]
        %v879 = vsel %vm877, %v865, %v878
        %880 = vst [vmem:[#allocation2 + $0x20] sm:$0xf] %v879
        %v882 = vunpack.c.l.b16 %v742
        %v883 = vunpack.c.h.b16 %v742
        %v884 = vpack.c.b16 %v882, %v882
        %v885 = vpack.c.b16 %v883, %v883
        %vm886 = vsmask.f32 256
        %vm887 = vsmask.f32 4368
        %vm888 = vmor %vm886, %vm887
        %v890 = vshrl.u32 %v884, 16
        %v892 = vrot.slane %v890, 7
        %v893 = vshll.u32 %v884, 16
        %v895 = vor.u32 %v892, %v893
        %v896 = vrot.slane %v892, 4
        %v898 = vshrl.u32 %v885, 16
        %v900 = vrot.slane %v898, 7
        %v901 = vshll.u32 %v885, 16
        %v903 = vor.u32 %v900, %v901
        %v904 = vsel %vm888, %v896, %v903
        %v905 = vrot.slane %v900, 4
        %vm909 = vsmask.f32 7938
        %vm910 = vmand %vm876, %vm909
        %v911 = vld [vmem:[#allocation2 + $0x24] sm:$0xf]
        %v912 = vsel %vm910, %v895, %v911
        %913 = vst [vmem:[#allocation2 + $0x24] sm:$0xf] %v912
        %914 = vst.msk [vmem:[#allocation2 + $0x28] sm:$0xf] %vm329, %v904
        %vm915 = vcmask 24576
        %vm916 = vmand %vm915, %vm886
        %v917 = vld [vmem:[#allocation2 + $0x2c] sm:$0x1]
        %v918 = vsel %vm916, %v905, %v917
        %919 = vst [vmem:[#allocation2 + $0x2c] sm:$0x1] %v918
        %v921 = vunpack.c.l.b16 %v743
        %v922 = vunpack.c.h.b16 %v743
        %v923 = vpack.c.b16 %v921, %v921
        %v924 = vpack.c.b16 %v922, %v922
        %v926 = vshrl.u32 %v923, 16
        %v928 = vrot.slane %v926, 6
        %v929 = vshll.u32 %v923, 16
        %v931 = vrot.slane %v929, 7
        %v932 = vor.u32 %v928, %v931
        %v933 = vrot.slane %v932, 4
        %v935 = vshrl.u32 %v924, 16
        %v937 = vrot.slane %v935, 6
        %v938 = vshll.u32 %v924, 16
        %v940 = vrot.slane %v938, 7
        %v941 = vor.u32 %v937, %v940
        %v942 = vsel %vm762, %v933, %v941
        %v943 = vrot.slane %v941, 4
        %v947 = vld [vmem:[#allocation2 + $0x2c] sm:$0xe]
        %v948 = vsel %vm787, %v932, %v947
        %949 = vst [vmem:[#allocation2 + $0x2c] sm:$0xe] %v948
        %950 = vst.msk [vmem:[#allocation2 + $0x30] sm:$0xf] %vm329, %v942
        %v951 = vld [vmem:[#allocation2 + $0x34] sm:$0x3]
        %v952 = vsel %vm793, %v943, %v951
        %953 = vst [vmem:[#allocation2 + $0x34] sm:$0x3] %v952
        %v955 = vunpack.c.l.b16 %v744
        %v956 = vunpack.c.h.b16 %v744
        %v957 = vpack.c.b16 %v955, %v955
        %v958 = vpack.c.b16 %v956, %v956
        %v960 = vshrl.u32 %v957, 16
        %v962 = vrot.slane %v960, 5
        %v963 = vshll.u32 %v957, 16
        %v965 = vrot.slane %v963, 6
        %v966 = vor.u32 %v962, %v965
        %v967 = vrot.slane %v966, 4
        %v969 = vshrl.u32 %v958, 16
        %v971 = vrot.slane %v969, 5
        %v972 = vshll.u32 %v958, 16
        %v974 = vrot.slane %v972, 6
        %v975 = vor.u32 %v971, %v974
        %v976 = vsel %vm804, %v967, %v975
        %v977 = vrot.slane %v975, 4
        %v981 = vld [vmem:[#allocation2 + $0x34] sm:$0xc]
        %v982 = vsel %vm829, %v966, %v981
        %983 = vst [vmem:[#allocation2 + $0x34] sm:$0xc] %v982
        %984 = vst.msk [vmem:[#allocation2 + $0x38] sm:$0xf] %vm329, %v976
        %v985 = vld [vmem:[#allocation2 + $0x3c] sm:$0x7]
        %v986 = vsel %vm835, %v977, %v985
        %987 = vst [vmem:[#allocation2 + $0x3c] sm:$0x7] %v986
        %v989 = vunpack.c.l.b16 %v745
        %v990 = vunpack.c.h.b16 %v745
        %v991 = vpack.c.b16 %v989, %v989
        %v992 = vpack.c.b16 %v990, %v990
        %v994 = vshll.u32 %v991, 16
        %v996 = vrot.slane %v994, 5
        %v997 = vshrl.u32 %v991, 16
        %v999 = vrot.slane %v997, 4
        %v1000 = vor.u32 %v999, %v996
        %v1001 = vrot.slane %v1000, 4
        %v1003 = vshll.u32 %v992, 16
        %v1005 = vrot.slane %v1003, 5
        %v1006 = vsel %vm846, %v1001, %v1005
        %v1007 = vshrl.u32 %v992, 16
        %v1009 = vrot.slane %v1007, 4
        %v1010 = vor.u32 %v1009, %v1005
        %v1011 = vrot.slane %v1010, 4
        %v1015 = vld [vmem:[#allocation2 + $0x3c] sm:$0x8]
        %v1016 = vsel %vm871, %v996, %v1015
        %1017 = vst [vmem:[#allocation2 + $0x3c] sm:$0x8] %v1016
        %1018 = vst.msk [vmem:[#allocation2 + $0x40] sm:$0xf] %vm329, %v1006
        %v1019 = vld [vmem:[#allocation2 + $0x44] sm:$0xf]
        %v1020 = vsel %vm877, %v1011, %v1019
        %1021 = vst [vmem:[#allocation2 + $0x44] sm:$0xf] %v1020
        %v1023 = vunpack.c.l.b16 %v746
        %v1024 = vunpack.c.h.b16 %v746
        %v1025 = vpack.c.b16 %v1023, %v1023
        %v1026 = vpack.c.b16 %v1024, %v1024
        %v1028 = vshrl.u32 %v1025, 16
        %v1030 = vrot.slane %v1028, 7
        %v1031 = vshll.u32 %v1025, 16
        %v1033 = vor.u32 %v1030, %v1031
        %v1034 = vrot.slane %v1030, 4
        %v1036 = vshrl.u32 %v1026, 16
        %v1038 = vrot.slane %v1036, 7
        %v1039 = vshll.u32 %v1026, 16
        %v1041 = vor.u32 %v1038, %v1039
        %v1042 = vsel %vm888, %v1034, %v1041
        %v1043 = vrot.slane %v1038, 4
        %v1047 = vld [vmem:[#allocation2 + $0x48] sm:$0xf]
        %v1048 = vsel %vm910, %v1033, %v1047
        %1049 = vst [vmem:[#allocation2 + $0x48] sm:$0xf] %v1048
        %1050 = vst.msk [vmem:[#allocation2 + $0x4c] sm:$0xf] %vm329, %v1042
        %v1051 = vld [vmem:[#allocation2 + $0x50] sm:$0x1]
        %v1052 = vsel %vm916, %v1043, %v1051
        %1053 = vst [vmem:[#allocation2 + $0x50] sm:$0x1] %v1052
        %v1055 = vunpack.c.l.b16 %v747
        %v1056 = vunpack.c.h.b16 %v747
        %v1057 = vpack.c.b16 %v1055, %v1055
        %v1058 = vpack.c.b16 %v1056, %v1056
        %v1060 = vshrl.u32 %v1057, 16
        %v1062 = vrot.slane %v1060, 6
        %v1063 = vshll.u32 %v1057, 16
        %v1065 = vrot.slane %v1063, 7
        %v1066 = vor.u32 %v1062, %v1065
        %v1067 = vrot.slane %v1066, 4
        %v1069 = vshrl.u32 %v1058, 16
        %v1071 = vrot.slane %v1069, 6
        %v1072 = vshll.u32 %v1058, 16
        %v1074 = vrot.slane %v1072, 7
        %v1075 = vor.u32 %v1071, %v1074
        %v1076 = vsel %vm762, %v1067, %v1075
        %v1077 = vrot.slane %v1075, 4
        %v1081 = vld [vmem:[#allocation2 + $0x50] sm:$0xe]
        %v1082 = vsel %vm787, %v1066, %v1081
        %1083 = vst [vmem:[#allocation2 + $0x50] sm:$0xe] %v1082
        %1084 = vst.msk [vmem:[#allocation2 + $0x54] sm:$0xf] %vm329, %v1076
        %v1085 = vld [vmem:[#allocation2 + $0x58] sm:$0x3]
        %v1086 = vsel %vm793, %v1077, %v1085
        %1087 = vst [vmem:[#allocation2 + $0x58] sm:$0x3] %v1086
        %v1089 = vunpack.c.l.b16 %v748
        %v1090 = vunpack.c.h.b16 %v748
        %v1091 = vpack.c.b16 %v1089, %v1089
        %v1092 = vpack.c.b16 %v1090, %v1090
        %v1094 = vshrl.u32 %v1091, 16
        %v1096 = vrot.slane %v1094, 5
        %v1097 = vshll.u32 %v1091, 16
        %v1099 = vrot.slane %v1097, 6
        %v1100 = vor.u32 %v1096, %v1099
        %v1101 = vrot.slane %v1100, 4
        %v1103 = vshrl.u32 %v1092, 16
        %v1105 = vrot.slane %v1103, 5
        %v1106 = vshll.u32 %v1092, 16
        %v1108 = vrot.slane %v1106, 6
        %v1109 = vor.u32 %v1105, %v1108
        %v1110 = vsel %vm804, %v1101, %v1109
        %v1111 = vrot.slane %v1109, 4
        %v1115 = vld [vmem:[#allocation2 + $0x58] sm:$0xc]
        %v1116 = vsel %vm829, %v1100, %v1115
        %1117 = vst [vmem:[#allocation2 + $0x58] sm:$0xc] %v1116
        %1118 = vst.msk [vmem:[#allocation2 + $0x5c] sm:$0xf] %vm329, %v1110
        %v1119 = vld [vmem:[#allocation2 + $0x60] sm:$0x7]
        %v1120 = vsel %vm835, %v1111, %v1119
        %1121 = vst [vmem:[#allocation2 + $0x60] sm:$0x7] %v1120
        %v1123 = vunpack.c.l.b16 %v749
        %v1124 = vunpack.c.h.b16 %v749
        %v1125 = vpack.c.b16 %v1123, %v1123
        %v1126 = vpack.c.b16 %v1124, %v1124
        %v1128 = vshll.u32 %v1125, 16
        %v1130 = vrot.slane %v1128, 5
        %v1131 = vshrl.u32 %v1125, 16
        %v1133 = vrot.slane %v1131, 4
        %v1134 = vor.u32 %v1133, %v1130
        %v1135 = vrot.slane %v1134, 4
        %v1137 = vshll.u32 %v1126, 16
        %v1139 = vrot.slane %v1137, 5
        %v1140 = vsel %vm846, %v1135, %v1139
        %v1141 = vshrl.u32 %v1126, 16
        %v1143 = vrot.slane %v1141, 4
        %v1144 = vor.u32 %v1143, %v1139
        %v1145 = vrot.slane %v1144, 4
        %v1149 = vld [vmem:[#allocation2 + $0x60] sm:$0x8]
        %v1150 = vsel %vm871, %v1130, %v1149
        %1151 = vst [vmem:[#allocation2 + $0x60] sm:$0x8] %v1150
        %1152 = vst.msk [vmem:[#allocation2 + $0x64] sm:$0xf] %vm329, %v1140
        %v1153 = vld [vmem:[#allocation2 + $0x68] sm:$0xf]
        %v1154 = vsel %vm877, %v1145, %v1153
        %1155 = vst [vmem:[#allocation2 + $0x68] sm:$0xf] %v1154
        %v1157 = vunpack.c.l.b16 %v750
        %v1158 = vunpack.c.h.b16 %v750
        %v1159 = vpack.c.b16 %v1157, %v1157
        %v1160 = vpack.c.b16 %v1158, %v1158
        %v1162 = vshrl.u32 %v1159, 16
        %v1164 = vrot.slane %v1162, 7
        %v1165 = vshll.u32 %v1159, 16
        %v1167 = vor.u32 %v1164, %v1165
        %v1168 = vrot.slane %v1164, 4
        %v1170 = vshrl.u32 %v1160, 16
        %v1172 = vrot.slane %v1170, 7
        %v1173 = vshll.u32 %v1160, 16
        %v1175 = vor.u32 %v1172, %v1173
        %v1176 = vsel %vm888, %v1168, %v1175
        %v1177 = vrot.slane %v1172, 4
        %v1181 = vld [vmem:[#allocation2 + $0x6c] sm:$0xf]
        %v1182 = vsel %vm910, %v1167, %v1181
        %1183 = vst [vmem:[#allocation2 + $0x6c] sm:$0xf] %v1182
        %1184 = vst.msk [vmem:[#allocation2 + $0x70] sm:$0xf] %vm329, %v1176
        %v1185 = vld [vmem:[#allocation2 + $0x74] sm:$0x1]
        %v1186 = vsel %vm916, %v1177, %v1185
        %1187 = vst [vmem:[#allocation2 + $0x74] sm:$0x1] %v1186
        %v1189 = vunpack.c.l.b16 %v751
        %v1190 = vunpack.c.h.b16 %v751
        %v1191 = vpack.c.b16 %v1189, %v1189
        %v1192 = vpack.c.b16 %v1190, %v1190
        %v1194 = vshrl.u32 %v1191, 16
        %v1196 = vrot.slane %v1194, 6
        %v1197 = vshll.u32 %v1191, 16
        %v1199 = vrot.slane %v1197, 7
        %v1200 = vor.u32 %v1196, %v1199
        %v1201 = vrot.slane %v1200, 4
        %v1203 = vshrl.u32 %v1192, 16
        %v1205 = vrot.slane %v1203, 6
        %v1206 = vshll.u32 %v1192, 16
        %v1208 = vrot.slane %v1206, 7
        %v1209 = vor.u32 %v1205, %v1208
        %v1210 = vsel %vm762, %v1201, %v1209
        %v1211 = vrot.slane %v1209, 4
        %v1215 = vld [vmem:[#allocation2 + $0x74] sm:$0xe]
        %v1216 = vsel %vm787, %v1200, %v1215
        %1217 = vst [vmem:[#allocation2 + $0x74] sm:$0xe] %v1216
        %1218 = vst.msk [vmem:[#allocation2 + $0x78] sm:$0xf] %vm329, %v1210
        %v1219 = vld [vmem:[#allocation2 + $0x7c] sm:$0x3]
        %v1220 = vsel %vm793, %v1211, %v1219
        %1221 = vst [vmem:[#allocation2 + $0x7c] sm:$0x3] %v1220
        %v1223 = vunpack.c.l.b16 %v752
        %v1224 = vunpack.c.h.b16 %v752
        %v1225 = vpack.c.b16 %v1223, %v1223
        %v1226 = vpack.c.b16 %v1224, %v1224
        %v1228 = vshrl.u32 %v1225, 16
        %v1230 = vrot.slane %v1228, 5
        %v1231 = vshll.u32 %v1225, 16
        %v1233 = vrot.slane %v1231, 6
        %v1234 = vor.u32 %v1230, %v1233
        %v1235 = vrot.slane %v1234, 4
        %v1237 = vshrl.u32 %v1226, 16
        %v1239 = vrot.slane %v1237, 5
        %v1240 = vshll.u32 %v1226, 16
        %v1242 = vrot.slane %v1240, 6
        %v1243 = vor.u32 %v1239, %v1242
        %v1244 = vsel %vm804, %v1235, %v1243
        %v1245 = vrot.slane %v1243, 4
        %v1249 = vld [vmem:[#allocation2 + $0x7c] sm:$0xc]
        %v1250 = vsel %vm829, %v1234, %v1249
        %1251 = vst [vmem:[#allocation2 + $0x7c] sm:$0xc] %v1250
        %1252 = vst.msk [vmem:[#allocation2 + $0x80] sm:$0xf] %vm329, %v1244
        %v1253 = vld [vmem:[#allocation2 + $0x84] sm:$0x7]
        %v1254 = vsel %vm835, %v1245, %v1253
        %1255 = vst [vmem:[#allocation2 + $0x84] sm:$0x7] %v1254
        %v1257 = vunpack.c.l.b16 %v753
        %v1258 = vunpack.c.h.b16 %v753
        %v1259 = vpack.c.b16 %v1257, %v1257
        %v1260 = vpack.c.b16 %v1258, %v1258
        %v1262 = vshll.u32 %v1259, 16
        %v1264 = vrot.slane %v1262, 5
        %v1265 = vshrl.u32 %v1259, 16
        %v1267 = vrot.slane %v1265, 4
        %v1268 = vor.u32 %v1267, %v1264
        %v1269 = vrot.slane %v1268, 4
        %v1271 = vshll.u32 %v1260, 16
        %v1273 = vrot.slane %v1271, 5
        %v1274 = vsel %vm846, %v1269, %v1273
        %v1275 = vshrl.u32 %v1260, 16
        %v1277 = vrot.slane %v1275, 4
        %v1278 = vor.u32 %v1277, %v1273
        %v1279 = vrot.slane %v1278, 4
        %v1283 = vld [vmem:[#allocation2 + $0x84] sm:$0x8]
        %v1284 = vsel %vm871, %v1264, %v1283
        %1285 = vst [vmem:[#allocation2 + $0x84] sm:$0x8] %v1284
        %1286 = vst.msk [vmem:[#allocation2 + $0x88] sm:$0xf] %vm329, %v1274
        %v1287 = vld [vmem:[#allocation2 + $0x8c] sm:$0xf]
        %v1288 = vsel %vm877, %v1279, %v1287
        %1289 = vst [vmem:[#allocation2 + $0x8c] sm:$0xf] %v1288
        %v1291 = vunpack.c.l.b16 %v754
        %v1292 = vunpack.c.h.b16 %v754
        %v1293 = vpack.c.b16 %v1291, %v1291
        %v1294 = vpack.c.b16 %v1292, %v1292
        %v1296 = vshrl.u32 %v1293, 16
        %v1298 = vrot.slane %v1296, 7
        %v1299 = vshll.u32 %v1293, 16
        %v1301 = vor.u32 %v1298, %v1299
        %v1302 = vrot.slane %v1298, 4
        %v1304 = vshrl.u32 %v1294, 16
        %v1306 = vrot.slane %v1304, 7
        %v1307 = vshll.u32 %v1294, 16
        %v1309 = vor.u32 %v1306, %v1307
        %v1310 = vsel %vm888, %v1302, %v1309
        %v1311 = vrot.slane %v1306, 4
        %v1315 = vld [vmem:[#allocation2 + $0x90] sm:$0xf]
        %v1316 = vsel %vm910, %v1301, %v1315
        %1317 = vst [vmem:[#allocation2 + $0x90] sm:$0xf] %v1316
        %1318 = vst.msk [vmem:[#allocation2 + $0x94] sm:$0xf] %vm329, %v1310
        %v1319 = vld [vmem:[#allocation2 + $0x98] sm:$0x1]
        %v1320 = vsel %vm916, %v1311, %v1319
        %1321 = vst [vmem:[#allocation2 + $0x98] sm:$0x1] %v1320
        %v1322 = vld [vmem:[#allocation2] sm:$0xf]
        %v1323 = vld [vmem:[#allocation2 + $0x4] sm:$0xf]
        %v1324 = vld [vmem:[#allocation2 + $0x8] sm:$0xf]
        %v1325 = vld [vmem:[#allocation2 + $0xc] sm:$0xf]
        %v1326 = vld [vmem:[#allocation2 + $0x10] sm:$0xf]
        %v1327 = vld [vmem:[#allocation2 + $0x14] sm:$0xf]
        %v1328 = vld [vmem:[#allocation2 + $0x18] sm:$0xf]
        %v1329 = vld [vmem:[#allocation2 + $0x1c] sm:$0xf]
        %v1330 = vld [vmem:[#allocation2 + $0x20] sm:$0xf]
        %v1331 = vld [vmem:[#allocation2 + $0x24] sm:$0xf]
        %v1332 = vld [vmem:[#allocation2 + $0x28] sm:$0xf]
        %v1333 = vld [vmem:[#allocation2 + $0x2c] sm:$0xf]
        %v1334 = vld [vmem:[#allocation2 + $0x30] sm:$0xf]
        %v1335 = vld [vmem:[#allocation2 + $0x34] sm:$0xf]
        %v1336 = vld [vmem:[#allocation2 + $0x38] sm:$0xf]
        %v1337 = vld [vmem:[#allocation2 + $0x3c] sm:$0xf]
        %v1338 = vld [vmem:[#allocation2 + $0x40] sm:$0xf]
        %v1339 = vld [vmem:[#allocation2 + $0x44] sm:$0xf]
        %v1340 = vld [vmem:[#allocation2 + $0x48] sm:$0xf]
        %v1341 = vld [vmem:[#allocation2 + $0x4c] sm:$0xf]
        %v1342 = vld [vmem:[#allocation2 + $0x50] sm:$0xf]
        %v1343 = vld [vmem:[#allocation2 + $0x54] sm:$0xf]
        %v1344 = vld [vmem:[#allocation2 + $0x58] sm:$0xf]
        %v1345 = vld [vmem:[#allocation2 + $0x5c] sm:$0xf]
        %v1346 = vld [vmem:[#allocation2 + $0x60] sm:$0xf]
        %v1347 = vld [vmem:[#allocation2 + $0x64] sm:$0xf]
        %v1348 = vld [vmem:[#allocation2 + $0x68] sm:$0xf]
        %v1349 = vld [vmem:[#allocation2 + $0x6c] sm:$0xf]
        %v1350 = vld [vmem:[#allocation2 + $0x70] sm:$0xf]
        %v1351 = vld [vmem:[#allocation2 + $0x74] sm:$0xf]
        %v1352 = vld [vmem:[#allocation2 + $0x78] sm:$0xf]
        %v1353 = vld [vmem:[#allocation2 + $0x7c] sm:$0xf]
        %v1354 = vld [vmem:[#allocation2 + $0x80] sm:$0xf]
        %v1355 = vld [vmem:[#allocation2 + $0x84] sm:$0xf]
        %v1356 = vld [vmem:[#allocation2 + $0x88] sm:$0xf]
        %v1357 = vld [vmem:[#allocation2 + $0x8c] sm:$0xf]
        %v1358 = vld [vmem:[#allocation9] sm:$0x3]
        %v1359 = vld [vmem:[#allocation2 + $0x90] sm:$0x1]
        %v1360 = vld [vmem:[#allocation9] sm:$0xc]
        %v1398 = vunpack.c.l.b16 %v1322
        %v1399 = vunpack.c.l.b16 %v1323
        %v1400 = vunpack.c.l.b16 %v1324
        %v1401 = vunpack.c.l.b16 %v1325
        %v1402 = vunpack.c.l.b16 %v1326
        %v1403 = vunpack.c.l.b16 %v1327
        %v1404 = vunpack.c.l.b16 %v1328
        %v1405 = vunpack.c.l.b16 %v1329
        %v1406 = vunpack.c.l.b16 %v1330
        %v1407 = vunpack.c.l.b16 %v1331
        %v1408 = vunpack.c.l.b16 %v1332
        %v1409 = vunpack.c.l.b16 %v1333
        %v1410 = vunpack.c.l.b16 %v1334
        %v1411 = vunpack.c.l.b16 %v1335
        %v1412 = vunpack.c.l.b16 %v1336
        %v1413 = vunpack.c.l.b16 %v1337
        %v1414 = vunpack.c.l.b16 %v1338
        %v1415 = vunpack.c.l.b16 %v1339
        %v1416 = vunpack.c.l.b16 %v1340
        %v1417 = vunpack.c.l.b16 %v1341
        %v1418 = vunpack.c.l.b16 %v1342
        %v1419 = vunpack.c.l.b16 %v1343
        %v1420 = vunpack.c.l.b16 %v1344
        %v1421 = vunpack.c.l.b16 %v1345
        %v1422 = vunpack.c.l.b16 %v1346
        %v1423 = vunpack.c.l.b16 %v1347
        %v1424 = vunpack.c.l.b16 %v1348
        %v1425 = vunpack.c.l.b16 %v1349
        %v1426 = vunpack.c.l.b16 %v1350
        %v1427 = vunpack.c.l.b16 %v1351
        %v1428 = vunpack.c.l.b16 %v1352
        %v1429 = vunpack.c.l.b16 %v1353
        %v1430 = vunpack.c.l.b16 %v1354
        %v1431 = vunpack.c.l.b16 %v1355
        %v1432 = vunpack.c.l.b16 %v1356
        %v1433 = vunpack.c.l.b16 %v1357
        %v1434 = vunpack.c.l.b16 %v1359
        %v1435 = vpack.c.b16 %v1399, %v1398
        %v1436 = vpack.c.b16 %v1401, %v1400
        %v1437 = vpack.c.b16 %v1403, %v1402
        %v1438 = vpack.c.b16 %v1405, %v1404
        %v1439 = vpack.c.b16 %v1407, %v1406
        %v1440 = vpack.c.b16 %v1409, %v1408
        %v1441 = vpack.c.b16 %v1411, %v1410
        %v1442 = vpack.c.b16 %v1413, %v1412
        %v1443 = vpack.c.b16 %v1415, %v1414
        %v1444 = vpack.c.b16 %v1417, %v1416
        %v1445 = vpack.c.b16 %v1419, %v1418
        %v1446 = vpack.c.b16 %v1421, %v1420
        %v1447 = vpack.c.b16 %v1423, %v1422
        %v1448 = vpack.c.b16 %v1425, %v1424
        %v1449 = vpack.c.b16 %v1427, %v1426
        %v1450 = vpack.c.b16 %v1429, %v1428
        %v1451 = vpack.c.b16 %v1431, %v1430
        %v1452 = vpack.c.b16 %v1433, %v1432
        %v1453 = vpack.c.b16 %v1434, %v1434
        %vm1454 = vsmask.f32 7424
        %v1456 = vshrl.u32 %v1435, 16
        %v1458 = vshll.u32 %v1435, 16
        %v1460 = vrot.slane %v1458, 1
        %v1461 = vor.u32 %v1456, %v1460
        %v1463 = vshll.u32 %v1436, 16
        %v1465 = vrot.slane %v1463, 1
        %v1466 = vsel %vm1454, %v1461, %v1465
        %v1467 = vshrl.u32 %v1436, 16
        %v1469 = vor.u32 %v1467, %v1465
        %v1471 = vshll.u32 %v1437, 16
        %v1473 = vrot.slane %v1471, 1
        %v1474 = vsel %vm1454, %v1469, %v1473
        %v1475 = vshrl.u32 %v1437, 16
        %v1477 = vor.u32 %v1475, %v1473
        %v1479 = vshll.u32 %v1438, 16
        %v1481 = vrot.slane %v1479, 1
        %v1482 = vsel %vm1454, %v1477, %v1481
        %v1483 = vshrl.u32 %v1438, 16
        %v1485 = vor.u32 %v1483, %v1481
        %v1487 = vshll.u32 %v1439, 16
        %v1489 = vrot.slane %v1487, 1
        %v1490 = vsel %vm1454, %v1485, %v1489
        %v1491 = vshrl.u32 %v1439, 16
        %v1493 = vor.u32 %v1491, %v1489
        %v1495 = vshll.u32 %v1440, 16
        %v1497 = vrot.slane %v1495, 1
        %v1498 = vsel %vm1454, %v1493, %v1497
        %v1499 = vshrl.u32 %v1440, 16
        %v1501 = vor.u32 %v1499, %v1497
        %v1503 = vshll.u32 %v1441, 16
        %v1505 = vrot.slane %v1503, 1
        %v1506 = vsel %vm1454, %v1501, %v1505
        %v1507 = vshrl.u32 %v1441, 16
        %v1509 = vor.u32 %v1507, %v1505
        %v1511 = vshll.u32 %v1442, 16
        %v1513 = vrot.slane %v1511, 1
        %v1514 = vsel %vm1454, %v1509, %v1513
        %v1515 = vshrl.u32 %v1442, 16
        %v1517 = vor.u32 %v1515, %v1513
        %v1519 = vshll.u32 %v1443, 16
        %v1521 = vrot.slane %v1519, 1
        %v1522 = vsel %vm1454, %v1517, %v1521
        %v1523 = vshrl.u32 %v1443, 16
        %v1525 = vor.u32 %v1523, %v1521
        %v1527 = vshll.u32 %v1444, 16
        %v1529 = vrot.slane %v1527, 1
        %v1530 = vsel %vm1454, %v1525, %v1529
        %v1531 = vshrl.u32 %v1444, 16
        %v1533 = vor.u32 %v1531, %v1529
        %v1535 = vshll.u32 %v1445, 16
        %v1537 = vrot.slane %v1535, 1
        %v1538 = vsel %vm1454, %v1533, %v1537
        %v1539 = vshrl.u32 %v1445, 16
        %v1541 = vor.u32 %v1539, %v1537
        %v1543 = vshll.u32 %v1446, 16
        %v1545 = vrot.slane %v1543, 1
        %v1546 = vsel %vm1454, %v1541, %v1545
        %v1547 = vshrl.u32 %v1446, 16
        %v1549 = vor.u32 %v1547, %v1545
        %v1551 = vshll.u32 %v1447, 16
        %v1553 = vrot.slane %v1551, 1
        %v1554 = vsel %vm1454, %v1549, %v1553
        %v1555 = vshrl.u32 %v1447, 16
        %v1557 = vor.u32 %v1555, %v1553
        %v1559 = vshll.u32 %v1448, 16
        %v1561 = vrot.slane %v1559, 1
        %v1562 = vsel %vm1454, %v1557, %v1561
        %v1563 = vshrl.u32 %v1448, 16
        %v1565 = vor.u32 %v1563, %v1561
        %v1567 = vshll.u32 %v1449, 16
        %v1569 = vrot.slane %v1567, 1
        %v1570 = vsel %vm1454, %v1565, %v1569
        %v1571 = vshrl.u32 %v1449, 16
        %v1573 = vor.u32 %v1571, %v1569
        %v1575 = vshll.u32 %v1450, 16
        %v1577 = vrot.slane %v1575, 1
        %v1578 = vsel %vm1454, %v1573, %v1577
        %v1579 = vshrl.u32 %v1450, 16
        %v1581 = vor.u32 %v1579, %v1577
        %v1583 = vshll.u32 %v1451, 16
        %v1585 = vrot.slane %v1583, 1
        %v1586 = vsel %vm1454, %v1581, %v1585
        %v1587 = vshrl.u32 %v1451, 16
        %v1589 = vor.u32 %v1587, %v1585
        %v1591 = vshll.u32 %v1452, 16
        %v1593 = vrot.slane %v1591, 1
        %v1594 = vsel %vm1454, %v1589, %v1593
        %v1595 = vshrl.u32 %v1452, 16
        %v1597 = vor.u32 %v1595, %v1593
        %v1599 = vshll.u32 %v1453, 16
        %v1601 = vrot.slane %v1599, 1
        %v1602 = vsel %vm1454, %v1597, %v1601
        %v1604 = vunpack.c.l.b16 %v1360
        %v1605 = vpack.c.b16 %v1604, %v1604
        %v1606 = vrot.slane %v1605, 2
        %vm1607 = vcmask 31744
        %v1609 = vsel %vm1607, %v1466, 0
        %v1612 = vsel %vm1607, %v1474, 0
        %v1615 = vsel %vm1607, %v1482, 0
        %v1618 = vsel %vm1607, %v1490, 0
        %v1621 = vsel %vm1607, %v1498, 0
        %v1624 = vsel %vm1607, %v1506, 0
        %v1627 = vsel %vm1607, %v1514, 0
        %v1630 = vsel %vm1607, %v1522, 0
        %v1633 = vsel %vm1607, %v1530, 0
        %v1636 = vsel %vm1607, %v1538, 0
        %v1639 = vsel %vm1607, %v1546, 0
        %v1642 = vsel %vm1607, %v1554, 0
        %v1645 = vsel %vm1607, %v1562, 0
        %v1648 = vsel %vm1607, %v1570, 0
        %v1651 = vsel %vm1607, %v1578, 0
        %v1654 = vsel %vm1607, %v1586, 0
        %v1657 = vsel %vm1607, %v1594, 0
        %v1660 = vsel %vm1607, %v1602, 0
        %vm1662 = vcmask 1041408
        %v1664 = vsel %vm1662, %v1606, 0
        %1666 = vmatprep.subr.bf16.mxu0 0
        %1667 = vmatpush1.bf16.msra.mxu0 %v1664
        %1668 = vmatprep.subr.bf16.mxu0 0
        %1669 = vmatpush1.bf16.msra.mxu0 0
        %1670 = vmatprep.subr.bf16.mxu0 0
        %1671 = vmatpush1.bf16.msra.mxu0 0
        %1672 = vmatprep.subr.bf16.mxu0 0
        %1673 = vmatpush1.bf16.msra.mxu0 0
        %1674 = vmatprep.subr.bf16.mxu0 0
        %1675 = vmatpush1.bf16.msra.mxu0 0
        %1676 = vmatprep.subr.bf16.mxu0 0
        %1677 = vmatpush1.bf16.msra.mxu0 0
        %1678 = vmatprep.subr.bf16.mxu0 0
        %1679 = vmatpush1.bf16.msra.mxu0 0
        %1680 = vmatprep.subr.bf16.mxu0 0
        %1681 = vmatpush1.bf16.msra.mxu0 0
        %1682 = vmatprep.subr.bf16.mxu0 0
        %1683 = vmatpush1.bf16.msra.mxu0 0
        %1684 = vmatprep.subr.bf16.mxu0 0
        %1685 = vmatpush1.bf16.msra.mxu0 0
        %1686 = vmatprep.subr.bf16.mxu0 0
        %1687 = vmatpush1.bf16.msra.mxu0 0
        %1688 = vmatprep.subr.bf16.mxu0 0
        %1689 = vmatpush1.bf16.msra.mxu0 0
        %1690 = vmatprep.subr.bf16.mxu0 0
        %1691 = vmatpush1.bf16.msra.mxu0 0
        %1692 = vmatprep.subr.bf16.mxu0 0
        %1693 = vmatpush1.bf16.msra.mxu0 0
        %1694 = vmatprep.subr.bf16.mxu0 0
        %1695 = vmatpush1.bf16.msra.mxu0 0
        %1696 = vmatprep.subr.bf16.mxu0 0
        %1697 = vmatpush1.bf16.msra.mxu0 0
        %1698 = vmatprep.mubr.bf16.mxu0 0
        %1699 = vmatmul.mubr.bf16.gmra.mrb[0].mxu0 %v1609
        %v1700 = vpop.f32.mrb[0].mxu0
        %v1701 = vadd.f32 0.0, %v1700
        %v1702 = vpop.f32.mrb[0].mxu0
        %v1703 = vpop.f32.mrb[0].mxu0
        %v1704 = vadd.f32 0.0, %v1703
        %v1705 = vpop.f32.mrb[0].mxu0
        %1706 = vmatprep.mubr.bf16.mxu0 0
        %1707 = vmatmul.mubr.bf16.gmra.mrb[0].mxu0 %v1612
        %v1708 = vpop.f32.mrb[0].mxu0
        %v1709 = vadd.f32 0.0, %v1708
        %v1710 = vpop.f32.mrb[0].mxu0
        %v1711 = vpop.f32.mrb[0].mxu0
        %v1712 = vadd.f32 0.0, %v1711
        %v1713 = vpop.f32.mrb[0].mxu0
        %1714 = vmatprep.mubr.bf16.mxu0 0
        %1715 = vmatmul.mubr.bf16.gmra.mrb[0].mxu0 %v1615
        %v1716 = vpop.f32.mrb[0].mxu0
        %v1717 = vadd.f32 0.0, %v1716
        %v1718 = vpop.f32.mrb[0].mxu0
        %v1719 = vpop.f32.mrb[0].mxu0
        %v1720 = vadd.f32 0.0, %v1719
        %v1721 = vpop.f32.mrb[0].mxu0
        %1722 = vmatprep.mubr.bf16.mxu0 0
        %1723 = vmatmul.mubr.bf16.gmra.mrb[0].mxu0 %v1618
        %v1724 = vpop.f32.mrb[0].mxu0
        %v1725 = vadd.f32 0.0, %v1724
        %v1726 = vpop.f32.mrb[0].mxu0
        %v1727 = vpop.f32.mrb[0].mxu0
        %v1728 = vadd.f32 0.0, %v1727
        %v1729 = vpop.f32.mrb[0].mxu0
        %1730 = vmatprep.mubr.bf16.mxu0 0
        %1731 = vmatmul.mubr.bf16.gmra.mrb[0].mxu0 %v1621
        %v1732 = vpop.f32.mrb[0].mxu0
        %v1733 = vadd.f32 0.0, %v1732
        %v1734 = vpop.f32.mrb[0].mxu0
        %v1735 = vpop.f32.mrb[0].mxu0
        %v1736 = vadd.f32 0.0, %v1735
        %v1737 = vpop.f32.mrb[0].mxu0
        %1738 = vmatprep.mubr.bf16.mxu0 0
        %1739 = vmatmul.mubr.bf16.gmra.mrb[0].mxu0 %v1624
        %v1740 = vpop.f32.mrb[0].mxu0
        %v1741 = vadd.f32 0.0, %v1740
        %v1742 = vpop.f32.mrb[0].mxu0
        %v1743 = vpop.f32.mrb[0].mxu0
        %v1744 = vadd.f32 0.0, %v1743
        %v1745 = vpop.f32.mrb[0].mxu0
        %1746 = vmatprep.mubr.bf16.mxu0 0
        %1747 = vmatmul.mubr.bf16.gmra.mrb[0].mxu0 %v1627
        %v1748 = vpop.f32.mrb[0].mxu0
        %v1749 = vadd.f32 0.0, %v1748
        %v1750 = vpop.f32.mrb[0].mxu0
        %v1751 = vpop.f32.mrb[0].mxu0
        %v1752 = vadd.f32 0.0, %v1751
        %v1753 = vpop.f32.mrb[0].mxu0
        %1754 = vmatprep.mubr.bf16.mxu0 0
        %1755 = vmatmul.mubr.bf16.gmra.mrb[0].mxu0 %v1630
        %v1756 = vpop.f32.mrb[0].mxu0
        %v1757 = vadd.f32 0.0, %v1756
        %v1758 = vpop.f32.mrb[0].mxu0
        %v1759 = vpop.f32.mrb[0].mxu0
        %v1760 = vadd.f32 0.0, %v1759
        %v1761 = vpop.f32.mrb[0].mxu0
        %1762 = vmatprep.mubr.bf16.mxu0 0
        %1763 = vmatmul.mubr.bf16.gmra.mrb[0].mxu0 %v1633
        %v1764 = vpop.f32.mrb[0].mxu0
        %v1765 = vadd.f32 0.0, %v1764
        %v1766 = vpop.f32.mrb[0].mxu0
        %v1767 = vpop.f32.mrb[0].mxu0
        %v1768 = vadd.f32 0.0, %v1767
        %v1769 = vpop.f32.mrb[0].mxu0
        %1770 = vmatprep.mubr.bf16.mxu0 0
        %1771 = vmatmul.mubr.bf16.gmra.mrb[0].mxu0 %v1636
        %v1772 = vpop.f32.mrb[0].mxu0
        %v1773 = vadd.f32 0.0, %v1772
        %v1774 = vpop.f32.mrb[0].mxu0
        %v1775 = vpop.f32.mrb[0].mxu0
        %v1776 = vadd.f32 0.0, %v1775
        %v1777 = vpop.f32.mrb[0].mxu0
        %1778 = vmatprep.mubr.bf16.mxu0 0
        %1779 = vmatmul.mubr.bf16.gmra.mrb[0].mxu0 %v1639
        %v1780 = vpop.f32.mrb[0].mxu0
        %v1781 = vadd.f32 0.0, %v1780
        %v1782 = vpop.f32.mrb[0].mxu0
        %v1783 = vpop.f32.mrb[0].mxu0
        %v1784 = vadd.f32 0.0, %v1783
        %v1785 = vpop.f32.mrb[0].mxu0
        %1786 = vmatprep.mubr.bf16.mxu0 0
        %1787 = vmatmul.mubr.bf16.gmra.mrb[0].mxu0 %v1642
        %v1788 = vpop.f32.mrb[0].mxu0
        %v1789 = vadd.f32 0.0, %v1788
        %v1790 = vpop.f32.mrb[0].mxu0
        %v1791 = vpop.f32.mrb[0].mxu0
        %v1792 = vadd.f32 0.0, %v1791
        %v1793 = vpop.f32.mrb[0].mxu0
        %1794 = vmatprep.mubr.bf16.mxu0 0
        %1795 = vmatmul.mubr.bf16.gmra.mrb[0].mxu0 %v1645
        %v1796 = vpop.f32.mrb[0].mxu0
        %v1797 = vadd.f32 0.0, %v1796
        %v1798 = vpop.f32.mrb[0].mxu0
        %v1799 = vpop.f32.mrb[0].mxu0
        %v1800 = vadd.f32 0.0, %v1799
        %v1801 = vpop.f32.mrb[0].mxu0
        %1802 = vmatprep.mubr.bf16.mxu0 0
        %1803 = vmatmul.mubr.bf16.gmra.mrb[0].mxu0 %v1648
        %v1804 = vpop.f32.mrb[0].mxu0
        %v1805 = vadd.f32 0.0, %v1804
        %v1806 = vpop.f32.mrb[0].mxu0
        %v1807 = vpop.f32.mrb[0].mxu0
        %v1808 = vadd.f32 0.0, %v1807
        %v1809 = vpop.f32.mrb[0].mxu0
        %1810 = vmatprep.mubr.bf16.mxu0 0
        %1811 = vmatmul.mubr.bf16.gmra.mrb[0].mxu0 %v1651
        %v1812 = vpop.f32.mrb[0].mxu0
        %v1813 = vadd.f32 0.0, %v1812
        %v1814 = vpop.f32.mrb[0].mxu0
        %v1815 = vpop.f32.mrb[0].mxu0
        %v1816 = vadd.f32 0.0, %v1815
        %v1817 = vpop.f32.mrb[0].mxu0
        %1818 = vmatprep.mubr.bf16.mxu0 0
        %1819 = vmatmul.mubr.bf16.gmra.mrb[0].mxu0 %v1654
        %v1820 = vpop.f32.mrb[0].mxu0
        %v1821 = vadd.f32 0.0, %v1820
        %v1822 = vpop.f32.mrb[0].mxu0
        %v1823 = vpop.f32.mrb[0].mxu0
        %v1824 = vadd.f32 0.0, %v1823
        %v1825 = vpop.f32.mrb[0].mxu0
        %1826 = vmatprep.mubr.bf16.mxu0 0
        %1827 = vmatmul.mubr.bf16.gmra.mrb[0].mxu0 %v1657
        %v1828 = vpop.f32.mrb[0].mxu0
        %v1829 = vadd.f32 0.0, %v1828
        %v1830 = vpop.f32.mrb[0].mxu0
        %v1831 = vpop.f32.mrb[0].mxu0
        %v1832 = vadd.f32 0.0, %v1831
        %v1833 = vpop.f32.mrb[0].mxu0
        %1834 = vmatprep.mubr.bf16.mxu0 0
        %1835 = vmatmul.mubr.bf16.gmra.mrb[0].mxu0 %v1660
        %v1836 = vpop.f32.mrb[0].mxu0
        %v1837 = vadd.f32 0.0, %v1836
        %v1838 = vpop.f32.mrb[0].mxu0
        %v1839 = vpop.f32.mrb[0].mxu0
        %v1840 = vadd.f32 0.0, %v1839
        %v1841 = vpop.f32.mrb[0].mxu0
        %1842 = vdwg.mxu0
        %v1843 = vsel %vm1607, %v1435, 0
        %v1845 = vsel %vm1607, %v1436, 0
        %v1847 = vsel %vm1607, %v1437, 0
        %v1849 = vsel %vm1607, %v1438, 0
        %v1851 = vsel %vm1607, %v1439, 0
        %v1853 = vsel %vm1607, %v1440, 0
        %v1855 = vsel %vm1607, %v1441, 0
        %v1857 = vsel %vm1607, %v1442, 0
        %v1859 = vsel %vm1607, %v1443, 0
        %v1861 = vsel %vm1607, %v1444, 0
        %v1863 = vsel %vm1607, %v1445, 0
        %v1865 = vsel %vm1607, %v1446, 0
        %v1867 = vsel %vm1607, %v1447, 0
        %v1869 = vsel %vm1607, %v1448, 0
        %v1871 = vsel %vm1607, %v1449, 0
        %v1873 = vsel %vm1607, %v1450, 0
        %v1875 = vsel %vm1607, %v1451, 0
        %v1877 = vsel %vm1607, %v1452, 0
        %v1880 = vsel %vm1662, %v1358, 0
        %1882 = vmatprep.subr.bf16.mxu0 0
        %1883 = vmatpush1.bf16.msra.mxu0 %v1880
        %1884 = vmatprep.subr.bf16.mxu0 0
        %1885 = vmatpush1.bf16.msra.mxu0 0
        %1886 = vmatprep.subr.bf16.mxu0 0
        %1887 = vmatpush1.bf16.msra.mxu0 0
        %1888 = vmatprep.subr.bf16.mxu0 0
        %1889 = vmatpush1.bf16.msra.mxu0 0
        %1890 = vmatprep.subr.bf16.mxu0 0
        %1891 = vmatpush1.bf16.msra.mxu0 0
        %1892 = vmatprep.subr.bf16.mxu0 0
        %1893 = vmatpush1.bf16.msra.mxu0 0
        %1894 = vmatprep.subr.bf16.mxu0 0
        %1895 = vmatpush1.bf16.msra.mxu0 0
        %1896 = vmatprep.subr.bf16.mxu0 0
        %1897 = vmatpush1.bf16.msra.mxu0 0
        %1898 = vmatprep.subr.bf16.mxu0 0
        %1899 = vmatpush1.bf16.msra.mxu0 0
        %1900 = vmatprep.subr.bf16.mxu0 0
        %1901 = vmatpush1.bf16.msra.mxu0 0
        %1902 = vmatprep.subr.bf16.mxu0 0
        %1903 = vmatpush1.bf16.msra.mxu0 0
        %1904 = vmatprep.subr.bf16.mxu0 0
        %1905 = vmatpush1.bf16.msra.mxu0 0
        %1906 = vmatprep.subr.bf16.mxu0 0
        %1907 = vmatpush1.bf16.msra.mxu0 0
        %1908 = vmatprep.subr.bf16.mxu0 0
        %1909 = vmatpush1.bf16.msra.mxu0 0
        %1910 = vmatprep.subr.bf16.mxu0 0
        %1911 = vmatpush1.bf16.msra.mxu0 0
        %1912 = vmatprep.subr.bf16.mxu0 0
        %1913 = vmatpush1.bf16.msra.mxu0 0
        %1914 = vmatprep.mubr.bf16.mxu0 0
        %1915 = vmatmul.mubr.bf16.gmra.mrb[0].mxu0 %v1843
        %v1916 = vpop.f32.mrb[0].mxu0
        %v1917 = vadd.f32 %v1701, %v1916
        %v1918 = vpop.f32.mrb[0].mxu0
        %v1919 = vpop.f32.mrb[0].mxu0
        %v1920 = vadd.f32 %v1704, %v1919
        %v1921 = vpop.f32.mrb[0].mxu0
        %1922 = vmatprep.mubr.bf16.mxu0 0
        %1923 = vmatmul.mubr.bf16.gmra.mrb[0].mxu0 %v1845
        %v1924 = vpop.f32.mrb[0].mxu0
        %v1925 = vadd.f32 %v1709, %v1924
        %v1926 = vpop.f32.mrb[0].mxu0
        %v1927 = vpop.f32.mrb[0].mxu0
        %v1928 = vadd.f32 %v1712, %v1927
        %v1929 = vpop.f32.mrb[0].mxu0
        %1930 = vmatprep.mubr.bf16.mxu0 0
        %1931 = vmatmul.mubr.bf16.gmra.mrb[0].mxu0 %v1847
        %v1932 = vpop.f32.mrb[0].mxu0
        %v1933 = vadd.f32 %v1717, %v1932
        %v1934 = vpop.f32.mrb[0].mxu0
        %v1935 = vpop.f32.mrb[0].mxu0
        %v1936 = vadd.f32 %v1720, %v1935
        %v1937 = vpop.f32.mrb[0].mxu0
        %1938 = vmatprep.mubr.bf16.mxu0 0
        %1939 = vmatmul.mubr.bf16.gmra.mrb[0].mxu0 %v1849
        %v1940 = vpop.f32.mrb[0].mxu0
        %v1941 = vadd.f32 %v1725, %v1940
        %v1942 = vpop.f32.mrb[0].mxu0
        %v1943 = vpop.f32.mrb[0].mxu0
        %v1944 = vadd.f32 %v1728, %v1943
        %v1945 = vpop.f32.mrb[0].mxu0
        %1946 = vmatprep.mubr.bf16.mxu0 0
        %1947 = vmatmul.mubr.bf16.gmra.mrb[0].mxu0 %v1851
        %v1948 = vpop.f32.mrb[0].mxu0
        %v1949 = vadd.f32 %v1733, %v1948
        %v1950 = vpop.f32.mrb[0].mxu0
        %v1951 = vpop.f32.mrb[0].mxu0
        %v1952 = vadd.f32 %v1736, %v1951
        %v1953 = vpop.f32.mrb[0].mxu0
        %1954 = vmatprep.mubr.bf16.mxu0 0
        %1955 = vmatmul.mubr.bf16.gmra.mrb[0].mxu0 %v1853
        %v1956 = vpop.f32.mrb[0].mxu0
        %v1957 = vadd.f32 %v1741, %v1956
        %v1958 = vpop.f32.mrb[0].mxu0
        %v1959 = vpop.f32.mrb[0].mxu0
        %v1960 = vadd.f32 %v1744, %v1959
        %v1961 = vpop.f32.mrb[0].mxu0
        %1962 = vmatprep.mubr.bf16.mxu0 0
        %1963 = vmatmul.mubr.bf16.gmra.mrb[0].mxu0 %v1855
        %v1964 = vpop.f32.mrb[0].mxu0
        %v1965 = vadd.f32 %v1749, %v1964
        %v1966 = vpop.f32.mrb[0].mxu0
        %v1967 = vpop.f32.mrb[0].mxu0
        %v1968 = vadd.f32 %v1752, %v1967
        %v1969 = vpop.f32.mrb[0].mxu0
        %1970 = vmatprep.mubr.bf16.mxu0 0
        %1971 = vmatmul.mubr.bf16.gmra.mrb[0].mxu0 %v1857
        %v1972 = vpop.f32.mrb[0].mxu0
        %v1973 = vadd.f32 %v1757, %v1972
        %v1974 = vpop.f32.mrb[0].mxu0
        %v1975 = vpop.f32.mrb[0].mxu0
        %v1976 = vadd.f32 %v1760, %v1975
        %v1977 = vpop.f32.mrb[0].mxu0
        %1978 = vmatprep.mubr.bf16.mxu0 0
        %1979 = vmatmul.mubr.bf16.gmra.mrb[0].mxu0 %v1859
        %v1980 = vpop.f32.mrb[0].mxu0
        %v1981 = vadd.f32 %v1765, %v1980
        %v1982 = vpop.f32.mrb[0].mxu0
        %v1983 = vpop.f32.mrb[0].mxu0
        %v1984 = vadd.f32 %v1768, %v1983
        %v1985 = vpop.f32.mrb[0].mxu0
        %1986 = vmatprep.mubr.bf16.mxu0 0
        %1987 = vmatmul.mubr.bf16.gmra.mrb[0].mxu0 %v1861
        %v1988 = vpop.f32.mrb[0].mxu0
        %v1989 = vadd.f32 %v1773, %v1988
        %v1990 = vpop.f32.mrb[0].mxu0
        %v1991 = vpop.f32.mrb[0].mxu0
        %v1992 = vadd.f32 %v1776, %v1991
        %v1993 = vpop.f32.mrb[0].mxu0
        %1994 = vmatprep.mubr.bf16.mxu0 0
        %1995 = vmatmul.mubr.bf16.gmra.mrb[0].mxu0 %v1863
        %v1996 = vpop.f32.mrb[0].mxu0
        %v1997 = vadd.f32 %v1781, %v1996
        %v1998 = vpop.f32.mrb[0].mxu0
        %v1999 = vpop.f32.mrb[0].mxu0
        %v2000 = vadd.f32 %v1784, %v1999
        %v2001 = vpop.f32.mrb[0].mxu0
        %2002 = vmatprep.mubr.bf16.mxu0 0
        %2003 = vmatmul.mubr.bf16.gmra.mrb[0].mxu0 %v1865
        %v2004 = vpop.f32.mrb[0].mxu0
        %v2005 = vadd.f32 %v1789, %v2004
        %v2006 = vpop.f32.mrb[0].mxu0
        %v2007 = vpop.f32.mrb[0].mxu0
        %v2008 = vadd.f32 %v1792, %v2007
        %v2009 = vpop.f32.mrb[0].mxu0
        %2010 = vmatprep.mubr.bf16.mxu0 0
        %2011 = vmatmul.mubr.bf16.gmra.mrb[0].mxu0 %v1867
        %v2012 = vpop.f32.mrb[0].mxu0
        %v2013 = vadd.f32 %v1797, %v2012
        %v2014 = vpop.f32.mrb[0].mxu0
        %v2015 = vpop.f32.mrb[0].mxu0
        %v2016 = vadd.f32 %v1800, %v2015
        %v2017 = vpop.f32.mrb[0].mxu0
        %2018 = vmatprep.mubr.bf16.mxu0 0
        %2019 = vmatmul.mubr.bf16.gmra.mrb[0].mxu0 %v1869
        %v2020 = vpop.f32.mrb[0].mxu0
        %v2021 = vadd.f32 %v1805, %v2020
        %v2022 = vpop.f32.mrb[0].mxu0
        %v2023 = vpop.f32.mrb[0].mxu0
        %v2024 = vadd.f32 %v1808, %v2023
        %v2025 = vpop.f32.mrb[0].mxu0
        %2026 = vmatprep.mubr.bf16.mxu0 0
        %2027 = vmatmul.mubr.bf16.gmra.mrb[0].mxu0 %v1871
        %v2028 = vpop.f32.mrb[0].mxu0
        %v2029 = vadd.f32 %v1813, %v2028
        %v2030 = vpop.f32.mrb[0].mxu0
        %v2031 = vpop.f32.mrb[0].mxu0
        %v2032 = vadd.f32 %v1816, %v2031
        %v2033 = vpop.f32.mrb[0].mxu0
        %2034 = vmatprep.mubr.bf16.mxu0 0
        %2035 = vmatmul.mubr.bf16.gmra.mrb[0].mxu0 %v1873
        %v2036 = vpop.f32.mrb[0].mxu0
        %v2037 = vadd.f32 %v1821, %v2036
        %v2038 = vpop.f32.mrb[0].mxu0
        %v2039 = vpop.f32.mrb[0].mxu0
        %v2040 = vadd.f32 %v1824, %v2039
        %v2041 = vpop.f32.mrb[0].mxu0
        %2042 = vmatprep.mubr.bf16.mxu0 0
        %2043 = vmatmul.mubr.bf16.gmra.mrb[0].mxu0 %v1875
        %v2044 = vpop.f32.mrb[0].mxu0
        %v2045 = vadd.f32 %v1829, %v2044
        %v2046 = vpop.f32.mrb[0].mxu0
        %v2047 = vpop.f32.mrb[0].mxu0
        %v2048 = vadd.f32 %v1832, %v2047
        %v2049 = vpop.f32.mrb[0].mxu0
        %2050 = vmatprep.mubr.bf16.mxu0 0
        %2051 = vmatmul.mubr.bf16.gmra.mrb[0].mxu0 %v1877
        %v2052 = vpop.f32.mrb[0].mxu0
        %v2053 = vadd.f32 %v1837, %v2052
        %v2054 = vpop.f32.mrb[0].mxu0
        %v2055 = vpop.f32.mrb[0].mxu0
        %v2056 = vadd.f32 %v1840, %v2055
        %v2057 = vpop.f32.mrb[0].mxu0
        %2058 = vdwg.mxu0
        %v2059 = vld [vmem:[#allocation2] sm:$0xe]
        %v2060 = vld [vmem:[#allocation9 + $0x4] sm:$0x3]
        %v2062 = vunpack.c.l.b16 %v2059
        %v2063 = vpack.c.b16 %v1399, %v2062
        %vm2064 = vcmask 1046528
        %v2065 = vrot.slane %v2063, 1
        %v2066 = vrot.slane %v1436, 1
        %v2067 = vsel %vm2064, %v2065, %v2066
        %v2068 = vrot.slane %v1437, 1
        %v2069 = vsel %vm2064, %v2066, %v2068
        %v2070 = vrot.slane %v1438, 1
        %v2071 = vsel %vm2064, %v2068, %v2070
        %v2072 = vrot.slane %v1439, 1
        %v2073 = vsel %vm2064, %v2070, %v2072
        %v2074 = vrot.slane %v1440, 1
        %v2075 = vsel %vm2064, %v2072, %v2074
        %v2076 = vrot.slane %v1441, 1
        %v2077 = vsel %vm2064, %v2074, %v2076
        %v2078 = vrot.slane %v1442, 1
        %v2079 = vsel %vm2064, %v2076, %v2078
        %v2080 = vrot.slane %v1443, 1
        %v2081 = vsel %vm2064, %v2078, %v2080
        %v2082 = vrot.slane %v1444, 1
        %v2083 = vsel %vm2064, %v2080, %v2082
        %v2084 = vrot.slane %v1445, 1
        %v2085 = vsel %vm2064, %v2082, %v2084
        %v2086 = vrot.slane %v1446, 1
        %v2087 = vsel %vm2064, %v2084, %v2086
        %v2088 = vrot.slane %v1447, 1
        %v2089 = vsel %vm2064, %v2086, %v2088
        %v2090 = vrot.slane %v1448, 1
        %v2091 = vsel %vm2064, %v2088, %v2090
        %v2092 = vrot.slane %v1449, 1
        %v2093 = vsel %vm2064, %v2090, %v2092
        %v2094 = vrot.slane %v1450, 1
        %v2095 = vsel %vm2064, %v2092, %v2094
        %v2096 = vrot.slane %v1451, 1
        %v2097 = vsel %vm2064, %v2094, %v2096
        %v2098 = vrot.slane %v1452, 1
        %v2099 = vsel %vm2064, %v2096, %v2098
        %v2100 = vrot.slane %v1453, 1
        %v2101 = vsel %vm2064, %v2098, %v2100
        %v2103 = vsel %vm1607, %v2067, 0
        %v2106 = vsel %vm1607, %v2069, 0
        %v2109 = vsel %vm1607, %v2071, 0
        %v2112 = vsel %vm1607, %v2073, 0
        %v2115 = vsel %vm1607, %v2075, 0
        %v2118 = vsel %vm1607, %v2077, 0
        %v2121 = vsel %vm1607, %v2079, 0
        %v2124 = vsel %vm1607, %v2081, 0
        %v2127 = vsel %vm1607, %v2083, 0
        %v2130 = vsel %vm1607, %v2085, 0
        %v2133 = vsel %vm1607, %v2087, 0
        %v2136 = vsel %vm1607, %v2089, 0
        %v2139 = vsel %vm1607, %v2091, 0
        %v2142 = vsel %vm1607, %v2093, 0
        %v2145 = vsel %vm1607, %v2095, 0
        %v2148 = vsel %vm1607, %v2097, 0
        %v2151 = vsel %vm1607, %v2099, 0
        %v2154 = vsel %vm1607, %v2101, 0
        %v2157 = vsel %vm1662, %v2060, 0
        %2159 = vmatprep.subr.bf16.mxu0 0
        %2160 = vmatpush1.bf16.msra.mxu0 %v2157
        %2161 = vmatprep.subr.bf16.mxu0 0
        %2162 = vmatpush1.bf16.msra.mxu0 0
        %2163 = vmatprep.subr.bf16.mxu0 0
        %2164 = vmatpush1.bf16.msra.mxu0 0
        %2165 = vmatprep.subr.bf16.mxu0 0
        %2166 = vmatpush1.bf16.msra.mxu0 0
        %2167 = vmatprep.subr.bf16.mxu0 0
        %2168 = vmatpush1.bf16.msra.mxu0 0
        %2169 = vmatprep.subr.bf16.mxu0 0
        %2170 = vmatpush1.bf16.msra.mxu0 0
        %2171 = vmatprep.subr.bf16.mxu0 0
        %2172 = vmatpush1.bf16.msra.mxu0 0
        %2173 = vmatprep.subr.bf16.mxu0 0
        %2174 = vmatpush1.bf16.msra.mxu0 0
        %2175 = vmatprep.subr.bf16.mxu0 0
        %2176 = vmatpush1.bf16.msra.mxu0 0
        %2177 = vmatprep.subr.bf16.mxu0 0
        %2178 = vmatpush1.bf16.msra.mxu0 0
        %2179 = vmatprep.subr.bf16.mxu0 0
        %2180 = vmatpush1.bf16.msra.mxu0 0
        %2181 = vmatprep.subr.bf16.mxu0 0
        %2182 = vmatpush1.bf16.msra.mxu0 0
        %2183 = vmatprep.subr.bf16.mxu0 0
        %2184 = vmatpush1.bf16.msra.mxu0 0
        %2185 = vmatprep.subr.bf16.mxu0 0
        %2186 = vmatpush1.bf16.msra.mxu0 0
        %2187 = vmatprep.subr.bf16.mxu0 0
        %2188 = vmatpush1.bf16.msra.mxu0 0
        %2189 = vmatprep.subr.bf16.mxu0 0
        %2190 = vmatpush1.bf16.msra.mxu0 0
        %2191 = vmatprep.mubr.bf16.mxu0 0
        %2192 = vmatmul.mubr.bf16.gmra.mrb[0].mxu0 %v2103
        %v2193 = vpop.f32.mrb[0].mxu0
        %v2194 = vadd.f32 0.0, %v2193
        %v2195 = vpop.f32.mrb[0].mxu0
        %v2196 = vpop.f32.mrb[0].mxu0
        %v2197 = vadd.f32 0.0, %v2196
        %v2198 = vpop.f32.mrb[0].mxu0
        %2199 = vmatprep.mubr.bf16.mxu0 0
        %2200 = vmatmul.mubr.bf16.gmra.mrb[0].mxu0 %v2106
        %v2201 = vpop.f32.mrb[0].mxu0
        %v2202 = vadd.f32 0.0, %v2201
        %v2203 = vpop.f32.mrb[0].mxu0
        %v2204 = vpop.f32.mrb[0].mxu0
        %v2205 = vadd.f32 0.0, %v2204
        %v2206 = vpop.f32.mrb[0].mxu0
        %2207 = vmatprep.mubr.bf16.mxu0 0
        %2208 = vmatmul.mubr.bf16.gmra.mrb[0].mxu0 %v2109
        %v2209 = vpop.f32.mrb[0].mxu0
        %v2210 = vadd.f32 0.0, %v2209
        %v2211 = vpop.f32.mrb[0].mxu0
        %v2212 = vpop.f32.mrb[0].mxu0
        %v2213 = vadd.f32 0.0, %v2212
        %v2214 = vpop.f32.mrb[0].mxu0
        %2215 = vmatprep.mubr.bf16.mxu0 0
        %2216 = vmatmul.mubr.bf16.gmra.mrb[0].mxu0 %v2112
        %v2217 = vpop.f32.mrb[0].mxu0
        %v2218 = vadd.f32 0.0, %v2217
        %v2219 = vpop.f32.mrb[0].mxu0
        %v2220 = vpop.f32.mrb[0].mxu0
        %v2221 = vadd.f32 0.0, %v2220
        %v2222 = vpop.f32.mrb[0].mxu0
        %2223 = vmatprep.mubr.bf16.mxu0 0
        %2224 = vmatmul.mubr.bf16.gmra.mrb[0].mxu0 %v2115
        %v2225 = vpop.f32.mrb[0].mxu0
        %v2226 = vadd.f32 0.0, %v2225
        %v2227 = vpop.f32.mrb[0].mxu0
        %v2228 = vpop.f32.mrb[0].mxu0
        %v2229 = vadd.f32 0.0, %v2228
        %v2230 = vpop.f32.mrb[0].mxu0
        %2231 = vmatprep.mubr.bf16.mxu0 0
        %2232 = vmatmul.mubr.bf16.gmra.mrb[0].mxu0 %v2118
        %v2233 = vpop.f32.mrb[0].mxu0
        %v2234 = vadd.f32 0.0, %v2233
        %v2235 = vpop.f32.mrb[0].mxu0
        %v2236 = vpop.f32.mrb[0].mxu0
        %v2237 = vadd.f32 0.0, %v2236
        %v2238 = vpop.f32.mrb[0].mxu0
        %2239 = vmatprep.mubr.bf16.mxu0 0
        %2240 = vmatmul.mubr.bf16.gmra.mrb[0].mxu0 %v2121
        %v2241 = vpop.f32.mrb[0].mxu0
        %v2242 = vadd.f32 0.0, %v2241
        %v2243 = vpop.f32.mrb[0].mxu0
        %v2244 = vpop.f32.mrb[0].mxu0
        %v2245 = vadd.f32 0.0, %v2244
        %v2246 = vpop.f32.mrb[0].mxu0
        %2247 = vmatprep.mubr.bf16.mxu0 0
        %2248 = vmatmul.mubr.bf16.gmra.mrb[0].mxu0 %v2124
        %v2249 = vpop.f32.mrb[0].mxu0
        %v2250 = vadd.f32 0.0, %v2249
        %v2251 = vpop.f32.mrb[0].mxu0
        %v2252 = vpop.f32.mrb[0].mxu0
        %v2253 = vadd.f32 0.0, %v2252
        %v2254 = vpop.f32.mrb[0].mxu0
        %2255 = vmatprep.mubr.bf16.mxu0 0
        %2256 = vmatmul.mubr.bf16.gmra.mrb[0].mxu0 %v2127
        %v2257 = vpop.f32.mrb[0].mxu0
        %v2258 = vadd.f32 0.0, %v2257
        %v2259 = vpop.f32.mrb[0].mxu0
        %v2260 = vpop.f32.mrb[0].mxu0
        %v2261 = vadd.f32 0.0, %v2260
        %v2262 = vpop.f32.mrb[0].mxu0
        %2263 = vmatprep.mubr.bf16.mxu0 0
        %2264 = vmatmul.mubr.bf16.gmra.mrb[0].mxu0 %v2130
        %v2265 = vpop.f32.mrb[0].mxu0
        %v2266 = vadd.f32 0.0, %v2265
        %v2267 = vpop.f32.mrb[0].mxu0
        %v2268 = vpop.f32.mrb[0].mxu0
        %v2269 = vadd.f32 0.0, %v2268
        %v2270 = vpop.f32.mrb[0].mxu0
        %2271 = vmatprep.mubr.bf16.mxu0 0
        %2272 = vmatmul.mubr.bf16.gmra.mrb[0].mxu0 %v2133
        %v2273 = vpop.f32.mrb[0].mxu0
        %v2274 = vadd.f32 0.0, %v2273
        %v2275 = vpop.f32.mrb[0].mxu0
        %v2276 = vpop.f32.mrb[0].mxu0
        %v2277 = vadd.f32 0.0, %v2276
        %v2278 = vpop.f32.mrb[0].mxu0
        %2279 = vmatprep.mubr.bf16.mxu0 0
        %2280 = vmatmul.mubr.bf16.gmra.mrb[0].mxu0 %v2136
        %v2281 = vpop.f32.mrb[0].mxu0
        %v2282 = vadd.f32 0.0, %v2281
        %v2283 = vpop.f32.mrb[0].mxu0
        %v2284 = vpop.f32.mrb[0].mxu0
        %v2285 = vadd.f32 0.0, %v2284
        %v2286 = vpop.f32.mrb[0].mxu0
        %2287 = vmatprep.mubr.bf16.mxu0 0
        %2288 = vmatmul.mubr.bf16.gmra.mrb[0].mxu0 %v2139
        %v2289 = vpop.f32.mrb[0].mxu0
        %v2290 = vadd.f32 0.0, %v2289
        %v2291 = vpop.f32.mrb[0].mxu0
        %v2292 = vpop.f32.mrb[0].mxu0
        %v2293 = vadd.f32 0.0, %v2292
        %v2294 = vpop.f32.mrb[0].mxu0
        %2295 = vmatprep.mubr.bf16.mxu0 0
        %2296 = vmatmul.mubr.bf16.gmra.mrb[0].mxu0 %v2142
        %v2297 = vpop.f32.mrb[0].mxu0
        %v2298 = vadd.f32 0.0, %v2297
        %v2299 = vpop.f32.mrb[0].mxu0
        %v2300 = vpop.f32.mrb[0].mxu0
        %v2301 = vadd.f32 0.0, %v2300
        %v2302 = vpop.f32.mrb[0].mxu0
        %2303 = vmatprep.mubr.bf16.mxu0 0
        %2304 = vmatmul.mubr.bf16.gmra.mrb[0].mxu0 %v2145
        %v2305 = vpop.f32.mrb[0].mxu0
        %v2306 = vadd.f32 0.0, %v2305
        %v2307 = vpop.f32.mrb[0].mxu0
        %v2308 = vpop.f32.mrb[0].mxu0
        %v2309 = vadd.f32 0.0, %v2308
        %v2310 = vpop.f32.mrb[0].mxu0
        %2311 = vmatprep.mubr.bf16.mxu0 0
        %2312 = vmatmul.mubr.bf16.gmra.mrb[0].mxu0 %v2148
        %v2313 = vpop.f32.mrb[0].mxu0
        %v2314 = vadd.f32 0.0, %v2313
        %v2315 = vpop.f32.mrb[0].mxu0
        %v2316 = vpop.f32.mrb[0].mxu0
        %v2317 = vadd.f32 0.0, %v2316
        %v2318 = vpop.f32.mrb[0].mxu0
        %2319 = vmatprep.mubr.bf16.mxu0 0
        %2320 = vmatmul.mubr.bf16.gmra.mrb[0].mxu0 %v2151
        %v2321 = vpop.f32.mrb[0].mxu0
        %v2322 = vadd.f32 0.0, %v2321
        %v2323 = vpop.f32.mrb[0].mxu0
        %v2324 = vpop.f32.mrb[0].mxu0
        %v2325 = vadd.f32 0.0, %v2324
        %v2326 = vpop.f32.mrb[0].mxu0
        %2327 = vmatprep.mubr.bf16.mxu0 0
        %2328 = vmatmul.mubr.bf16.gmra.mrb[0].mxu0 %v2154
        %v2329 = vpop.f32.mrb[0].mxu0
        %v2330 = vadd.f32 0.0, %v2329
        %v2331 = vpop.f32.mrb[0].mxu0
        %v2332 = vpop.f32.mrb[0].mxu0
        %v2333 = vadd.f32 0.0, %v2332
        %v2334 = vpop.f32.mrb[0].mxu0
        %2335 = vdwg.mxu0
        %v2336 = vadd.f32 %v1917, %v2194
        %v2337 = vadd.f32 %v1920, %v2197
        %v2338 = vadd.f32 %v1925, %v2202
        %v2339 = vadd.f32 %v1928, %v2205
        %v2340 = vadd.f32 %v1933, %v2210
        %v2341 = vadd.f32 %v1936, %v2213
        %v2342 = vadd.f32 %v1941, %v2218
        %v2343 = vadd.f32 %v1944, %v2221
        %v2344 = vadd.f32 %v1949, %v2226
        %v2345 = vadd.f32 %v1952, %v2229
        %v2346 = vadd.f32 %v1957, %v2234
        %v2347 = vadd.f32 %v1960, %v2237
        %v2348 = vadd.f32 %v1965, %v2242
        %v2349 = vadd.f32 %v1968, %v2245
        %v2350 = vadd.f32 %v1973, %v2250
        %v2351 = vadd.f32 %v1976, %v2253
        %v2352 = vadd.f32 %v1981, %v2258
        %v2353 = vadd.f32 %v1984, %v2261
        %v2354 = vadd.f32 %v1989, %v2266
        %v2355 = vadd.f32 %v1992, %v2269
        %v2356 = vadd.f32 %v1997, %v2274
        %v2357 = vadd.f32 %v2000, %v2277
        %v2358 = vadd.f32 %v2005, %v2282
        %v2359 = vadd.f32 %v2008, %v2285
        %v2360 = vadd.f32 %v2013, %v2290
        %v2361 = vadd.f32 %v2016, %v2293
        %v2362 = vadd.f32 %v2021, %v2298
        %v2363 = vadd.f32 %v2024, %v2301
        %v2364 = vadd.f32 %v2029, %v2306
        %v2365 = vadd.f32 %v2032, %v2309
        %v2366 = vadd.f32 %v2037, %v2314
        %v2367 = vadd.f32 %v2040, %v2317
        %v2368 = vadd.f32 %v2045, %v2322
        %v2369 = vadd.f32 %v2048, %v2325
        %v2370 = vadd.f32 %v2053, %v2330
        %v2371 = vadd.f32 %v2056, %v2333
        %v2372 = vld [vmem:[#allocation2 + $0x8] sm:$0xe]
        %v2373 = vld [vmem:[#allocation2 + $0xc] sm:$0xf]
        %v2374 = vld [vmem:[#allocation2 + $0x10] sm:$0xf]
        %v2375 = vld [vmem:[#allocation2 + $0x14] sm:$0xf]
        %v2376 = vld [vmem:[#allocation2 + $0x18] sm:$0xf]
        %v2377 = vld [vmem:[#allocation2 + $0x1c] sm:$0xf]
        %v2378 = vld [vmem:[#allocation2 + $0x20] sm:$0xf]
        %v2379 = vld [vmem:[#allocation2 + $0x24] sm:$0xf]
        %v2380 = vld [vmem:[#allocation2 + $0x28] sm:$0xf]
        %v2381 = vld [vmem:[#allocation2 + $0x2c] sm:$0xf]
        %v2382 = vld [vmem:[#allocation2 + $0x30] sm:$0xf]
        %v2383 = vld [vmem:[#allocation2 + $0x34] sm:$0xf]
        %v2384 = vld [vmem:[#allocation2 + $0x38] sm:$0xf]
        %v2385 = vld [vmem:[#allocation2 + $0x3c] sm:$0xf]
        %v2386 = vld [vmem:[#allocation2 + $0x40] sm:$0xf]
        %v2387 = vld [vmem:[#allocation2 + $0x44] sm:$0xf]
        %v2388 = vld [vmem:[#allocation2 + $0x48] sm:$0xf]
        %v2389 = vld [vmem:[#allocation2 + $0x4c] sm:$0xf]
        %v2390 = vld [vmem:[#allocation2 + $0x50] sm:$0xf]
        %v2391 = vld [vmem:[#allocation2 + $0x54] sm:$0xf]
        %v2392 = vld [vmem:[#allocation2 + $0x58] sm:$0xf]
        %v2393 = vld [vmem:[#allocation2 + $0x5c] sm:$0xf]
        %v2394 = vld [vmem:[#allocation2 + $0x60] sm:$0xf]
        %v2395 = vld [vmem:[#allocation2 + $0x64] sm:$0xf]
        %v2396 = vld [vmem:[#allocation2 + $0x68] sm:$0xf]
        %v2397 = vld [vmem:[#allocation2 + $0x6c] sm:$0xf]
        %v2398 = vld [vmem:[#allocation2 + $0x70] sm:$0xf]
        %v2399 = vld [vmem:[#allocation2 + $0x74] sm:$0xf]
        %v2400 = vld [vmem:[#allocation2 + $0x78] sm:$0xf]
        %v2401 = vld [vmem:[#allocation2 + $0x7c] sm:$0xf]
        %v2402 = vld [vmem:[#allocation2 + $0x80] sm:$0xf]
        %v2403 = vld [vmem:[#allocation2 + $0x84] sm:$0xf]
        %v2404 = vld [vmem:[#allocation2 + $0x88] sm:$0xf]
        %v2405 = vld [vmem:[#allocation2 + $0x8c] sm:$0xf]
        %v2406 = vld [vmem:[#allocation2 + $0x90] sm:$0xf]
        %v2407 = vld [vmem:[#allocation2 + $0x94] sm:$0xf]
        %v2408 = vld [vmem:[#allocation2 + $0x98] sm:$0x1]
        %v2409 = vld [vmem:[#allocation9 + $0x4] sm:$0xc]
        %v2447 = vunpack.c.l.b16 %v2372
        %v2448 = vunpack.c.l.b16 %v2373
        %v2449 = vunpack.c.l.b16 %v2374
        %v2450 = vunpack.c.l.b16 %v2375
        %v2451 = vunpack.c.l.b16 %v2376
        %v2452 = vunpack.c.l.b16 %v2377
        %v2453 = vunpack.c.l.b16 %v2378
        %v2454 = vunpack.c.l.b16 %v2379
        %v2455 = vunpack.c.l.b16 %v2380
        %v2456 = vunpack.c.l.b16 %v2381
        %v2457 = vunpack.c.l.b16 %v2382
        %v2458 = vunpack.c.l.b16 %v2383
        %v2459 = vunpack.c.l.b16 %v2384
        %v2460 = vunpack.c.l.b16 %v2385
        %v2461 = vunpack.c.l.b16 %v2386
        %v2462 = vunpack.c.l.b16 %v2387
        %v2463 = vunpack.c.l.b16 %v2388
        %v2464 = vunpack.c.l.b16 %v2389
        %v2465 = vunpack.c.l.b16 %v2390
        %v2466 = vunpack.c.l.b16 %v2391
        %v2467 = vunpack.c.l.b16 %v2392
        %v2468 = vunpack.c.l.b16 %v2393
        %v2469 = vunpack.c.l.b16 %v2394
        %v2470 = vunpack.c.l.b16 %v2395
        %v2471 = vunpack.c.l.b16 %v2396
        %v2472 = vunpack.c.l.b16 %v2397
        %v2473 = vunpack.c.l.b16 %v2398
        %v2474 = vunpack.c.l.b16 %v2399
        %v2475 = vunpack.c.l.b16 %v2400
        %v2476 = vunpack.c.l.b16 %v2401
        %v2477 = vunpack.c.l.b16 %v2402
        %v2478 = vunpack.c.l.b16 %v2403
        %v2479 = vunpack.c.l.b16 %v2404
        %v2480 = vunpack.c.l.b16 %v2405
        %v2481 = vunpack.c.l.b16 %v2406
        %v2482 = vunpack.c.l.b16 %v2407
        %v2483 = vunpack.c.l.b16 %v2408
        %v2484 = vpack.c.b16 %v2448, %v2447
        %v2485 = vpack.c.b16 %v2450, %v2449
        %v2486 = vpack.c.b16 %v2452, %v2451
        %v2487 = vpack.c.b16 %v2454, %v2453
        %v2488 = vpack.c.b16 %v2456, %v2455
        %v2489 = vpack.c.b16 %v2458, %v2457
        %v2490 = vpack.c.b16 %v2460, %v2459
        %v2491 = vpack.c.b16 %v2462, %v2461
        %v2492 = vpack.c.b16 %v2464, %v2463
        %v2493 = vpack.c.b16 %v2466, %v2465
        %v2494 = vpack.c.b16 %v2468, %v2467
        %v2495 = vpack.c.b16 %v2470, %v2469
        %v2496 = vpack.c.b16 %v2472, %v2471
        %v2497 = vpack.c.b16 %v2474, %v2473
        %v2498 = vpack.c.b16 %v2476, %v2475
        %v2499 = vpack.c.b16 %v2478, %v2477
        %v2500 = vpack.c.b16 %v2480, %v2479
        %v2501 = vpack.c.b16 %v2482, %v2481
        %v2502 = vpack.c.b16 %v2483, %v2483
        %v2503 = vrot.slane %v2484, 1
        %v2504 = vrot.slane %v2485, 1
        %v2505 = vsel %vm2064, %v2503, %v2504
        %v2506 = vrot.slane %v2486, 1
        %v2507 = vsel %vm2064, %v2504, %v2506
        %v2508 = vrot.slane %v2487, 1
        %v2509 = vsel %vm2064, %v2506, %v2508
        %v2510 = vrot.slane %v2488, 1
        %v2511 = vsel %vm2064, %v2508, %v2510
        %v2512 = vrot.slane %v2489, 1
        %v2513 = vsel %vm2064, %v2510, %v2512
        %v2514 = vrot.slane %v2490, 1
        %v2515 = vsel %vm2064, %v2512, %v2514
        %v2516 = vrot.slane %v2491, 1
        %v2517 = vsel %vm2064, %v2514, %v2516
        %v2518 = vrot.slane %v2492, 1
        %v2519 = vsel %vm2064, %v2516, %v2518
        %v2520 = vrot.slane %v2493, 1
        %v2521 = vsel %vm2064, %v2518, %v2520
        %v2522 = vrot.slane %v2494, 1
        %v2523 = vsel %vm2064, %v2520, %v2522
        %v2524 = vrot.slane %v2495, 1
        %v2525 = vsel %vm2064, %v2522, %v2524
        %v2526 = vrot.slane %v2496, 1
        %v2527 = vsel %vm2064, %v2524, %v2526
        %v2528 = vrot.slane %v2497, 1
        %v2529 = vsel %vm2064, %v2526, %v2528
        %v2530 = vrot.slane %v2498, 1
        %v2531 = vsel %vm2064, %v2528, %v2530
        %v2532 = vrot.slane %v2499, 1
        %v2533 = vsel %vm2064, %v2530, %v2532
        %v2534 = vrot.slane %v2500, 1
        %v2535 = vsel %vm2064, %v2532, %v2534
        %v2536 = vrot.slane %v2501, 1
        %v2537 = vsel %vm2064, %v2534, %v2536
        %v2538 = vrot.slane %v2502, 1
        %v2539 = vsel %vm2064, %v2536, %v2538
        %v2541 = vunpack.c.l.b16 %v2409
        %v2542 = vpack.c.b16 %v2541, %v2541
        %v2543 = vrot.slane %v2542, 2
        %v2545 = vsel %vm1607, %v2505, 0
        %v2548 = vsel %vm1607, %v2507, 0
        %v2551 = vsel %vm1607, %v2509, 0
        %v2554 = vsel %vm1607, %v2511, 0
        %v2557 = vsel %vm1607, %v2513, 0
        %v2560 = vsel %vm1607, %v2515, 0
        %v2563 = vsel %vm1607, %v2517, 0
        %v2566 = vsel %vm1607, %v2519, 0
        %v2569 = vsel %vm1607, %v2521, 0
        %v2572 = vsel %vm1607, %v2523, 0
        %v2575 = vsel %vm1607, %v2525, 0
        %v2578 = vsel %vm1607, %v2527, 0
        %v2581 = vsel %vm1607, %v2529, 0
        %v2584 = vsel %vm1607, %v2531, 0
        %v2587 = vsel %vm1607, %v2533, 0
        %v2590 = vsel %vm1607, %v2535, 0
        %v2593 = vsel %vm1607, %v2537, 0
        %v2596 = vsel %vm1607, %v2539, 0
        %v2599 = vsel %vm1662, %v2543, 0
        %2601 = vmatprep.subr.bf16.mxu0 0
        %2602 = vmatpush1.bf16.msra.mxu0 %v2599
        %2603 = vmatprep.subr.bf16.mxu0 0
        %2604 = vmatpush1.bf16.msra.mxu0 0
        %2605 = vmatprep.subr.bf16.mxu0 0
        %2606 = vmatpush1.bf16.msra.mxu0 0
        %2607 = vmatprep.subr.bf16.mxu0 0
        %2608 = vmatpush1.bf16.msra.mxu0 0
        %2609 = vmatprep.subr.bf16.mxu0 0
        %2610 = vmatpush1.bf16.msra.mxu0 0
        %2611 = vmatprep.subr.bf16.mxu0 0
        %2612 = vmatpush1.bf16.msra.mxu0 0
        %2613 = vmatprep.subr.bf16.mxu0 0
        %2614 = vmatpush1.bf16.msra.mxu0 0
        %2615 = vmatprep.subr.bf16.mxu0 0
        %2616 = vmatpush1.bf16.msra.mxu0 0
        %2617 = vmatprep.subr.bf16.mxu0 0
        %2618 = vmatpush1.bf16.msra.mxu0 0
        %2619 = vmatprep.subr.bf16.mxu0 0
        %2620 = vmatpush1.bf16.msra.mxu0 0
        %2621 = vmatprep.subr.bf16.mxu0 0
        %2622 = vmatpush1.bf16.msra.mxu0 0
        %2623 = vmatprep.subr.bf16.mxu0 0
        %2624 = vmatpush1.bf16.msra.mxu0 0
        %2625 = vmatprep.subr.bf16.mxu0 0
        %2626 = vmatpush1.bf16.msra.mxu0 0
        %2627 = vmatprep.subr.bf16.mxu0 0
        %2628 = vmatpush1.bf16.msra.mxu0 0
        %2629 = vmatprep.subr.bf16.mxu0 0
        %2630 = vmatpush1.bf16.msra.mxu0 0
        %2631 = vmatprep.subr.bf16.mxu0 0
        %2632 = vmatpush1.bf16.msra.mxu0 0
        %2633 = vmatprep.mubr.bf16.mxu0 0
        %2634 = vmatmul.mubr.bf16.gmra.mrb[0].mxu0 %v2545
        %v2635 = vpop.f32.mrb[0].mxu0
        %v2636 = vadd.f32 0.0, %v2635
        %v2637 = vpop.f32.mrb[0].mxu0
        %v2638 = vpop.f32.mrb[0].mxu0
        %v2639 = vadd.f32 0.0, %v2638
        %v2640 = vpop.f32.mrb[0].mxu0
        %2641 = vmatprep.mubr.bf16.mxu0 0
        %2642 = vmatmul.mubr.bf16.gmra.mrb[0].mxu0 %v2548
        %v2643 = vpop.f32.mrb[0].mxu0
        %v2644 = vadd.f32 0.0, %v2643
        %v2645 = vpop.f32.mrb[0].mxu0
        %v2646 = vpop.f32.mrb[0].mxu0
        %v2647 = vadd.f32 0.0, %v2646
        %v2648 = vpop.f32.mrb[0].mxu0
        %2649 = vmatprep.mubr.bf16.mxu0 0
        %2650 = vmatmul.mubr.bf16.gmra.mrb[0].mxu0 %v2551
        %v2651 = vpop.f32.mrb[0].mxu0
        %v2652 = vadd.f32 0.0, %v2651
        %v2653 = vpop.f32.mrb[0].mxu0
        %v2654 = vpop.f32.mrb[0].mxu0
        %v2655 = vadd.f32 0.0, %v2654
        %v2656 = vpop.f32.mrb[0].mxu0
        %2657 = vmatprep.mubr.bf16.mxu0 0
        %2658 = vmatmul.mubr.bf16.gmra.mrb[0].mxu0 %v2554
        %v2659 = vpop.f32.mrb[0].mxu0
        %v2660 = vadd.f32 0.0, %v2659
        %v2661 = vpop.f32.mrb[0].mxu0
        %v2662 = vpop.f32.mrb[0].mxu0
        %v2663 = vadd.f32 0.0, %v2662
        %v2664 = vpop.f32.mrb[0].mxu0
        %2665 = vmatprep.mubr.bf16.mxu0 0
        %2666 = vmatmul.mubr.bf16.gmra.mrb[0].mxu0 %v2557
        %v2667 = vpop.f32.mrb[0].mxu0
        %v2668 = vadd.f32 0.0, %v2667
        %v2669 = vpop.f32.mrb[0].mxu0
        %v2670 = vpop.f32.mrb[0].mxu0
        %v2671 = vadd.f32 0.0, %v2670
        %v2672 = vpop.f32.mrb[0].mxu0
        %2673 = vmatprep.mubr.bf16.mxu0 0
        %2674 = vmatmul.mubr.bf16.gmra.mrb[0].mxu0 %v2560
        %v2675 = vpop.f32.mrb[0].mxu0
        %v2676 = vadd.f32 0.0, %v2675
        %v2677 = vpop.f32.mrb[0].mxu0
        %v2678 = vpop.f32.mrb[0].mxu0
        %v2679 = vadd.f32 0.0, %v2678
        %v2680 = vpop.f32.mrb[0].mxu0
        %2681 = vmatprep.mubr.bf16.mxu0 0
        %2682 = vmatmul.mubr.bf16.gmra.mrb[0].mxu0 %v2563
        %v2683 = vpop.f32.mrb[0].mxu0
        %v2684 = vadd.f32 0.0, %v2683
        %v2685 = vpop.f32.mrb[0].mxu0
        %v2686 = vpop.f32.mrb[0].mxu0
        %v2687 = vadd.f32 0.0, %v2686
        %v2688 = vpop.f32.mrb[0].mxu0
        %2689 = vmatprep.mubr.bf16.mxu0 0
        %2690 = vmatmul.mubr.bf16.gmra.mrb[0].mxu0 %v2566
        %v2691 = vpop.f32.mrb[0].mxu0
        %v2692 = vadd.f32 0.0, %v2691
        %v2693 = vpop.f32.mrb[0].mxu0
        %v2694 = vpop.f32.mrb[0].mxu0
        %v2695 = vadd.f32 0.0, %v2694
        %v2696 = vpop.f32.mrb[0].mxu0
        %2697 = vmatprep.mubr.bf16.mxu0 0
        %2698 = vmatmul.mubr.bf16.gmra.mrb[0].mxu0 %v2569
        %v2699 = vpop.f32.mrb[0].mxu0
        %v2700 = vadd.f32 0.0, %v2699
        %v2701 = vpop.f32.mrb[0].mxu0
        %v2702 = vpop.f32.mrb[0].mxu0
        %v2703 = vadd.f32 0.0, %v2702
        %v2704 = vpop.f32.mrb[0].mxu0
        %2705 = vmatprep.mubr.bf16.mxu0 0
        %2706 = vmatmul.mubr.bf16.gmra.mrb[0].mxu0 %v2572
        %v2707 = vpop.f32.mrb[0].mxu0
        %v2708 = vadd.f32 0.0, %v2707
        %v2709 = vpop.f32.mrb[0].mxu0
        %v2710 = vpop.f32.mrb[0].mxu0
        %v2711 = vadd.f32 0.0, %v2710
        %v2712 = vpop.f32.mrb[0].mxu0
        %2713 = vmatprep.mubr.bf16.mxu0 0
        %2714 = vmatmul.mubr.bf16.gmra.mrb[0].mxu0 %v2575
        %v2715 = vpop.f32.mrb[0].mxu0
        %v2716 = vadd.f32 0.0, %v2715
        %v2717 = vpop.f32.mrb[0].mxu0
        %v2718 = vpop.f32.mrb[0].mxu0
        %v2719 = vadd.f32 0.0, %v2718
        %v2720 = vpop.f32.mrb[0].mxu0
        %2721 = vmatprep.mubr.bf16.mxu0 0
        %2722 = vmatmul.mubr.bf16.gmra.mrb[0].mxu0 %v2578
        %v2723 = vpop.f32.mrb[0].mxu0
        %v2724 = vadd.f32 0.0, %v2723
        %v2725 = vpop.f32.mrb[0].mxu0
        %v2726 = vpop.f32.mrb[0].mxu0
        %v2727 = vadd.f32 0.0, %v2726
        %v2728 = vpop.f32.mrb[0].mxu0
        %2729 = vmatprep.mubr.bf16.mxu0 0
        %2730 = vmatmul.mubr.bf16.gmra.mrb[0].mxu0 %v2581
        %v2731 = vpop.f32.mrb[0].mxu0
        %v2732 = vadd.f32 0.0, %v2731
        %v2733 = vpop.f32.mrb[0].mxu0
        %v2734 = vpop.f32.mrb[0].mxu0
        %v2735 = vadd.f32 0.0, %v2734
        %v2736 = vpop.f32.mrb[0].mxu0
        %2737 = vmatprep.mubr.bf16.mxu0 0
        %2738 = vmatmul.mubr.bf16.gmra.mrb[0].mxu0 %v2584
        %v2739 = vpop.f32.mrb[0].mxu0
        %v2740 = vadd.f32 0.0, %v2739
        %v2741 = vpop.f32.mrb[0].mxu0
        %v2742 = vpop.f32.mrb[0].mxu0
        %v2743 = vadd.f32 0.0, %v2742
        %v2744 = vpop.f32.mrb[0].mxu0
        %2745 = vmatprep.mubr.bf16.mxu0 0
        %2746 = vmatmul.mubr.bf16.gmra.mrb[0].mxu0 %v2587
        %v2747 = vpop.f32.mrb[0].mxu0
        %v2748 = vadd.f32 0.0, %v2747
        %v2749 = vpop.f32.mrb[0].mxu0
        %v2750 = vpop.f32.mrb[0].mxu0
        %v2751 = vadd.f32 0.0, %v2750
        %v2752 = vpop.f32.mrb[0].mxu0
        %2753 = vmatprep.mubr.bf16.mxu0 0
        %2754 = vmatmul.mubr.bf16.gmra.mrb[0].mxu0 %v2590
        %v2755 = vpop.f32.mrb[0].mxu0
        %v2756 = vadd.f32 0.0, %v2755
        %v2757 = vpop.f32.mrb[0].mxu0
        %v2758 = vpop.f32.mrb[0].mxu0
        %v2759 = vadd.f32 0.0, %v2758
        %v2760 = vpop.f32.mrb[0].mxu0
        %2761 = vmatprep.mubr.bf16.mxu0 0
        %2762 = vmatmul.mubr.bf16.gmra.mrb[0].mxu0 %v2593
        %v2763 = vpop.f32.mrb[0].mxu0
        %v2764 = vadd.f32 0.0, %v2763
        %v2765 = vpop.f32.mrb[0].mxu0
        %v2766 = vpop.f32.mrb[0].mxu0
        %v2767 = vadd.f32 0.0, %v2766
        %v2768 = vpop.f32.mrb[0].mxu0
        %2769 = vmatprep.mubr.bf16.mxu0 0
        %2770 = vmatmul.mubr.bf16.gmra.mrb[0].mxu0 %v2596
        %v2771 = vpop.f32.mrb[0].mxu0
        %v2772 = vadd.f32 0.0, %v2771
        %v2773 = vpop.f32.mrb[0].mxu0
        %v2774 = vpop.f32.mrb[0].mxu0
        %v2775 = vadd.f32 0.0, %v2774
        %v2776 = vpop.f32.mrb[0].mxu0
        %2777 = vdwg.mxu0
        %v2778 = vadd.f32 %v2336, %v2636
        %v2779 = vadd.f32 %v2337, %v2639
        %v2780 = vadd.f32 %v2338, %v2644
        %v2781 = vadd.f32 %v2339, %v2647
        %v2782 = vadd.f32 %v2340, %v2652
        %v2783 = vadd.f32 %v2341, %v2655
        %v2784 = vadd.f32 %v2342, %v2660
        %v2785 = vadd.f32 %v2343, %v2663
        %v2786 = vadd.f32 %v2344, %v2668
        %v2787 = vadd.f32 %v2345, %v2671
        %v2788 = vadd.f32 %v2346, %v2676
        %v2789 = vadd.f32 %v2347, %v2679
        %v2790 = vadd.f32 %v2348, %v2684
        %v2791 = vadd.f32 %v2349, %v2687
        %v2792 = vadd.f32 %v2350, %v2692
        %v2793 = vadd.f32 %v2351, %v2695
        %v2794 = vadd.f32 %v2352, %v2700
        %v2795 = vadd.f32 %v2353, %v2703
        %v2796 = vadd.f32 %v2354, %v2708
        %v2797 = vadd.f32 %v2355, %v2711
        %v2798 = vadd.f32 %v2356, %v2716
        %v2799 = vadd.f32 %v2357, %v2719
        %v2800 = vadd.f32 %v2358, %v2724
        %v2801 = vadd.f32 %v2359, %v2727
        %v2802 = vadd.f32 %v2360, %v2732
        %v2803 = vadd.f32 %v2361, %v2735
        %v2804 = vadd.f32 %v2362, %v2740
        %v2805 = vadd.f32 %v2363, %v2743
        %v2806 = vadd.f32 %v2364, %v2748
        %v2807 = vadd.f32 %v2365, %v2751
        %v2808 = vadd.f32 %v2366, %v2756
        %v2809 = vadd.f32 %v2367, %v2759
        %v2810 = vadd.f32 %v2368, %v2764
        %v2811 = vadd.f32 %v2369, %v2767
        %v2812 = vadd.f32 %v2370, %v2772
        %v2813 = vadd.f32 %v2371, %v2775
        %v2814 = vld [vmem:[#allocation2 + $0x98] sm:$0x3]
        %v2815 = vld [vmem:[#allocation9 + $0x8] sm:$0x3]
        %v2817 = vunpack.c.l.b16 %v2814
        %v2818 = vpack.c.b16 %v2817, %v2817
        %vm2819 = vsmask.f32 6400
        %v2821 = vshrl.u32 %v2484, 16
        %v2823 = vrot.slane %v2821, 1
        %v2824 = vshll.u32 %v2484, 16
        %v2826 = vrot.slane %v2824, 2
        %v2827 = vor.u32 %v2823, %v2826
        %v2829 = vshrl.u32 %v2485, 16
        %v2831 = vrot.slane %v2829, 1
        %v2832 = vshll.u32 %v2485, 16
        %v2834 = vrot.slane %v2832, 2
        %v2835 = vor.u32 %v2831, %v2834
        %v2836 = vsel %vm2819, %v2827, %v2835
        %v2838 = vshrl.u32 %v2486, 16
        %v2840 = vrot.slane %v2838, 1
        %v2841 = vshll.u32 %v2486, 16
        %v2843 = vrot.slane %v2841, 2
        %v2844 = vor.u32 %v2840, %v2843
        %v2845 = vsel %vm2819, %v2835, %v2844
        %v2847 = vshrl.u32 %v2487, 16
        %v2849 = vrot.slane %v2847, 1
        %v2850 = vshll.u32 %v2487, 16
        %v2852 = vrot.slane %v2850, 2
        %v2853 = vor.u32 %v2849, %v2852
        %v2854 = vsel %vm2819, %v2844, %v2853
        %v2856 = vshrl.u32 %v2488, 16
        %v2858 = vrot.slane %v2856, 1
        %v2859 = vshll.u32 %v2488, 16
        %v2861 = vrot.slane %v2859, 2
        %v2862 = vor.u32 %v2858, %v2861
        %v2863 = vsel %vm2819, %v2853, %v2862
        %v2865 = vshrl.u32 %v2489, 16
        %v2867 = vrot.slane %v2865, 1
        %v2868 = vshll.u32 %v2489, 16
        %v2870 = vrot.slane %v2868, 2
        %v2871 = vor.u32 %v2867, %v2870
        %v2872 = vsel %vm2819, %v2862, %v2871
        %v2874 = vshrl.u32 %v2490, 16
        %v2876 = vrot.slane %v2874, 1
        %v2877 = vshll.u32 %v2490, 16
        %v2879 = vrot.slane %v2877, 2
        %v2880 = vor.u32 %v2876, %v2879
        %v2881 = vsel %vm2819, %v2871, %v2880
        %v2883 = vshrl.u32 %v2491, 16
        %v2885 = vrot.slane %v2883, 1
        %v2886 = vshll.u32 %v2491, 16
        %v2888 = vrot.slane %v2886, 2
        %v2889 = vor.u32 %v2885, %v2888
        %v2890 = vsel %vm2819, %v2880, %v2889
        %v2892 = vshrl.u32 %v2492, 16
        %v2894 = vrot.slane %v2892, 1
        %v2895 = vshll.u32 %v2492, 16
        %v2897 = vrot.slane %v2895, 2
        %v2898 = vor.u32 %v2894, %v2897
        %v2899 = vsel %vm2819, %v2889, %v2898
        %v2901 = vshrl.u32 %v2493, 16
        %v2903 = vrot.slane %v2901, 1
        %v2904 = vshll.u32 %v2493, 16
        %v2906 = vrot.slane %v2904, 2
        %v2907 = vor.u32 %v2903, %v2906
        %v2908 = vsel %vm2819, %v2898, %v2907
        %v2910 = vshrl.u32 %v2494, 16
        %v2912 = vrot.slane %v2910, 1
        %v2913 = vshll.u32 %v2494, 16
        %v2915 = vrot.slane %v2913, 2
        %v2916 = vor.u32 %v2912, %v2915
        %v2917 = vsel %vm2819, %v2907, %v2916
        %v2919 = vshrl.u32 %v2495, 16
        %v2921 = vrot.slane %v2919, 1
        %v2922 = vshll.u32 %v2495, 16
        %v2924 = vrot.slane %v2922, 2
        %v2925 = vor.u32 %v2921, %v2924
        %v2926 = vsel %vm2819, %v2916, %v2925
        %v2928 = vshrl.u32 %v2496, 16
        %v2930 = vrot.slane %v2928, 1
        %v2931 = vshll.u32 %v2496, 16
        %v2933 = vrot.slane %v2931, 2
        %v2934 = vor.u32 %v2930, %v2933
        %v2935 = vsel %vm2819, %v2925, %v2934
        %v2937 = vshrl.u32 %v2497, 16
        %v2939 = vrot.slane %v2937, 1
        %v2940 = vshll.u32 %v2497, 16
        %v2942 = vrot.slane %v2940, 2
        %v2943 = vor.u32 %v2939, %v2942
        %v2944 = vsel %vm2819, %v2934, %v2943
        %v2946 = vshrl.u32 %v2498, 16
        %v2948 = vrot.slane %v2946, 1
        %v2949 = vshll.u32 %v2498, 16
        %v2951 = vrot.slane %v2949, 2
        %v2952 = vor.u32 %v2948, %v2951
        %v2953 = vsel %vm2819, %v2943, %v2952
        %v2955 = vshrl.u32 %v2499, 16
        %v2957 = vrot.slane %v2955, 1
        %v2958 = vshll.u32 %v2499, 16
        %v2960 = vrot.slane %v2958, 2
        %v2961 = vor.u32 %v2957, %v2960
        %v2962 = vsel %vm2819, %v2952, %v2961
        %v2964 = vshrl.u32 %v2500, 16
        %v2966 = vrot.slane %v2964, 1
        %v2967 = vshll.u32 %v2500, 16
        %v2969 = vrot.slane %v2967, 2
        %v2970 = vor.u32 %v2966, %v2969
        %v2971 = vsel %vm2819, %v2961, %v2970
        %v2973 = vshrl.u32 %v2501, 16
        %v2975 = vrot.slane %v2973, 1
        %v2976 = vshll.u32 %v2501, 16
        %v2978 = vrot.slane %v2976, 2
        %v2979 = vor.u32 %v2975, %v2978
        %v2980 = vsel %vm2819, %v2970, %v2979
        %v2982 = vshrl.u32 %v2818, 16
        %v2984 = vrot.slane %v2982, 1
        %v2985 = vshll.u32 %v2818, 16
        %v2987 = vrot.slane %v2985, 2
        %v2988 = vor.u32 %v2984, %v2987
        %v2989 = vsel %vm2819, %v2979, %v2988
        %v2991 = vsel %vm1607, %v2836, 0
        %v2994 = vsel %vm1607, %v2845, 0
        %v2997 = vsel %vm1607, %v2854, 0
        %v3000 = vsel %vm1607, %v2863, 0
        %v3003 = vsel %vm1607, %v2872, 0
        %v3006 = vsel %vm1607, %v2881, 0
        %v3009 = vsel %vm1607, %v2890, 0
        %v3012 = vsel %vm1607, %v2899, 0
        %v3015 = vsel %vm1607, %v2908, 0
        %v3018 = vsel %vm1607, %v2917, 0
        %v3021 = vsel %vm1607, %v2926, 0
        %v3024 = vsel %vm1607, %v2935, 0
        %v3027 = vsel %vm1607, %v2944, 0
        %v3030 = vsel %vm1607, %v2953, 0
        %v3033 = vsel %vm1607, %v2962, 0
        %v3036 = vsel %vm1607, %v2971, 0
        %v3039 = vsel %vm1607, %v2980, 0
        %v3042 = vsel %vm1607, %v2989, 0
        %v3045 = vsel %vm1662, %v2815, 0
        %3047 = vmatprep.subr.bf16.mxu0 0
        %3048 = vmatpush1.bf16.msra.mxu0 %v3045
        %3049 = vmatprep.subr.bf16.mxu0 0
        %3050 = vmatpush1.bf16.msra.mxu0 0
        %3051 = vmatprep.subr.bf16.mxu0 0
        %3052 = vmatpush1.bf16.msra.mxu0 0
        %3053 = vmatprep.subr.bf16.mxu0 0
        %3054 = vmatpush1.bf16.msra.mxu0 0
        %3055 = vmatprep.subr.bf16.mxu0 0
        %3056 = vmatpush1.bf16.msra.mxu0 0
        %3057 = vmatprep.subr.bf16.mxu0 0
        %3058 = vmatpush1.bf16.msra.mxu0 0
        %3059 = vmatprep.subr.bf16.mxu0 0
        %3060 = vmatpush1.bf16.msra.mxu0 0
        %3061 = vmatprep.subr.bf16.mxu0 0
        %3062 = vmatpush1.bf16.msra.mxu0 0
        %3063 = vmatprep.subr.bf16.mxu0 0
        %3064 = vmatpush1.bf16.msra.mxu0 0
        %3065 = vmatprep.subr.bf16.mxu0 0
        %3066 = vmatpush1.bf16.msra.mxu0 0
        %3067 = vmatprep.subr.bf16.mxu0 0
        %3068 = vmatpush1.bf16.msra.mxu0 0
        %3069 = vmatprep.subr.bf16.mxu0 0
        %3070 = vmatpush1.bf16.msra.mxu0 0
        %3071 = vmatprep.subr.bf16.mxu0 0
        %3072 = vmatpush1.bf16.msra.mxu0 0
        %3073 = vmatprep.subr.bf16.mxu0 0
        %3074 = vmatpush1.bf16.msra.mxu0 0
        %3075 = vmatprep.subr.bf16.mxu0 0
        %3076 = vmatpush1.bf16.msra.mxu0 0
        %3077 = vmatprep.subr.bf16.mxu0 0
        %3078 = vmatpush1.bf16.msra.mxu0 0
        %3079 = vmatprep.mubr.bf16.mxu0 0
        %3080 = vmatmul.mubr.bf16.gmra.mrb[0].mxu0 %v2991
        %v3081 = vpop.f32.mrb[0].mxu0
        %v3082 = vadd.f32 0.0, %v3081
        %v3083 = vpop.f32.mrb[0].mxu0
        %v3084 = vpop.f32.mrb[0].mxu0
        %v3085 = vadd.f32 0.0, %v3084
        %v3086 = vpop.f32.mrb[0].mxu0
        %3087 = vmatprep.mubr.bf16.mxu0 0
        %3088 = vmatmul.mubr.bf16.gmra.mrb[0].mxu0 %v2994
        %v3089 = vpop.f32.mrb[0].mxu0
        %v3090 = vadd.f32 0.0, %v3089
        %v3091 = vpop.f32.mrb[0].mxu0
        %v3092 = vpop.f32.mrb[0].mxu0
        %v3093 = vadd.f32 0.0, %v3092
        %v3094 = vpop.f32.mrb[0].mxu0
        %3095 = vmatprep.mubr.bf16.mxu0 0
        %3096 = vmatmul.mubr.bf16.gmra.mrb[0].mxu0 %v2997
        %v3097 = vpop.f32.mrb[0].mxu0
        %v3098 = vadd.f32 0.0, %v3097
        %v3099 = vpop.f32.mrb[0].mxu0
        %v3100 = vpop.f32.mrb[0].mxu0
        %v3101 = vadd.f32 0.0, %v3100
        %v3102 = vpop.f32.mrb[0].mxu0
        %3103 = vmatprep.mubr.bf16.mxu0 0
        %3104 = vmatmul.mubr.bf16.gmra.mrb[0].mxu0 %v3000
        %v3105 = vpop.f32.mrb[0].mxu0
        %v3106 = vadd.f32 0.0, %v3105
        %v3107 = vpop.f32.mrb[0].mxu0
        %v3108 = vpop.f32.mrb[0].mxu0
        %v3109 = vadd.f32 0.0, %v3108
        %v3110 = vpop.f32.mrb[0].mxu0
        %3111 = vmatprep.mubr.bf16.mxu0 0
        %3112 = vmatmul.mubr.bf16.gmra.mrb[0].mxu0 %v3003
        %v3113 = vpop.f32.mrb[0].mxu0
        %v3114 = vadd.f32 0.0, %v3113
        %v3115 = vpop.f32.mrb[0].mxu0
        %v3116 = vpop.f32.mrb[0].mxu0
        %v3117 = vadd.f32 0.0, %v3116
        %v3118 = vpop.f32.mrb[0].mxu0
        %3119 = vmatprep.mubr.bf16.mxu0 0
        %3120 = vmatmul.mubr.bf16.gmra.mrb[0].mxu0 %v3006
        %v3121 = vpop.f32.mrb[0].mxu0
        %v3122 = vadd.f32 0.0, %v3121
        %v3123 = vpop.f32.mrb[0].mxu0
        %v3124 = vpop.f32.mrb[0].mxu0
        %v3125 = vadd.f32 0.0, %v3124
        %v3126 = vpop.f32.mrb[0].mxu0
        %3127 = vmatprep.mubr.bf16.mxu0 0
        %3128 = vmatmul.mubr.bf16.gmra.mrb[0].mxu0 %v3009
        %v3129 = vpop.f32.mrb[0].mxu0
        %v3130 = vadd.f32 0.0, %v3129
        %v3131 = vpop.f32.mrb[0].mxu0
        %v3132 = vpop.f32.mrb[0].mxu0
        %v3133 = vadd.f32 0.0, %v3132
        %v3134 = vpop.f32.mrb[0].mxu0
        %3135 = vmatprep.mubr.bf16.mxu0 0
        %3136 = vmatmul.mubr.bf16.gmra.mrb[0].mxu0 %v3012
        %v3137 = vpop.f32.mrb[0].mxu0
        %v3138 = vadd.f32 0.0, %v3137
        %v3139 = vpop.f32.mrb[0].mxu0
        %v3140 = vpop.f32.mrb[0].mxu0
        %v3141 = vadd.f32 0.0, %v3140
        %v3142 = vpop.f32.mrb[0].mxu0
        %3143 = vmatprep.mubr.bf16.mxu0 0
        %3144 = vmatmul.mubr.bf16.gmra.mrb[0].mxu0 %v3015
        %v3145 = vpop.f32.mrb[0].mxu0
        %v3146 = vadd.f32 0.0, %v3145
        %v3147 = vpop.f32.mrb[0].mxu0
        %v3148 = vpop.f32.mrb[0].mxu0
        %v3149 = vadd.f32 0.0, %v3148
        %v3150 = vpop.f32.mrb[0].mxu0
        %3151 = vmatprep.mubr.bf16.mxu0 0
        %3152 = vmatmul.mubr.bf16.gmra.mrb[0].mxu0 %v3018
        %v3153 = vpop.f32.mrb[0].mxu0
        %v3154 = vadd.f32 0.0, %v3153
        %v3155 = vpop.f32.mrb[0].mxu0
        %v3156 = vpop.f32.mrb[0].mxu0
        %v3157 = vadd.f32 0.0, %v3156
        %v3158 = vpop.f32.mrb[0].mxu0
        %3159 = vmatprep.mubr.bf16.mxu0 0
        %3160 = vmatmul.mubr.bf16.gmra.mrb[0].mxu0 %v3021
        %v3161 = vpop.f32.mrb[0].mxu0
        %v3162 = vadd.f32 0.0, %v3161
        %v3163 = vpop.f32.mrb[0].mxu0
        %v3164 = vpop.f32.mrb[0].mxu0
        %v3165 = vadd.f32 0.0, %v3164
        %v3166 = vpop.f32.mrb[0].mxu0
        %3167 = vmatprep.mubr.bf16.mxu0 0
        %3168 = vmatmul.mubr.bf16.gmra.mrb[0].mxu0 %v3024
        %v3169 = vpop.f32.mrb[0].mxu0
        %v3170 = vadd.f32 0.0, %v3169
        %v3171 = vpop.f32.mrb[0].mxu0
        %v3172 = vpop.f32.mrb[0].mxu0
        %v3173 = vadd.f32 0.0, %v3172
        %v3174 = vpop.f32.mrb[0].mxu0
        %3175 = vmatprep.mubr.bf16.mxu0 0
        %3176 = vmatmul.mubr.bf16.gmra.mrb[0].mxu0 %v3027
        %v3177 = vpop.f32.mrb[0].mxu0
        %v3178 = vadd.f32 0.0, %v3177
        %v3179 = vpop.f32.mrb[0].mxu0
        %v3180 = vpop.f32.mrb[0].mxu0
        %v3181 = vadd.f32 0.0, %v3180
        %v3182 = vpop.f32.mrb[0].mxu0
        %3183 = vmatprep.mubr.bf16.mxu0 0
        %3184 = vmatmul.mubr.bf16.gmra.mrb[0].mxu0 %v3030
        %v3185 = vpop.f32.mrb[0].mxu0
        %v3186 = vadd.f32 0.0, %v3185
        %v3187 = vpop.f32.mrb[0].mxu0
        %v3188 = vpop.f32.mrb[0].mxu0
        %v3189 = vadd.f32 0.0, %v3188
        %v3190 = vpop.f32.mrb[0].mxu0
        %3191 = vmatprep.mubr.bf16.mxu0 0
        %3192 = vmatmul.mubr.bf16.gmra.mrb[0].mxu0 %v3033
        %v3193 = vpop.f32.mrb[0].mxu0
        %v3194 = vadd.f32 0.0, %v3193
        %v3195 = vpop.f32.mrb[0].mxu0
        %v3196 = vpop.f32.mrb[0].mxu0
        %v3197 = vadd.f32 0.0, %v3196
        %v3198 = vpop.f32.mrb[0].mxu0
        %3199 = vmatprep.mubr.bf16.mxu0 0
        %3200 = vmatmul.mubr.bf16.gmra.mrb[0].mxu0 %v3036
        %v3201 = vpop.f32.mrb[0].mxu0
        %v3202 = vadd.f32 0.0, %v3201
        %v3203 = vpop.f32.mrb[0].mxu0
        %v3204 = vpop.f32.mrb[0].mxu0
        %v3205 = vadd.f32 0.0, %v3204
        %v3206 = vpop.f32.mrb[0].mxu0
        %3207 = vmatprep.mubr.bf16.mxu0 0
        %3208 = vmatmul.mubr.bf16.gmra.mrb[0].mxu0 %v3039
        %v3209 = vpop.f32.mrb[0].mxu0
        %v3210 = vadd.f32 0.0, %v3209
        %v3211 = vpop.f32.mrb[0].mxu0
        %v3212 = vpop.f32.mrb[0].mxu0
        %v3213 = vadd.f32 0.0, %v3212
        %v3214 = vpop.f32.mrb[0].mxu0
        %3215 = vmatprep.mubr.bf16.mxu0 0
        %3216 = vmatmul.mubr.bf16.gmra.mrb[0].mxu0 %v3042
        %v3217 = vpop.f32.mrb[0].mxu0
        %v3218 = vadd.f32 0.0, %v3217
        %v3219 = vpop.f32.mrb[0].mxu0
        %v3220 = vpop.f32.mrb[0].mxu0
        %v3221 = vadd.f32 0.0, %v3220
        %v3222 = vpop.f32.mrb[0].mxu0
        %3223 = vdwg.mxu0
        %v3224 = vadd.f32 %v2778, %v3082
        %v3225 = vadd.f32 %v2779, %v3085
        %v3226 = vadd.f32 %v2780, %v3090
        %v3227 = vadd.f32 %v2781, %v3093
        %v3228 = vadd.f32 %v2782, %v3098
        %v3229 = vadd.f32 %v2783, %v3101
        %v3230 = vadd.f32 %v2784, %v3106
        %v3231 = vadd.f32 %v2785, %v3109
        %v3232 = vadd.f32 %v2786, %v3114
        %v3233 = vadd.f32 %v2787, %v3117
        %v3234 = vadd.f32 %v2788, %v3122
        %v3235 = vadd.f32 %v2789, %v3125
        %v3236 = vadd.f32 %v2790, %v3130
        %v3237 = vadd.f32 %v2791, %v3133
        %v3238 = vadd.f32 %v2792, %v3138
        %v3239 = vadd.f32 %v2793, %v3141
        %v3240 = vadd.f32 %v2794, %v3146
        %v3241 = vadd.f32 %v2795, %v3149
        %v3242 = vadd.f32 %v2796, %v3154
        %v3243 = vadd.f32 %v2797, %v3157
        %v3244 = vadd.f32 %v2798, %v3162
        %v3245 = vadd.f32 %v2799, %v3165
        %v3246 = vadd.f32 %v2800, %v3170
        %v3247 = vadd.f32 %v2801, %v3173
        %v3248 = vadd.f32 %v2802, %v3178
        %v3249 = vadd.f32 %v2803, %v3181
        %v3250 = vadd.f32 %v2804, %v3186
        %v3251 = vadd.f32 %v2805, %v3189
        %v3252 = vadd.f32 %v2806, %v3194
        %v3253 = vadd.f32 %v2807, %v3197
        %v3254 = vadd.f32 %v2808, %v3202
        %v3255 = vadd.f32 %v2809, %v3205
        %v3256 = vadd.f32 %v2810, %v3210
        %v3257 = vadd.f32 %v2811, %v3213
        %v3258 = vadd.f32 %v2812, %v3218
        %v3259 = vadd.f32 %v2813, %v3221
        %v3260 = vld [vmem:[#allocation2 + $0x8] sm:$0xc]
        %v3261 = vld [vmem:[#allocation9 + $0x8] sm:$0xc]
        %v3263 = vunpack.c.l.b16 %v3260
        %v3264 = vpack.c.b16 %v2448, %v3263
        %vm3265 = vcmask 1045504
        %v3266 = vrot.slane %v3264, 2
        %v3267 = vrot.slane %v2485, 2
        %v3268 = vsel %vm3265, %v3266, %v3267
        %v3269 = vrot.slane %v2486, 2
        %v3270 = vsel %vm3265, %v3267, %v3269
        %v3271 = vrot.slane %v2487, 2
        %v3272 = vsel %vm3265, %v3269, %v3271
        %v3273 = vrot.slane %v2488, 2
        %v3274 = vsel %vm3265, %v3271, %v3273
        %v3275 = vrot.slane %v2489, 2
        %v3276 = vsel %vm3265, %v3273, %v3275
        %v3277 = vrot.slane %v2490, 2
        %v3278 = vsel %vm3265, %v3275, %v3277
        %v3279 = vrot.slane %v2491, 2
        %v3280 = vsel %vm3265, %v3277, %v3279
        %v3281 = vrot.slane %v2492, 2
        %v3282 = vsel %vm3265, %v3279, %v3281
        %v3283 = vrot.slane %v2493, 2
        %v3284 = vsel %vm3265, %v3281, %v3283
        %v3285 = vrot.slane %v2494, 2
        %v3286 = vsel %vm3265, %v3283, %v3285
        %v3287 = vrot.slane %v2495, 2
        %v3288 = vsel %vm3265, %v3285, %v3287
        %v3289 = vrot.slane %v2496, 2
        %v3290 = vsel %vm3265, %v3287, %v3289
        %v3291 = vrot.slane %v2497, 2
        %v3292 = vsel %vm3265, %v3289, %v3291
        %v3293 = vrot.slane %v2498, 2
        %v3294 = vsel %vm3265, %v3291, %v3293
        %v3295 = vrot.slane %v2499, 2
        %v3296 = vsel %vm3265, %v3293, %v3295
        %v3297 = vrot.slane %v2500, 2
        %v3298 = vsel %vm3265, %v3295, %v3297
        %v3299 = vrot.slane %v2501, 2
        %v3300 = vsel %vm3265, %v3297, %v3299
        %v3301 = vrot.slane %v2818, 2
        %v3302 = vsel %vm3265, %v3299, %v3301
        %v3304 = vunpack.c.l.b16 %v3261
        %v3305 = vpack.c.b16 %v3304, %v3304
        %v3306 = vrot.slane %v3305, 2
        %v3308 = vsel %vm1607, %v3268, 0
        %v3311 = vsel %vm1607, %v3270, 0
        %v3314 = vsel %vm1607, %v3272, 0
        %v3317 = vsel %vm1607, %v3274, 0
        %v3320 = vsel %vm1607, %v3276, 0
        %v3323 = vsel %vm1607, %v3278, 0
        %v3326 = vsel %vm1607, %v3280, 0
        %v3329 = vsel %vm1607, %v3282, 0
        %v3332 = vsel %vm1607, %v3284, 0
        %v3335 = vsel %vm1607, %v3286, 0
        %v3338 = vsel %vm1607, %v3288, 0
        %v3341 = vsel %vm1607, %v3290, 0
        %v3344 = vsel %vm1607, %v3292, 0
        %v3347 = vsel %vm1607, %v3294, 0
        %v3350 = vsel %vm1607, %v3296, 0
        %v3353 = vsel %vm1607, %v3298, 0
        %v3356 = vsel %vm1607, %v3300, 0
        %v3359 = vsel %vm1607, %v3302, 0
        %v3362 = vsel %vm1662, %v3306, 0
        %3364 = vmatprep.subr.bf16.mxu0 0
        %3365 = vmatpush1.bf16.msra.mxu0 %v3362
        %3366 = vmatprep.subr.bf16.mxu0 0
        %3367 = vmatpush1.bf16.msra.mxu0 0
        %3368 = vmatprep.subr.bf16.mxu0 0
        %3369 = vmatpush1.bf16.msra.mxu0 0
        %3370 = vmatprep.subr.bf16.mxu0 0
        %3371 = vmatpush1.bf16.msra.mxu0 0
        %3372 = vmatprep.subr.bf16.mxu0 0
        %3373 = vmatpush1.bf16.msra.mxu0 0
        %3374 = vmatprep.subr.bf16.mxu0 0
        %3375 = vmatpush1.bf16.msra.mxu0 0
        %3376 = vmatprep.subr.bf16.mxu0 0
        %3377 = vmatpush1.bf16.msra.mxu0 0
        %3378 = vmatprep.subr.bf16.mxu0 0
        %3379 = vmatpush1.bf16.msra.mxu0 0
        %3380 = vmatprep.subr.bf16.mxu0 0
        %3381 = vmatpush1.bf16.msra.mxu0 0
        %3382 = vmatprep.subr.bf16.mxu0 0
        %3383 = vmatpush1.bf16.msra.mxu0 0
        %3384 = vmatprep.subr.bf16.mxu0 0
        %3385 = vmatpush1.bf16.msra.mxu0 0
        %3386 = vmatprep.subr.bf16.mxu0 0
        %3387 = vmatpush1.bf16.msra.mxu0 0
        %3388 = vmatprep.subr.bf16.mxu0 0
        %3389 = vmatpush1.bf16.msra.mxu0 0
        %3390 = vmatprep.subr.bf16.mxu0 0
        %3391 = vmatpush1.bf16.msra.mxu0 0
        %3392 = vmatprep.subr.bf16.mxu0 0
        %3393 = vmatpush1.bf16.msra.mxu0 0
        %3394 = vmatprep.subr.bf16.mxu0 0
        %3395 = vmatpush1.bf16.msra.mxu0 0
        %3396 = vmatprep.mubr.bf16.mxu0 0
        %3397 = vmatmul.mubr.bf16.gmra.mrb[0].mxu0 %v3308
        %v3398 = vpop.f32.mrb[0].mxu0
        %v3399 = vadd.f32 0.0, %v3398
        %v3400 = vpop.f32.mrb[0].mxu0
        %v3401 = vpop.f32.mrb[0].mxu0
        %v3402 = vadd.f32 0.0, %v3401
        %v3403 = vpop.f32.mrb[0].mxu0
        %3404 = vmatprep.mubr.bf16.mxu0 0
        %3405 = vmatmul.mubr.bf16.gmra.mrb[0].mxu0 %v3311
        %v3406 = vpop.f32.mrb[0].mxu0
        %v3407 = vadd.f32 0.0, %v3406
        %v3408 = vpop.f32.mrb[0].mxu0
        %v3409 = vpop.f32.mrb[0].mxu0
        %v3410 = vadd.f32 0.0, %v3409
        %v3411 = vpop.f32.mrb[0].mxu0
        %3412 = vmatprep.mubr.bf16.mxu0 0
        %3413 = vmatmul.mubr.bf16.gmra.mrb[0].mxu0 %v3314
        %v3414 = vpop.f32.mrb[0].mxu0
        %v3415 = vadd.f32 0.0, %v3414
        %v3416 = vpop.f32.mrb[0].mxu0
        %v3417 = vpop.f32.mrb[0].mxu0
        %v3418 = vadd.f32 0.0, %v3417
        %v3419 = vpop.f32.mrb[0].mxu0
        %3420 = vmatprep.mubr.bf16.mxu0 0
        %3421 = vmatmul.mubr.bf16.gmra.mrb[0].mxu0 %v3317
        %v3422 = vpop.f32.mrb[0].mxu0
        %v3423 = vadd.f32 0.0, %v3422
        %v3424 = vpop.f32.mrb[0].mxu0
        %v3425 = vpop.f32.mrb[0].mxu0
        %v3426 = vadd.f32 0.0, %v3425
        %v3427 = vpop.f32.mrb[0].mxu0
        %3428 = vmatprep.mubr.bf16.mxu0 0
        %3429 = vmatmul.mubr.bf16.gmra.mrb[0].mxu0 %v3320
        %v3430 = vpop.f32.mrb[0].mxu0
        %v3431 = vadd.f32 0.0, %v3430
        %v3432 = vpop.f32.mrb[0].mxu0
        %v3433 = vpop.f32.mrb[0].mxu0
        %v3434 = vadd.f32 0.0, %v3433
        %v3435 = vpop.f32.mrb[0].mxu0
        %3436 = vmatprep.mubr.bf16.mxu0 0
        %3437 = vmatmul.mubr.bf16.gmra.mrb[0].mxu0 %v3323
        %v3438 = vpop.f32.mrb[0].mxu0
        %v3439 = vadd.f32 0.0, %v3438
        %v3440 = vpop.f32.mrb[0].mxu0
        %v3441 = vpop.f32.mrb[0].mxu0
        %v3442 = vadd.f32 0.0, %v3441
        %v3443 = vpop.f32.mrb[0].mxu0
        %3444 = vmatprep.mubr.bf16.mxu0 0
        %3445 = vmatmul.mubr.bf16.gmra.mrb[0].mxu0 %v3326
        %v3446 = vpop.f32.mrb[0].mxu0
        %v3447 = vadd.f32 0.0, %v3446
        %v3448 = vpop.f32.mrb[0].mxu0
        %v3449 = vpop.f32.mrb[0].mxu0
        %v3450 = vadd.f32 0.0, %v3449
        %v3451 = vpop.f32.mrb[0].mxu0
        %3452 = vmatprep.mubr.bf16.mxu0 0
        %3453 = vmatmul.mubr.bf16.gmra.mrb[0].mxu0 %v3329
        %v3454 = vpop.f32.mrb[0].mxu0
        %v3455 = vadd.f32 0.0, %v3454
        %v3456 = vpop.f32.mrb[0].mxu0
        %v3457 = vpop.f32.mrb[0].mxu0
        %v3458 = vadd.f32 0.0, %v3457
        %v3459 = vpop.f32.mrb[0].mxu0
        %3460 = vmatprep.mubr.bf16.mxu0 0
        %3461 = vmatmul.mubr.bf16.gmra.mrb[0].mxu0 %v3332
        %v3462 = vpop.f32.mrb[0].mxu0
        %v3463 = vadd.f32 0.0, %v3462
        %v3464 = vpop.f32.mrb[0].mxu0
        %v3465 = vpop.f32.mrb[0].mxu0
        %v3466 = vadd.f32 0.0, %v3465
        %v3467 = vpop.f32.mrb[0].mxu0
        %3468 = vmatprep.mubr.bf16.mxu0 0
        %3469 = vmatmul.mubr.bf16.gmra.mrb[0].mxu0 %v3335
        %v3470 = vpop.f32.mrb[0].mxu0
        %v3471 = vadd.f32 0.0, %v3470
        %v3472 = vpop.f32.mrb[0].mxu0
        %v3473 = vpop.f32.mrb[0].mxu0
        %v3474 = vadd.f32 0.0, %v3473
        %v3475 = vpop.f32.mrb[0].mxu0
        %3476 = vmatprep.mubr.bf16.mxu0 0
        %3477 = vmatmul.mubr.bf16.gmra.mrb[0].mxu0 %v3338
        %v3478 = vpop.f32.mrb[0].mxu0
        %v3479 = vadd.f32 0.0, %v3478
        %v3480 = vpop.f32.mrb[0].mxu0
        %v3481 = vpop.f32.mrb[0].mxu0
        %v3482 = vadd.f32 0.0, %v3481
        %v3483 = vpop.f32.mrb[0].mxu0
        %3484 = vmatprep.mubr.bf16.mxu0 0
        %3485 = vmatmul.mubr.bf16.gmra.mrb[0].mxu0 %v3341
        %v3486 = vpop.f32.mrb[0].mxu0
        %v3487 = vadd.f32 0.0, %v3486
        %v3488 = vpop.f32.mrb[0].mxu0
        %v3489 = vpop.f32.mrb[0].mxu0
        %v3490 = vadd.f32 0.0, %v3489
        %v3491 = vpop.f32.mrb[0].mxu0
        %3492 = vmatprep.mubr.bf16.mxu0 0
        %3493 = vmatmul.mubr.bf16.gmra.mrb[0].mxu0 %v3344
        %v3494 = vpop.f32.mrb[0].mxu0
        %v3495 = vadd.f32 0.0, %v3494
        %v3496 = vpop.f32.mrb[0].mxu0
        %v3497 = vpop.f32.mrb[0].mxu0
        %v3498 = vadd.f32 0.0, %v3497
        %v3499 = vpop.f32.mrb[0].mxu0
        %3500 = vmatprep.mubr.bf16.mxu0 0
        %3501 = vmatmul.mubr.bf16.gmra.mrb[0].mxu0 %v3347
        %v3502 = vpop.f32.mrb[0].mxu0
        %v3503 = vadd.f32 0.0, %v3502
        %v3504 = vpop.f32.mrb[0].mxu0
        %v3505 = vpop.f32.mrb[0].mxu0
        %v3506 = vadd.f32 0.0, %v3505
        %v3507 = vpop.f32.mrb[0].mxu0
        %3508 = vmatprep.mubr.bf16.mxu0 0
        %3509 = vmatmul.mubr.bf16.gmra.mrb[0].mxu0 %v3350
        %v3510 = vpop.f32.mrb[0].mxu0
        %v3511 = vadd.f32 0.0, %v3510
        %v3512 = vpop.f32.mrb[0].mxu0
        %v3513 = vpop.f32.mrb[0].mxu0
        %v3514 = vadd.f32 0.0, %v3513
        %v3515 = vpop.f32.mrb[0].mxu0
        %3516 = vmatprep.mubr.bf16.mxu0 0
        %3517 = vmatmul.mubr.bf16.gmra.mrb[0].mxu0 %v3353
        %v3518 = vpop.f32.mrb[0].mxu0
        %v3519 = vadd.f32 0.0, %v3518
        %v3520 = vpop.f32.mrb[0].mxu0
        %v3521 = vpop.f32.mrb[0].mxu0
        %v3522 = vadd.f32 0.0, %v3521
        %v3523 = vpop.f32.mrb[0].mxu0
        %3524 = vmatprep.mubr.bf16.mxu0 0
        %3525 = vmatmul.mubr.bf16.gmra.mrb[0].mxu0 %v3356
        %v3526 = vpop.f32.mrb[0].mxu0
        %v3527 = vadd.f32 0.0, %v3526
        %v3528 = vpop.f32.mrb[0].mxu0
        %v3529 = vpop.f32.mrb[0].mxu0
        %v3530 = vadd.f32 0.0, %v3529
        %v3531 = vpop.f32.mrb[0].mxu0
        %3532 = vmatprep.mubr.bf16.mxu0 0
        %3533 = vmatmul.mubr.bf16.gmra.mrb[0].mxu0 %v3359
        %v3534 = vpop.f32.mrb[0].mxu0
        %v3535 = vadd.f32 0.0, %v3534
        %v3536 = vpop.f32.mrb[0].mxu0
        %v3537 = vpop.f32.mrb[0].mxu0
        %v3538 = vadd.f32 0.0, %v3537
        %v3539 = vpop.f32.mrb[0].mxu0
        %3540 = vdwg.mxu0
        %v3541 = vadd.f32 %v3224, %v3399
        %v3542 = vadd.f32 %v3225, %v3402
        %v3543 = vadd.f32 %v3226, %v3407
        %v3544 = vadd.f32 %v3227, %v3410
        %v3545 = vadd.f32 %v3228, %v3415
        %v3546 = vadd.f32 %v3229, %v3418
        %v3547 = vadd.f32 %v3230, %v3423
        %v3548 = vadd.f32 %v3231, %v3426
        %v3549 = vadd.f32 %v3232, %v3431
        %v3550 = vadd.f32 %v3233, %v3434
        %v3551 = vadd.f32 %v3234, %v3439
        %v3552 = vadd.f32 %v3235, %v3442
        %v3553 = vadd.f32 %v3236, %v3447
        %v3554 = vadd.f32 %v3237, %v3450
        %v3555 = vadd.f32 %v3238, %v3455
        %v3556 = vadd.f32 %v3239, %v3458
        %v3557 = vadd.f32 %v3240, %v3463
        %v3558 = vadd.f32 %v3241, %v3466
        %v3559 = vadd.f32 %v3242, %v3471
        %v3560 = vadd.f32 %v3243, %v3474
        %v3561 = vadd.f32 %v3244, %v3479
        %v3562 = vadd.f32 %v3245, %v3482
        %v3563 = vadd.f32 %v3246, %v3487
        %v3564 = vadd.f32 %v3247, %v3490
        %v3565 = vadd.f32 %v3248, %v3495
        %v3566 = vadd.f32 %v3249, %v3498
        %v3567 = vadd.f32 %v3250, %v3503
        %v3568 = vadd.f32 %v3251, %v3506
        %v3569 = vadd.f32 %v3252, %v3511
        %v3570 = vadd.f32 %v3253, %v3514
        %v3571 = vadd.f32 %v3254, %v3519
        %v3572 = vadd.f32 %v3255, %v3522
        %v3573 = vadd.f32 %v3256, %v3527
        %v3574 = vadd.f32 %v3257, %v3530
        %v3575 = vadd.f32 %v3258, %v3535
        %v3576 = vadd.f32 %v3259, %v3538
        %v3577 = vld [vmem:[#allocation2 + $0x10] sm:$0xc]
        %v3578 = vld [vmem:[#allocation2 + $0x14] sm:$0xf]
        %v3579 = vld [vmem:[#allocation2 + $0x18] sm:$0xf]
        %v3580 = vld [vmem:[#allocation2 + $0x1c] sm:$0xf]
        %v3581 = vld [vmem:[#allocation2 + $0x20] sm:$0xf]
        %v3582 = vld [vmem:[#allocation2 + $0x24] sm:$0xf]
        %v3583 = vld [vmem:[#allocation2 + $0x28] sm:$0xf]
        %v3584 = vld [vmem:[#allocation2 + $0x2c] sm:$0xf]
        %v3585 = vld [vmem:[#allocation2 + $0x30] sm:$0xf]
        %v3586 = vld [vmem:[#allocation2 + $0x34] sm:$0xf]
        %v3587 = vld [vmem:[#allocation2 + $0x38] sm:$0xf]
        %v3588 = vld [vmem:[#allocation2 + $0x3c] sm:$0xf]
        %v3589 = vld [vmem:[#allocation2 + $0x40] sm:$0xf]
        %v3590 = vld [vmem:[#allocation2 + $0x44] sm:$0xf]
        %v3591 = vld [vmem:[#allocation2 + $0x48] sm:$0xf]
        %v3592 = vld [vmem:[#allocation2 + $0x4c] sm:$0xf]
        %v3593 = vld [vmem:[#allocation2 + $0x50] sm:$0xf]
        %v3594 = vld [vmem:[#allocation2 + $0x54] sm:$0xf]
        %v3595 = vld [vmem:[#allocation2 + $0x58] sm:$0xf]
        %v3596 = vld [vmem:[#allocation2 + $0x5c] sm:$0xf]
        %v3597 = vld [vmem:[#allocation2 + $0x60] sm:$0xf]
        %v3598 = vld [vmem:[#allocation2 + $0x64] sm:$0xf]
        %v3599 = vld [vmem:[#allocation2 + $0x68] sm:$0xf]
        %v3600 = vld [vmem:[#allocation2 + $0x6c] sm:$0xf]
        %v3601 = vld [vmem:[#allocation2 + $0x70] sm:$0xf]
        %v3602 = vld [vmem:[#allocation2 + $0x74] sm:$0xf]
        %v3603 = vld [vmem:[#allocation2 + $0x78] sm:$0xf]
        %v3604 = vld [vmem:[#allocation2 + $0x7c] sm:$0xf]
        %v3605 = vld [vmem:[#allocation2 + $0x80] sm:$0xf]
        %v3606 = vld [vmem:[#allocation2 + $0x84] sm:$0xf]
        %v3607 = vld [vmem:[#allocation2 + $0x88] sm:$0xf]
        %v3608 = vld [vmem:[#allocation2 + $0x8c] sm:$0xf]
        %v3609 = vld [vmem:[#allocation2 + $0x90] sm:$0xf]
        %v3610 = vld [vmem:[#allocation2 + $0x94] sm:$0xf]
        %v3611 = vld [vmem:[#allocation2 + $0x98] sm:$0xf]
        %v3612 = vld [vmem:[#allocation2 + $0x9c] sm:$0xf]
        %v3613 = vld [vmem:[#allocation2 + $0xa0] sm:$0x3]
        %v3614 = vld [vmem:[#allocation9 + $0xc] sm:$0x3]
        %v3652 = vunpack.c.l.b16 %v3577
        %v3653 = vunpack.c.l.b16 %v3578
        %v3654 = vunpack.c.l.b16 %v3579
        %v3655 = vunpack.c.l.b16 %v3580
        %v3656 = vunpack.c.l.b16 %v3581
        %v3657 = vunpack.c.l.b16 %v3582
        %v3658 = vunpack.c.l.b16 %v3583
        %v3659 = vunpack.c.l.b16 %v3584
        %v3660 = vunpack.c.l.b16 %v3585
        %v3661 = vunpack.c.l.b16 %v3586
        %v3662 = vunpack.c.l.b16 %v3587
        %v3663 = vunpack.c.l.b16 %v3588
        %v3664 = vunpack.c.l.b16 %v3589
        %v3665 = vunpack.c.l.b16 %v3590
        %v3666 = vunpack.c.l.b16 %v3591
        %v3667 = vunpack.c.l.b16 %v3592
        %v3668 = vunpack.c.l.b16 %v3593
        %v3669 = vunpack.c.l.b16 %v3594
        %v3670 = vunpack.c.l.b16 %v3595
        %v3671 = vunpack.c.l.b16 %v3596
        %v3672 = vunpack.c.l.b16 %v3597
        %v3673 = vunpack.c.l.b16 %v3598
        %v3674 = vunpack.c.l.b16 %v3599
        %v3675 = vunpack.c.l.b16 %v3600
        %v3676 = vunpack.c.l.b16 %v3601
        %v3677 = vunpack.c.l.b16 %v3602
        %v3678 = vunpack.c.l.b16 %v3603
        %v3679 = vunpack.c.l.b16 %v3604
        %v3680 = vunpack.c.l.b16 %v3605
        %v3681 = vunpack.c.l.b16 %v3606
        %v3682 = vunpack.c.l.b16 %v3607
        %v3683 = vunpack.c.l.b16 %v3608
        %v3684 = vunpack.c.l.b16 %v3609
        %v3685 = vunpack.c.l.b16 %v3610
        %v3686 = vunpack.c.l.b16 %v3611
        %v3687 = vunpack.c.l.b16 %v3612
        %v3688 = vunpack.c.l.b16 %v3613
        %v3689 = vpack.c.b16 %v3653, %v3652
        %v3690 = vpack.c.b16 %v3655, %v3654
        %v3691 = vpack.c.b16 %v3657, %v3656
        %v3692 = vpack.c.b16 %v3659, %v3658
        %v3693 = vpack.c.b16 %v3661, %v3660
        %v3694 = vpack.c.b16 %v3663, %v3662
        %v3695 = vpack.c.b16 %v3665, %v3664
        %v3696 = vpack.c.b16 %v3667, %v3666
        %v3697 = vpack.c.b16 %v3669, %v3668
        %v3698 = vpack.c.b16 %v3671, %v3670
        %v3699 = vpack.c.b16 %v3673, %v3672
        %v3700 = vpack.c.b16 %v3675, %v3674
        %v3701 = vpack.c.b16 %v3677, %v3676
        %v3702 = vpack.c.b16 %v3679, %v3678
        %v3703 = vpack.c.b16 %v3681, %v3680
        %v3704 = vpack.c.b16 %v3683, %v3682
        %v3705 = vpack.c.b16 %v3685, %v3684
        %v3706 = vpack.c.b16 %v3687, %v3686
        %v3707 = vpack.c.b16 %v3688, %v3688
        %v3708 = vrot.slane %v3689, 2
        %v3709 = vrot.slane %v3690, 2
        %v3710 = vsel %vm3265, %v3708, %v3709
        %v3711 = vrot.slane %v3691, 2
        %v3712 = vsel %vm3265, %v3709, %v3711
        %v3713 = vrot.slane %v3692, 2
        %v3714 = vsel %vm3265, %v3711, %v3713
        %v3715 = vrot.slane %v3693, 2
        %v3716 = vsel %vm3265, %v3713, %v3715
        %v3717 = vrot.slane %v3694, 2
        %v3718 = vsel %vm3265, %v3715, %v3717
        %v3719 = vrot.slane %v3695, 2
        %v3720 = vsel %vm3265, %v3717, %v3719
        %v3721 = vrot.slane %v3696, 2
        %v3722 = vsel %vm3265, %v3719, %v3721
        %v3723 = vrot.slane %v3697, 2
        %v3724 = vsel %vm3265, %v3721, %v3723
        %v3725 = vrot.slane %v3698, 2
        %v3726 = vsel %vm3265, %v3723, %v3725
        %v3727 = vrot.slane %v3699, 2
        %v3728 = vsel %vm3265, %v3725, %v3727
        %v3729 = vrot.slane %v3700, 2
        %v3730 = vsel %vm3265, %v3727, %v3729
        %v3731 = vrot.slane %v3701, 2
        %v3732 = vsel %vm3265, %v3729, %v3731
        %v3733 = vrot.slane %v3702, 2
        %v3734 = vsel %vm3265, %v3731, %v3733
        %v3735 = vrot.slane %v3703, 2
        %v3736 = vsel %vm3265, %v3733, %v3735
        %v3737 = vrot.slane %v3704, 2
        %v3738 = vsel %vm3265, %v3735, %v3737
        %v3739 = vrot.slane %v3705, 2
        %v3740 = vsel %vm3265, %v3737, %v3739
        %v3741 = vrot.slane %v3706, 2
        %v3742 = vsel %vm3265, %v3739, %v3741
        %v3743 = vrot.slane %v3707, 2
        %v3744 = vsel %vm3265, %v3741, %v3743
        %v3746 = vsel %vm1607, %v3710, 0
        %v3749 = vsel %vm1607, %v3712, 0
        %v3752 = vsel %vm1607, %v3714, 0
        %v3755 = vsel %vm1607, %v3716, 0
        %v3758 = vsel %vm1607, %v3718, 0
        %v3761 = vsel %vm1607, %v3720, 0
        %v3764 = vsel %vm1607, %v3722, 0
        %v3767 = vsel %vm1607, %v3724, 0
        %v3770 = vsel %vm1607, %v3726, 0
        %v3773 = vsel %vm1607, %v3728, 0
        %v3776 = vsel %vm1607, %v3730, 0
        %v3779 = vsel %vm1607, %v3732, 0
        %v3782 = vsel %vm1607, %v3734, 0
        %v3785 = vsel %vm1607, %v3736, 0
        %v3788 = vsel %vm1607, %v3738, 0
        %v3791 = vsel %vm1607, %v3740, 0
        %v3794 = vsel %vm1607, %v3742, 0
        %v3797 = vsel %vm1607, %v3744, 0
        %v3800 = vsel %vm1662, %v3614, 0
        %3802 = vmatprep.subr.bf16.mxu0 0
        %3803 = vmatpush1.bf16.msra.mxu0 %v3800
        %3804 = vmatprep.subr.bf16.mxu0 0
        %3805 = vmatpush1.bf16.msra.mxu0 0
        %3806 = vmatprep.subr.bf16.mxu0 0
        %3807 = vmatpush1.bf16.msra.mxu0 0
        %3808 = vmatprep.subr.bf16.mxu0 0
        %3809 = vmatpush1.bf16.msra.mxu0 0
        %3810 = vmatprep.subr.bf16.mxu0 0
        %3811 = vmatpush1.bf16.msra.mxu0 0
        %3812 = vmatprep.subr.bf16.mxu0 0
        %3813 = vmatpush1.bf16.msra.mxu0 0
        %3814 = vmatprep.subr.bf16.mxu0 0
        %3815 = vmatpush1.bf16.msra.mxu0 0
        %3816 = vmatprep.subr.bf16.mxu0 0
        %3817 = vmatpush1.bf16.msra.mxu0 0
        %3818 = vmatprep.subr.bf16.mxu0 0
        %3819 = vmatpush1.bf16.msra.mxu0 0
        %3820 = vmatprep.subr.bf16.mxu0 0
        %3821 = vmatpush1.bf16.msra.mxu0 0
        %3822 = vmatprep.subr.bf16.mxu0 0
        %3823 = vmatpush1.bf16.msra.mxu0 0
        %3824 = vmatprep.subr.bf16.mxu0 0
        %3825 = vmatpush1.bf16.msra.mxu0 0
        %3826 = vmatprep.subr.bf16.mxu0 0
        %3827 = vmatpush1.bf16.msra.mxu0 0
        %3828 = vmatprep.subr.bf16.mxu0 0
        %3829 = vmatpush1.bf16.msra.mxu0 0
        %3830 = vmatprep.subr.bf16.mxu0 0
        %3831 = vmatpush1.bf16.msra.mxu0 0
        %3832 = vmatprep.subr.bf16.mxu0 0
        %3833 = vmatpush1.bf16.msra.mxu0 0
        %3834 = vmatprep.mubr.bf16.mxu0 0
        %3835 = vmatmul.mubr.bf16.gmra.mrb[0].mxu0 %v3746
        %v3836 = vpop.f32.mrb[0].mxu0
        %v3837 = vadd.f32 0.0, %v3836
        %v3838 = vpop.f32.mrb[0].mxu0
        %v3839 = vpop.f32.mrb[0].mxu0
        %v3840 = vadd.f32 0.0, %v3839
        %v3841 = vpop.f32.mrb[0].mxu0
        %3842 = vmatprep.mubr.bf16.mxu0 0
        %3843 = vmatmul.mubr.bf16.gmra.mrb[0].mxu0 %v3749
        %v3844 = vpop.f32.mrb[0].mxu0
        %v3845 = vadd.f32 0.0, %v3844
        %v3846 = vpop.f32.mrb[0].mxu0
        %v3847 = vpop.f32.mrb[0].mxu0
        %v3848 = vadd.f32 0.0, %v3847
        %v3849 = vpop.f32.mrb[0].mxu0
        %3850 = vmatprep.mubr.bf16.mxu0 0
        %3851 = vmatmul.mubr.bf16.gmra.mrb[0].mxu0 %v3752
        %v3852 = vpop.f32.mrb[0].mxu0
        %v3853 = vadd.f32 0.0, %v3852
        %v3854 = vpop.f32.mrb[0].mxu0
        %v3855 = vpop.f32.mrb[0].mxu0
        %v3856 = vadd.f32 0.0, %v3855
        %v3857 = vpop.f32.mrb[0].mxu0
        %3858 = vmatprep.mubr.bf16.mxu0 0
        %3859 = vmatmul.mubr.bf16.gmra.mrb[0].mxu0 %v3755
        %v3860 = vpop.f32.mrb[0].mxu0
        %v3861 = vadd.f32 0.0, %v3860
        %v3862 = vpop.f32.mrb[0].mxu0
        %v3863 = vpop.f32.mrb[0].mxu0
        %v3864 = vadd.f32 0.0, %v3863
        %v3865 = vpop.f32.mrb[0].mxu0
        %3866 = vmatprep.mubr.bf16.mxu0 0
        %3867 = vmatmul.mubr.bf16.gmra.mrb[0].mxu0 %v3758
        %v3868 = vpop.f32.mrb[0].mxu0
        %v3869 = vadd.f32 0.0, %v3868
        %v3870 = vpop.f32.mrb[0].mxu0
        %v3871 = vpop.f32.mrb[0].mxu0
        %v3872 = vadd.f32 0.0, %v3871
        %v3873 = vpop.f32.mrb[0].mxu0
        %3874 = vmatprep.mubr.bf16.mxu0 0
        %3875 = vmatmul.mubr.bf16.gmra.mrb[0].mxu0 %v3761
        %v3876 = vpop.f32.mrb[0].mxu0
        %v3877 = vadd.f32 0.0, %v3876
        %v3878 = vpop.f32.mrb[0].mxu0
        %v3879 = vpop.f32.mrb[0].mxu0
        %v3880 = vadd.f32 0.0, %v3879
        %v3881 = vpop.f32.mrb[0].mxu0
        %3882 = vmatprep.mubr.bf16.mxu0 0
        %3883 = vmatmul.mubr.bf16.gmra.mrb[0].mxu0 %v3764
        %v3884 = vpop.f32.mrb[0].mxu0
        %v3885 = vadd.f32 0.0, %v3884
        %v3886 = vpop.f32.mrb[0].mxu0
        %v3887 = vpop.f32.mrb[0].mxu0
        %v3888 = vadd.f32 0.0, %v3887
        %v3889 = vpop.f32.mrb[0].mxu0
        %3890 = vmatprep.mubr.bf16.mxu0 0
        %3891 = vmatmul.mubr.bf16.gmra.mrb[0].mxu0 %v3767
        %v3892 = vpop.f32.mrb[0].mxu0
        %v3893 = vadd.f32 0.0, %v3892
        %v3894 = vpop.f32.mrb[0].mxu0
        %v3895 = vpop.f32.mrb[0].mxu0
        %v3896 = vadd.f32 0.0, %v3895
        %v3897 = vpop.f32.mrb[0].mxu0
        %3898 = vmatprep.mubr.bf16.mxu0 0
        %3899 = vmatmul.mubr.bf16.gmra.mrb[0].mxu0 %v3770
        %v3900 = vpop.f32.mrb[0].mxu0
        %v3901 = vadd.f32 0.0, %v3900
        %v3902 = vpop.f32.mrb[0].mxu0
        %v3903 = vpop.f32.mrb[0].mxu0
        %v3904 = vadd.f32 0.0, %v3903
        %v3905 = vpop.f32.mrb[0].mxu0
        %3906 = vmatprep.mubr.bf16.mxu0 0
        %3907 = vmatmul.mubr.bf16.gmra.mrb[0].mxu0 %v3773
        %v3908 = vpop.f32.mrb[0].mxu0
        %v3909 = vadd.f32 0.0, %v3908
        %v3910 = vpop.f32.mrb[0].mxu0
        %v3911 = vpop.f32.mrb[0].mxu0
        %v3912 = vadd.f32 0.0, %v3911
        %v3913 = vpop.f32.mrb[0].mxu0
        %3914 = vmatprep.mubr.bf16.mxu0 0
        %3915 = vmatmul.mubr.bf16.gmra.mrb[0].mxu0 %v3776
        %v3916 = vpop.f32.mrb[0].mxu0
        %v3917 = vadd.f32 0.0, %v3916
        %v3918 = vpop.f32.mrb[0].mxu0
        %v3919 = vpop.f32.mrb[0].mxu0
        %v3920 = vadd.f32 0.0, %v3919
        %v3921 = vpop.f32.mrb[0].mxu0
        %3922 = vmatprep.mubr.bf16.mxu0 0
        %3923 = vmatmul.mubr.bf16.gmra.mrb[0].mxu0 %v3779
        %v3924 = vpop.f32.mrb[0].mxu0
        %v3925 = vadd.f32 0.0, %v3924
        %v3926 = vpop.f32.mrb[0].mxu0
        %v3927 = vpop.f32.mrb[0].mxu0
        %v3928 = vadd.f32 0.0, %v3927
        %v3929 = vpop.f32.mrb[0].mxu0
        %3930 = vmatprep.mubr.bf16.mxu0 0
        %3931 = vmatmul.mubr.bf16.gmra.mrb[0].mxu0 %v3782
        %v3932 = vpop.f32.mrb[0].mxu0
        %v3933 = vadd.f32 0.0, %v3932
        %v3934 = vpop.f32.mrb[0].mxu0
        %v3935 = vpop.f32.mrb[0].mxu0
        %v3936 = vadd.f32 0.0, %v3935
        %v3937 = vpop.f32.mrb[0].mxu0
        %3938 = vmatprep.mubr.bf16.mxu0 0
        %3939 = vmatmul.mubr.bf16.gmra.mrb[0].mxu0 %v3785
        %v3940 = vpop.f32.mrb[0].mxu0
        %v3941 = vadd.f32 0.0, %v3940
        %v3942 = vpop.f32.mrb[0].mxu0
        %v3943 = vpop.f32.mrb[0].mxu0
        %v3944 = vadd.f32 0.0, %v3943
        %v3945 = vpop.f32.mrb[0].mxu0
        %3946 = vmatprep.mubr.bf16.mxu0 0
        %3947 = vmatmul.mubr.bf16.gmra.mrb[0].mxu0 %v3788
        %v3948 = vpop.f32.mrb[0].mxu0
        %v3949 = vadd.f32 0.0, %v3948
        %v3950 = vpop.f32.mrb[0].mxu0
        %v3951 = vpop.f32.mrb[0].mxu0
        %v3952 = vadd.f32 0.0, %v3951
        %v3953 = vpop.f32.mrb[0].mxu0
        %3954 = vmatprep.mubr.bf16.mxu0 0
        %3955 = vmatmul.mubr.bf16.gmra.mrb[0].mxu0 %v3791
        %v3956 = vpop.f32.mrb[0].mxu0
        %v3957 = vadd.f32 0.0, %v3956
        %v3958 = vpop.f32.mrb[0].mxu0
        %v3959 = vpop.f32.mrb[0].mxu0
        %v3960 = vadd.f32 0.0, %v3959
        %v3961 = vpop.f32.mrb[0].mxu0
        %3962 = vmatprep.mubr.bf16.mxu0 0
        %3963 = vmatmul.mubr.bf16.gmra.mrb[0].mxu0 %v3794
        %v3964 = vpop.f32.mrb[0].mxu0
        %v3965 = vadd.f32 0.0, %v3964
        %v3966 = vpop.f32.mrb[0].mxu0
        %v3967 = vpop.f32.mrb[0].mxu0
        %v3968 = vadd.f32 0.0, %v3967
        %v3969 = vpop.f32.mrb[0].mxu0
        %3970 = vmatprep.mubr.bf16.mxu0 0
        %3971 = vmatmul.mubr.bf16.gmra.mrb[0].mxu0 %v3797
        %v3972 = vpop.f32.mrb[0].mxu0
        %v3973 = vadd.f32 0.0, %v3972
        %v3974 = vpop.f32.mrb[0].mxu0
        %v3975 = vpop.f32.mrb[0].mxu0
        %v3976 = vadd.f32 0.0, %v3975
        %v3977 = vpop.f32.mrb[0].mxu0
        %3978 = vdwg.mxu0
        %v3979 = vadd.f32 %v3541, %v3837
        %v3980 = vadd.f32 %v3542, %v3840
        %v3981 = vadd.f32 %v3543, %v3845
        %v3982 = vadd.f32 %v3544, %v3848
        %v3983 = vadd.f32 %v3545, %v3853
        %v3984 = vadd.f32 %v3546, %v3856
        %v3985 = vadd.f32 %v3547, %v3861
        %v3986 = vadd.f32 %v3548, %v3864
        %v3987 = vadd.f32 %v3549, %v3869
        %v3988 = vadd.f32 %v3550, %v3872
        %v3989 = vadd.f32 %v3551, %v3877
        %v3990 = vadd.f32 %v3552, %v3880
        %v3991 = vadd.f32 %v3553, %v3885
        %v3992 = vadd.f32 %v3554, %v3888
        %v3993 = vadd.f32 %v3555, %v3893
        %v3994 = vadd.f32 %v3556, %v3896
        %v3995 = vadd.f32 %v3557, %v3901
        %v3996 = vadd.f32 %v3558, %v3904
        %v3997 = vadd.f32 %v3559, %v3909
        %v3998 = vadd.f32 %v3560, %v3912
        %v3999 = vadd.f32 %v3561, %v3917
        %v4000 = vadd.f32 %v3562, %v3920
        %v4001 = vadd.f32 %v3563, %v3925
        %v4002 = vadd.f32 %v3564, %v3928
        %v4003 = vadd.f32 %v3565, %v3933
        %v4004 = vadd.f32 %v3566, %v3936
        %v4005 = vadd.f32 %v3567, %v3941
        %v4006 = vadd.f32 %v3568, %v3944
        %v4007 = vadd.f32 %v3569, %v3949
        %v4008 = vadd.f32 %v3570, %v3952
        %v4009 = vadd.f32 %v3571, %v3957
        %v4010 = vadd.f32 %v3572, %v3960
        %v4011 = vadd.f32 %v3573, %v3965
        %v4012 = vadd.f32 %v3574, %v3968
        %v4013 = vadd.f32 %v3575, %v3973
        %v4014 = vadd.f32 %v3576, %v3976
        %v4015 = vld [vmem:[#allocation2 + $0xa0] sm:$0x7]
        %v4016 = vld [vmem:[#allocation9 + $0xc] sm:$0xc]
        %v4018 = vunpack.c.l.b16 %v4015
        %v4019 = vpack.c.b16 %v4018, %v4018
        %vm4020 = vsmask.f32 5376
        %v4022 = vshrl.u32 %v3689, 16
        %v4024 = vrot.slane %v4022, 2
        %v4025 = vshll.u32 %v3689, 16
        %v4027 = vrot.slane %v4025, 3
        %v4028 = vor.u32 %v4024, %v4027
        %v4030 = vshrl.u32 %v3690, 16
        %v4032 = vrot.slane %v4030, 2
        %v4033 = vshll.u32 %v3690, 16
        %v4035 = vrot.slane %v4033, 3
        %v4036 = vor.u32 %v4032, %v4035
        %v4037 = vsel %vm4020, %v4028, %v4036
        %v4039 = vshrl.u32 %v3691, 16
        %v4041 = vrot.slane %v4039, 2
        %v4042 = vshll.u32 %v3691, 16
        %v4044 = vrot.slane %v4042, 3
        %v4045 = vor.u32 %v4041, %v4044
        %v4046 = vsel %vm4020, %v4036, %v4045
        %v4048 = vshrl.u32 %v3692, 16
        %v4050 = vrot.slane %v4048, 2
        %v4051 = vshll.u32 %v3692, 16
        %v4053 = vrot.slane %v4051, 3
        %v4054 = vor.u32 %v4050, %v4053
        %v4055 = vsel %vm4020, %v4045, %v4054
        %v4057 = vshrl.u32 %v3693, 16
        %v4059 = vrot.slane %v4057, 2
        %v4060 = vshll.u32 %v3693, 16
        %v4062 = vrot.slane %v4060, 3
        %v4063 = vor.u32 %v4059, %v4062
        %v4064 = vsel %vm4020, %v4054, %v4063
        %v4066 = vshrl.u32 %v3694, 16
        %v4068 = vrot.slane %v4066, 2
        %v4069 = vshll.u32 %v3694, 16
        %v4071 = vrot.slane %v4069, 3
        %v4072 = vor.u32 %v4068, %v4071
        %v4073 = vsel %vm4020, %v4063, %v4072
        %v4075 = vshrl.u32 %v3695, 16
        %v4077 = vrot.slane %v4075, 2
        %v4078 = vshll.u32 %v3695, 16
        %v4080 = vrot.slane %v4078, 3
        %v4081 = vor.u32 %v4077, %v4080
        %v4082 = vsel %vm4020, %v4072, %v4081
        %v4084 = vshrl.u32 %v3696, 16
        %v4086 = vrot.slane %v4084, 2
        %v4087 = vshll.u32 %v3696, 16
        %v4089 = vrot.slane %v4087, 3
        %v4090 = vor.u32 %v4086, %v4089
        %v4091 = vsel %vm4020, %v4081, %v4090
        %v4093 = vshrl.u32 %v3697, 16
        %v4095 = vrot.slane %v4093, 2
        %v4096 = vshll.u32 %v3697, 16
        %v4098 = vrot.slane %v4096, 3
        %v4099 = vor.u32 %v4095, %v4098
        %v4100 = vsel %vm4020, %v4090, %v4099
        %v4102 = vshrl.u32 %v3698, 16
        %v4104 = vrot.slane %v4102, 2
        %v4105 = vshll.u32 %v3698, 16
        %v4107 = vrot.slane %v4105, 3
        %v4108 = vor.u32 %v4104, %v4107
        %v4109 = vsel %vm4020, %v4099, %v4108
        %v4111 = vshrl.u32 %v3699, 16
        %v4113 = vrot.slane %v4111, 2
        %v4114 = vshll.u32 %v3699, 16
        %v4116 = vrot.slane %v4114, 3
        %v4117 = vor.u32 %v4113, %v4116
        %v4118 = vsel %vm4020, %v4108, %v4117
        %v4120 = vshrl.u32 %v3700, 16
        %v4122 = vrot.slane %v4120, 2
        %v4123 = vshll.u32 %v3700, 16
        %v4125 = vrot.slane %v4123, 3
        %v4126 = vor.u32 %v4122, %v4125
        %v4127 = vsel %vm4020, %v4117, %v4126
        %v4129 = vshrl.u32 %v3701, 16
        %v4131 = vrot.slane %v4129, 2
        %v4132 = vshll.u32 %v3701, 16
        %v4134 = vrot.slane %v4132, 3
        %v4135 = vor.u32 %v4131, %v4134
        %v4136 = vsel %vm4020, %v4126, %v4135
        %v4138 = vshrl.u32 %v3702, 16
        %v4140 = vrot.slane %v4138, 2
        %v4141 = vshll.u32 %v3702, 16
        %v4143 = vrot.slane %v4141, 3
        %v4144 = vor.u32 %v4140, %v4143
        %v4145 = vsel %vm4020, %v4135, %v4144
        %v4147 = vshrl.u32 %v3703, 16
        %v4149 = vrot.slane %v4147, 2
        %v4150 = vshll.u32 %v3703, 16
        %v4152 = vrot.slane %v4150, 3
        %v4153 = vor.u32 %v4149, %v4152
        %v4154 = vsel %vm4020, %v4144, %v4153
        %v4156 = vshrl.u32 %v3704, 16
        %v4158 = vrot.slane %v4156, 2
        %v4159 = vshll.u32 %v3704, 16
        %v4161 = vrot.slane %v4159, 3
        %v4162 = vor.u32 %v4158, %v4161
        %v4163 = vsel %vm4020, %v4153, %v4162
        %v4165 = vshrl.u32 %v3705, 16
        %v4167 = vrot.slane %v4165, 2
        %v4168 = vshll.u32 %v3705, 16
        %v4170 = vrot.slane %v4168, 3
        %v4171 = vor.u32 %v4167, %v4170
        %v4172 = vsel %vm4020, %v4162, %v4171
        %v4174 = vshrl.u32 %v3706, 16
        %v4176 = vrot.slane %v4174, 2
        %v4177 = vshll.u32 %v3706, 16
        %v4179 = vrot.slane %v4177, 3
        %v4180 = vor.u32 %v4176, %v4179
        %v4181 = vsel %vm4020, %v4171, %v4180
        %v4183 = vshrl.u32 %v4019, 16
        %v4185 = vrot.slane %v4183, 2
        %v4186 = vshll.u32 %v4019, 16
        %v4188 = vrot.slane %v4186, 3
        %v4189 = vor.u32 %v4185, %v4188
        %v4190 = vsel %vm4020, %v4180, %v4189
        %v4192 = vunpack.c.l.b16 %v4016
        %v4193 = vpack.c.b16 %v4192, %v4192
        %v4194 = vrot.slane %v4193, 2
        %v4196 = vsel %vm1607, %v4037, 0
        %v4199 = vsel %vm1607, %v4046, 0
        %v4202 = vsel %vm1607, %v4055, 0
        %v4205 = vsel %vm1607, %v4064, 0
        %v4208 = vsel %vm1607, %v4073, 0
        %v4211 = vsel %vm1607, %v4082, 0
        %v4214 = vsel %vm1607, %v4091, 0
        %v4217 = vsel %vm1607, %v4100, 0
        %v4220 = vsel %vm1607, %v4109, 0
        %v4223 = vsel %vm1607, %v4118, 0
        %v4226 = vsel %vm1607, %v4127, 0
        %v4229 = vsel %vm1607, %v4136, 0
        %v4232 = vsel %vm1607, %v4145, 0
        %v4235 = vsel %vm1607, %v4154, 0
        %v4238 = vsel %vm1607, %v4163, 0
        %v4241 = vsel %vm1607, %v4172, 0
        %v4244 = vsel %vm1607, %v4181, 0
        %v4247 = vsel %vm1607, %v4190, 0
        %v4250 = vsel %vm1662, %v4194, 0
        %4252 = vmatprep.subr.bf16.mxu0 0
        %4253 = vmatpush1.bf16.msra.mxu0 %v4250
        %4254 = vmatprep.subr.bf16.mxu0 0
        %4255 = vmatpush1.bf16.msra.mxu0 0
        %4256 = vmatprep.subr.bf16.mxu0 0
        %4257 = vmatpush1.bf16.msra.mxu0 0
        %4258 = vmatprep.subr.bf16.mxu0 0
        %4259 = vmatpush1.bf16.msra.mxu0 0
        %4260 = vmatprep.subr.bf16.mxu0 0
        %4261 = vmatpush1.bf16.msra.mxu0 0
        %4262 = vmatprep.subr.bf16.mxu0 0
        %4263 = vmatpush1.bf16.msra.mxu0 0
        %4264 = vmatprep.subr.bf16.mxu0 0
        %4265 = vmatpush1.bf16.msra.mxu0 0
        %4266 = vmatprep.subr.bf16.mxu0 0
        %4267 = vmatpush1.bf16.msra.mxu0 0
        %4268 = vmatprep.subr.bf16.mxu0 0
        %4269 = vmatpush1.bf16.msra.mxu0 0
        %4270 = vmatprep.subr.bf16.mxu0 0
        %4271 = vmatpush1.bf16.msra.mxu0 0
        %4272 = vmatprep.subr.bf16.mxu0 0
        %4273 = vmatpush1.bf16.msra.mxu0 0
        %4274 = vmatprep.subr.bf16.mxu0 0
        %4275 = vmatpush1.bf16.msra.mxu0 0
        %4276 = vmatprep.subr.bf16.mxu0 0
        %4277 = vmatpush1.bf16.msra.mxu0 0
        %4278 = vmatprep.subr.bf16.mxu0 0
        %4279 = vmatpush1.bf16.msra.mxu0 0
        %4280 = vmatprep.subr.bf16.mxu0 0
        %4281 = vmatpush1.bf16.msra.mxu0 0
        %4282 = vmatprep.subr.bf16.mxu0 0
        %4283 = vmatpush1.bf16.msra.mxu0 0
        %4284 = vmatprep.mubr.bf16.mxu0 0
        %4285 = vmatmul.mubr.bf16.gmra.mrb[0].mxu0 %v4196
        %v4286 = vpop.f32.mrb[0].mxu0
        %v4287 = vadd.f32 0.0, %v4286
        %v4288 = vpop.f32.mrb[0].mxu0
        %v4289 = vpop.f32.mrb[0].mxu0
        %v4290 = vadd.f32 0.0, %v4289
        %v4291 = vpop.f32.mrb[0].mxu0
        %4292 = vmatprep.mubr.bf16.mxu0 0
        %4293 = vmatmul.mubr.bf16.gmra.mrb[0].mxu0 %v4199
        %v4294 = vpop.f32.mrb[0].mxu0
        %v4295 = vadd.f32 0.0, %v4294
        %v4296 = vpop.f32.mrb[0].mxu0
        %v4297 = vpop.f32.mrb[0].mxu0
        %v4298 = vadd.f32 0.0, %v4297
        %v4299 = vpop.f32.mrb[0].mxu0
        %4300 = vmatprep.mubr.bf16.mxu0 0
        %4301 = vmatmul.mubr.bf16.gmra.mrb[0].mxu0 %v4202
        %v4302 = vpop.f32.mrb[0].mxu0
        %v4303 = vadd.f32 0.0, %v4302
        %v4304 = vpop.f32.mrb[0].mxu0
        %v4305 = vpop.f32.mrb[0].mxu0
        %v4306 = vadd.f32 0.0, %v4305
        %v4307 = vpop.f32.mrb[0].mxu0
        %4308 = vmatprep.mubr.bf16.mxu0 0
        %4309 = vmatmul.mubr.bf16.gmra.mrb[0].mxu0 %v4205
        %v4310 = vpop.f32.mrb[0].mxu0
        %v4311 = vadd.f32 0.0, %v4310
        %v4312 = vpop.f32.mrb[0].mxu0
        %v4313 = vpop.f32.mrb[0].mxu0
        %v4314 = vadd.f32 0.0, %v4313
        %v4315 = vpop.f32.mrb[0].mxu0
        %4316 = vmatprep.mubr.bf16.mxu0 0
        %4317 = vmatmul.mubr.bf16.gmra.mrb[0].mxu0 %v4208
        %v4318 = vpop.f32.mrb[0].mxu0
        %v4319 = vadd.f32 0.0, %v4318
        %v4320 = vpop.f32.mrb[0].mxu0
        %v4321 = vpop.f32.mrb[0].mxu0
        %v4322 = vadd.f32 0.0, %v4321
        %v4323 = vpop.f32.mrb[0].mxu0
        %4324 = vmatprep.mubr.bf16.mxu0 0
        %4325 = vmatmul.mubr.bf16.gmra.mrb[0].mxu0 %v4211
        %v4326 = vpop.f32.mrb[0].mxu0
        %v4327 = vadd.f32 0.0, %v4326
        %v4328 = vpop.f32.mrb[0].mxu0
        %v4329 = vpop.f32.mrb[0].mxu0
        %v4330 = vadd.f32 0.0, %v4329
        %v4331 = vpop.f32.mrb[0].mxu0
        %4332 = vmatprep.mubr.bf16.mxu0 0
        %4333 = vmatmul.mubr.bf16.gmra.mrb[0].mxu0 %v4214
        %v4334 = vpop.f32.mrb[0].mxu0
        %v4335 = vadd.f32 0.0, %v4334
        %v4336 = vpop.f32.mrb[0].mxu0
        %v4337 = vpop.f32.mrb[0].mxu0
        %v4338 = vadd.f32 0.0, %v4337
        %v4339 = vpop.f32.mrb[0].mxu0
        %4340 = vmatprep.mubr.bf16.mxu0 0
        %4341 = vmatmul.mubr.bf16.gmra.mrb[0].mxu0 %v4217
        %v4342 = vpop.f32.mrb[0].mxu0
        %v4343 = vadd.f32 0.0, %v4342
        %v4344 = vpop.f32.mrb[0].mxu0
        %v4345 = vpop.f32.mrb[0].mxu0
        %v4346 = vadd.f32 0.0, %v4345
        %v4347 = vpop.f32.mrb[0].mxu0
        %4348 = vmatprep.mubr.bf16.mxu0 0
        %4349 = vmatmul.mubr.bf16.gmra.mrb[0].mxu0 %v4220
        %v4350 = vpop.f32.mrb[0].mxu0
        %v4351 = vadd.f32 0.0, %v4350
        %v4352 = vpop.f32.mrb[0].mxu0
        %v4353 = vpop.f32.mrb[0].mxu0
        %v4354 = vadd.f32 0.0, %v4353
        %v4355 = vpop.f32.mrb[0].mxu0
        %4356 = vmatprep.mubr.bf16.mxu0 0
        %4357 = vmatmul.mubr.bf16.gmra.mrb[0].mxu0 %v4223
        %v4358 = vpop.f32.mrb[0].mxu0
        %v4359 = vadd.f32 0.0, %v4358
        %v4360 = vpop.f32.mrb[0].mxu0
        %v4361 = vpop.f32.mrb[0].mxu0
        %v4362 = vadd.f32 0.0, %v4361
        %v4363 = vpop.f32.mrb[0].mxu0
        %4364 = vmatprep.mubr.bf16.mxu0 0
        %4365 = vmatmul.mubr.bf16.gmra.mrb[0].mxu0 %v4226
        %v4366 = vpop.f32.mrb[0].mxu0
        %v4367 = vadd.f32 0.0, %v4366
        %v4368 = vpop.f32.mrb[0].mxu0
        %v4369 = vpop.f32.mrb[0].mxu0
        %v4370 = vadd.f32 0.0, %v4369
        %v4371 = vpop.f32.mrb[0].mxu0
        %4372 = vmatprep.mubr.bf16.mxu0 0
        %4373 = vmatmul.mubr.bf16.gmra.mrb[0].mxu0 %v4229
        %v4374 = vpop.f32.mrb[0].mxu0
        %v4375 = vadd.f32 0.0, %v4374
        %v4376 = vpop.f32.mrb[0].mxu0
        %v4377 = vpop.f32.mrb[0].mxu0
        %v4378 = vadd.f32 0.0, %v4377
        %v4379 = vpop.f32.mrb[0].mxu0
        %4380 = vmatprep.mubr.bf16.mxu0 0
        %4381 = vmatmul.mubr.bf16.gmra.mrb[0].mxu0 %v4232
        %v4382 = vpop.f32.mrb[0].mxu0
        %v4383 = vadd.f32 0.0, %v4382
        %v4384 = vpop.f32.mrb[0].mxu0
        %v4385 = vpop.f32.mrb[0].mxu0
        %v4386 = vadd.f32 0.0, %v4385
        %v4387 = vpop.f32.mrb[0].mxu0
        %4388 = vmatprep.mubr.bf16.mxu0 0
        %4389 = vmatmul.mubr.bf16.gmra.mrb[0].mxu0 %v4235
        %v4390 = vpop.f32.mrb[0].mxu0
        %v4391 = vadd.f32 0.0, %v4390
        %v4392 = vpop.f32.mrb[0].mxu0
        %v4393 = vpop.f32.mrb[0].mxu0
        %v4394 = vadd.f32 0.0, %v4393
        %v4395 = vpop.f32.mrb[0].mxu0
        %4396 = vmatprep.mubr.bf16.mxu0 0
        %4397 = vmatmul.mubr.bf16.gmra.mrb[0].mxu0 %v4238
        %v4398 = vpop.f32.mrb[0].mxu0
        %v4399 = vadd.f32 0.0, %v4398
        %v4400 = vpop.f32.mrb[0].mxu0
        %v4401 = vpop.f32.mrb[0].mxu0
        %v4402 = vadd.f32 0.0, %v4401
        %v4403 = vpop.f32.mrb[0].mxu0
        %4404 = vmatprep.mubr.bf16.mxu0 0
        %4405 = vmatmul.mubr.bf16.gmra.mrb[0].mxu0 %v4241
        %v4406 = vpop.f32.mrb[0].mxu0
        %v4407 = vadd.f32 0.0, %v4406
        %v4408 = vpop.f32.mrb[0].mxu0
        %v4409 = vpop.f32.mrb[0].mxu0
        %v4410 = vadd.f32 0.0, %v4409
        %v4411 = vpop.f32.mrb[0].mxu0
        %4412 = vmatprep.mubr.bf16.mxu0 0
        %4413 = vmatmul.mubr.bf16.gmra.mrb[0].mxu0 %v4244
        %v4414 = vpop.f32.mrb[0].mxu0
        %v4415 = vadd.f32 0.0, %v4414
        %v4416 = vpop.f32.mrb[0].mxu0
        %v4417 = vpop.f32.mrb[0].mxu0
        %v4418 = vadd.f32 0.0, %v4417
        %v4419 = vpop.f32.mrb[0].mxu0
        %4420 = vmatprep.mubr.bf16.mxu0 0
        %4421 = vmatmul.mubr.bf16.gmra.mrb[0].mxu0 %v4247
        %v4422 = vpop.f32.mrb[0].mxu0
        %v4423 = vadd.f32 0.0, %v4422
        %v4424 = vpop.f32.mrb[0].mxu0
        %v4425 = vpop.f32.mrb[0].mxu0
        %v4426 = vadd.f32 0.0, %v4425
        %v4427 = vpop.f32.mrb[0].mxu0
        %4428 = vdwg.mxu0
        %v4429 = vadd.f32 %v3979, %v4287
        %v4430 = vadd.f32 %v3980, %v4290
        %v4431 = vadd.f32 %v3981, %v4295
        %v4432 = vadd.f32 %v3982, %v4298
        %v4433 = vadd.f32 %v3983, %v4303
        %v4434 = vadd.f32 %v3984, %v4306
        %v4435 = vadd.f32 %v3985, %v4311
        %v4436 = vadd.f32 %v3986, %v4314
        %v4437 = vadd.f32 %v3987, %v4319
        %v4438 = vadd.f32 %v3988, %v4322
        %v4439 = vadd.f32 %v3989, %v4327
        %v4440 = vadd.f32 %v3990, %v4330
        %v4441 = vadd.f32 %v3991, %v4335
        %v4442 = vadd.f32 %v3992, %v4338
        %v4443 = vadd.f32 %v3993, %v4343
        %v4444 = vadd.f32 %v3994, %v4346
        %v4445 = vadd.f32 %v3995, %v4351
        %v4446 = vadd.f32 %v3996, %v4354
        %v4447 = vadd.f32 %v3997, %v4359
        %v4448 = vadd.f32 %v3998, %v4362
        %v4449 = vadd.f32 %v3999, %v4367
        %v4450 = vadd.f32 %v4000, %v4370
        %v4451 = vadd.f32 %v4001, %v4375
        %v4452 = vadd.f32 %v4002, %v4378
        %v4453 = vadd.f32 %v4003, %v4383
        %v4454 = vadd.f32 %v4004, %v4386
        %v4455 = vadd.f32 %v4005, %v4391
        %v4456 = vadd.f32 %v4006, %v4394
        %v4457 = vadd.f32 %v4007, %v4399
        %v4458 = vadd.f32 %v4008, %v4402
        %v4459 = vadd.f32 %v4009, %v4407
        %v4460 = vadd.f32 %v4010, %v4410
        %v4461 = vadd.f32 %v4011, %v4415
        %v4462 = vadd.f32 %v4012, %v4418
        %v4463 = vadd.f32 %v4013, %v4423
        %v4464 = vadd.f32 %v4014, %v4426
        %v4465 = vld [vmem:[#allocation2 + $0x10] sm:$0x8]
        %v4466 = vld [vmem:[#allocation9 + $0x10] sm:$0x3]
        %v4468 = vunpack.c.l.b16 %v4465
        %v4469 = vpack.c.b16 %v3653, %v4468
        %vm4470 = vcmask 1044480
        %v4471 = vrot.slane %v4469, 3
        %v4472 = vrot.slane %v3690, 3
        %v4473 = vsel %vm4470, %v4471, %v4472
        %v4474 = vrot.slane %v3691, 3
        %v4475 = vsel %vm4470, %v4472, %v4474
        %v4476 = vrot.slane %v3692, 3
        %v4477 = vsel %vm4470, %v4474, %v4476
        %v4478 = vrot.slane %v3693, 3
        %v4479 = vsel %vm4470, %v4476, %v4478
        %v4480 = vrot.slane %v3694, 3
        %v4481 = vsel %vm4470, %v4478, %v4480
        %v4482 = vrot.slane %v3695, 3
        %v4483 = vsel %vm4470, %v4480, %v4482
        %v4484 = vrot.slane %v3696, 3
        %v4485 = vsel %vm4470, %v4482, %v4484
        %v4486 = vrot.slane %v3697, 3
        %v4487 = vsel %vm4470, %v4484, %v4486
        %v4488 = vrot.slane %v3698, 3
        %v4489 = vsel %vm4470, %v4486, %v4488
        %v4490 = vrot.slane %v3699, 3
        %v4491 = vsel %vm4470, %v4488, %v4490
        %v4492 = vrot.slane %v3700, 3
        %v4493 = vsel %vm4470, %v4490, %v4492
        %v4494 = vrot.slane %v3701, 3
        %v4495 = vsel %vm4470, %v4492, %v4494
        %v4496 = vrot.slane %v3702, 3
        %v4497 = vsel %vm4470, %v4494, %v4496
        %v4498 = vrot.slane %v3703, 3
        %v4499 = vsel %vm4470, %v4496, %v4498
        %v4500 = vrot.slane %v3704, 3
        %v4501 = vsel %vm4470, %v4498, %v4500
        %v4502 = vrot.slane %v3705, 3
        %v4503 = vsel %vm4470, %v4500, %v4502
        %v4504 = vrot.slane %v3706, 3
        %v4505 = vsel %vm4470, %v4502, %v4504
        %v4506 = vrot.slane %v4019, 3
        %v4507 = vsel %vm4470, %v4504, %v4506
        %v4509 = vsel %vm1607, %v4473, 0
        %v4512 = vsel %vm1607, %v4475, 0
        %v4515 = vsel %vm1607, %v4477, 0
        %v4518 = vsel %vm1607, %v4479, 0
        %v4521 = vsel %vm1607, %v4481, 0
        %v4524 = vsel %vm1607, %v4483, 0
        %v4527 = vsel %vm1607, %v4485, 0
        %v4530 = vsel %vm1607, %v4487, 0
        %v4533 = vsel %vm1607, %v4489, 0
        %v4536 = vsel %vm1607, %v4491, 0
        %v4539 = vsel %vm1607, %v4493, 0
        %v4542 = vsel %vm1607, %v4495, 0
        %v4545 = vsel %vm1607, %v4497, 0
        %v4548 = vsel %vm1607, %v4499, 0
        %v4551 = vsel %vm1607, %v4501, 0
        %v4554 = vsel %vm1607, %v4503, 0
        %v4557 = vsel %vm1607, %v4505, 0
        %v4560 = vsel %vm1607, %v4507, 0
        %v4563 = vsel %vm1662, %v4466, 0
        %4565 = vmatprep.subr.bf16.mxu0 0
        %4566 = vmatpush1.bf16.msra.mxu0 %v4563
        %4567 = vmatprep.subr.bf16.mxu0 0
        %4568 = vmatpush1.bf16.msra.mxu0 0
        %4569 = vmatprep.subr.bf16.mxu0 0
        %4570 = vmatpush1.bf16.msra.mxu0 0
        %4571 = vmatprep.subr.bf16.mxu0 0
        %4572 = vmatpush1.bf16.msra.mxu0 0
        %4573 = vmatprep.subr.bf16.mxu0 0
        %4574 = vmatpush1.bf16.msra.mxu0 0
        %4575 = vmatprep.subr.bf16.mxu0 0
        %4576 = vmatpush1.bf16.msra.mxu0 0
        %4577 = vmatprep.subr.bf16.mxu0 0
        %4578 = vmatpush1.bf16.msra.mxu0 0
        %4579 = vmatprep.subr.bf16.mxu0 0
        %4580 = vmatpush1.bf16.msra.mxu0 0
        %4581 = vmatprep.subr.bf16.mxu0 0
        %4582 = vmatpush1.bf16.msra.mxu0 0
        %4583 = vmatprep.subr.bf16.mxu0 0
        %4584 = vmatpush1.bf16.msra.mxu0 0
        %4585 = vmatprep.subr.bf16.mxu0 0
        %4586 = vmatpush1.bf16.msra.mxu0 0
        %4587 = vmatprep.subr.bf16.mxu0 0
        %4588 = vmatpush1.bf16.msra.mxu0 0
        %4589 = vmatprep.subr.bf16.mxu0 0
        %4590 = vmatpush1.bf16.msra.mxu0 0
        %4591 = vmatprep.subr.bf16.mxu0 0
        %4592 = vmatpush1.bf16.msra.mxu0 0
        %4593 = vmatprep.subr.bf16.mxu0 0
        %4594 = vmatpush1.bf16.msra.mxu0 0
        %4595 = vmatprep.subr.bf16.mxu0 0
        %4596 = vmatpush1.bf16.msra.mxu0 0
        %4597 = vmatprep.mubr.bf16.mxu0 0
        %4598 = vmatmul.mubr.bf16.gmra.mrb[0].mxu0 %v4509
        %v4599 = vpop.f32.mrb[0].mxu0
        %v4600 = vadd.f32 0.0, %v4599
        %v4601 = vpop.f32.mrb[0].mxu0
        %v4602 = vpop.f32.mrb[0].mxu0
        %v4603 = vadd.f32 0.0, %v4602
        %v4604 = vpop.f32.mrb[0].mxu0
        %4605 = vmatprep.mubr.bf16.mxu0 0
        %4606 = vmatmul.mubr.bf16.gmra.mrb[0].mxu0 %v4512
        %v4607 = vpop.f32.mrb[0].mxu0
        %v4608 = vadd.f32 0.0, %v4607
        %v4609 = vpop.f32.mrb[0].mxu0
        %v4610 = vpop.f32.mrb[0].mxu0
        %v4611 = vadd.f32 0.0, %v4610
        %v4612 = vpop.f32.mrb[0].mxu0
        %4613 = vmatprep.mubr.bf16.mxu0 0
        %4614 = vmatmul.mubr.bf16.gmra.mrb[0].mxu0 %v4515
        %v4615 = vpop.f32.mrb[0].mxu0
        %v4616 = vadd.f32 0.0, %v4615
        %v4617 = vpop.f32.mrb[0].mxu0
        %v4618 = vpop.f32.mrb[0].mxu0
        %v4619 = vadd.f32 0.0, %v4618
        %v4620 = vpop.f32.mrb[0].mxu0
        %4621 = vmatprep.mubr.bf16.mxu0 0
        %4622 = vmatmul.mubr.bf16.gmra.mrb[0].mxu0 %v4518
        %v4623 = vpop.f32.mrb[0].mxu0
        %v4624 = vadd.f32 0.0, %v4623
        %v4625 = vpop.f32.mrb[0].mxu0
        %v4626 = vpop.f32.mrb[0].mxu0
        %v4627 = vadd.f32 0.0, %v4626
        %v4628 = vpop.f32.mrb[0].mxu0
        %4629 = vmatprep.mubr.bf16.mxu0 0
        %4630 = vmatmul.mubr.bf16.gmra.mrb[0].mxu0 %v4521
        %v4631 = vpop.f32.mrb[0].mxu0
        %v4632 = vadd.f32 0.0, %v4631
        %v4633 = vpop.f32.mrb[0].mxu0
        %v4634 = vpop.f32.mrb[0].mxu0
        %v4635 = vadd.f32 0.0, %v4634
        %v4636 = vpop.f32.mrb[0].mxu0
        %4637 = vmatprep.mubr.bf16.mxu0 0
        %4638 = vmatmul.mubr.bf16.gmra.mrb[0].mxu0 %v4524
        %v4639 = vpop.f32.mrb[0].mxu0
        %v4640 = vadd.f32 0.0, %v4639
        %v4641 = vpop.f32.mrb[0].mxu0
        %v4642 = vpop.f32.mrb[0].mxu0
        %v4643 = vadd.f32 0.0, %v4642
        %v4644 = vpop.f32.mrb[0].mxu0
        %4645 = vmatprep.mubr.bf16.mxu0 0
        %4646 = vmatmul.mubr.bf16.gmra.mrb[0].mxu0 %v4527
        %v4647 = vpop.f32.mrb[0].mxu0
        %v4648 = vadd.f32 0.0, %v4647
        %v4649 = vpop.f32.mrb[0].mxu0
        %v4650 = vpop.f32.mrb[0].mxu0
        %v4651 = vadd.f32 0.0, %v4650
        %v4652 = vpop.f32.mrb[0].mxu0
        %4653 = vmatprep.mubr.bf16.mxu0 0
        %4654 = vmatmul.mubr.bf16.gmra.mrb[0].mxu0 %v4530
        %v4655 = vpop.f32.mrb[0].mxu0
        %v4656 = vadd.f32 0.0, %v4655
        %v4657 = vpop.f32.mrb[0].mxu0
        %v4658 = vpop.f32.mrb[0].mxu0
        %v4659 = vadd.f32 0.0, %v4658
        %v4660 = vpop.f32.mrb[0].mxu0
        %4661 = vmatprep.mubr.bf16.mxu0 0
        %4662 = vmatmul.mubr.bf16.gmra.mrb[0].mxu0 %v4533
        %v4663 = vpop.f32.mrb[0].mxu0
        %v4664 = vadd.f32 0.0, %v4663
        %v4665 = vpop.f32.mrb[0].mxu0
        %v4666 = vpop.f32.mrb[0].mxu0
        %v4667 = vadd.f32 0.0, %v4666
        %v4668 = vpop.f32.mrb[0].mxu0
        %4669 = vmatprep.mubr.bf16.mxu0 0
        %4670 = vmatmul.mubr.bf16.gmra.mrb[0].mxu0 %v4536
        %v4671 = vpop.f32.mrb[0].mxu0
        %v4672 = vadd.f32 0.0, %v4671
        %v4673 = vpop.f32.mrb[0].mxu0
        %v4674 = vpop.f32.mrb[0].mxu0
        %v4675 = vadd.f32 0.0, %v4674
        %v4676 = vpop.f32.mrb[0].mxu0
        %4677 = vmatprep.mubr.bf16.mxu0 0
        %4678 = vmatmul.mubr.bf16.gmra.mrb[0].mxu0 %v4539
        %v4679 = vpop.f32.mrb[0].mxu0
        %v4680 = vadd.f32 0.0, %v4679
        %v4681 = vpop.f32.mrb[0].mxu0
        %v4682 = vpop.f32.mrb[0].mxu0
        %v4683 = vadd.f32 0.0, %v4682
        %v4684 = vpop.f32.mrb[0].mxu0
        %4685 = vmatprep.mubr.bf16.mxu0 0
        %4686 = vmatmul.mubr.bf16.gmra.mrb[0].mxu0 %v4542
        %v4687 = vpop.f32.mrb[0].mxu0
        %v4688 = vadd.f32 0.0, %v4687
        %v4689 = vpop.f32.mrb[0].mxu0
        %v4690 = vpop.f32.mrb[0].mxu0
        %v4691 = vadd.f32 0.0, %v4690
        %v4692 = vpop.f32.mrb[0].mxu0
        %4693 = vmatprep.mubr.bf16.mxu0 0
        %4694 = vmatmul.mubr.bf16.gmra.mrb[0].mxu0 %v4545
        %v4695 = vpop.f32.mrb[0].mxu0
        %v4696 = vadd.f32 0.0, %v4695
        %v4697 = vpop.f32.mrb[0].mxu0
        %v4698 = vpop.f32.mrb[0].mxu0
        %v4699 = vadd.f32 0.0, %v4698
        %v4700 = vpop.f32.mrb[0].mxu0
        %4701 = vmatprep.mubr.bf16.mxu0 0
        %4702 = vmatmul.mubr.bf16.gmra.mrb[0].mxu0 %v4548
        %v4703 = vpop.f32.mrb[0].mxu0
        %v4704 = vadd.f32 0.0, %v4703
        %v4705 = vpop.f32.mrb[0].mxu0
        %v4706 = vpop.f32.mrb[0].mxu0
        %v4707 = vadd.f32 0.0, %v4706
        %v4708 = vpop.f32.mrb[0].mxu0
        %4709 = vmatprep.mubr.bf16.mxu0 0
        %4710 = vmatmul.mubr.bf16.gmra.mrb[0].mxu0 %v4551
        %v4711 = vpop.f32.mrb[0].mxu0
        %v4712 = vadd.f32 0.0, %v4711
        %v4713 = vpop.f32.mrb[0].mxu0
        %v4714 = vpop.f32.mrb[0].mxu0
        %v4715 = vadd.f32 0.0, %v4714
        %v4716 = vpop.f32.mrb[0].mxu0
        %4717 = vmatprep.mubr.bf16.mxu0 0
        %4718 = vmatmul.mubr.bf16.gmra.mrb[0].mxu0 %v4554
        %v4719 = vpop.f32.mrb[0].mxu0
        %v4720 = vadd.f32 0.0, %v4719
        %v4721 = vpop.f32.mrb[0].mxu0
        %v4722 = vpop.f32.mrb[0].mxu0
        %v4723 = vadd.f32 0.0, %v4722
        %v4724 = vpop.f32.mrb[0].mxu0
        %4725 = vmatprep.mubr.bf16.mxu0 0
        %4726 = vmatmul.mubr.bf16.gmra.mrb[0].mxu0 %v4557
        %v4727 = vpop.f32.mrb[0].mxu0
        %v4728 = vadd.f32 0.0, %v4727
        %v4729 = vpop.f32.mrb[0].mxu0
        %v4730 = vpop.f32.mrb[0].mxu0
        %v4731 = vadd.f32 0.0, %v4730
        %v4732 = vpop.f32.mrb[0].mxu0
        %4733 = vmatprep.mubr.bf16.mxu0 0
        %4734 = vmatmul.mubr.bf16.gmra.mrb[0].mxu0 %v4560
        %v4735 = vpop.f32.mrb[0].mxu0
        %v4736 = vadd.f32 0.0, %v4735
        %v4737 = vpop.f32.mrb[0].mxu0
        %v4738 = vpop.f32.mrb[0].mxu0
        %v4739 = vadd.f32 0.0, %v4738
        %v4740 = vpop.f32.mrb[0].mxu0
        %4741 = vdwg.mxu0
        %v4742 = vadd.f32 %v4429, %v4600
        %v4743 = vadd.f32 %v4430, %v4603
        %v4744 = vadd.f32 %v4431, %v4608
        %v4745 = vadd.f32 %v4432, %v4611
        %v4746 = vadd.f32 %v4433, %v4616
        %v4747 = vadd.f32 %v4434, %v4619
        %v4748 = vadd.f32 %v4435, %v4624
        %v4749 = vadd.f32 %v4436, %v4627
        %v4750 = vadd.f32 %v4437, %v4632
        %v4751 = vadd.f32 %v4438, %v4635
        %v4752 = vadd.f32 %v4439, %v4640
        %v4753 = vadd.f32 %v4440, %v4643
        %v4754 = vadd.f32 %v4441, %v4648
        %v4755 = vadd.f32 %v4442, %v4651
        %v4756 = vadd.f32 %v4443, %v4656
        %v4757 = vadd.f32 %v4444, %v4659
        %v4758 = vadd.f32 %v4445, %v4664
        %v4759 = vadd.f32 %v4446, %v4667
        %v4760 = vadd.f32 %v4447, %v4672
        %v4761 = vadd.f32 %v4448, %v4675
        %v4762 = vadd.f32 %v4449, %v4680
        %v4763 = vadd.f32 %v4450, %v4683
        %v4764 = vadd.f32 %v4451, %v4688
        %v4765 = vadd.f32 %v4452, %v4691
        %v4766 = vadd.f32 %v4453, %v4696
        %v4767 = vadd.f32 %v4454, %v4699
        %v4768 = vadd.f32 %v4455, %v4704
        %v4769 = vadd.f32 %v4456, %v4707
        %v4770 = vadd.f32 %v4457, %v4712
        %v4771 = vadd.f32 %v4458, %v4715
        %v4772 = vadd.f32 %v4459, %v4720
        %v4773 = vadd.f32 %v4460, %v4723
        %v4774 = vadd.f32 %v4461, %v4728
        %v4775 = vadd.f32 %v4462, %v4731
        %v4776 = vadd.f32 %v4463, %v4736
        %v4777 = vadd.f32 %v4464, %v4739
        %v4778 = vpack.c.bf16 %v4743, %v4742
        %v4780 = vunpack.c.l.b16 %v4778
        %v4781 = vunpack.c.h.b16 %v4778
        %v4782 = vpack.c.b16 %v4780, %v4780
        %v4783 = vpack.c.b16 %v4781, %v4781
        %4786 = vst.msk [vmem:[%s313] sm:$0xf] %vm329, %v4782
        %4787 = vst.msk [vmem:[%s313 + $0x4] sm:$0xf] %vm329, %v4783
        %v4788 = vpack.c.bf16 %v4745, %v4744
        %v4789 = vpack.c.bf16 %v4746, %v4746
        %v4792 = vunpack.c.l.b16 %v4788
        %v4793 = vunpack.c.h.b16 %v4788
        %v4794 = vunpack.c.l.b16 %v4789
        %v4795 = vpack.c.b16 %v4792, %v4792
        %v4796 = vpack.c.b16 %v4793, %v4793
        %v4797 = vpack.c.b16 %v4794, %v4794
        %vm4798 = vcmask 1042432
        %vm4799 = vcmask 1046532
        %vm4800 = vmor %vm4798, %vm4799
        %v4801 = vrot.slane %v4795, 5
        %v4802 = vrot.slane %v4801, 4
        %v4803 = vrot.slane %v4796, 5
        %v4804 = vsel %vm4800, %v4802, %v4803
        %v4805 = vrot.slane %v4803, 4
        %v4806 = vrot.slane %v4797, 5
        %v4807 = vsel %vm4800, %v4805, %v4806
        %4810 = vst.msk [vmem:[%s313 + $0x8] sm:$0xf] %vm329, %v4804
        %4811 = vst.msk [vmem:[%s313 + $0xc] sm:$0xf] %vm329, %v4807
        %v4812 = vpack.c.bf16 %v4747, %v4746
        %v4813 = vpack.c.bf16 %v4748, %v4748
        %v4816 = vunpack.c.l.b16 %v4812
        %v4817 = vunpack.c.h.b16 %v4812
        %v4818 = vunpack.c.l.b16 %v4813
        %v4819 = vpack.c.b16 %v4816, %v4816
        %v4820 = vpack.c.b16 %v4817, %v4817
        %v4821 = vpack.c.b16 %v4818, %v4818
        %vm4822 = vcmask 1041408
        %vm4823 = vcmask 1045508
        %vm4824 = vmor %vm4822, %vm4823
        %v4825 = vrot.slane %v4819, 6
        %v4826 = vrot.slane %v4825, 4
        %v4827 = vrot.slane %v4820, 6
        %v4828 = vsel %vm4824, %v4826, %v4827
        %v4829 = vrot.slane %v4827, 4
        %v4830 = vrot.slane %v4821, 6
        %v4831 = vsel %vm4824, %v4829, %v4830
        %4834 = vst.msk [vmem:[%s313 + $0x10] sm:$0xf] %vm329, %v4828
        %4835 = vst.msk [vmem:[%s313 + $0x14] sm:$0xf] %vm329, %v4831
        %v4836 = vpack.c.bf16 %v4749, %v4748
        %v4837 = vpack.c.bf16 %v4750, %v4750
        %v4840 = vunpack.c.l.b16 %v4836
        %v4841 = vunpack.c.h.b16 %v4836
        %v4842 = vunpack.c.l.b16 %v4837
        %v4843 = vpack.c.b16 %v4840, %v4840
        %v4844 = vpack.c.b16 %v4841, %v4841
        %v4845 = vpack.c.b16 %v4842, %v4842
        %vm4846 = vcmask 1040384
        %vm4847 = vcmask 1044484
        %vm4848 = vmor %vm4846, %vm4847
        %v4849 = vrot.slane %v4843, 7
        %v4850 = vrot.slane %v4849, 4
        %v4851 = vrot.slane %v4844, 7
        %v4852 = vsel %vm4848, %v4850, %v4851
        %v4853 = vrot.slane %v4851, 4
        %v4854 = vrot.slane %v4845, 7
        %v4855 = vsel %vm4848, %v4853, %v4854
        %4858 = vst.msk [vmem:[%s313 + $0x18] sm:$0xf] %vm329, %v4852
        %4859 = vst.msk [vmem:[%s313 + $0x1c] sm:$0xf] %vm329, %v4855
        %v4860 = vpack.c.bf16 %v4752, %v4751
        %v4862 = vunpack.c.l.b16 %v4860
        %v4863 = vunpack.c.h.b16 %v4860
        %v4864 = vpack.c.b16 %v4862, %v4862
        %v4865 = vpack.c.b16 %v4863, %v4863
        %4868 = vst.msk [vmem:[%s313 + $0x20] sm:$0xf] %vm329, %v4864
        %4869 = vst.msk [vmem:[%s313 + $0x24] sm:$0xf] %vm329, %v4865
        %v4870 = vpack.c.bf16 %v4754, %v4753
        %v4871 = vpack.c.bf16 %v4755, %v4755
        %v4874 = vunpack.c.l.b16 %v4870
        %v4875 = vunpack.c.h.b16 %v4870
        %v4876 = vunpack.c.l.b16 %v4871
        %v4877 = vpack.c.b16 %v4874, %v4874
        %v4878 = vpack.c.b16 %v4875, %v4875
        %v4879 = vpack.c.b16 %v4876, %v4876
        %v4880 = vrot.slane %v4877, 5
        %v4881 = vrot.slane %v4880, 4
        %v4882 = vrot.slane %v4878, 5
        %v4883 = vsel %vm4800, %v4881, %v4882
        %v4884 = vrot.slane %v4882, 4
        %v4885 = vrot.slane %v4879, 5
        %v4886 = vsel %vm4800, %v4884, %v4885
        %4889 = vst.msk [vmem:[%s313 + $0x28] sm:$0xf] %vm329, %v4883
        %4890 = vst.msk [vmem:[%s313 + $0x2c] sm:$0xf] %vm329, %v4886
        %v4891 = vpack.c.bf16 %v4756, %v4755
        %v4892 = vpack.c.bf16 %v4757, %v4757
        %v4895 = vunpack.c.l.b16 %v4891
        %v4896 = vunpack.c.h.b16 %v4891
        %v4897 = vunpack.c.l.b16 %v4892
        %v4898 = vpack.c.b16 %v4895, %v4895
        %v4899 = vpack.c.b16 %v4896, %v4896
        %v4900 = vpack.c.b16 %v4897, %v4897
        %v4901 = vrot.slane %v4898, 6
        %v4902 = vrot.slane %v4901, 4
        %v4903 = vrot.slane %v4899, 6
        %v4904 = vsel %vm4824, %v4902, %v4903
        %v4905 = vrot.slane %v4903, 4
        %v4906 = vrot.slane %v4900, 6
        %v4907 = vsel %vm4824, %v4905, %v4906
        %4910 = vst.msk [vmem:[%s313 + $0x30] sm:$0xf] %vm329, %v4904
        %4911 = vst.msk [vmem:[%s313 + $0x34] sm:$0xf] %vm329, %v4907
        %v4912 = vpack.c.bf16 %v4758, %v4757
        %v4913 = vpack.c.bf16 %v4759, %v4759
        %v4916 = vunpack.c.l.b16 %v4912
        %v4917 = vunpack.c.h.b16 %v4912
        %v4918 = vunpack.c.l.b16 %v4913
        %v4919 = vpack.c.b16 %v4916, %v4916
        %v4920 = vpack.c.b16 %v4917, %v4917
        %v4921 = vpack.c.b16 %v4918, %v4918
        %v4922 = vrot.slane %v4919, 7
        %v4923 = vrot.slane %v4922, 4
        %v4924 = vrot.slane %v4920, 7
        %v4925 = vsel %vm4848, %v4923, %v4924
        %v4926 = vrot.slane %v4924, 4
        %v4927 = vrot.slane %v4921, 7
        %v4928 = vsel %vm4848, %v4926, %v4927
        %4931 = vst.msk [vmem:[%s313 + $0x38] sm:$0xf] %vm329, %v4925
        %4932 = vst.msk [vmem:[%s313 + $0x3c] sm:$0xf] %vm329, %v4928
        %v4933 = vpack.c.bf16 %v4761, %v4760
        %v4935 = vunpack.c.l.b16 %v4933
        %v4936 = vunpack.c.h.b16 %v4933
        %v4937 = vpack.c.b16 %v4935, %v4935
        %v4938 = vpack.c.b16 %v4936, %v4936
        %4941 = vst.msk [vmem:[%s313 + $0x40] sm:$0xf] %vm329, %v4937
        %4942 = vst.msk [vmem:[%s313 + $0x44] sm:$0xf] %vm329, %v4938
        %v4943 = vpack.c.bf16 %v4763, %v4762
        %v4944 = vpack.c.bf16 %v4764, %v4764
        %v4947 = vunpack.c.l.b16 %v4943
        %v4948 = vunpack.c.h.b16 %v4943
        %v4949 = vunpack.c.l.b16 %v4944
        %v4950 = vpack.c.b16 %v4947, %v4947
        %v4951 = vpack.c.b16 %v4948, %v4948
        %v4952 = vpack.c.b16 %v4949, %v4949
        %v4953 = vrot.slane %v4950, 5
        %v4954 = vrot.slane %v4953, 4
        %v4955 = vrot.slane %v4951, 5
        %v4956 = vsel %vm4800, %v4954, %v4955
        %v4957 = vrot.slane %v4955, 4
        %v4958 = vrot.slane %v4952, 5
        %v4959 = vsel %vm4800, %v4957, %v4958
        %4962 = vst.msk [vmem:[%s313 + $0x48] sm:$0xf] %vm329, %v4956
        %4963 = vst.msk [vmem:[%s313 + $0x4c] sm:$0xf] %vm329, %v4959
        %v4964 = vpack.c.bf16 %v4765, %v4764
        %v4965 = vpack.c.bf16 %v4766, %v4766
        %v4968 = vunpack.c.l.b16 %v4964
        %v4969 = vunpack.c.h.b16 %v4964
        %v4970 = vunpack.c.l.b16 %v4965
        %v4971 = vpack.c.b16 %v4968, %v4968
        %v4972 = vpack.c.b16 %v4969, %v4969
        %v4973 = vpack.c.b16 %v4970, %v4970
        %v4974 = vrot.slane %v4971, 6
        %v4975 = vrot.slane %v4974, 4
        %v4976 = vrot.slane %v4972, 6
        %v4977 = vsel %vm4824, %v4975, %v4976
        %v4978 = vrot.slane %v4976, 4
        %v4979 = vrot.slane %v4973, 6
        %v4980 = vsel %vm4824, %v4978, %v4979
        %4983 = vst.msk [vmem:[%s313 + $0x50] sm:$0xf] %vm329, %v4977
        %4984 = vst.msk [vmem:[%s313 + $0x54] sm:$0xf] %vm329, %v4980
        %v4985 = vpack.c.bf16 %v4767, %v4766
        %v4986 = vpack.c.bf16 %v4768, %v4768
        %v4989 = vunpack.c.l.b16 %v4985
        %v4990 = vunpack.c.h.b16 %v4985
        %v4991 = vunpack.c.l.b16 %v4986
        %v4992 = vpack.c.b16 %v4989, %v4989
        %v4993 = vpack.c.b16 %v4990, %v4990
        %v4994 = vpack.c.b16 %v4991, %v4991
        %v4995 = vrot.slane %v4992, 7
        %v4996 = vrot.slane %v4995, 4
        %v4997 = vrot.slane %v4993, 7
        %v4998 = vsel %vm4848, %v4996, %v4997
        %v4999 = vrot.slane %v4997, 4
        %v5000 = vrot.slane %v4994, 7
        %v5001 = vsel %vm4848, %v4999, %v5000
        %5004 = vst.msk [vmem:[%s313 + $0x58] sm:$0xf] %vm329, %v4998
        %5005 = vst.msk [vmem:[%s313 + $0x5c] sm:$0xf] %vm329, %v5001
        %v5006 = vpack.c.bf16 %v4770, %v4769
        %v5008 = vunpack.c.l.b16 %v5006
        %v5009 = vunpack.c.h.b16 %v5006
        %v5010 = vpack.c.b16 %v5008, %v5008
        %v5011 = vpack.c.b16 %v5009, %v5009
        %5014 = vst.msk [vmem:[%s313 + $0x60] sm:$0xf] %vm329, %v5010
        %5015 = vst.msk [vmem:[%s313 + $0x64] sm:$0xf] %vm329, %v5011
        %v5016 = vpack.c.bf16 %v4772, %v4771
        %v5017 = vpack.c.bf16 %v4773, %v4773
        %v5020 = vunpack.c.l.b16 %v5016
        %v5021 = vunpack.c.h.b16 %v5016
        %v5022 = vunpack.c.l.b16 %v5017
        %v5023 = vpack.c.b16 %v5020, %v5020
        %v5024 = vpack.c.b16 %v5021, %v5021
        %v5025 = vpack.c.b16 %v5022, %v5022
        %v5026 = vrot.slane %v5023, 5
        %v5027 = vrot.slane %v5026, 4
        %v5028 = vrot.slane %v5024, 5
        %v5029 = vsel %vm4800, %v5027, %v5028
        %v5030 = vrot.slane %v5028, 4
        %v5031 = vrot.slane %v5025, 5
        %v5032 = vsel %vm4800, %v5030, %v5031
        %5035 = vst.msk [vmem:[%s313 + $0x68] sm:$0xf] %vm329, %v5029
        %5036 = vst.msk [vmem:[%s313 + $0x6c] sm:$0xf] %vm329, %v5032
        %v5037 = vpack.c.bf16 %v4774, %v4773
        %v5038 = vpack.c.bf16 %v4775, %v4775
        %v5041 = vunpack.c.l.b16 %v5037
        %v5042 = vunpack.c.h.b16 %v5037
        %v5043 = vunpack.c.l.b16 %v5038
        %v5044 = vpack.c.b16 %v5041, %v5041
        %v5045 = vpack.c.b16 %v5042, %v5042
        %v5046 = vpack.c.b16 %v5043, %v5043
        %v5047 = vrot.slane %v5044, 6
        %v5048 = vrot.slane %v5047, 4
        %v5049 = vrot.slane %v5045, 6
        %v5050 = vsel %vm4824, %v5048, %v5049
        %v5051 = vrot.slane %v5049, 4
        %v5052 = vrot.slane %v5046, 6
        %v5053 = vsel %vm4824, %v5051, %v5052
        %5056 = vst.msk [vmem:[%s313 + $0x70] sm:$0xf] %vm329, %v5050
        %5057 = vst.msk [vmem:[%s313 + $0x74] sm:$0xf] %vm329, %v5053
        %v5058 = vpack.c.bf16 %v4776, %v4775
        %v5059 = vpack.c.bf16 %v4777, %v4777
        %v5062 = vunpack.c.l.b16 %v5058
        %v5063 = vunpack.c.h.b16 %v5058
        %v5064 = vunpack.c.l.b16 %v5059
        %v5065 = vpack.c.b16 %v5062, %v5062
        %v5066 = vpack.c.b16 %v5063, %v5063
        %v5067 = vpack.c.b16 %v5064, %v5064
        %v5068 = vrot.slane %v5065, 7
        %v5069 = vrot.slane %v5068, 4
        %v5070 = vrot.slane %v5066, 7
        %v5071 = vsel %vm4848, %v5069, %v5070
        %v5072 = vrot.slane %v5070, 4
        %v5073 = vrot.slane %v5067, 7
        %v5074 = vsel %vm4848, %v5072, %v5073
        %5077 = vst.msk [vmem:[%s313 + $0x78] sm:$0xf] %vm329, %v5071
        %5078 = vst.msk [vmem:[%s313 + $0x7c] sm:$0xf] %vm329, %v5074
        %v5079 = vld [vmem:[%s313] sm:$0xf]
        %v5080 = vld [vmem:[%s313 + $0x4] sm:$0xf]
        %v5081 = vld [vmem:[%s313 + $0x8] sm:$0xf]
        %v5082 = vld [vmem:[%s313 + $0xc] sm:$0xf]
        %v5083 = vld [vmem:[%s313 + $0x10] sm:$0xf]
        %v5084 = vld [vmem:[%s313 + $0x14] sm:$0xf]
        %v5085 = vld [vmem:[%s313 + $0x18] sm:$0xf]
        %v5086 = vld [vmem:[%s313 + $0x1c] sm:$0xf]
        %v5087 = vld [vmem:[%s313 + $0x20] sm:$0xf]
        %v5088 = vld [vmem:[%s313 + $0x24] sm:$0xf]
        %v5089 = vld [vmem:[%s313 + $0x28] sm:$0xf]
        %v5090 = vld [vmem:[%s313 + $0x2c] sm:$0xf]
        %v5091 = vld [vmem:[%s313 + $0x30] sm:$0xf]
        %v5092 = vld [vmem:[%s313 + $0x34] sm:$0xf]
        %v5093 = vld [vmem:[%s313 + $0x38] sm:$0xf]
        %v5094 = vld [vmem:[%s313 + $0x3c] sm:$0xf]
        %v5095 = vld [vmem:[%s313 + $0x40] sm:$0xf]
        %v5096 = vld [vmem:[%s313 + $0x44] sm:$0xf]
        %v5097 = vld [vmem:[%s313 + $0x48] sm:$0xf]
        %v5098 = vld [vmem:[%s313 + $0x4c] sm:$0xf]
        %v5099 = vld [vmem:[%s313 + $0x50] sm:$0xf]
        %v5100 = vld [vmem:[%s313 + $0x54] sm:$0xf]
        %v5101 = vld [vmem:[%s313 + $0x58] sm:$0xf]
        %v5102 = vld [vmem:[%s313 + $0x5c] sm:$0xf]
        %v5103 = vld [vmem:[%s313 + $0x60] sm:$0xf]
        %v5104 = vld [vmem:[%s313 + $0x64] sm:$0xf]
        %v5105 = vld [vmem:[%s313 + $0x68] sm:$0xf]
        %v5106 = vld [vmem:[%s313 + $0x6c] sm:$0xf]
        %v5107 = vld [vmem:[%s313 + $0x70] sm:$0xf]
        %v5108 = vld [vmem:[%s313 + $0x74] sm:$0xf]
        %v5109 = vld [vmem:[%s313 + $0x78] sm:$0xf]
        %v5110 = vld [vmem:[%s313 + $0x7c] sm:$0xf]
        %v5111 = vunpack.c.l.bf16 %v5079
        %v5112 = vunpack.c.l.bf16 %v5080
        %v5113 = vunpack.c.l.bf16 %v5081
        %v5114 = vunpack.c.l.bf16 %v5082
        %v5115 = vunpack.c.l.bf16 %v5083
        %v5116 = vunpack.c.l.bf16 %v5084
        %v5117 = vunpack.c.l.bf16 %v5085
        %v5118 = vunpack.c.l.bf16 %v5086
        %v5119 = vunpack.c.l.bf16 %v5087
        %v5120 = vunpack.c.l.bf16 %v5088
        %v5121 = vunpack.c.l.bf16 %v5089
        %v5122 = vunpack.c.l.bf16 %v5090
        %v5123 = vunpack.c.l.bf16 %v5091
        %v5124 = vunpack.c.l.bf16 %v5092
        %v5125 = vunpack.c.l.bf16 %v5093
        %v5126 = vunpack.c.l.bf16 %v5094
        %v5127 = vunpack.c.l.bf16 %v5095
        %v5128 = vunpack.c.l.bf16 %v5096
        %v5129 = vunpack.c.l.bf16 %v5097
        %v5130 = vunpack.c.l.bf16 %v5098
        %v5131 = vunpack.c.l.bf16 %v5099
        %v5132 = vunpack.c.l.bf16 %v5100
        %v5133 = vunpack.c.l.bf16 %v5101
        %v5134 = vunpack.c.l.bf16 %v5102
        %v5135 = vunpack.c.l.bf16 %v5103
        %v5136 = vunpack.c.l.bf16 %v5104
        %v5137 = vunpack.c.l.bf16 %v5105
        %v5138 = vunpack.c.l.bf16 %v5106
        %v5139 = vunpack.c.l.bf16 %v5107
        %v5140 = vunpack.c.l.bf16 %v5108
        %v5141 = vunpack.c.l.bf16 %v5109
        %v5142 = vunpack.c.l.bf16 %v5110
        %v5143 = vsel %vm1607, %v5111, 0.0
        %v5144 = vsel %vm1607, %v5112, 0.0
        %v5145 = vadd.f32 %v5143, %v5144
        %v5146 = vsel %vm1607, %v5113, 0.0
        %v5147 = vadd.f32 %v5145, %v5146
        %v5148 = vsel %vm1607, %v5114, 0.0
        %v5149 = vadd.f32 %v5147, %v5148
        %v5150 = vsel %vm1607, %v5115, 0.0
        %v5151 = vadd.f32 %v5149, %v5150
        %v5152 = vsel %vm1607, %v5116, 0.0
        %v5153 = vadd.f32 %v5151, %v5152
        %v5154 = vsel %vm1607, %v5117, 0.0
        %v5155 = vadd.f32 %v5153, %v5154
        %v5156 = vsel %vm1607, %v5118, 0.0
        %v5157 = vadd.f32 %v5155, %v5156
        %v5158 = vsel %vm1607, %v5119, 0.0
        %v5159 = vadd.f32 %v5157, %v5158
        %v5160 = vsel %vm1607, %v5120, 0.0
        %v5161 = vadd.f32 %v5159, %v5160
        %v5162 = vsel %vm1607, %v5121, 0.0
        %v5163 = vadd.f32 %v5161, %v5162
        %v5164 = vsel %vm1607, %v5122, 0.0
        %v5165 = vadd.f32 %v5163, %v5164
        %v5166 = vsel %vm1607, %v5123, 0.0
        %v5167 = vadd.f32 %v5165, %v5166
        %v5168 = vsel %vm1607, %v5124, 0.0
        %v5169 = vadd.f32 %v5167, %v5168
        %v5170 = vsel %vm1607, %v5125, 0.0
        %v5171 = vadd.f32 %v5169, %v5170
        %v5172 = vsel %vm1607, %v5126, 0.0
        %v5173 = vadd.f32 %v5171, %v5172
        %v5174 = vsel %vm1607, %v5127, 0.0
        %v5175 = vadd.f32 %v5173, %v5174
        %v5176 = vsel %vm1607, %v5128, 0.0
        %v5177 = vadd.f32 %v5175, %v5176
        %v5178 = vsel %vm1607, %v5129, 0.0
        %v5179 = vadd.f32 %v5177, %v5178
        %v5180 = vsel %vm1607, %v5130, 0.0
        %v5181 = vadd.f32 %v5179, %v5180
        %v5182 = vsel %vm1607, %v5131, 0.0
        %v5183 = vadd.f32 %v5181, %v5182
        %v5184 = vsel %vm1607, %v5132, 0.0
        %v5185 = vadd.f32 %v5183, %v5184
        %v5186 = vsel %vm1607, %v5133, 0.0
        %v5187 = vadd.f32 %v5185, %v5186
        %v5188 = vsel %vm1607, %v5134, 0.0
        %v5189 = vadd.f32 %v5187, %v5188
        %v5190 = vsel %vm1607, %v5135, 0.0
        %v5191 = vadd.f32 %v5189, %v5190
        %v5192 = vsel %vm1607, %v5136, 0.0
        %v5193 = vadd.f32 %v5191, %v5192
        %v5194 = vsel %vm1607, %v5137, 0.0
        %v5195 = vadd.f32 %v5193, %v5194
        %v5196 = vsel %vm1607, %v5138, 0.0
        %v5197 = vadd.f32 %v5195, %v5196
        %v5198 = vsel %vm1607, %v5139, 0.0
        %v5199 = vadd.f32 %v5197, %v5198
        %v5200 = vsel %vm1607, %v5140, 0.0
        %v5201 = vadd.f32 %v5199, %v5200
        %v5202 = vsel %vm1607, %v5141, 0.0
        %v5203 = vadd.f32 %v5201, %v5202
        %v5204 = vsel %vm1607, %v5142, 0.0
        %v5205 = vadd.f32 %v5203, %v5204
        %v5206 = vrot.slane %v5205, 4
        %v5207 = vadd.f32 %v5205, %v5206
        %v5208 = vrot.slane %v5207, 2
        %v5209 = vadd.f32 %v5207, %v5208
        %v5210 = vrot.slane %v5209, 1
        %v5211 = vadd.f32 %v5209, %v5210
        %vm5212 = vcmask 24576
        %5213 = vst.msk [vmem:[%s319] sm:$0x1] %vm5212, %v5211
        %v5214 = vmul.f32 %v5111, %v5111
        %v5215 = vmul.f32 %v5112, %v5112
        %v5216 = vmul.f32 %v5113, %v5113
        %v5217 = vmul.f32 %v5114, %v5114
        %v5218 = vmul.f32 %v5115, %v5115
        %v5219 = vmul.f32 %v5116, %v5116
        %v5220 = vmul.f32 %v5117, %v5117
        %v5221 = vmul.f32 %v5118, %v5118
        %v5222 = vmul.f32 %v5119, %v5119
        %v5223 = vmul.f32 %v5120, %v5120
        %v5224 = vmul.f32 %v5121, %v5121
        %v5225 = vmul.f32 %v5122, %v5122
        %v5226 = vmul.f32 %v5123, %v5123
        %v5227 = vmul.f32 %v5124, %v5124
        %v5228 = vmul.f32 %v5125, %v5125
        %v5229 = vmul.f32 %v5126, %v5126
        %v5230 = vmul.f32 %v5127, %v5127
        %v5231 = vmul.f32 %v5128, %v5128
        %v5232 = vmul.f32 %v5129, %v5129
        %v5233 = vmul.f32 %v5130, %v5130
        %v5234 = vmul.f32 %v5131, %v5131
        %v5235 = vmul.f32 %v5132, %v5132
        %v5236 = vmul.f32 %v5133, %v5133
        %v5237 = vmul.f32 %v5134, %v5134
        %v5238 = vmul.f32 %v5135, %v5135
        %v5239 = vmul.f32 %v5136, %v5136
        %v5240 = vmul.f32 %v5137, %v5137
        %v5241 = vmul.f32 %v5138, %v5138
        %v5242 = vmul.f32 %v5139, %v5139
        %v5243 = vmul.f32 %v5140, %v5140
        %v5244 = vmul.f32 %v5141, %v5141
        %v5245 = vmul.f32 %v5142, %v5142
        %v5246 = vsel %vm1607, %v5214, 0.0
        %v5247 = vsel %vm1607, %v5215, 0.0
        %v5248 = vadd.f32 %v5246, %v5247
        %v5249 = vsel %vm1607, %v5216, 0.0
        %v5250 = vadd.f32 %v5248, %v5249
        %v5251 = vsel %vm1607, %v5217, 0.0
        %v5252 = vadd.f32 %v5250, %v5251
        %v5253 = vsel %vm1607, %v5218, 0.0
        %v5254 = vadd.f32 %v5252, %v5253
        %v5255 = vsel %vm1607, %v5219, 0.0
        %v5256 = vadd.f32 %v5254, %v5255
        %v5257 = vsel %vm1607, %v5220, 0.0
        %v5258 = vadd.f32 %v5256, %v5257
        %v5259 = vsel %vm1607, %v5221, 0.0
        %v5260 = vadd.f32 %v5258, %v5259
        %v5261 = vsel %vm1607, %v5222, 0.0
        %v5262 = vadd.f32 %v5260, %v5261
        %v5263 = vsel %vm1607, %v5223, 0.0
        %v5264 = vadd.f32 %v5262, %v5263
        %v5265 = vsel %vm1607, %v5224, 0.0
        %v5266 = vadd.f32 %v5264, %v5265
        %v5267 = vsel %vm1607, %v5225, 0.0
        %v5268 = vadd.f32 %v5266, %v5267
        %v5269 = vsel %vm1607, %v5226, 0.0
        %v5270 = vadd.f32 %v5268, %v5269
        %v5271 = vsel %vm1607, %v5227, 0.0
        %v5272 = vadd.f32 %v5270, %v5271
        %v5273 = vsel %vm1607, %v5228, 0.0
        %v5274 = vadd.f32 %v5272, %v5273
        %v5275 = vsel %vm1607, %v5229, 0.0
        %v5276 = vadd.f32 %v5274, %v5275
        %v5277 = vsel %vm1607, %v5230, 0.0
        %v5278 = vadd.f32 %v5276, %v5277
        %v5279 = vsel %vm1607, %v5231, 0.0
        %v5280 = vadd.f32 %v5278, %v5279
        %v5281 = vsel %vm1607, %v5232, 0.0
        %v5282 = vadd.f32 %v5280, %v5281
        %v5283 = vsel %vm1607, %v5233, 0.0
        %v5284 = vadd.f32 %v5282, %v5283
        %v5285 = vsel %vm1607, %v5234, 0.0
        %v5286 = vadd.f32 %v5284, %v5285
        %v5287 = vsel %vm1607, %v5235, 0.0
        %v5288 = vadd.f32 %v5286, %v5287
        %v5289 = vsel %vm1607, %v5236, 0.0
        %v5290 = vadd.f32 %v5288, %v5289
        %v5291 = vsel %vm1607, %v5237, 0.0
        %v5292 = vadd.f32 %v5290, %v5291
        %v5293 = vsel %vm1607, %v5238, 0.0
        %v5294 = vadd.f32 %v5292, %v5293
        %v5295 = vsel %vm1607, %v5239, 0.0
        %v5296 = vadd.f32 %v5294, %v5295
        %v5297 = vsel %vm1607, %v5240, 0.0
        %v5298 = vadd.f32 %v5296, %v5297
        %v5299 = vsel %vm1607, %v5241, 0.0
        %v5300 = vadd.f32 %v5298, %v5299
        %v5301 = vsel %vm1607, %v5242, 0.0
        %v5302 = vadd.f32 %v5300, %v5301
        %v5303 = vsel %vm1607, %v5243, 0.0
        %v5304 = vadd.f32 %v5302, %v5303
        %v5305 = vsel %vm1607, %v5244, 0.0
        %v5306 = vadd.f32 %v5304, %v5305
        %v5307 = vsel %vm1607, %v5245, 0.0
        %v5308 = vadd.f32 %v5306, %v5307
        %v5309 = vrot.slane %v5308, 4
        %v5310 = vadd.f32 %v5308, %v5309
        %v5311 = vrot.slane %v5310, 2
        %v5312 = vadd.f32 %v5310, %v5311
        %v5313 = vrot.slane %v5312, 1
        %v5314 = vadd.f32 %v5312, %v5313
        %5315 = vst.msk [vmem:[%s325] sm:$0x1] %vm5212, %v5314
        %s5316 = sand.u32 %s126, 1
        %s5317 = scalar_lea.sflag [#allocation5], %s5316
        %s5318 = sand.u32 %s126, 1
        %s5319 = smul.addr %s5318, 128
        %s5320 = scalar_lea.vmem [#allocation11], %s5319
        %s5321 = sand.u32 %s29, 1
        %s5322 = scalar_lea.sflag [#allocation13], %s5321
        %s5323 = sand.u32 %s152, 1
        %s5324 = scalar_lea.vmem [#allocation12], %s5323
        %s5325 = sand.u32 %s29, 1
        %s5326 = scalar_lea.sflag [#allocation13], %s5325
        %s5327 = sand.u32 %s178, 1
        %s5328 = scalar_lea.vmem [#allocation14], %s5327
        // Predicated region
        $region53: #{resnet_block_forward.5} parent=35 // pred_check
          %p5329 = pneg %p136
        $region54: #{resnet_block_forward.5} parent=35 // pred_check_branch
          %5331 = sbr.rel (%p5329) target = $region56
        $region55: #{resnet_block_forward.5} parent=35 // pred_region
          %s5332 = smul.u32 32, %s29
          %s5334 = ssub.s32 2048, 2048
          %5335 = vsyncadd %s5317, %s5334
          %s5336 = smul.addr %s5332, 64
          %s5337 = scalar_lea.hbm %s4, %s5336
          %s5338 = sshll.u32 %s5320, 4
          %s5339 = int_to_ptr.vmem [resolvable:$true] %s5338
          %5344 = dma.vmem_to_hbm [thread:$0]  %s5339, 2048, %s5337, %s5317, 64, 64, 4
        $region56: #{resnet_block_forward.5} parent=35 // pred_fallthru
          _
        // Predicated region
        $region57: #{resnet_block_forward.5} parent=35 // pred_check
          %p5345 = pneg %p162
        $region58: #{resnet_block_forward.5} parent=35 // pred_check_branch
          %5347 = sbr.rel (%p5345) target = $region60
        $region59: #{resnet_block_forward.5} parent=35 // pred_region
          %s5349 = ssub.s32 16, 16
          %5350 = vsyncadd %s5322, %s5349
          %s5351 = smul.addr %s29, 16
          %s5352 = scalar_lea.hbm %s5, %s5351
          %s5354 = sshll.u32 %s5324, 4
          %s5355 = int_to_ptr.vmem [resolvable:$true] %s5354
          %5357 = dma.vmem_to_hbm [thread:$0]  %s5355, 16, %s5352, %s5322
        $region60: #{resnet_block_forward.5} parent=35 // pred_fallthru
          _
        // Predicated region
        $region61: #{resnet_block_forward.5} parent=35 // pred_check
          %p5358 = pneg %p188
        $region62: #{resnet_block_forward.5} parent=35 // pred_check_branch
          %5360 = sbr.rel (%p5358) target = $region64
        $region63: #{resnet_block_forward.5} parent=35 // pred_region
          %s5362 = ssub.s32 16, 16
          %5363 = vsyncadd %s5326, %s5362
          %s5364 = smul.addr %s29, 16
          %s5365 = scalar_lea.hbm %s6, %s5364
          %s5367 = sshll.u32 %s5328, 4
          %s5368 = int_to_ptr.vmem [resolvable:$true] %s5367
          %5370 = dma.vmem_to_hbm [thread:$0]  %s5368, 16, %s5365, %s5326
        $region64: #{resnet_block_forward.5} parent=35 // pred_fallthru
          _
      $region36: #{resnet_block_forward.5} parent=5 // pred_fallthru
        _
      %p5371 = scmp.le.s32.totalorder 2, %s24
      // Predicated region
      $region65: #{resnet_block_forward.5} parent=5 // pred_check
        %p5372 = pneg %p5371
      $region66: #{resnet_block_forward.5} parent=5 // pred_check_branch
        %5374 = sbr.rel (%p5372) target = $region68
      $region67: #{resnet_block_forward.5} parent=5 // pred_region
        %s5375 = ssub.s32 %s24, 2
        // Predicated region
        $region69: #{resnet_block_forward.5} parent=67 // pred_check
          %p5376 = pneg %p142
        $region70: #{resnet_block_forward.5} parent=67 // pred_check_branch
          %5378 = sbr.rel (%p5376) target = $region72
        $region71: #{resnet_block_forward.5} parent=67 // pred_region
          %s5379 = sand.u32 %s127, 1
          %s5380 = scalar_lea.sflag [#allocation5], %s5379
          %s5381 = sand.u32 %s127, 1
          %s5382 = smul.addr %s5381, 128
          %s5383 = scalar_lea.vmem [#allocation11], %s5382
          %5384 = dma.done %s5380, 2048
        $region72: #{resnet_block_forward.5} parent=67 // pred_fallthru
          _
        // Predicated region
        $region73: #{resnet_block_forward.5} parent=67 // pred_check
          %p5385 = pneg %p168
        $region74: #{resnet_block_forward.5} parent=67 // pred_check_branch
          %5387 = sbr.rel (%p5385) target = $region76
        $region75: #{resnet_block_forward.5} parent=67 // pred_region
          %s5388 = sand.u32 %s30, 1
          %s5389 = scalar_lea.sflag [#allocation13], %s5388
          %s5390 = sand.u32 %s153, 1
          %s5391 = scalar_lea.vmem [#allocation12], %s5390
          %5392 = dma.done %s5389, 16
        $region76: #{resnet_block_forward.5} parent=67 // pred_fallthru
          _
        // Predicated region
        $region77: #{resnet_block_forward.5} parent=67 // pred_check
          %p5393 = pneg %p194
        $region78: #{resnet_block_forward.5} parent=67 // pred_check_branch
          %5395 = sbr.rel (%p5393) target = $region80
        $region79: #{resnet_block_forward.5} parent=67 // pred_region
          %s5396 = sand.u32 %s30, 1
          %s5397 = scalar_lea.sflag [#allocation13], %s5396
          %s5398 = sand.u32 %s179, 1
          %s5399 = scalar_lea.vmem [#allocation14], %s5398
          %5400 = dma.done %s5397, 16
        $region80: #{resnet_block_forward.5} parent=67 // pred_fallthru
          _
      $region68: #{resnet_block_forward.5} parent=5 // pred_fallthru
        _
    $region6: #{resnet_block_forward.5} parent=1 // loop_footer
      %s28 = sadd.s32 1, %s24
    $region7: #{resnet_block_forward.5} parent=1 // loop_footer_branch
      %23 = sbr.rel target = $region3
    $region8: #{resnet_block_forward.5} parent=1 // loop_exit
      _
    %5401 = vsyncpa [#allocation4], 1
    %s5402 = scalar_lea.sflag [#allocation4], 1
    %5403 = vsyncpa %s5402, 1
    %5404 = vsyncpa [#allocation7], 1
    %5405 = vsyncpa [#allocation10], 1
    %5406 = vsyncpa [#allocation5], 1
    %s5407 = scalar_lea.sflag [#allocation5], 1
    %5408 = vsyncpa %s5407, 1
    %5409 = vsyncpa [#allocation13], 1
    %s5410 = scalar_lea.sflag [#allocation13], 1
    %5411 = vsyncpa %s5410, 1

</llo_original>
